<compile_context>
chip_gen: v6e
topology: v6e:2x2x1
jax: 0.10.0
libtpu: 0.0.40
codegen_flags: <defaults>
</compile_context>

<pallas_src>
import numpy as np
import jax
import jax.numpy as jnp
from jax.experimental import pallas as pl
from jax.experimental.pallas import tpu as pltpu

_EPS = 1e-5


# ---------------------------------------------------------------------------
# Fused forward kernel (one grid step = one batch block)
# ---------------------------------------------------------------------------
def _autoencoder_kernel(x_ref, w1_ref, p1_ref, w2_ref, p2_ref, w3_ref, p3_ref,
                        wc1_ref, bc1_ref, wc2_ref, bc2_ref,
                        wd1_ref, pd1_ref, wd2_ref, pd2_ref, wd3_ref, bd3_ref,
                        g6_ref, g6t_ref, g16_ref, g16t_ref,
                        xrec_ref, y_ref, lat_ref):
    f32, bf16 = jnp.float32, jnp.bfloat16
    nb = x_ref.shape[0]                      # per-block batch (static)

    def mm(a, w_ref):                        # bf16 MXU operands, f32 accumulation
        return jnp.dot(a.astype(bf16), w_ref[...], preferred_element_type=f32)

    def bn_relu(a, p_ref, g_ref, gt_ref, npos):
        """bias + train-mode BatchNorm (biased batch stats) + ReLU on an (nb, L) tile
        whose lanes are ordered (position, channel); p_ref rows = [bias, gamma, beta]
        pre-tiled to the lane layout."""
        bias, gamma, beta = p_ref[0:1, :], p_ref[1:2, :], p_ref[2:3, :]
        a = a + bias
        s = jnp.concatenate([a.sum(axis=0, keepdims=True),
                             (a * a).sum(axis=0, keepdims=True)], axis=0)   # (2, L)
        if g_ref is not None:                # reduce lane groups -> per-channel stats
            s = jnp.dot(s, g_ref[...], preferred_element_type=f32)          # (2, C)
        inv_n = 1.0 / float(nb * npos)
        mean_c = s[0:1, :] * inv_n
        var_c = jnp.maximum(s[1:2, :] * inv_n - mean_c * mean_c, 0.0)
        istd_c = jax.lax.rsqrt(var_c + _EPS)
        ms = jnp.concatenate([mean_c, istd_c], axis=0)                      # (2, C)
        if gt_ref is not None:               # broadcast back to (pos, channel) lanes
            ms = jnp.dot(ms, gt_ref[...], preferred_element_type=f32)       # (2, L)
        scale = gamma * ms[1:2, :]
        shift = beta - ms[0:1, :] * scale
        return jnp.maximum(a * scale + shift, 0.0)

    x = x_ref[...].astype(f32)                                             # (nb, 784)

    # ---- encoder: Conv(1->6,k5,s2) -> Conv(6->16,k5,s2) -> Conv(16->32,k4), +BN+ReLU
    a1 = bn_relu(mm(x, w1_ref), p1_ref, g6_ref, g6t_ref, 144)    # (nb, 864) = (12,12,6)
    a2 = bn_relu(mm(a1, w2_ref), p2_ref, g16_ref, g16t_ref, 16)  # (nb, 256) = (4,4,16)
    lat = bn_relu(mm(a2, w3_ref), p3_ref, None, None, 1)         # (nb, 32)
    lat_ref[...] = lat

    # ---- classifier: Linear(32,20)+ReLU, Linear(20,10)
    h = jnp.maximum(mm(lat, wc1_ref) + bc1_ref[...], 0.0)
    y_ref[...] = mm(h, wc2_ref) + bc2_ref[...]

    # ---- decoder: ReLU -> ConvT(32->16,k4) -> ConvT(16->6,k5,s2,op1)
    #               -> ConvT(6->1,k5,s2,op1) -> Sigmoid
    d0 = jnp.maximum(lat, 0.0)                                    # leading nn.ReLU()
    d1 = bn_relu(mm(d0, wd1_ref), pd1_ref, g16_ref, g16t_ref, 16)   # (nb, 256)
    d2 = bn_relu(mm(d1, wd2_ref), pd2_ref, g6_ref, g6t_ref, 144)    # (nb, 864)
    z = mm(d2, wd3_ref) + bd3_ref[...]                               # (nb, 784)
    xrec_ref[...] = 0.5 * (jnp.tanh(0.5 * z) + 1.0)                  # stable sigmoid


# ---------------------------------------------------------------------------
# One-time host-side weight packing: bake the spatial unrolling of every
# conv / deconv into a dense (in_features, out_features) GEMM matrix.
# Feature layout on both sides is (h, w, c) with the channel fastest.
# ---------------------------------------------------------------------------
def _conv_dense(w, hi, wi, stride):
    """Conv2d weight (Cout,Cin,KH,KW) -> dense (hi*wi*Cin, ho*wo*Cout)."""
    w = np.asarray(w, np.float32)
    cout, cin, kh, kw = w.shape
    ho = (hi - kh) // stride + 1
    wo = (wi - kw) // stride + 1
    m = np.zeros((hi * wi * cin, ho * wo * cout), np.float32)
    oh, ow = np.arange(ho), np.arange(wo)
    out_idx = (oh[:, None] * wo + ow[None, :]) * cout
    for a in range(kh):
        for b in range(kw):
            in_idx = ((oh[:, None] * stride + a) * wi + (ow[None, :] * stride + b)) * cin
            for ci in range(cin):
                for co in range(cout):
                    m[in_idx + ci, out_idx + co] = w[co, ci, a, b]
    return m


def _deconv_dense(w, hi, wi, stride, output_padding):
    """ConvTranspose2d weight (Cin,Cout,KH,KW) -> dense (hi*wi*Cin, ho*wo*Cout)."""
    w = np.asarray(w, np.float32)
    cin, cout, kh, kw = w.shape
    ho = (hi - 1) * stride + kh + output_padding
    wo = (wi - 1) * stride + kw + output_padding
    m = np.zeros((hi * wi * cin, ho * wo * cout), np.float32)
    ih, iw = np.arange(hi), np.arange(wi)
    in_idx = (ih[:, None] * wi + iw[None, :]) * cin
    for a in range(kh):
        for b in range(kw):
            out_idx = ((ih[:, None] * stride + a) * wo + (iw[None, :] * stride + b)) * cout
            for ci in range(cin):
                for co in range(cout):
                    m[in_idx + ci, out_idx + co] = w[ci, co, a, b]
    return m


def _pack_bn(bias, gamma, beta, npos):
    bias, gamma, beta = (np.asarray(v, np.float32) for v in (bias, gamma, beta))
    return jnp.asarray(np.stack([np.tile(bias, npos), np.tile(gamma, npos),
                                 np.tile(beta, npos)], 0))


def _group(npos, c):
    """(npos*c, c) 0/1 matrix reducing the (pos, channel) lane layout to channels."""
    return np.kron(np.ones((npos, 1), np.float32), np.eye(c, dtype=np.float32))


def pack_params(p):
    bf16 = jnp.bfloat16
    pn = {k: np.asarray(jax.device_get(v), np.float32) for k, v in p.items()}
    g6, g16 = _group(144, 6), _group(16, 16)            # (864, 6), (256, 16)
    return {
        # encoder (dense GEMM weights in bf16; bias/gamma/beta packs kept in f32)
        "w1": jnp.asarray(_conv_dense(pn["ew1"], 28, 28, 2), bf16),       # (784, 864)
        "p1": _pack_bn(pn["eb1"], pn["ebn1_g"], pn["ebn1_b"], 144),
        "w2": jnp.asarray(_conv_dense(pn["ew2"], 12, 12, 2), bf16),       # (864, 256)
        "p2": _pack_bn(pn["eb2"], pn["ebn2_g"], pn["ebn2_b"], 16),
        "w3": jnp.asarray(_conv_dense(pn["ew3"], 4, 4, 1), bf16),         # (256, 32)
        "p3": _pack_bn(pn["eb3"], pn["ebn3_g"], pn["ebn3_b"], 1),
        # classifier
        "wc1": jnp.asarray(pn["cw1"].T, bf16), "bc1": jnp.asarray(pn["cb1"][None, :]),
        "wc2": jnp.asarray(pn["cw2"].T, bf16), "bc2": jnp.asarray(pn["cb2"][None, :]),
        # decoder
        "wd1": jnp.asarray(_deconv_dense(pn["dw1"], 1, 1, 1, 0), bf16),   # (32, 256)
        "pd1": _pack_bn(pn["db1"], pn["dbn1_g"], pn["dbn1_b"], 16),
        "wd2": jnp.asarray(_deconv_dense(pn["dw2"], 4, 4, 2, 1), bf16),   # (256, 864)
        "pd2": _pack_bn(pn["db2"], pn["dbn2_g"], pn["dbn2_b"], 144),
        "wd3": jnp.asarray(_deconv_dense(pn["dw3"], 12, 12, 2, 1), bf16), # (864, 784)
        "bd3": jnp.asarray(pn["db3"][None, :]),                           # (1, 1)
        # BN channel-grouping / broadcast matrices (f32 for exact statistics)
        "g6": jnp.asarray(g6), "g6t": jnp.asarray(np.ascontiguousarray(g6.T)),
        "g16": jnp.asarray(g16), "g16t": jnp.asarray(np.ascontiguousarray(g16.T)),
    }


# ---------------------------------------------------------------------------
# Forward pass (matches Autoencoder.forward with projection_layer=False)
# ---------------------------------------------------------------------------
def autoencoder_forward(packed, x, *, block_n=None):
    """x: (N, 1, 28, 28) f32 -> (x_rec, y, x_proj, x_latent) like the PyTorch module.
    BatchNorm statistics are computed per batch grid block; block_n == N (default)
    matches PyTorch train-mode exactly."""
    N = x.shape[0]
    if block_n is None or block_n >= N:
        block_n = N
    assert N % block_n == 0 and (block_n == N or block_n % 8 == 0)
    grid = (N // block_n,)

    def batch_spec(width):
        return pl.BlockSpec((block_n, width), lambda i: (i, 0))

    def const_spec(arr):
        return pl.BlockSpec(arr.shape, lambda i: (0, 0))   # fetched once, stays resident

    weights = [packed[k] for k in
               ("w1", "p1", "w2", "p2", "w3", "p3",
                "wc1", "bc1", "wc2", "bc2",
                "wd1", "pd1", "wd2", "pd2", "wd3", "bd3",
                "g6", "g6t", "g16", "g16t")]

    x_rec, y, lat = pl.pallas_call(
        _autoencoder_kernel,
        grid=grid,
        in_specs=[batch_spec(784)] + [const_spec(w) for w in weights],
        out_specs=(batch_spec(784), batch_spec(10), batch_spec(32)),
        out_shape=(
            jax.ShapeDtypeStruct((N, 784), jnp.float32),   # reconstruction (lane-dense)
            jax.ShapeDtypeStruct((N, 10), jnp.float32),    # classifier logits
            jax.ShapeDtypeStruct((N, 32), jnp.float32),    # latent (= x_proj)
        ),
        compiler_params=pltpu.CompilerParams(dimension_semantics=("parallel",)),
    )(x.reshape(N, 784), *weights)

    x_latent = lat.reshape(N, 32, 1, 1)
    return x_rec.reshape(N, 1, 28, 28), y, x_latent, x_latent


# ---------------------------------------------------------------------------
# Parameter construction (deterministic, PyTorch-like uniform fan-in init)
# ---------------------------------------------------------------------------
def _init_w(key, shape, fan_in):
    bound = 1.0 / jnp.sqrt(fan_in)
    return jax.random.uniform(key, shape, jnp.float32, -bound, bound)


def make_params(enc_channel=(6, 16, 32), dec_channel=(32, 16, 6)):
    keys = jax.random.split(jax.random.PRNGKey(42), 16)
    e0, e1, e2 = enc_channel
    d0, d1, d2 = dec_channel
    p = {}
    # encoder (Conv2d weight layout: (Cout, Cin, k, k))
    p["ew1"] = _init_w(keys[0], (e0, 1, 5, 5), 1 * 25);   p["eb1"] = _init_w(keys[1], (e0,), 1 * 25)
    p["ew2"] = _init_w(keys[2], (e1, e0, 5, 5), e0 * 25); p["eb2"] = _init_w(keys[3], (e1,), e0 * 25)
    p["ew3"] = _init_w(keys[4], (e2, e1, 4, 4), e1 * 16); p["eb3"] = _init_w(keys[5], (e2,), e1 * 16)
    for name, c in (("ebn1", e0), ("ebn2", e1), ("ebn3", e2)):
        p[name + "_g"] = jnp.ones((c,), jnp.float32)
        p[name + "_b"] = jnp.zeros((c,), jnp.float32)
    # classifier
    p["cw1"] = _init_w(keys[6], (20, e2), e2);   p["cb1"] = _init_w(keys[7], (20,), e2)
    p["cw2"] = _init_w(keys[8], (10, 20), 20);   p["cb2"] = _init_w(keys[9], (10,), 20)
    # decoder (ConvTranspose2d weight layout: (Cin, Cout, k, k))
    p["dw1"] = _init_w(keys[10], (d0, d1, 4, 4), d0 * 16); p["db1"] = _init_w(keys[11], (d1,), d0 * 16)
    p["dw2"] = _init_w(keys[12], (d1, d2, 5, 5), d1 * 25); p["db2"] = _init_w(keys[13], (d2,), d1 * 25)
    p["dw3"] = _init_w(keys[14], (d2, 1, 5, 5), d2 * 25);  p["db3"] = _init_w(keys[15], (1,), d2 * 25)
    for name, c in (("dbn1", d1), ("dbn2", d2)):
        p[name + "_g"] = jnp.ones((c,), jnp.float32)
        p[name + "_b"] = jnp.zeros((c,), jnp.float32)
    return p


if __name__ == "__main__":
    # MNIST-like input: the encoder/classifier wiring requires 28x28 spatial.
    x = jax.random.uniform(jax.random.PRNGKey(0), (2, 1, 28, 28), jnp.float32)
    params = make_params()

    packed = pack_params(params)                 # one-time host-side weight repacking
    fwd = jax.jit(autoencoder_forward)
    x_rec, y, x_proj, x_latent = fwd(packed, x)
    jax.block_until_ready((x_rec, y, x_proj, x_latent))

    assert x_rec.shape == (2, 1, 28, 28)
    assert y.shape == (2, 10)
    assert x_proj.shape == (2, 32, 1, 1)
    assert x_latent.shape == (2, 32, 1, 1)
    assert bool(jnp.all(x_rec >= 0.0) & jnp.all(x_rec <= 1.0))
    assert bool(jnp.all(jnp.isfinite(x_rec)) & jnp.all(jnp.isfinite(y)))
    print("KERNEL_OK")
</pallas_src>

<mosaic_0001>
module attributes {stable_mosaic.version = 11 : i64} {
  func.func @_autoencoder_kernel(%arg0: i32, %arg1: memref<2x784xf32, #tpu.memory_space<vmem>>, %arg2: memref<784x864xbf16, #tpu.memory_space<vmem>>, %arg3: memref<3x864xf32, #tpu.memory_space<vmem>>, %arg4: memref<864x256xbf16, #tpu.memory_space<vmem>>, %arg5: memref<3x256xf32, #tpu.memory_space<vmem>>, %arg6: memref<256x32xbf16, #tpu.memory_space<vmem>>, %arg7: memref<3x32xf32, #tpu.memory_space<vmem>>, %arg8: memref<32x20xbf16, #tpu.memory_space<vmem>>, %arg9: memref<1x20xf32, #tpu.memory_space<vmem>>, %arg10: memref<20x10xbf16, #tpu.memory_space<vmem>>, %arg11: memref<1x10xf32, #tpu.memory_space<vmem>>, %arg12: memref<32x256xbf16, #tpu.memory_space<vmem>>, %arg13: memref<3x256xf32, #tpu.memory_space<vmem>>, %arg14: memref<256x864xbf16, #tpu.memory_space<vmem>>, %arg15: memref<3x864xf32, #tpu.memory_space<vmem>>, %arg16: memref<864x784xbf16, #tpu.memory_space<vmem>>, %arg17: memref<1x1xf32, #tpu.memory_space<vmem>>, %arg18: memref<864x6xf32, #tpu.memory_space<vmem>>, %arg19: memref<6x864xf32, #tpu.memory_space<vmem>>, %arg20: memref<256x16xf32, #tpu.memory_space<vmem>>, %arg21: memref<16x256xf32, #tpu.memory_space<vmem>>, %arg22: memref<2x784xf32, #tpu.memory_space<vmem>>, %arg23: memref<2x10xf32, #tpu.memory_space<vmem>>, %arg24: memref<2x32xf32, #tpu.memory_space<vmem>>) attributes {dimension_semantics = [#tpu.dimension_semantics<parallel>], iteration_bounds = array<i64: 1>, scalar_prefetch = 0 : i64, scratch_operands = 0 : i64, tpu.core_type = #tpu.core_type<tc>, window_params = [{transform_indices = @transform_0, window_bounds = array<i64: 2, 784>}, {pipeline_mode = #tpu.pipeline_mode<synchronous>, transform_indices = @transform_1, window_bounds = array<i64: 784, 864>}, {pipeline_mode = #tpu.pipeline_mode<synchronous>, transform_indices = @transform_2, window_bounds = array<i64: 3, 864>}, {pipeline_mode = #tpu.pipeline_mode<synchronous>, transform_indices = @transform_3, window_bounds = array<i64: 864, 256>}, {pipeline_mode = #tpu.pipeline_mode<synchronous>, transform_indices = @transform_4, window_bounds = array<i64: 3, 256>}, {pipeline_mode = #tpu.pipeline_mode<synchronous>, transform_indices = @transform_5, window_bounds = array<i64: 256, 32>}, {pipeline_mode = #tpu.pipeline_mode<synchronous>, transform_indices = @transform_6, window_bounds = array<i64: 3, 32>}, {pipeline_mode = #tpu.pipeline_mode<synchronous>, transform_indices = @transform_7, window_bounds = array<i64: 32, 20>}, {pipeline_mode = #tpu.pipeline_mode<synchronous>, transform_indices = @transform_8, window_bounds = array<i64: 1, 20>}, {pipeline_mode = #tpu.pipeline_mode<synchronous>, transform_indices = @transform_9, window_bounds = array<i64: 20, 10>}, {pipeline_mode = #tpu.pipeline_mode<synchronous>, transform_indices = @transform_10, window_bounds = array<i64: 1, 10>}, {pipeline_mode = #tpu.pipeline_mode<synchronous>, transform_indices = @transform_11, window_bounds = array<i64: 32, 256>}, {pipeline_mode = #tpu.pipeline_mode<synchronous>, transform_indices = @transform_12, window_bounds = array<i64: 3, 256>}, {pipeline_mode = #tpu.pipeline_mode<synchronous>, transform_indices = @transform_13, window_bounds = array<i64: 256, 864>}, {pipeline_mode = #tpu.pipeline_mode<synchronous>, transform_indices = @transform_14, window_bounds = array<i64: 3, 864>}, {pipeline_mode = #tpu.pipeline_mode<synchronous>, transform_indices = @transform_15, window_bounds = array<i64: 864, 784>}, {pipeline_mode = #tpu.pipeline_mode<synchronous>, transform_indices = @transform_16, window_bounds = array<i64: 1, 1>}, {pipeline_mode = #tpu.pipeline_mode<synchronous>, transform_indices = @transform_17, window_bounds = array<i64: 864, 6>}, {pipeline_mode = #tpu.pipeline_mode<synchronous>, transform_indices = @transform_18, window_bounds = array<i64: 6, 864>}, {pipeline_mode = #tpu.pipeline_mode<synchronous>, transform_indices = @transform_19, window_bounds = array<i64: 256, 16>}, {pipeline_mode = #tpu.pipeline_mode<synchronous>, transform_indices = @transform_20, window_bounds = array<i64: 16, 256>}, {transform_indices = @transform_21, window_bounds = array<i64: 2, 784>}, {transform_indices = @transform_22, window_bounds = array<i64: 2, 10>}, {transform_indices = @transform_23, window_bounds = array<i64: 2, 32>}]} {
    %c0 = arith.constant 0 : index
    %c0_0 = arith.constant 0 : index
    %0 = vector.load %arg1[%c0, %c0_0] : memref<2x784xf32, #tpu.memory_space<vmem>>, vector<2x784xf32>
    %1 = arith.truncf %0 : vector<2x784xf32> to vector<2x784xbf16>
    %c0_1 = arith.constant 0 : index
    %c0_2 = arith.constant 0 : index
    %2 = vector.load %arg2[%c0_1, %c0_2] : memref<784x864xbf16, #tpu.memory_space<vmem>>, vector<784x864xbf16>
    %cst = arith.constant dense<0.000000e+00> : vector<2x864xf32>
    %3 = tpu.matmul %1, %2, %cst {dimension_numbers = #tpu.dot_dimension_numbers<[1], [0], [0], [1], [0, 0, 1, 1], [], []>} : vector<2x784xbf16>, vector<784x864xbf16>, vector<2x864xf32> -> vector<2x864xf32>
    %c0_3 = arith.constant 0 : index
    %c0_4 = arith.constant 0 : index
    %4 = vector.load %arg3[%c0_3, %c0_4] : memref<3x864xf32, #tpu.memory_space<vmem>>, vector<1x864xf32>
    %c1 = arith.constant 1 : index
    %c0_5 = arith.constant 0 : index
    %5 = vector.load %arg3[%c1, %c0_5] : memref<3x864xf32, #tpu.memory_space<vmem>>, vector<1x864xf32>
    %c2 = arith.constant 2 : index
    %c0_6 = arith.constant 0 : index
    %6 = vector.load %arg3[%c2, %c0_6] : memref<3x864xf32, #tpu.memory_space<vmem>>, vector<1x864xf32>
    %7 = vector.broadcast %4 : vector<1x864xf32> to vector<2x864xf32>
    %8 = arith.addf %3, %7 : vector<2x864xf32>
    %cst_7 = arith.constant dense<0.000000e+00> : vector<864xf32>
    %9 = vector.multi_reduction <add>, %8, %cst_7 [0] : vector<2x864xf32> to vector<864xf32>
    %10 = vector.shape_cast %9 : vector<864xf32> to vector<1x864xf32>
    %11 = arith.mulf %8, %8 : vector<2x864xf32>
    %cst_8 = arith.constant dense<0.000000e+00> : vector<864xf32>
    %12 = vector.multi_reduction <add>, %11, %cst_8 [0] : vector<2x864xf32> to vector<864xf32>
    %13 = vector.shape_cast %12 : vector<864xf32> to vector<1x864xf32>
    %14 = tpu.concatenate %10, %13 in 0 : vector<1x864xf32>, vector<1x864xf32> -> vector<2x864xf32>
    %c0_9 = arith.constant 0 : index
    %c0_10 = arith.constant 0 : index
    %15 = vector.load %arg18[%c0_9, %c0_10] : memref<864x6xf32, #tpu.memory_space<vmem>>, vector<864x6xf32>
    %cst_11 = arith.constant dense<0.000000e+00> : vector<2x6xf32>
    %16 = tpu.matmul %14, %15, %cst_11 {dimension_numbers = #tpu.dot_dimension_numbers<[1], [0], [0], [1], [0, 0, 1, 1], [], []>} : vector<2x864xf32>, vector<864x6xf32>, vector<2x6xf32> -> vector<2x6xf32>
    %17 = vector.extract_strided_slice %16 {offsets = [0, 0], sizes = [1, 6], strides = [1, 1]} : vector<2x6xf32> to vector<1x6xf32>
    %cst_12 = arith.constant 0.00347222225 : f32
    %18 = vector.broadcast %cst_12 : f32 to vector<1x6xf32>
    %19 = arith.mulf %17, %18 : vector<1x6xf32>
    %20 = vector.extract_strided_slice %16 {offsets = [1, 0], sizes = [1, 6], strides = [1, 1]} : vector<2x6xf32> to vector<1x6xf32>
    %cst_13 = arith.constant 0.00347222225 : f32
    %21 = vector.broadcast %cst_13 : f32 to vector<1x6xf32>
    %22 = arith.mulf %20, %21 : vector<1x6xf32>
    %23 = arith.mulf %19, %19 : vector<1x6xf32>
    %24 = arith.subf %22, %23 : vector<1x6xf32>
    %cst_14 = arith.constant 0.000000e+00 : f32
    %25 = vector.broadcast %cst_14 : f32 to vector<1x6xf32>
    %26 = arith.maximumf %24, %25 : vector<1x6xf32>
    %cst_15 = arith.constant 9.99999974E-6 : f32
    %27 = vector.broadcast %cst_15 : f32 to vector<1x6xf32>
    %28 = arith.addf %26, %27 : vector<1x6xf32>
    %29 = math.rsqrt %28 : vector<1x6xf32>
    %30 = tpu.concatenate %19, %29 in 0 : vector<1x6xf32>, vector<1x6xf32> -> vector<2x6xf32>
    %c0_16 = arith.constant 0 : index
    %c0_17 = arith.constant 0 : index
    %31 = vector.load %arg19[%c0_16, %c0_17] : memref<6x864xf32, #tpu.memory_space<vmem>>, vector<6x864xf32>
    %cst_18 = arith.constant dense<0.000000e+00> : vector<2x864xf32>
    %32 = tpu.matmul %30, %31, %cst_18 {dimension_numbers = #tpu.dot_dimension_numbers<[1], [0], [0], [1], [0, 0, 1, 1], [], []>} : vector<2x6xf32>, vector<6x864xf32>, vector<2x864xf32> -> vector<2x864xf32>
    %33 = vector.extract_strided_slice %32 {offsets = [1, 0], sizes = [1, 864], strides = [1, 1]} : vector<2x864xf32> to vector<1x864xf32>
    %34 = arith.mulf %5, %33 : vector<1x864xf32>
    %35 = vector.extract_strided_slice %32 {offsets = [0, 0], sizes = [1, 864], strides = [1, 1]} : vector<2x864xf32> to vector<1x864xf32>
    %36 = arith.mulf %35, %34 : vector<1x864xf32>
    %37 = arith.subf %6, %36 : vector<1x864xf32>
    %38 = vector.broadcast %34 : vector<1x864xf32> to vector<2x864xf32>
    %39 = arith.mulf %8, %38 : vector<2x864xf32>
    %40 = vector.broadcast %37 : vector<1x864xf32> to vector<2x864xf32>
    %41 = arith.addf %39, %40 : vector<2x864xf32>
    %cst_19 = arith.constant 0.000000e+00 : f32
    %42 = vector.broadcast %cst_19 : f32 to vector<2x864xf32>
    %43 = arith.maximumf %41, %42 : vector<2x864xf32>
    %44 = arith.truncf %43 : vector<2x864xf32> to vector<2x864xbf16>
    %c0_20 = arith.constant 0 : index
    %c0_21 = arith.constant 0 : index
    %45 = vector.load %arg4[%c0_20, %c0_21] : memref<864x256xbf16, #tpu.memory_space<vmem>>, vector<864x256xbf16>
    %cst_22 = arith.constant dense<0.000000e+00> : vector<2x256xf32>
    %46 = tpu.matmul %44, %45, %cst_22 {dimension_numbers = #tpu.dot_dimension_numbers<[1], [0], [0], [1], [0, 0, 1, 1], [], []>} : vector<2x864xbf16>, vector<864x256xbf16>, vector<2x256xf32> -> vector<2x256xf32>
    %c0_23 = arith.constant 0 : index
    %c0_24 = arith.constant 0 : index
    %47 = vector.load %arg5[%c0_23, %c0_24] : memref<3x256xf32, #tpu.memory_space<vmem>>, vector<1x256xf32>
    %c1_25 = arith.constant 1 : index
    %c0_26 = arith.constant 0 : index
    %48 = vector.load %arg5[%c1_25, %c0_26] : memref<3x256xf32, #tpu.memory_space<vmem>>, vector<1x256xf32>
    %c2_27 = arith.constant 2 : index
    %c0_28 = arith.constant 0 : index
    %49 = vector.load %arg5[%c2_27, %c0_28] : memref<3x256xf32, #tpu.memory_space<vmem>>, vector<1x256xf32>
    %50 = vector.broadcast %47 : vector<1x256xf32> to vector<2x256xf32>
    %51 = arith.addf %46, %50 : vector<2x256xf32>
    %cst_29 = arith.constant dense<0.000000e+00> : vector<256xf32>
    %52 = vector.multi_reduction <add>, %51, %cst_29 [0] : vector<2x256xf32> to vector<256xf32>
    %53 = vector.shape_cast %52 : vector<256xf32> to vector<1x256xf32>
    %54 = arith.mulf %51, %51 : vector<2x256xf32>
    %cst_30 = arith.constant dense<0.000000e+00> : vector<256xf32>
    %55 = vector.multi_reduction <add>, %54, %cst_30 [0] : vector<2x256xf32> to vector<256xf32>
    %56 = vector.shape_cast %55 : vector<256xf32> to vector<1x256xf32>
    %57 = tpu.concatenate %53, %56 in 0 : vector<1x256xf32>, vector<1x256xf32> -> vector<2x256xf32>
    %c0_31 = arith.constant 0 : index
    %c0_32 = arith.constant 0 : index
    %58 = vector.load %arg20[%c0_31, %c0_32] : memref<256x16xf32, #tpu.memory_space<vmem>>, vector<256x16xf32>
    %cst_33 = arith.constant dense<0.000000e+00> : vector<2x16xf32>
    %59 = tpu.matmul %57, %58, %cst_33 {dimension_numbers = #tpu.dot_dimension_numbers<[1], [0], [0], [1], [0, 0, 1, 1], [], []>} : vector<2x256xf32>, vector<256x16xf32>, vector<2x16xf32> -> vector<2x16xf32>
    %60 = vector.extract_strided_slice %59 {offsets = [0, 0], sizes = [1, 16], strides = [1, 1]} : vector<2x16xf32> to vector<1x16xf32>
    %cst_34 = arith.constant 3.125000e-02 : f32
    %61 = vector.broadcast %cst_34 : f32 to vector<1x16xf32>
    %62 = arith.mulf %60, %61 : vector<1x16xf32>
    %63 = vector.extract_strided_slice %59 {offsets = [1, 0], sizes = [1, 16], strides = [1, 1]} : vector<2x16xf32> to vector<1x16xf32>
    %cst_35 = arith.constant 3.125000e-02 : f32
    %64 = vector.broadcast %cst_35 : f32 to vector<1x16xf32>
    %65 = arith.mulf %63, %64 : vector<1x16xf32>
    %66 = arith.mulf %62, %62 : vector<1x16xf32>
    %67 = arith.subf %65, %66 : vector<1x16xf32>
    %cst_36 = arith.constant 0.000000e+00 : f32
    %68 = vector.broadcast %cst_36 : f32 to vector<1x16xf32>
    %69 = arith.maximumf %67, %68 : vector<1x16xf32>
    %cst_37 = arith.constant 9.99999974E-6 : f32
    %70 = vector.broadcast %cst_37 : f32 to vector<1x16xf32>
    %71 = arith.addf %69, %70 : vector<1x16xf32>
    %72 = math.rsqrt %71 : vector<1x16xf32>
    %73 = tpu.concatenate %62, %72 in 0 : vector<1x16xf32>, vector<1x16xf32> -> vector<2x16xf32>
    %c0_38 = arith.constant 0 : index
    %c0_39 = arith.constant 0 : index
    %74 = vector.load %arg21[%c0_38, %c0_39] : memref<16x256xf32, #tpu.memory_space<vmem>>, vector<16x256xf32>
    %cst_40 = arith.constant dense<0.000000e+00> : vector<2x256xf32>
    %75 = tpu.matmul %73, %74, %cst_40 {dimension_numbers = #tpu.dot_dimension_numbers<[1], [0], [0], [1], [0, 0, 1, 1], [], []>} : vector<2x16xf32>, vector<16x256xf32>, vector<2x256xf32> -> vector<2x256xf32>
    %76 = vector.extract_strided_slice %75 {offsets = [1, 0], sizes = [1, 256], strides = [1, 1]} : vector<2x256xf32> to vector<1x256xf32>
    %77 = arith.mulf %48, %76 : vector<1x256xf32>
    %78 = vector.extract_strided_slice %75 {offsets = [0, 0], sizes = [1, 256], strides = [1, 1]} : vector<2x256xf32> to vector<1x256xf32>
    %79 = arith.mulf %78, %77 : vector<1x256xf32>
    %80 = arith.subf %49, %79 : vector<1x256xf32>
    %81 = vector.broadcast %77 : vector<1x256xf32> to vector<2x256xf32>
    %82 = arith.mulf %51, %81 : vector<2x256xf32>
    %83 = vector.broadcast %80 : vector<1x256xf32> to vector<2x256xf32>
    %84 = arith.addf %82, %83 : vector<2x256xf32>
    %cst_41 = arith.constant 0.000000e+00 : f32
    %85 = vector.broadcast %cst_41 : f32 to vector<2x256xf32>
    %86 = arith.maximumf %84, %85 : vector<2x256xf32>
    %87 = arith.truncf %86 : vector<2x256xf32> to vector<2x256xbf16>
    %c0_42 = arith.constant 0 : index
    %c0_43 = arith.constant 0 : index
    %88 = vector.load %arg6[%c0_42, %c0_43] : memref<256x32xbf16, #tpu.memory_space<vmem>>, vector<256x32xbf16>
    %cst_44 = arith.constant dense<0.000000e+00> : vector<2x32xf32>
    %89 = tpu.matmul %87, %88, %cst_44 {dimension_numbers = #tpu.dot_dimension_numbers<[1], [0], [0], [1], [0, 0, 1, 1], [], []>} : vector<2x256xbf16>, vector<256x32xbf16>, vector<2x32xf32> -> vector<2x32xf32>
    %c0_45 = arith.constant 0 : index
    %c0_46 = arith.constant 0 : index
    %90 = vector.load %arg7[%c0_45, %c0_46] : memref<3x32xf32, #tpu.memory_space<vmem>>, vector<1x32xf32>
    %c1_47 = arith.constant 1 : index
    %c0_48 = arith.constant 0 : index
    %91 = vector.load %arg7[%c1_47, %c0_48] : memref<3x32xf32, #tpu.memory_space<vmem>>, vector<1x32xf32>
    %c2_49 = arith.constant 2 : index
    %c0_50 = arith.constant 0 : index
    %92 = vector.load %arg7[%c2_49, %c0_50] : memref<3x32xf32, #tpu.memory_space<vmem>>, vector<1x32xf32>
    %93 = vector.broadcast %90 : vector<1x32xf32> to vector<2x32xf32>
    %94 = arith.addf %89, %93 : vector<2x32xf32>
    %cst_51 = arith.constant dense<0.000000e+00> : vector<32xf32>
    %95 = vector.multi_reduction <add>, %94, %cst_51 [0] : vector<2x32xf32> to vector<32xf32>
    %96 = vector.shape_cast %95 : vector<32xf32> to vector<1x32xf32>
    %97 = arith.mulf %94, %94 : vector<2x32xf32>
    %cst_52 = arith.constant dense<0.000000e+00> : vector<32xf32>
    %98 = vector.multi_reduction <add>, %97, %cst_52 [0] : vector<2x32xf32> to vector<32xf32>
    %99 = vector.shape_cast %98 : vector<32xf32> to vector<1x32xf32>
    %100 = tpu.concatenate %96, %99 in 0 : vector<1x32xf32>, vector<1x32xf32> -> vector<2x32xf32>
    %101 = vector.extract_strided_slice %100 {offsets = [0, 0], sizes = [1, 32], strides = [1, 1]} : vector<2x32xf32> to vector<1x32xf32>
    %cst_53 = arith.constant 5.000000e-01 : f32
    %102 = vector.broadcast %cst_53 : f32 to vector<1x32xf32>
    %103 = arith.mulf %101, %102 : vector<1x32xf32>
    %104 = vector.extract_strided_slice %100 {offsets = [1, 0], sizes = [1, 32], strides = [1, 1]} : vector<2x32xf32> to vector<1x32xf32>
    %cst_54 = arith.constant 5.000000e-01 : f32
    %105 = vector.broadcast %cst_54 : f32 to vector<1x32xf32>
    %106 = arith.mulf %104, %105 : vector<1x32xf32>
    %107 = arith.mulf %103, %103 : vector<1x32xf32>
    %108 = arith.subf %106, %107 : vector<1x32xf32>
    %cst_55 = arith.constant 0.000000e+00 : f32
    %109 = vector.broadcast %cst_55 : f32 to vector<1x32xf32>
    %110 = arith.maximumf %108, %109 : vector<1x32xf32>
    %cst_56 = arith.constant 9.99999974E-6 : f32
    %111 = vector.broadcast %cst_56 : f32 to vector<1x32xf32>
    %112 = arith.addf %110, %111 : vector<1x32xf32>
    %113 = math.rsqrt %112 : vector<1x32xf32>
    %114 = tpu.concatenate %103, %113 in 0 : vector<1x32xf32>, vector<1x32xf32> -> vector<2x32xf32>
    %115 = vector.extract_strided_slice %114 {offsets = [1, 0], sizes = [1, 32], strides = [1, 1]} : vector<2x32xf32> to vector<1x32xf32>
    %116 = arith.mulf %91, %115 : vector<1x32xf32>
    %117 = vector.extract_strided_slice %114 {offsets = [0, 0], sizes = [1, 32], strides = [1, 1]} : vector<2x32xf32> to vector<1x32xf32>
    %118 = arith.mulf %117, %116 : vector<1x32xf32>
    %119 = arith.subf %92, %118 : vector<1x32xf32>
    %120 = vector.broadcast %116 : vector<1x32xf32> to vector<2x32xf32>
    %121 = arith.mulf %94, %120 : vector<2x32xf32>
    %122 = vector.broadcast %119 : vector<1x32xf32> to vector<2x32xf32>
    %123 = arith.addf %121, %122 : vector<2x32xf32>
    %cst_57 = arith.constant 0.000000e+00 : f32
    %124 = vector.broadcast %cst_57 : f32 to vector<2x32xf32>
    %125 = arith.maximumf %123, %124 : vector<2x32xf32>
    %c0_58 = arith.constant 0 : index
    %c0_59 = arith.constant 0 : index
    %126 = vector.load %arg24[%c0_58, %c0_59] : memref<2x32xf32, #tpu.memory_space<vmem>>, vector<2x32xf32>
    tpu.vector_store %arg24[%c0_58, %c0_59], %125 {strides = array<i32>} : memref<2x32xf32, #tpu.memory_space<vmem>>, vector<2x32xf32>,
    %127 = arith.truncf %125 : vector<2x32xf32> to vector<2x32xbf16>
    %c0_60 = arith.constant 0 : index
    %c0_61 = arith.constant 0 : index
    %128 = vector.load %arg8[%c0_60, %c0_61] : memref<32x20xbf16, #tpu.memory_space<vmem>>, vector<32x20xbf16>
    %cst_62 = arith.constant dense<0.000000e+00> : vector<2x20xf32>
    %129 = tpu.matmul %127, %128, %cst_62 {dimension_numbers = #tpu.dot_dimension_numbers<[1], [0], [0], [1], [0, 0, 1, 1], [], []>} : vector<2x32xbf16>, vector<32x20xbf16>, vector<2x20xf32> -> vector<2x20xf32>
    %c0_63 = arith.constant 0 : index
    %c0_64 = arith.constant 0 : index
    %130 = vector.load %arg9[%c0_63, %c0_64] : memref<1x20xf32, #tpu.memory_space<vmem>>, vector<1x20xf32>
    %131 = vector.broadcast %130 : vector<1x20xf32> to vector<2x20xf32>
    %132 = arith.addf %129, %131 : vector<2x20xf32>
    %cst_65 = arith.constant 0.000000e+00 : f32
    %133 = vector.broadcast %cst_65 : f32 to vector<2x20xf32>
    %134 = arith.maximumf %132, %133 : vector<2x20xf32>
    %135 = arith.truncf %134 : vector<2x20xf32> to vector<2x20xbf16>
    %c0_66 = arith.constant 0 : index
    %c0_67 = arith.constant 0 : index
    %136 = vector.load %arg10[%c0_66, %c0_67] : memref<20x10xbf16, #tpu.memory_space<vmem>>, vector<20x10xbf16>
    %cst_68 = arith.constant dense<0.000000e+00> : vector<2x10xf32>
    %137 = tpu.matmul %135, %136, %cst_68 {dimension_numbers = #tpu.dot_dimension_numbers<[1], [0], [0], [1], [0, 0, 1, 1], [], []>} : vector<2x20xbf16>, vector<20x10xbf16>, vector<2x10xf32> -> vector<2x10xf32>
    %c0_69 = arith.constant 0 : index
    %c0_70 = arith.constant 0 : index
    %138 = vector.load %arg11[%c0_69, %c0_70] : memref<1x10xf32, #tpu.memory_space<vmem>>, vector<1x10xf32>
    %139 = vector.broadcast %138 : vector<1x10xf32> to vector<2x10xf32>
    %140 = arith.addf %137, %139 : vector<2x10xf32>
    %c0_71 = arith.constant 0 : index
    %c0_72 = arith.constant 0 : index
    %141 = vector.load %arg23[%c0_71, %c0_72] : memref<2x10xf32, #tpu.memory_space<vmem>>, vector<2x10xf32>
    tpu.vector_store %arg23[%c0_71, %c0_72], %140 {strides = array<i32>} : memref<2x10xf32, #tpu.memory_space<vmem>>, vector<2x10xf32>,
    %cst_73 = arith.constant 0.000000e+00 : f32
    %142 = vector.broadcast %cst_73 : f32 to vector<2x32xf32>
    %143 = arith.maximumf %125, %142 : vector<2x32xf32>
    %144 = arith.truncf %143 : vector<2x32xf32> to vector<2x32xbf16>
    %c0_74 = arith.constant 0 : index
    %c0_75 = arith.constant 0 : index
    %145 = vector.load %arg12[%c0_74, %c0_75] : memref<32x256xbf16, #tpu.memory_space<vmem>>, vector<32x256xbf16>
    %cst_76 = arith.constant dense<0.000000e+00> : vector<2x256xf32>
    %146 = tpu.matmul %144, %145, %cst_76 {dimension_numbers = #tpu.dot_dimension_numbers<[1], [0], [0], [1], [0, 0, 1, 1], [], []>} : vector<2x32xbf16>, vector<32x256xbf16>, vector<2x256xf32> -> vector<2x256xf32>
    %c0_77 = arith.constant 0 : index
    %c0_78 = arith.constant 0 : index
    %147 = vector.load %arg13[%c0_77, %c0_78] : memref<3x256xf32, #tpu.memory_space<vmem>>, vector<1x256xf32>
    %c1_79 = arith.constant 1 : index
    %c0_80 = arith.constant 0 : index
    %148 = vector.load %arg13[%c1_79, %c0_80] : memref<3x256xf32, #tpu.memory_space<vmem>>, vector<1x256xf32>
    %c2_81 = arith.constant 2 : index
    %c0_82 = arith.constant 0 : index
    %149 = vector.load %arg13[%c2_81, %c0_82] : memref<3x256xf32, #tpu.memory_space<vmem>>, vector<1x256xf32>
    %150 = vector.broadcast %147 : vector<1x256xf32> to vector<2x256xf32>
    %151 = arith.addf %146, %150 : vector<2x256xf32>
    %cst_83 = arith.constant dense<0.000000e+00> : vector<256xf32>
    %152 = vector.multi_reduction <add>, %151, %cst_83 [0] : vector<2x256xf32> to vector<256xf32>
    %153 = vector.shape_cast %152 : vector<256xf32> to vector<1x256xf32>
    %154 = arith.mulf %151, %151 : vector<2x256xf32>
    %cst_84 = arith.constant dense<0.000000e+00> : vector<256xf32>
    %155 = vector.multi_reduction <add>, %154, %cst_84 [0] : vector<2x256xf32> to vector<256xf32>
    %156 = vector.shape_cast %155 : vector<256xf32> to vector<1x256xf32>
    %157 = tpu.concatenate %153, %156 in 0 : vector<1x256xf32>, vector<1x256xf32> -> vector<2x256xf32>
    %c0_85 = arith.constant 0 : index
    %c0_86 = arith.constant 0 : index
    %158 = vector.load %arg20[%c0_85, %c0_86] : memref<256x16xf32, #tpu.memory_space<vmem>>, vector<256x16xf32>
    %cst_87 = arith.constant dense<0.000000e+00> : vector<2x16xf32>
    %159 = tpu.matmul %157, %158, %cst_87 {dimension_numbers = #tpu.dot_dimension_numbers<[1], [0], [0], [1], [0, 0, 1, 1], [], []>} : vector<2x256xf32>, vector<256x16xf32>, vector<2x16xf32> -> vector<2x16xf32>
    %160 = vector.extract_strided_slice %159 {offsets = [0, 0], sizes = [1, 16], strides = [1, 1]} : vector<2x16xf32> to vector<1x16xf32>
    %cst_88 = arith.constant 3.125000e-02 : f32
    %161 = vector.broadcast %cst_88 : f32 to vector<1x16xf32>
    %162 = arith.mulf %160, %161 : vector<1x16xf32>
    %163 = vector.extract_strided_slice %159 {offsets = [1, 0], sizes = [1, 16], strides = [1, 1]} : vector<2x16xf32> to vector<1x16xf32>
    %cst_89 = arith.constant 3.125000e-02 : f32
    %164 = vector.broadcast %cst_89 : f32 to vector<1x16xf32>
    %165 = arith.mulf %163, %164 : vector<1x16xf32>
    %166 = arith.mulf %162, %162 : vector<1x16xf32>
    %167 = arith.subf %165, %166 : vector<1x16xf32>
    %cst_90 = arith.constant 0.000000e+00 : f32
    %168 = vector.broadcast %cst_90 : f32 to vector<1x16xf32>
    %169 = arith.maximumf %167, %168 : vector<1x16xf32>
    %cst_91 = arith.constant 9.99999974E-6 : f32
    %170 = vector.broadcast %cst_91 : f32 to vector<1x16xf32>
    %171 = arith.addf %169, %170 : vector<1x16xf32>
    %172 = math.rsqrt %171 : vector<1x16xf32>
    %173 = tpu.concatenate %162, %172 in 0 : vector<1x16xf32>, vector<1x16xf32> -> vector<2x16xf32>
    %c0_92 = arith.constant 0 : index
    %c0_93 = arith.constant 0 : index
    %174 = vector.load %arg21[%c0_92, %c0_93] : memref<16x256xf32, #tpu.memory_space<vmem>>, vector<16x256xf32>
    %cst_94 = arith.constant dense<0.000000e+00> : vector<2x256xf32>
    %175 = tpu.matmul %173, %174, %cst_94 {dimension_numbers = #tpu.dot_dimension_numbers<[1], [0], [0], [1], [0, 0, 1, 1], [], []>} : vector<2x16xf32>, vector<16x256xf32>, vector<2x256xf32> -> vector<2x256xf32>
    %176 = vector.extract_strided_slice %175 {offsets = [1, 0], sizes = [1, 256], strides = [1, 1]} : vector<2x256xf32> to vector<1x256xf32>
    %177 = arith.mulf %148, %176 : vector<1x256xf32>
    %178 = vector.extract_strided_slice %175 {offsets = [0, 0], sizes = [1, 256], strides = [1, 1]} : vector<2x256xf32> to vector<1x256xf32>
    %179 = arith.mulf %178, %177 : vector<1x256xf32>
    %180 = arith.subf %149, %179 : vector<1x256xf32>
    %181 = vector.broadcast %177 : vector<1x256xf32> to vector<2x256xf32>
    %182 = arith.mulf %151, %181 : vector<2x256xf32>
    %183 = vector.broadcast %180 : vector<1x256xf32> to vector<2x256xf32>
    %184 = arith.addf %182, %183 : vector<2x256xf32>
    %cst_95 = arith.constant 0.000000e+00 : f32
    %185 = vector.broadcast %cst_95 : f32 to vector<2x256xf32>
    %186 = arith.maximumf %184, %185 : vector<2x256xf32>
    %187 = arith.truncf %186 : vector<2x256xf32> to vector<2x256xbf16>
    %c0_96 = arith.constant 0 : index
    %c0_97 = arith.constant 0 : index
    %188 = vector.load %arg14[%c0_96, %c0_97] : memref<256x864xbf16, #tpu.memory_space<vmem>>, vector<256x864xbf16>
    %cst_98 = arith.constant dense<0.000000e+00> : vector<2x864xf32>
    %189 = tpu.matmul %187, %188, %cst_98 {dimension_numbers = #tpu.dot_dimension_numbers<[1], [0], [0], [1], [0, 0, 1, 1], [], []>} : vector<2x256xbf16>, vector<256x864xbf16>, vector<2x864xf32> -> vector<2x864xf32>
    %c0_99 = arith.constant 0 : index
    %c0_100 = arith.constant 0 : index
    %190 = vector.load %arg15[%c0_99, %c0_100] : memref<3x864xf32, #tpu.memory_space<vmem>>, vector<1x864xf32>
    %c1_101 = arith.constant 1 : index
    %c0_102 = arith.constant 0 : index
    %191 = vector.load %arg15[%c1_101, %c0_102] : memref<3x864xf32, #tpu.memory_space<vmem>>, vector<1x864xf32>
    %c2_103 = arith.constant 2 : index
    %c0_104 = arith.constant 0 : index
    %192 = vector.load %arg15[%c2_103, %c0_104] : memref<3x864xf32, #tpu.memory_space<vmem>>, vector<1x864xf32>
    %193 = vector.broadcast %190 : vector<1x864xf32> to vector<2x864xf32>
    %194 = arith.addf %189, %193 : vector<2x864xf32>
    %cst_105 = arith.constant dense<0.000000e+00> : vector<864xf32>
    %195 = vector.multi_reduction <add>, %194, %cst_105 [0] : vector<2x864xf32> to vector<864xf32>
    %196 = vector.shape_cast %195 : vector<864xf32> to vector<1x864xf32>
    %197 = arith.mulf %194, %194 : vector<2x864xf32>
    %cst_106 = arith.constant dense<0.000000e+00> : vector<864xf32>
    %198 = vector.multi_reduction <add>, %197, %cst_106 [0] : vector<2x864xf32> to vector<864xf32>
    %199 = vector.shape_cast %198 : vector<864xf32> to vector<1x864xf32>
    %200 = tpu.concatenate %196, %199 in 0 : vector<1x864xf32>, vector<1x864xf32> -> vector<2x864xf32>
    %c0_107 = arith.constant 0 : index
    %c0_108 = arith.constant 0 : index
    %201 = vector.load %arg18[%c0_107, %c0_108] : memref<864x6xf32, #tpu.memory_space<vmem>>, vector<864x6xf32>
    %cst_109 = arith.constant dense<0.000000e+00> : vector<2x6xf32>
    %202 = tpu.matmul %200, %201, %cst_109 {dimension_numbers = #tpu.dot_dimension_numbers<[1], [0], [0], [1], [0, 0, 1, 1], [], []>} : vector<2x864xf32>, vector<864x6xf32>, vector<2x6xf32> -> vector<2x6xf32>
    %203 = vector.extract_strided_slice %202 {offsets = [0, 0], sizes = [1, 6], strides = [1, 1]} : vector<2x6xf32> to vector<1x6xf32>
    %cst_110 = arith.constant 0.00347222225 : f32
    %204 = vector.broadcast %cst_110 : f32 to vector<1x6xf32>
    %205 = arith.mulf %203, %204 : vector<1x6xf32>
    %206 = vector.extract_strided_slice %202 {offsets = [1, 0], sizes = [1, 6], strides = [1, 1]} : vector<2x6xf32> to vector<1x6xf32>
    %cst_111 = arith.constant 0.00347222225 : f32
    %207 = vector.broadcast %cst_111 : f32 to vector<1x6xf32>
    %208 = arith.mulf %206, %207 : vector<1x6xf32>
    %209 = arith.mulf %205, %205 : vector<1x6xf32>
    %210 = arith.subf %208, %209 : vector<1x6xf32>
    %cst_112 = arith.constant 0.000000e+00 : f32
    %211 = vector.broadcast %cst_112 : f32 to vector<1x6xf32>
    %212 = arith.maximumf %210, %211 : vector<1x6xf32>
    %cst_113 = arith.constant 9.99999974E-6 : f32
    %213 = vector.broadcast %cst_113 : f32 to vector<1x6xf32>
    %214 = arith.addf %212, %213 : vector<1x6xf32>
    %215 = math.rsqrt %214 : vector<1x6xf32>
    %216 = tpu.concatenate %205, %215 in 0 : vector<1x6xf32>, vector<1x6xf32> -> vector<2x6xf32>
    %c0_114 = arith.constant 0 : index
    %c0_115 = arith.constant 0 : index
    %217 = vector.load %arg19[%c0_114, %c0_115] : memref<6x864xf32, #tpu.memory_space<vmem>>, vector<6x864xf32>
    %cst_116 = arith.constant dense<0.000000e+00> : vector<2x864xf32>
    %218 = tpu.matmul %216, %217, %cst_116 {dimension_numbers = #tpu.dot_dimension_numbers<[1], [0], [0], [1], [0, 0, 1, 1], [], []>} : vector<2x6xf32>, vector<6x864xf32>, vector<2x864xf32> -> vector<2x864xf32>
    %219 = vector.extract_strided_slice %218 {offsets = [1, 0], sizes = [1, 864], strides = [1, 1]} : vector<2x864xf32> to vector<1x864xf32>
    %220 = arith.mulf %191, %219 : vector<1x864xf32>
    %221 = vector.extract_strided_slice %218 {offsets = [0, 0], sizes = [1, 864], strides = [1, 1]} : vector<2x864xf32> to vector<1x864xf32>
    %222 = arith.mulf %221, %220 : vector<1x864xf32>
    %223 = arith.subf %192, %222 : vector<1x864xf32>
    %224 = vector.broadcast %220 : vector<1x864xf32> to vector<2x864xf32>
    %225 = arith.mulf %194, %224 : vector<2x864xf32>
    %226 = vector.broadcast %223 : vector<1x864xf32> to vector<2x864xf32>
    %227 = arith.addf %225, %226 : vector<2x864xf32>
    %cst_117 = arith.constant 0.000000e+00 : f32
    %228 = vector.broadcast %cst_117 : f32 to vector<2x864xf32>
    %229 = arith.maximumf %227, %228 : vector<2x864xf32>
    %230 = arith.truncf %229 : vector<2x864xf32> to vector<2x864xbf16>
    %c0_118 = arith.constant 0 : index
    %c0_119 = arith.constant 0 : index
    %231 = vector.load %arg16[%c0_118, %c0_119] : memref<864x784xbf16, #tpu.memory_space<vmem>>, vector<864x784xbf16>
    %cst_120 = arith.constant dense<0.000000e+00> : vector<2x784xf32>
    %232 = tpu.matmul %230, %231, %cst_120 {dimension_numbers = #tpu.dot_dimension_numbers<[1], [0], [0], [1], [0, 0, 1, 1], [], []>} : vector<2x864xbf16>, vector<864x784xbf16>, vector<2x784xf32> -> vector<2x784xf32>
    %c0_121 = arith.constant 0 : index
    %c0_122 = arith.constant 0 : index
    %233 = vector.load %arg17[%c0_121, %c0_122] : memref<1x1xf32, #tpu.memory_space<vmem>>, vector<1x1xf32>
    %234 = vector.broadcast %233 : vector<1x1xf32> to vector<2x784xf32>
    %235 = arith.addf %232, %234 : vector<2x784xf32>
    %cst_123 = arith.constant 5.000000e-01 : f32
    %236 = vector.broadcast %cst_123 : f32 to vector<2x784xf32>
    %237 = arith.mulf %236, %235 : vector<2x784xf32>
    %238 = math.tanh %237 : vector<2x784xf32>
    %cst_124 = arith.constant 1.000000e+00 : f32
    %239 = vector.broadcast %cst_124 : f32 to vector<2x784xf32>
    %240 = arith.addf %238, %239 : vector<2x784xf32>
    %cst_125 = arith.constant 5.000000e-01 : f32
    %241 = vector.broadcast %cst_125 : f32 to vector<2x784xf32>
    %242 = arith.mulf %241, %240 : vector<2x784xf32>
    %c0_126 = arith.constant 0 : index
    %c0_127 = arith.constant 0 : index
    %243 = vector.load %arg22[%c0_126, %c0_127] : memref<2x784xf32, #tpu.memory_space<vmem>>, vector<2x784xf32>
    tpu.vector_store %arg22[%c0_126, %c0_127], %242 {strides = array<i32>} : memref<2x784xf32, #tpu.memory_space<vmem>>, vector<2x784xf32>,
    return
  }
  func.func @transform_0(%arg0: i32) -> (i32, i32) {
    %c0_i32 = arith.constant 0 : i32
    %c0_i32_0 = arith.constant 0 : i32
    return %arg0, %c0_i32 : i32, i32
  }
  func.func @transform_1(%arg0: i32) -> (i32, i32) {
    %c0_i32 = arith.constant 0 : i32
    %c0_i32_0 = arith.constant 0 : i32
    %c0_i32_1 = arith.constant 0 : i32
    return %c0_i32, %c0_i32_0 : i32, i32
  }
  func.func @transform_2(%arg0: i32) -> (i32, i32) {
    %c0_i32 = arith.constant 0 : i32
    %c0_i32_0 = arith.constant 0 : i32
    %c0_i32_1 = arith.constant 0 : i32
    return %c0_i32, %c0_i32_0 : i32, i32
  }
  func.func @transform_3(%arg0: i32) -> (i32, i32) {
    %c0_i32 = arith.constant 0 : i32
    %c0_i32_0 = arith.constant 0 : i32
    %c0_i32_1 = arith.constant 0 : i32
    return %c0_i32, %c0_i32_0 : i32, i32
  }
  func.func @transform_4(%arg0: i32) -> (i32, i32) {
    %c0_i32 = arith.constant 0 : i32
    %c0_i32_0 = arith.constant 0 : i32
    %c0_i32_1 = arith.constant 0 : i32
    return %c0_i32, %c0_i32_0 : i32, i32
  }
  func.func @transform_5(%arg0: i32) -> (i32, i32) {
    %c0_i32 = arith.constant 0 : i32
    %c0_i32_0 = arith.constant 0 : i32
    %c0_i32_1 = arith.constant 0 : i32
    return %c0_i32, %c0_i32_0 : i32, i32
  }
  func.func @transform_6(%arg0: i32) -> (i32, i32) {
    %c0_i32 = arith.constant 0 : i32
    %c0_i32_0 = arith.constant 0 : i32
    %c0_i32_1 = arith.constant 0 : i32
    return %c0_i32, %c0_i32_0 : i32, i32
  }
  func.func @transform_7(%arg0: i32) -> (i32, i32) {
    %c0_i32 = arith.constant 0 : i32
    %c0_i32_0 = arith.constant 0 : i32
    %c0_i32_1 = arith.constant 0 : i32
    return %c0_i32, %c0_i32_0 : i32, i32
  }
  func.func @transform_8(%arg0: i32) -> (i32, i32) {
    %c0_i32 = arith.constant 0 : i32
    %c0_i32_0 = arith.constant 0 : i32
    %c0_i32_1 = arith.constant 0 : i32
    return %c0_i32, %c0_i32_0 : i32, i32
  }
  func.func @transform_9(%arg0: i32) -> (i32, i32) {
    %c0_i32 = arith.constant 0 : i32
    %c0_i32_0 = arith.constant 0 : i32
    %c0_i32_1 = arith.constant 0 : i32
    return %c0_i32, %c0_i32_0 : i32, i32
  }
  func.func @transform_10(%arg0: i32) -> (i32, i32) {
    %c0_i32 = arith.constant 0 : i32
    %c0_i32_0 = arith.constant 0 : i32
    %c0_i32_1 = arith.constant 0 : i32
    return %c0_i32, %c0_i32_0 : i32, i32
  }
  func.func @transform_11(%arg0: i32) -> (i32, i32) {
    %c0_i32 = arith.constant 0 : i32
    %c0_i32_0 = arith.constant 0 : i32
    %c0_i32_1 = arith.constant 0 : i32
    return %c0_i32, %c0_i32_0 : i32, i32
  }
  func.func @transform_12(%arg0: i32) -> (i32, i32) {
    %c0_i32 = arith.constant 0 : i32
    %c0_i32_0 = arith.constant 0 : i32
    %c0_i32_1 = arith.constant 0 : i32
    return %c0_i32, %c0_i32_0 : i32, i32
  }
  func.func @transform_13(%arg0: i32) -> (i32, i32) {
    %c0_i32 = arith.constant 0 : i32
    %c0_i32_0 = arith.constant 0 : i32
    %c0_i32_1 = arith.constant 0 : i32
    return %c0_i32, %c0_i32_0 : i32, i32
  }
  func.func @transform_14(%arg0: i32) -> (i32, i32) {
    %c0_i32 = arith.constant 0 : i32
    %c0_i32_0 = arith.constant 0 : i32
    %c0_i32_1 = arith.constant 0 : i32
    return %c0_i32, %c0_i32_0 : i32, i32
  }
  func.func @transform_15(%arg0: i32) -> (i32, i32) {
    %c0_i32 = arith.constant 0 : i32
    %c0_i32_0 = arith.constant 0 : i32
    %c0_i32_1 = arith.constant 0 : i32
    return %c0_i32, %c0_i32_0 : i32, i32
  }
  func.func @transform_16(%arg0: i32) -> (i32, i32) {
    %c0_i32 = arith.constant 0 : i32
    %c0_i32_0 = arith.constant 0 : i32
    %c0_i32_1 = arith.constant 0 : i32
    return %c0_i32, %c0_i32_0 : i32, i32
  }
  func.func @transform_17(%arg0: i32) -> (i32, i32) {
    %c0_i32 = arith.constant 0 : i32
    %c0_i32_0 = arith.constant 0 : i32
    %c0_i32_1 = arith.constant 0 : i32
    return %c0_i32, %c0_i32_0 : i32, i32
  }
  func.func @transform_18(%arg0: i32) -> (i32, i32) {
    %c0_i32 = arith.constant 0 : i32
    %c0_i32_0 = arith.constant 0 : i32
    %c0_i32_1 = arith.constant 0 : i32
    return %c0_i32, %c0_i32_0 : i32, i32
  }
  func.func @transform_19(%arg0: i32) -> (i32, i32) {
    %c0_i32 = arith.constant 0 : i32
    %c0_i32_0 = arith.constant 0 : i32
    %c0_i32_1 = arith.constant 0 : i32
    return %c0_i32, %c0_i32_0 : i32, i32
  }
  func.func @transform_20(%arg0: i32) -> (i32, i32) {
    %c0_i32 = arith.constant 0 : i32
    %c0_i32_0 = arith.constant 0 : i32
    %c0_i32_1 = arith.constant 0 : i32
    return %c0_i32, %c0_i32_0 : i32, i32
  }
  func.func @transform_21(%arg0: i32) -> (i32, i32) {
    %c0_i32 = arith.constant 0 : i32
    %c0_i32_0 = arith.constant 0 : i32
    return %arg0, %c0_i32 : i32, i32
  }
  func.func @transform_22(%arg0: i32) -> (i32, i32) {
    %c0_i32 = arith.constant 0 : i32
    %c0_i32_0 = arith.constant 0 : i32
    return %arg0, %c0_i32 : i32, i32
  }
  func.func @transform_23(%arg0: i32) -> (i32, i32) {
    %c0_i32 = arith.constant 0 : i32
    %c0_i32_0 = arith.constant 0 : i32
    return %arg0, %c0_i32 : i32, i32
  }
}

</mosaic_0001>

<llo_original>
// kernel: autoencoder_forward.1
$region0: #{autoencoder_forward.1}
  #allocation0 [shape = 'u32[]', space=smem, size = 0x4, offset = 0x4, fixed_abs, tag = 'smem constant byte address 0x4 - core index']
  #allocation1 [shape = 'u32[144,128]{1,0:T(1,128)}', space=vmem, size = 0x12000, scoped, tag = 'internal scratch']
  #allocation2 [shape = 'f32[1,1]{1,0:T(1,128)S(1)}', space=vmem, size = 0x200, scoped, tag = 'scoped memory for autoencoder_forward.1']
  %s0 = inlined_call_operand.vmem [shape: f32[2,784], index: 0, kind: input, shape index: {}]
  %s1 = inlined_call_operand.vmem [shape: bf16[784,864], index: 1, kind: input, shape index: {}]
  %s2 = inlined_call_operand.vmem [shape: f32[3,864], index: 2, kind: input, shape index: {}]
  %s3 = inlined_call_operand.vmem [shape: bf16[864,256], index: 3, kind: input, shape index: {}]
  %s4 = inlined_call_operand.vmem [shape: f32[3,256], index: 4, kind: input, shape index: {}]
  %s5 = inlined_call_operand.vmem [shape: bf16[256,32], index: 5, kind: input, shape index: {}]
  %s6 = inlined_call_operand.vmem [shape: f32[3,32], index: 6, kind: input, shape index: {}]
  %s7 = inlined_call_operand.vmem [shape: bf16[32,20], index: 7, kind: input, shape index: {}]
  %s8 = inlined_call_operand.vmem [shape: f32[1,20], index: 8, kind: input, shape index: {}]
  %s9 = inlined_call_operand.vmem [shape: bf16[20,10], index: 9, kind: input, shape index: {}]
  %s10 = inlined_call_operand.vmem [shape: f32[1,10], index: 10, kind: input, shape index: {}]
  %s11 = inlined_call_operand.vmem [shape: bf16[32,256], index: 11, kind: input, shape index: {}]
  %s12 = inlined_call_operand.vmem [shape: f32[3,256], index: 12, kind: input, shape index: {}]
  %s13 = inlined_call_operand.vmem [shape: bf16[256,864], index: 13, kind: input, shape index: {}]
  %s14 = inlined_call_operand.vmem [shape: f32[3,864], index: 14, kind: input, shape index: {}]
  %s15 = inlined_call_operand.vmem [shape: bf16[864,784], index: 15, kind: input, shape index: {}]
  %s16 = inlined_call_operand.<no memory space> [shape: f32[1,1], index: 16, kind: input, shape index: {}]
  %s17 = inlined_call_operand.vmem [shape: f32[864,6], index: 17, kind: input, shape index: {}]
  %s18 = inlined_call_operand.vmem [shape: f32[6,864], index: 18, kind: input, shape index: {}]
  %s19 = inlined_call_operand.vmem [shape: f32[256,16], index: 19, kind: input, shape index: {}]
  %s20 = inlined_call_operand.vmem [shape: f32[16,256], index: 20, kind: input, shape index: {}]
  %s21 = inlined_call_operand.vmem [shape: f32[2,784], index: 21, kind: output, shape index: {0}]
  %s22 = inlined_call_operand.hbm [shape: f32[2,10], index: 22, kind: output, shape index: {1}]
  %s23 = inlined_call_operand.vmem [shape: f32[2,32], index: 23, kind: output, shape index: {2}]
  %24 = xla_tuple %s21, %s22, %s23
  %s25 = sld [smem:[#allocation0]]
  $region110: #{autoencoder_forward.1} parent=0
    _
  %s27 = ssub.s32 1, %s25
  %s28 = scalar_select 0, %s27, %s25
  %v29 = vstv %s16
  %30 = vst [vmem:[#allocation2] sm:$0x1] %v29
  $region1: #{autoencoder_forward.1} parent=0
    #allocation3 [shape = 'u8[1024]{0}', space=vmem, size = 0x400, scoped, tag = 'output window, operand 1, single buffered']
    #allocation4 [shape = 's32[1]{0}', space=sflag, size = 0x4, scoped, tag = 'scoped memory for autoencoder_forward.1']
    %31 = vsyncpa [#allocation4], 0
    // Predicated region
    $region2: #{autoencoder_forward.1} parent=1 // pred_check
      _
    $region3: #{autoencoder_forward.1} parent=1 // pred_check_branch
      %33 = sbr.rel (0) target = $region5
    $region4: #{autoencoder_forward.1} parent=1 // pred_region
      _
    $region5: #{autoencoder_forward.1} parent=1 // pred_fallthru
      _
    // Predicated region
    $region6: #{autoencoder_forward.1} parent=1 // pred_check
      _
    $region7: #{autoencoder_forward.1} parent=1 // pred_check_branch
      %35 = sbr.rel (0) target = $region9
    $region8: #{autoencoder_forward.1} parent=1 // pred_region
      _
    $region9: #{autoencoder_forward.1} parent=1 // pred_fallthru
      _
    // Predicated region
    $region10: #{autoencoder_forward.1} parent=1 // pred_check
      _
    $region11: #{autoencoder_forward.1} parent=1 // pred_check_branch
      %37 = sbr.rel (0) target = $region13
    $region12: #{autoencoder_forward.1} parent=1 // pred_region
      _
    $region13: #{autoencoder_forward.1} parent=1 // pred_fallthru
      _
    // Predicated region
    $region14: #{autoencoder_forward.1} parent=1 // pred_check
      _
    $region15: #{autoencoder_forward.1} parent=1 // pred_check_branch
      %39 = sbr.rel (0) target = $region17
    $region16: #{autoencoder_forward.1} parent=1 // pred_region
      _
    $region17: #{autoencoder_forward.1} parent=1 // pred_fallthru
      _
    // Predicated region
    $region18: #{autoencoder_forward.1} parent=1 // pred_check
      _
    $region19: #{autoencoder_forward.1} parent=1 // pred_check_branch
      %41 = sbr.rel (0) target = $region21
    $region20: #{autoencoder_forward.1} parent=1 // pred_region
      _
    $region21: #{autoencoder_forward.1} parent=1 // pred_fallthru
      _
    // Predicated region
    $region22: #{autoencoder_forward.1} parent=1 // pred_check
      _
    $region23: #{autoencoder_forward.1} parent=1 // pred_check_branch
      %43 = sbr.rel (0) target = $region25
    $region24: #{autoencoder_forward.1} parent=1 // pred_region
      _
    $region25: #{autoencoder_forward.1} parent=1 // pred_fallthru
      _
    // Predicated region
    $region26: #{autoencoder_forward.1} parent=1 // pred_check
      _
    $region27: #{autoencoder_forward.1} parent=1 // pred_check_branch
      %45 = sbr.rel (0) target = $region29
    $region28: #{autoencoder_forward.1} parent=1 // pred_region
      _
    $region29: #{autoencoder_forward.1} parent=1 // pred_fallthru
      _
    // Predicated region
    $region30: #{autoencoder_forward.1} parent=1 // pred_check
      _
    $region31: #{autoencoder_forward.1} parent=1 // pred_check_branch
      %47 = sbr.rel (0) target = $region33
    $region32: #{autoencoder_forward.1} parent=1 // pred_region
      _
    $region33: #{autoencoder_forward.1} parent=1 // pred_fallthru
      _
    // Predicated region
    $region34: #{autoencoder_forward.1} parent=1 // pred_check
      _
    $region35: #{autoencoder_forward.1} parent=1 // pred_check_branch
      %49 = sbr.rel (0) target = $region37
    $region36: #{autoencoder_forward.1} parent=1 // pred_region
      _
    $region37: #{autoencoder_forward.1} parent=1 // pred_fallthru
      _
    // Predicated region
    $region38: #{autoencoder_forward.1} parent=1 // pred_check
      _
    $region39: #{autoencoder_forward.1} parent=1 // pred_check_branch
      %51 = sbr.rel (0) target = $region41
    $region40: #{autoencoder_forward.1} parent=1 // pred_region
      _
    $region41: #{autoencoder_forward.1} parent=1 // pred_fallthru
      _
    // Predicated region
    $region42: #{autoencoder_forward.1} parent=1 // pred_check
      _
    $region43: #{autoencoder_forward.1} parent=1 // pred_check_branch
      %53 = sbr.rel (0) target = $region45
    $region44: #{autoencoder_forward.1} parent=1 // pred_region
      _
    $region45: #{autoencoder_forward.1} parent=1 // pred_fallthru
      _
    // Predicated region
    $region46: #{autoencoder_forward.1} parent=1 // pred_check
      _
    $region47: #{autoencoder_forward.1} parent=1 // pred_check_branch
      %55 = sbr.rel (0) target = $region49
    $region48: #{autoencoder_forward.1} parent=1 // pred_region
      _
    $region49: #{autoencoder_forward.1} parent=1 // pred_fallthru
      _
    // Predicated region
    $region50: #{autoencoder_forward.1} parent=1 // pred_check
      _
    $region51: #{autoencoder_forward.1} parent=1 // pred_check_branch
      %57 = sbr.rel (0) target = $region53
    $region52: #{autoencoder_forward.1} parent=1 // pred_region
      _
    $region53: #{autoencoder_forward.1} parent=1 // pred_fallthru
      _
    // Predicated region
    $region54: #{autoencoder_forward.1} parent=1 // pred_check
      _
    $region55: #{autoencoder_forward.1} parent=1 // pred_check_branch
      %59 = sbr.rel (0) target = $region57
    $region56: #{autoencoder_forward.1} parent=1 // pred_region
      _
    $region57: #{autoencoder_forward.1} parent=1 // pred_fallthru
      _
    // Predicated region
    $region58: #{autoencoder_forward.1} parent=1 // pred_check
      _
    $region59: #{autoencoder_forward.1} parent=1 // pred_check_branch
      %61 = sbr.rel (0) target = $region61
    $region60: #{autoencoder_forward.1} parent=1 // pred_region
      _
    $region61: #{autoencoder_forward.1} parent=1 // pred_fallthru
      _
    // Predicated region
    $region62: #{autoencoder_forward.1} parent=1 // pred_check
      _
    $region63: #{autoencoder_forward.1} parent=1 // pred_check_branch
      %63 = sbr.rel (0) target = $region65
    $region64: #{autoencoder_forward.1} parent=1 // pred_region
      _
    $region65: #{autoencoder_forward.1} parent=1 // pred_fallthru
      _
    // Predicated region
    $region66: #{autoencoder_forward.1} parent=1 // pred_check
      _
    $region67: #{autoencoder_forward.1} parent=1 // pred_check_branch
      %65 = sbr.rel (0) target = $region69
    $region68: #{autoencoder_forward.1} parent=1 // pred_region
      _
    $region69: #{autoencoder_forward.1} parent=1 // pred_fallthru
      _
    // Predicated region
    $region70: #{autoencoder_forward.1} parent=1 // pred_check
      _
    $region71: #{autoencoder_forward.1} parent=1 // pred_check_branch
      %67 = sbr.rel (0) target = $region73
    $region72: #{autoencoder_forward.1} parent=1 // pred_region
      _
    $region73: #{autoencoder_forward.1} parent=1 // pred_fallthru
      _
    // Predicated region
    $region74: #{autoencoder_forward.1} parent=1 // pred_check
      _
    $region75: #{autoencoder_forward.1} parent=1 // pred_check_branch
      %69 = sbr.rel (0) target = $region77
    $region76: #{autoencoder_forward.1} parent=1 // pred_region
      _
    $region77: #{autoencoder_forward.1} parent=1 // pred_fallthru
      _
    // Predicated region
    $region78: #{autoencoder_forward.1} parent=1 // pred_check
      _
    $region79: #{autoencoder_forward.1} parent=1 // pred_check_branch
      %71 = sbr.rel (0) target = $region81
    $region80: #{autoencoder_forward.1} parent=1 // pred_region
      _
    $region81: #{autoencoder_forward.1} parent=1 // pred_fallthru
      _
    // Predicated region
    $region82: #{autoencoder_forward.1} parent=1 // pred_check
      _
    $region83: #{autoencoder_forward.1} parent=1 // pred_check_branch
      %73 = sbr.rel (0) target = $region85
    $region84: #{autoencoder_forward.1} parent=1 // pred_region
      _
    $region85: #{autoencoder_forward.1} parent=1 // pred_fallthru
      _
    %v75 = vld [vmem:[%s0] sm:$0xff]
    %v76 = vld [vmem:[%s0 + $0x8] sm:$0x3f]
    %v79 = vcombine.high %v75, %v75
    %v81 = vunpack.c.l.s4 1983009808
    %v82 = vunpack.c.0.s8 %v81
    %v83 = vlaneseq
    %v84 = vshrl.u32 %v83, 7
    %v85 = vsub.s32 %v82, %v84
    %v86 = vrot.slane %v75, %v85
    %v88 = vunpack.c.l.s4 1983009808
    %v89 = vunpack.c.0.s8 %v88
    %v90 = vlaneseq
    %v91 = vshrl.u32 %v90, 7
    %v92 = vsub.s32 %v89, %v91
    %v93 = vrot.slane %v79, %v92
    %v94 = vcombine.high %v86, %v86
    %v95 = vcombine.high %v93, %v93
    %v96 = vcombine.high %v76, %v76
    %v98 = vunpack.c.l.s4 1983009808
    %v99 = vunpack.c.0.s8 %v98
    %v100 = vlaneseq
    %v101 = vshrl.u32 %v100, 7
    %v102 = vsub.s32 %v99, %v101
    %v103 = vrot.slane %v76, %v102
    %v105 = vunpack.c.l.s4 1983009808
    %v106 = vunpack.c.0.s8 %v105
    %v107 = vlaneseq
    %v108 = vshrl.u32 %v107, 7
    %v109 = vsub.s32 %v106, %v108
    %v110 = vrot.slane %v96, %v109
    %v111 = vcombine.high %v103, %v103
    %v119 = vpack.c.bf16 %v86, %v86
    %v120 = vpack.c.bf16 %v94, %v94
    %v121 = vpack.c.bf16 %v93, %v93
    %v122 = vpack.c.bf16 %v95, %v95
    %v123 = vpack.c.bf16 %v103, %v103
    %v124 = vpack.c.bf16 %v111, %v111
    %v125 = vpack.c.bf16 %v110, %v110
    %v126 = vld [vmem:[%s1] sm:$0xff]
    %v127 = vld [vmem:[%s1 + $0x8] sm:$0xff]
    %v128 = vld [vmem:[%s1 + $0x10] sm:$0xff]
    %v129 = vld [vmem:[%s1 + $0x18] sm:$0xf]
    %v130 = vld [vmem:[%s1 + $0x1c] sm:$0xff]
    %v131 = vld [vmem:[%s1 + $0x24] sm:$0xff]
    %v132 = vld [vmem:[%s1 + $0x2c] sm:$0xff]
    %v133 = vld [vmem:[%s1 + $0x34] sm:$0xf]
    %v134 = vld [vmem:[%s1 + $0x38] sm:$0xff]
    %v135 = vld [vmem:[%s1 + $0x40] sm:$0xff]
    %v136 = vld [vmem:[%s1 + $0x48] sm:$0xff]
    %v137 = vld [vmem:[%s1 + $0x50] sm:$0xf]
    %v138 = vld [vmem:[%s1 + $0x54] sm:$0xff]
    %v139 = vld [vmem:[%s1 + $0x5c] sm:$0xff]
    %v140 = vld [vmem:[%s1 + $0x64] sm:$0xff]
    %v141 = vld [vmem:[%s1 + $0x6c] sm:$0xf]
    %v142 = vld [vmem:[%s1 + $0x70] sm:$0xff]
    %v143 = vld [vmem:[%s1 + $0x78] sm:$0xff]
    %v144 = vld [vmem:[%s1 + $0x80] sm:$0xff]
    %v145 = vld [vmem:[%s1 + $0x88] sm:$0xf]
    %v146 = vld [vmem:[%s1 + $0x8c] sm:$0xff]
    %v147 = vld [vmem:[%s1 + $0x94] sm:$0xff]
    %v148 = vld [vmem:[%s1 + $0x9c] sm:$0xff]
    %v149 = vld [vmem:[%s1 + $0xa4] sm:$0xf]
    %v150 = vld [vmem:[%s1 + $0xa8] sm:$0xff]
    %v151 = vld [vmem:[%s1 + $0xb0] sm:$0xff]
    %v152 = vld [vmem:[%s1 + $0xb8] sm:$0xff]
    %v153 = vld [vmem:[%s1 + $0xc0] sm:$0xf]
    %v154 = vld [vmem:[%s1 + $0xc4] sm:$0xff]
    %v155 = vld [vmem:[%s1 + $0xcc] sm:$0xff]
    %v156 = vld [vmem:[%s1 + $0xd4] sm:$0xff]
    %v157 = vld [vmem:[%s1 + $0xdc] sm:$0xf]
    %v158 = vld [vmem:[%s1 + $0xe0] sm:$0xff]
    %v159 = vld [vmem:[%s1 + $0xe8] sm:$0xff]
    %v160 = vld [vmem:[%s1 + $0xf0] sm:$0xff]
    %v161 = vld [vmem:[%s1 + $0xf8] sm:$0xf]
    %v162 = vld [vmem:[%s1 + $0xfc] sm:$0xff]
    %v163 = vld [vmem:[%s1 + $0x104] sm:$0xff]
    %v164 = vld [vmem:[%s1 + $0x10c] sm:$0xff]
    %v165 = vld [vmem:[%s1 + $0x114] sm:$0xf]
    %v166 = vld [vmem:[%s1 + $0x118] sm:$0xff]
    %v167 = vld [vmem:[%s1 + $0x120] sm:$0xff]
    %v168 = vld [vmem:[%s1 + $0x128] sm:$0xff]
    %v169 = vld [vmem:[%s1 + $0x130] sm:$0xf]
    %v170 = vld [vmem:[%s1 + $0x134] sm:$0xff]
    %v171 = vld [vmem:[%s1 + $0x13c] sm:$0xff]
    %v172 = vld [vmem:[%s1 + $0x144] sm:$0xff]
    %v173 = vld [vmem:[%s1 + $0x14c] sm:$0xf]
    %v174 = vld [vmem:[%s1 + $0x150] sm:$0xff]
    %v175 = vld [vmem:[%s1 + $0x158] sm:$0xff]
    %v176 = vld [vmem:[%s1 + $0x160] sm:$0xff]
    %v177 = vld [vmem:[%s1 + $0x168] sm:$0xf]
    %v178 = vld [vmem:[%s1 + $0x16c] sm:$0xff]
    %v179 = vld [vmem:[%s1 + $0x174] sm:$0xff]
    %v180 = vld [vmem:[%s1 + $0x17c] sm:$0xff]
    %v181 = vld [vmem:[%s1 + $0x184] sm:$0xf]
    %v182 = vld [vmem:[%s1 + $0x188] sm:$0xff]
    %v183 = vld [vmem:[%s1 + $0x190] sm:$0xff]
    %v184 = vld [vmem:[%s1 + $0x198] sm:$0xff]
    %v185 = vld [vmem:[%s1 + $0x1a0] sm:$0xf]
    %v186 = vld [vmem:[%s1 + $0x1a4] sm:$0xff]
    %v187 = vld [vmem:[%s1 + $0x1ac] sm:$0xff]
    %v188 = vld [vmem:[%s1 + $0x1b4] sm:$0xff]
    %v189 = vld [vmem:[%s1 + $0x1bc] sm:$0xf]
    %v190 = vld [vmem:[%s1 + $0x1c0] sm:$0xff]
    %v191 = vld [vmem:[%s1 + $0x1c8] sm:$0xff]
    %v192 = vld [vmem:[%s1 + $0x1d0] sm:$0xff]
    %v193 = vld [vmem:[%s1 + $0x1d8] sm:$0xf]
    %v194 = vld [vmem:[%s1 + $0x1dc] sm:$0xff]
    %v195 = vld [vmem:[%s1 + $0x1e4] sm:$0xff]
    %v196 = vld [vmem:[%s1 + $0x1ec] sm:$0xff]
    %v197 = vld [vmem:[%s1 + $0x1f4] sm:$0xf]
    %v198 = vld [vmem:[%s1 + $0x1f8] sm:$0xff]
    %v199 = vld [vmem:[%s1 + $0x200] sm:$0xff]
    %v200 = vld [vmem:[%s1 + $0x208] sm:$0xff]
    %v201 = vld [vmem:[%s1 + $0x210] sm:$0xf]
    %v202 = vld [vmem:[%s1 + $0x214] sm:$0xff]
    %v203 = vld [vmem:[%s1 + $0x21c] sm:$0xff]
    %v204 = vld [vmem:[%s1 + $0x224] sm:$0xff]
    %v205 = vld [vmem:[%s1 + $0x22c] sm:$0xf]
    %v206 = vld [vmem:[%s1 + $0x230] sm:$0xff]
    %v207 = vld [vmem:[%s1 + $0x238] sm:$0xff]
    %v208 = vld [vmem:[%s1 + $0x240] sm:$0xff]
    %v209 = vld [vmem:[%s1 + $0x248] sm:$0xf]
    %v210 = vld [vmem:[%s1 + $0x24c] sm:$0xff]
    %v211 = vld [vmem:[%s1 + $0x254] sm:$0xff]
    %v212 = vld [vmem:[%s1 + $0x25c] sm:$0xff]
    %v213 = vld [vmem:[%s1 + $0x264] sm:$0xf]
    %v214 = vld [vmem:[%s1 + $0x268] sm:$0xff]
    %v215 = vld [vmem:[%s1 + $0x270] sm:$0xff]
    %v216 = vld [vmem:[%s1 + $0x278] sm:$0xff]
    %v217 = vld [vmem:[%s1 + $0x280] sm:$0xf]
    %v218 = vld [vmem:[%s1 + $0x284] sm:$0xff]
    %v219 = vld [vmem:[%s1 + $0x28c] sm:$0xff]
    %v220 = vld [vmem:[%s1 + $0x294] sm:$0xff]
    %v221 = vld [vmem:[%s1 + $0x29c] sm:$0xf]
    %v222 = vld [vmem:[%s1 + $0x2a0] sm:$0xff]
    %v223 = vld [vmem:[%s1 + $0x2a8] sm:$0xff]
    %v224 = vld [vmem:[%s1 + $0x2b0] sm:$0xff]
    %v225 = vld [vmem:[%s1 + $0x2b8] sm:$0xf]
    %v226 = vld [vmem:[%s1 + $0x2bc] sm:$0xff]
    %v227 = vld [vmem:[%s1 + $0x2c4] sm:$0xff]
    %v228 = vld [vmem:[%s1 + $0x2cc] sm:$0xff]
    %v229 = vld [vmem:[%s1 + $0x2d4] sm:$0xf]
    %v230 = vld [vmem:[%s1 + $0x2d8] sm:$0xff]
    %v231 = vld [vmem:[%s1 + $0x2e0] sm:$0xff]
    %v232 = vld [vmem:[%s1 + $0x2e8] sm:$0xff]
    %v233 = vld [vmem:[%s1 + $0x2f0] sm:$0xf]
    %v234 = vld [vmem:[%s1 + $0x2f4] sm:$0xff]
    %v235 = vld [vmem:[%s1 + $0x2fc] sm:$0xff]
    %v236 = vld [vmem:[%s1 + $0x304] sm:$0xff]
    %v237 = vld [vmem:[%s1 + $0x30c] sm:$0xf]
    %v238 = vld [vmem:[%s1 + $0x310] sm:$0xff]
    %v239 = vld [vmem:[%s1 + $0x318] sm:$0xff]
    %v240 = vld [vmem:[%s1 + $0x320] sm:$0xff]
    %v241 = vld [vmem:[%s1 + $0x328] sm:$0xf]
    %v242 = vld [vmem:[%s1 + $0x32c] sm:$0xff]
    %v243 = vld [vmem:[%s1 + $0x334] sm:$0xff]
    %v244 = vld [vmem:[%s1 + $0x33c] sm:$0xff]
    %v245 = vld [vmem:[%s1 + $0x344] sm:$0xf]
    %v246 = vld [vmem:[%s1 + $0x348] sm:$0xff]
    %v247 = vld [vmem:[%s1 + $0x350] sm:$0xff]
    %v248 = vld [vmem:[%s1 + $0x358] sm:$0xff]
    %v249 = vld [vmem:[%s1 + $0x360] sm:$0xf]
    %v250 = vld [vmem:[%s1 + $0x364] sm:$0xff]
    %v251 = vld [vmem:[%s1 + $0x36c] sm:$0xff]
    %v252 = vld [vmem:[%s1 + $0x374] sm:$0xff]
    %v253 = vld [vmem:[%s1 + $0x37c] sm:$0xf]
    %v254 = vld [vmem:[%s1 + $0x380] sm:$0xff]
    %v255 = vld [vmem:[%s1 + $0x388] sm:$0xff]
    %v256 = vld [vmem:[%s1 + $0x390] sm:$0xff]
    %v257 = vld [vmem:[%s1 + $0x398] sm:$0xf]
    %v258 = vld [vmem:[%s1 + $0x39c] sm:$0xff]
    %v259 = vld [vmem:[%s1 + $0x3a4] sm:$0xff]
    %v260 = vld [vmem:[%s1 + $0x3ac] sm:$0xff]
    %v261 = vld [vmem:[%s1 + $0x3b4] sm:$0xf]
    %v262 = vld [vmem:[%s1 + $0x3b8] sm:$0xff]
    %v263 = vld [vmem:[%s1 + $0x3c0] sm:$0xff]
    %v264 = vld [vmem:[%s1 + $0x3c8] sm:$0xff]
    %v265 = vld [vmem:[%s1 + $0x3d0] sm:$0xf]
    %v266 = vld [vmem:[%s1 + $0x3d4] sm:$0xff]
    %v267 = vld [vmem:[%s1 + $0x3dc] sm:$0xff]
    %v268 = vld [vmem:[%s1 + $0x3e4] sm:$0xff]
    %v269 = vld [vmem:[%s1 + $0x3ec] sm:$0xf]
    %v270 = vld [vmem:[%s1 + $0x3f0] sm:$0xff]
    %v271 = vld [vmem:[%s1 + $0x3f8] sm:$0xff]
    %v272 = vld [vmem:[%s1 + $0x400] sm:$0xff]
    %v273 = vld [vmem:[%s1 + $0x408] sm:$0xf]
    %v274 = vld [vmem:[%s1 + $0x40c] sm:$0xff]
    %v275 = vld [vmem:[%s1 + $0x414] sm:$0xff]
    %v276 = vld [vmem:[%s1 + $0x41c] sm:$0xff]
    %v277 = vld [vmem:[%s1 + $0x424] sm:$0xf]
    %v278 = vld [vmem:[%s1 + $0x428] sm:$0xff]
    %v279 = vld [vmem:[%s1 + $0x430] sm:$0xff]
    %v280 = vld [vmem:[%s1 + $0x438] sm:$0xff]
    %v281 = vld [vmem:[%s1 + $0x440] sm:$0xf]
    %v282 = vld [vmem:[%s1 + $0x444] sm:$0xff]
    %v283 = vld [vmem:[%s1 + $0x44c] sm:$0xff]
    %v284 = vld [vmem:[%s1 + $0x454] sm:$0xff]
    %v285 = vld [vmem:[%s1 + $0x45c] sm:$0xf]
    %v286 = vld [vmem:[%s1 + $0x460] sm:$0xff]
    %v287 = vld [vmem:[%s1 + $0x468] sm:$0xff]
    %v288 = vld [vmem:[%s1 + $0x470] sm:$0xff]
    %v289 = vld [vmem:[%s1 + $0x478] sm:$0xf]
    %v290 = vld [vmem:[%s1 + $0x47c] sm:$0xff]
    %v291 = vld [vmem:[%s1 + $0x484] sm:$0xff]
    %v292 = vld [vmem:[%s1 + $0x48c] sm:$0xff]
    %v293 = vld [vmem:[%s1 + $0x494] sm:$0xf]
    %v294 = vld [vmem:[%s1 + $0x498] sm:$0xff]
    %v295 = vld [vmem:[%s1 + $0x4a0] sm:$0xff]
    %v296 = vld [vmem:[%s1 + $0x4a8] sm:$0xff]
    %v297 = vld [vmem:[%s1 + $0x4b0] sm:$0xf]
    %v298 = vld [vmem:[%s1 + $0x4b4] sm:$0xff]
    %v299 = vld [vmem:[%s1 + $0x4bc] sm:$0xff]
    %v300 = vld [vmem:[%s1 + $0x4c4] sm:$0xff]
    %v301 = vld [vmem:[%s1 + $0x4cc] sm:$0xf]
    %v302 = vld [vmem:[%s1 + $0x4d0] sm:$0xff]
    %v303 = vld [vmem:[%s1 + $0x4d8] sm:$0xff]
    %v304 = vld [vmem:[%s1 + $0x4e0] sm:$0xff]
    %v305 = vld [vmem:[%s1 + $0x4e8] sm:$0xf]
    %v306 = vld [vmem:[%s1 + $0x4ec] sm:$0xff]
    %v307 = vld [vmem:[%s1 + $0x4f4] sm:$0xff]
    %v308 = vld [vmem:[%s1 + $0x4fc] sm:$0xff]
    %v309 = vld [vmem:[%s1 + $0x504] sm:$0xf]
    %v310 = vld [vmem:[%s1 + $0x508] sm:$0xff]
    %v311 = vld [vmem:[%s1 + $0x510] sm:$0xff]
    %v312 = vld [vmem:[%s1 + $0x518] sm:$0xff]
    %v313 = vld [vmem:[%s1 + $0x520] sm:$0xf]
    %v314 = vld [vmem:[%s1 + $0x524] sm:$0xff]
    %v315 = vld [vmem:[%s1 + $0x52c] sm:$0xff]
    %v316 = vld [vmem:[%s1 + $0x534] sm:$0xff]
    %v317 = vld [vmem:[%s1 + $0x53c] sm:$0xf]
    %v318 = vld [vmem:[%s1 + $0x540] sm:$0xff]
    %v319 = vld [vmem:[%s1 + $0x548] sm:$0xff]
    %v320 = vld [vmem:[%s1 + $0x550] sm:$0xff]
    %v321 = vld [vmem:[%s1 + $0x558] sm:$0xf]
    %v322 = vld [vmem:[%s1 + $0x55c] sm:$0xff]
    %v323 = vld [vmem:[%s1 + $0x564] sm:$0xff]
    %v324 = vld [vmem:[%s1 + $0x56c] sm:$0xff]
    %v325 = vld [vmem:[%s1 + $0x574] sm:$0xf]
    %v326 = vld [vmem:[%s1 + $0x578] sm:$0xff]
    %v327 = vld [vmem:[%s1 + $0x580] sm:$0xff]
    %v328 = vld [vmem:[%s1 + $0x588] sm:$0xff]
    %v329 = vld [vmem:[%s1 + $0x590] sm:$0xf]
    %v330 = vld [vmem:[%s1 + $0x594] sm:$0xff]
    %v331 = vld [vmem:[%s1 + $0x59c] sm:$0xff]
    %v332 = vld [vmem:[%s1 + $0x5a4] sm:$0xff]
    %v333 = vld [vmem:[%s1 + $0x5ac] sm:$0xf]
    %v334 = vld [vmem:[%s1 + $0x5b0] sm:$0xff]
    %v335 = vld [vmem:[%s1 + $0x5b8] sm:$0xff]
    %v336 = vld [vmem:[%s1 + $0x5c0] sm:$0xff]
    %v337 = vld [vmem:[%s1 + $0x5c8] sm:$0xf]
    %v338 = vld [vmem:[%s1 + $0x5cc] sm:$0xff]
    %v339 = vld [vmem:[%s1 + $0x5d4] sm:$0xff]
    %v340 = vld [vmem:[%s1 + $0x5dc] sm:$0xff]
    %v341 = vld [vmem:[%s1 + $0x5e4] sm:$0xf]
    %v342 = vld [vmem:[%s1 + $0x5e8] sm:$0xff]
    %v343 = vld [vmem:[%s1 + $0x5f0] sm:$0xff]
    %v344 = vld [vmem:[%s1 + $0x5f8] sm:$0xff]
    %v345 = vld [vmem:[%s1 + $0x600] sm:$0xf]
    %v346 = vld [vmem:[%s1 + $0x604] sm:$0xff]
    %v347 = vld [vmem:[%s1 + $0x60c] sm:$0xff]
    %v348 = vld [vmem:[%s1 + $0x614] sm:$0xff]
    %v349 = vld [vmem:[%s1 + $0x61c] sm:$0xf]
    %v350 = vld [vmem:[%s1 + $0x620] sm:$0xff]
    %v351 = vld [vmem:[%s1 + $0x628] sm:$0xff]
    %v352 = vld [vmem:[%s1 + $0x630] sm:$0xff]
    %v353 = vld [vmem:[%s1 + $0x638] sm:$0xf]
    %v354 = vld [vmem:[%s1 + $0x63c] sm:$0xff]
    %v355 = vld [vmem:[%s1 + $0x644] sm:$0xff]
    %v356 = vld [vmem:[%s1 + $0x64c] sm:$0xff]
    %v357 = vld [vmem:[%s1 + $0x654] sm:$0xf]
    %v358 = vld [vmem:[%s1 + $0x658] sm:$0xff]
    %v359 = vld [vmem:[%s1 + $0x660] sm:$0xff]
    %v360 = vld [vmem:[%s1 + $0x668] sm:$0xff]
    %v361 = vld [vmem:[%s1 + $0x670] sm:$0xf]
    %v362 = vld [vmem:[%s1 + $0x674] sm:$0xff]
    %v363 = vld [vmem:[%s1 + $0x67c] sm:$0xff]
    %v364 = vld [vmem:[%s1 + $0x684] sm:$0xff]
    %v365 = vld [vmem:[%s1 + $0x68c] sm:$0xf]
    %v366 = vld [vmem:[%s1 + $0x690] sm:$0xff]
    %v367 = vld [vmem:[%s1 + $0x698] sm:$0xff]
    %v368 = vld [vmem:[%s1 + $0x6a0] sm:$0xff]
    %v369 = vld [vmem:[%s1 + $0x6a8] sm:$0xf]
    %v370 = vld [vmem:[%s1 + $0x6ac] sm:$0xff]
    %v371 = vld [vmem:[%s1 + $0x6b4] sm:$0xff]
    %v372 = vld [vmem:[%s1 + $0x6bc] sm:$0xff]
    %v373 = vld [vmem:[%s1 + $0x6c4] sm:$0xf]
    %v374 = vld [vmem:[%s1 + $0x6c8] sm:$0xff]
    %v375 = vld [vmem:[%s1 + $0x6d0] sm:$0xff]
    %v376 = vld [vmem:[%s1 + $0x6d8] sm:$0xff]
    %v377 = vld [vmem:[%s1 + $0x6e0] sm:$0xf]
    %v378 = vld [vmem:[%s1 + $0x6e4] sm:$0xff]
    %v379 = vld [vmem:[%s1 + $0x6ec] sm:$0xff]
    %v380 = vld [vmem:[%s1 + $0x6f4] sm:$0xff]
    %v381 = vld [vmem:[%s1 + $0x6fc] sm:$0xf]
    %v382 = vld [vmem:[%s1 + $0x700] sm:$0xff]
    %v383 = vld [vmem:[%s1 + $0x708] sm:$0xff]
    %v384 = vld [vmem:[%s1 + $0x710] sm:$0xff]
    %v385 = vld [vmem:[%s1 + $0x718] sm:$0xf]
    %v386 = vld [vmem:[%s1 + $0x71c] sm:$0xff]
    %v387 = vld [vmem:[%s1 + $0x724] sm:$0xff]
    %v388 = vld [vmem:[%s1 + $0x72c] sm:$0xff]
    %v389 = vld [vmem:[%s1 + $0x734] sm:$0xf]
    %v390 = vld [vmem:[%s1 + $0x738] sm:$0xff]
    %v391 = vld [vmem:[%s1 + $0x740] sm:$0xff]
    %v392 = vld [vmem:[%s1 + $0x748] sm:$0xff]
    %v393 = vld [vmem:[%s1 + $0x750] sm:$0xf]
    %v394 = vld [vmem:[%s1 + $0x754] sm:$0xff]
    %v395 = vld [vmem:[%s1 + $0x75c] sm:$0xff]
    %v396 = vld [vmem:[%s1 + $0x764] sm:$0xff]
    %v397 = vld [vmem:[%s1 + $0x76c] sm:$0xf]
    %v398 = vld [vmem:[%s1 + $0x770] sm:$0xff]
    %v399 = vld [vmem:[%s1 + $0x778] sm:$0xff]
    %v400 = vld [vmem:[%s1 + $0x780] sm:$0xff]
    %v401 = vld [vmem:[%s1 + $0x788] sm:$0xf]
    %v402 = vld [vmem:[%s1 + $0x78c] sm:$0xff]
    %v403 = vld [vmem:[%s1 + $0x794] sm:$0xff]
    %v404 = vld [vmem:[%s1 + $0x79c] sm:$0xff]
    %v405 = vld [vmem:[%s1 + $0x7a4] sm:$0xf]
    %v406 = vld [vmem:[%s1 + $0x7a8] sm:$0xff]
    %v407 = vld [vmem:[%s1 + $0x7b0] sm:$0xff]
    %v408 = vld [vmem:[%s1 + $0x7b8] sm:$0xff]
    %v409 = vld [vmem:[%s1 + $0x7c0] sm:$0xf]
    %v410 = vld [vmem:[%s1 + $0x7c4] sm:$0xff]
    %v411 = vld [vmem:[%s1 + $0x7cc] sm:$0xff]
    %v412 = vld [vmem:[%s1 + $0x7d4] sm:$0xff]
    %v413 = vld [vmem:[%s1 + $0x7dc] sm:$0xf]
    %v414 = vld [vmem:[%s1 + $0x7e0] sm:$0xff]
    %v415 = vld [vmem:[%s1 + $0x7e8] sm:$0xff]
    %v416 = vld [vmem:[%s1 + $0x7f0] sm:$0xff]
    %v417 = vld [vmem:[%s1 + $0x7f8] sm:$0xf]
    %v418 = vld [vmem:[%s1 + $0x7fc] sm:$0xff]
    %v419 = vld [vmem:[%s1 + $0x804] sm:$0xff]
    %v420 = vld [vmem:[%s1 + $0x80c] sm:$0xff]
    %v421 = vld [vmem:[%s1 + $0x814] sm:$0xf]
    %v422 = vld [vmem:[%s1 + $0x818] sm:$0xff]
    %v423 = vld [vmem:[%s1 + $0x820] sm:$0xff]
    %v424 = vld [vmem:[%s1 + $0x828] sm:$0xff]
    %v425 = vld [vmem:[%s1 + $0x830] sm:$0xf]
    %v426 = vld [vmem:[%s1 + $0x834] sm:$0xff]
    %v427 = vld [vmem:[%s1 + $0x83c] sm:$0xff]
    %v428 = vld [vmem:[%s1 + $0x844] sm:$0xff]
    %v429 = vld [vmem:[%s1 + $0x84c] sm:$0xf]
    %v430 = vld [vmem:[%s1 + $0x850] sm:$0xff]
    %v431 = vld [vmem:[%s1 + $0x858] sm:$0xff]
    %v432 = vld [vmem:[%s1 + $0x860] sm:$0xff]
    %v433 = vld [vmem:[%s1 + $0x868] sm:$0xf]
    %v434 = vld [vmem:[%s1 + $0x86c] sm:$0xff]
    %v435 = vld [vmem:[%s1 + $0x874] sm:$0xff]
    %v436 = vld [vmem:[%s1 + $0x87c] sm:$0xff]
    %v437 = vld [vmem:[%s1 + $0x884] sm:$0xf]
    %v438 = vld [vmem:[%s1 + $0x888] sm:$0xff]
    %v439 = vld [vmem:[%s1 + $0x890] sm:$0xff]
    %v440 = vld [vmem:[%s1 + $0x898] sm:$0xff]
    %v441 = vld [vmem:[%s1 + $0x8a0] sm:$0xf]
    %v442 = vld [vmem:[%s1 + $0x8a4] sm:$0xff]
    %v443 = vld [vmem:[%s1 + $0x8ac] sm:$0xff]
    %v444 = vld [vmem:[%s1 + $0x8b4] sm:$0xff]
    %v445 = vld [vmem:[%s1 + $0x8bc] sm:$0xf]
    %v446 = vld [vmem:[%s1 + $0x8c0] sm:$0xff]
    %v447 = vld [vmem:[%s1 + $0x8c8] sm:$0xff]
    %v448 = vld [vmem:[%s1 + $0x8d0] sm:$0xff]
    %v449 = vld [vmem:[%s1 + $0x8d8] sm:$0xf]
    %v450 = vld [vmem:[%s1 + $0x8dc] sm:$0xff]
    %v451 = vld [vmem:[%s1 + $0x8e4] sm:$0xff]
    %v452 = vld [vmem:[%s1 + $0x8ec] sm:$0xff]
    %v453 = vld [vmem:[%s1 + $0x8f4] sm:$0xf]
    %v454 = vld [vmem:[%s1 + $0x8f8] sm:$0xff]
    %v455 = vld [vmem:[%s1 + $0x900] sm:$0xff]
    %v456 = vld [vmem:[%s1 + $0x908] sm:$0xff]
    %v457 = vld [vmem:[%s1 + $0x910] sm:$0xf]
    %v458 = vld [vmem:[%s1 + $0x914] sm:$0xff]
    %v459 = vld [vmem:[%s1 + $0x91c] sm:$0xff]
    %v460 = vld [vmem:[%s1 + $0x924] sm:$0xff]
    %v461 = vld [vmem:[%s1 + $0x92c] sm:$0xf]
    %v462 = vld [vmem:[%s1 + $0x930] sm:$0xff]
    %v463 = vld [vmem:[%s1 + $0x938] sm:$0xff]
    %v464 = vld [vmem:[%s1 + $0x940] sm:$0xff]
    %v465 = vld [vmem:[%s1 + $0x948] sm:$0xf]
    %v466 = vld [vmem:[%s1 + $0x94c] sm:$0xff]
    %v467 = vld [vmem:[%s1 + $0x954] sm:$0xff]
    %v468 = vld [vmem:[%s1 + $0x95c] sm:$0xff]
    %v469 = vld [vmem:[%s1 + $0x964] sm:$0xf]
    %v470 = vld [vmem:[%s1 + $0x968] sm:$0xff]
    %v471 = vld [vmem:[%s1 + $0x970] sm:$0xff]
    %v472 = vld [vmem:[%s1 + $0x978] sm:$0xff]
    %v473 = vld [vmem:[%s1 + $0x980] sm:$0xf]
    %v474 = vld [vmem:[%s1 + $0x984] sm:$0xff]
    %v475 = vld [vmem:[%s1 + $0x98c] sm:$0xff]
    %v476 = vld [vmem:[%s1 + $0x994] sm:$0xff]
    %v477 = vld [vmem:[%s1 + $0x99c] sm:$0xf]
    %v478 = vld [vmem:[%s1 + $0x9a0] sm:$0xff]
    %v479 = vld [vmem:[%s1 + $0x9a8] sm:$0xff]
    %v480 = vld [vmem:[%s1 + $0x9b0] sm:$0xff]
    %v481 = vld [vmem:[%s1 + $0x9b8] sm:$0xf]
    %v482 = vld [vmem:[%s1 + $0x9bc] sm:$0xff]
    %v483 = vld [vmem:[%s1 + $0x9c4] sm:$0xff]
    %v484 = vld [vmem:[%s1 + $0x9cc] sm:$0xff]
    %v485 = vld [vmem:[%s1 + $0x9d4] sm:$0xf]
    %v486 = vld [vmem:[%s1 + $0x9d8] sm:$0xff]
    %v487 = vld [vmem:[%s1 + $0x9e0] sm:$0xff]
    %v488 = vld [vmem:[%s1 + $0x9e8] sm:$0xff]
    %v489 = vld [vmem:[%s1 + $0x9f0] sm:$0xf]
    %v490 = vld [vmem:[%s1 + $0x9f4] sm:$0xff]
    %v491 = vld [vmem:[%s1 + $0x9fc] sm:$0xff]
    %v492 = vld [vmem:[%s1 + $0xa04] sm:$0xff]
    %v493 = vld [vmem:[%s1 + $0xa0c] sm:$0xf]
    %v494 = vld [vmem:[%s1 + $0xa10] sm:$0xff]
    %v495 = vld [vmem:[%s1 + $0xa18] sm:$0xff]
    %v496 = vld [vmem:[%s1 + $0xa20] sm:$0xff]
    %v497 = vld [vmem:[%s1 + $0xa28] sm:$0xf]
    %v498 = vld [vmem:[%s1 + $0xa2c] sm:$0xff]
    %v499 = vld [vmem:[%s1 + $0xa34] sm:$0xff]
    %v500 = vld [vmem:[%s1 + $0xa3c] sm:$0xff]
    %v501 = vld [vmem:[%s1 + $0xa44] sm:$0xf]
    %v502 = vld [vmem:[%s1 + $0xa48] sm:$0xff]
    %v503 = vld [vmem:[%s1 + $0xa50] sm:$0xff]
    %v504 = vld [vmem:[%s1 + $0xa58] sm:$0xff]
    %v505 = vld [vmem:[%s1 + $0xa60] sm:$0xf]
    %v506 = vld [vmem:[%s1 + $0xa64] sm:$0xff]
    %v507 = vld [vmem:[%s1 + $0xa6c] sm:$0xff]
    %v508 = vld [vmem:[%s1 + $0xa74] sm:$0xff]
    %v509 = vld [vmem:[%s1 + $0xa7c] sm:$0xf]
    %v510 = vld [vmem:[%s1 + $0xa80] sm:$0xff]
    %v511 = vld [vmem:[%s1 + $0xa88] sm:$0xff]
    %v512 = vld [vmem:[%s1 + $0xa90] sm:$0xff]
    %v513 = vld [vmem:[%s1 + $0xa98] sm:$0xf]
    %v514 = vld [vmem:[%s1 + $0xa9c] sm:$0xff]
    %v515 = vld [vmem:[%s1 + $0xaa4] sm:$0xff]
    %v516 = vld [vmem:[%s1 + $0xaac] sm:$0xff]
    %v517 = vld [vmem:[%s1 + $0xab4] sm:$0xf]
    %v518 = vld [vmem:[%s2] ss:$4 sm:$0x7f]
    %s519 = scalar_lea.vmem %s2, 1
    %v520 = vld [vmem:[%s519] ss:$4 sm:$0x7f]
    %s521 = scalar_lea.vmem %s2, 2
    %v522 = vld [vmem:[%s521] ss:$4 sm:$0x7f]
    %v524 = vlaneseq
    %v525 = vshrl.u32 %v524, 7
    %v526 = vsub.s32 0, %v525
    %v527 = vrot.slane %v518, %v526
    %v528 = vlaneseq
    %v529 = vshrl.u32 %v528, 7
    %v530 = vsub.s32 1, %v529
    %v531 = vrot.slane %v518, %v530
    %v532 = vlaneseq
    %v533 = vshrl.u32 %v532, 7
    %v534 = vsub.s32 2, %v533
    %v535 = vrot.slane %v518, %v534
    %v536 = vlaneseq
    %v537 = vshrl.u32 %v536, 7
    %v538 = vsub.s32 3, %v537
    %v539 = vrot.slane %v518, %v538
    %v540 = vlaneseq
    %v541 = vshrl.u32 %v540, 7
    %v542 = vsub.s32 4, %v541
    %v543 = vrot.slane %v518, %v542
    %v544 = vlaneseq
    %v545 = vshrl.u32 %v544, 7
    %v546 = vsub.s32 5, %v545
    %v547 = vrot.slane %v518, %v546
    %v548 = vlaneseq
    %v549 = vshrl.u32 %v548, 7
    %v550 = vsub.s32 6, %v549
    %v551 = vrot.slane %v518, %v550
    %v951 = vunpack.c.l.b16 %v126
    %v952 = vunpack.c.h.b16 %v126
    %v953 = vunpack.c.l.b16 %v127
    %v954 = vunpack.c.h.b16 %v127
    %v955 = vunpack.c.l.b16 %v128
    %v956 = vunpack.c.h.b16 %v128
    %v957 = vunpack.c.l.b16 %v129
    %v958 = vunpack.c.l.b16 %v130
    %v959 = vunpack.c.h.b16 %v130
    %v960 = vunpack.c.l.b16 %v131
    %v961 = vunpack.c.h.b16 %v131
    %v962 = vunpack.c.l.b16 %v132
    %v963 = vunpack.c.h.b16 %v132
    %v964 = vunpack.c.l.b16 %v133
    %v965 = vunpack.c.l.b16 %v134
    %v966 = vunpack.c.h.b16 %v134
    %v967 = vunpack.c.l.b16 %v135
    %v968 = vunpack.c.h.b16 %v135
    %v969 = vunpack.c.l.b16 %v136
    %v970 = vunpack.c.h.b16 %v136
    %v971 = vunpack.c.l.b16 %v137
    %v972 = vunpack.c.l.b16 %v138
    %v973 = vunpack.c.h.b16 %v138
    %v974 = vunpack.c.l.b16 %v139
    %v975 = vunpack.c.h.b16 %v139
    %v976 = vunpack.c.l.b16 %v140
    %v977 = vunpack.c.h.b16 %v140
    %v978 = vunpack.c.l.b16 %v141
    %v979 = vunpack.c.l.b16 %v142
    %v980 = vunpack.c.h.b16 %v142
    %v981 = vunpack.c.l.b16 %v143
    %v982 = vunpack.c.h.b16 %v143
    %v983 = vunpack.c.l.b16 %v144
    %v984 = vunpack.c.h.b16 %v144
    %v985 = vunpack.c.l.b16 %v145
    %v986 = vunpack.c.l.b16 %v146
    %v987 = vunpack.c.h.b16 %v146
    %v988 = vunpack.c.l.b16 %v147
    %v989 = vunpack.c.h.b16 %v147
    %v990 = vunpack.c.l.b16 %v148
    %v991 = vunpack.c.h.b16 %v148
    %v992 = vunpack.c.l.b16 %v149
    %v993 = vunpack.c.l.b16 %v150
    %v994 = vunpack.c.h.b16 %v150
    %v995 = vunpack.c.l.b16 %v151
    %v996 = vunpack.c.h.b16 %v151
    %v997 = vunpack.c.l.b16 %v152
    %v998 = vunpack.c.h.b16 %v152
    %v999 = vunpack.c.l.b16 %v153
    %v1000 = vunpack.c.l.b16 %v154
    %v1001 = vunpack.c.h.b16 %v154
    %v1002 = vunpack.c.l.b16 %v155
    %v1003 = vunpack.c.h.b16 %v155
    %v1004 = vunpack.c.l.b16 %v156
    %v1005 = vunpack.c.h.b16 %v156
    %v1006 = vunpack.c.l.b16 %v157
    %v1007 = vunpack.c.l.b16 %v158
    %v1008 = vunpack.c.h.b16 %v158
    %v1009 = vunpack.c.l.b16 %v159
    %v1010 = vunpack.c.h.b16 %v159
    %v1011 = vunpack.c.l.b16 %v160
    %v1012 = vunpack.c.h.b16 %v160
    %v1013 = vunpack.c.l.b16 %v161
    %v1014 = vunpack.c.l.b16 %v162
    %v1015 = vunpack.c.h.b16 %v162
    %v1016 = vunpack.c.l.b16 %v163
    %v1017 = vunpack.c.h.b16 %v163
    %v1018 = vunpack.c.l.b16 %v164
    %v1019 = vunpack.c.h.b16 %v164
    %v1020 = vunpack.c.l.b16 %v165
    %v1021 = vunpack.c.l.b16 %v166
    %v1022 = vunpack.c.h.b16 %v166
    %v1023 = vunpack.c.l.b16 %v167
    %v1024 = vunpack.c.h.b16 %v167
    %v1025 = vunpack.c.l.b16 %v168
    %v1026 = vunpack.c.h.b16 %v168
    %v1027 = vunpack.c.l.b16 %v169
    %v1028 = vunpack.c.l.b16 %v170
    %v1029 = vunpack.c.h.b16 %v170
    %v1030 = vunpack.c.l.b16 %v171
    %v1031 = vunpack.c.h.b16 %v171
    %v1032 = vunpack.c.l.b16 %v172
    %v1033 = vunpack.c.h.b16 %v172
    %v1034 = vunpack.c.l.b16 %v173
    %v1035 = vunpack.c.l.b16 %v174
    %v1036 = vunpack.c.h.b16 %v174
    %v1037 = vunpack.c.l.b16 %v175
    %v1038 = vunpack.c.h.b16 %v175
    %v1039 = vunpack.c.l.b16 %v176
    %v1040 = vunpack.c.h.b16 %v176
    %v1041 = vunpack.c.l.b16 %v177
    %v1042 = vunpack.c.l.b16 %v178
    %v1043 = vunpack.c.h.b16 %v178
    %v1044 = vunpack.c.l.b16 %v179
    %v1045 = vunpack.c.h.b16 %v179
    %v1046 = vunpack.c.l.b16 %v180
    %v1047 = vunpack.c.h.b16 %v180
    %v1048 = vunpack.c.l.b16 %v181
    %v1049 = vunpack.c.l.b16 %v182
    %v1050 = vunpack.c.h.b16 %v182
    %v1051 = vunpack.c.l.b16 %v183
    %v1052 = vunpack.c.h.b16 %v183
    %v1053 = vunpack.c.l.b16 %v184
    %v1054 = vunpack.c.h.b16 %v184
    %v1055 = vunpack.c.l.b16 %v185
    %v1056 = vunpack.c.l.b16 %v186
    %v1057 = vunpack.c.h.b16 %v186
    %v1058 = vunpack.c.l.b16 %v187
    %v1059 = vunpack.c.h.b16 %v187
    %v1060 = vunpack.c.l.b16 %v188
    %v1061 = vunpack.c.h.b16 %v188
    %v1062 = vunpack.c.l.b16 %v189
    %v1063 = vunpack.c.l.b16 %v190
    %v1064 = vunpack.c.h.b16 %v190
    %v1065 = vunpack.c.l.b16 %v191
    %v1066 = vunpack.c.h.b16 %v191
    %v1067 = vunpack.c.l.b16 %v192
    %v1068 = vunpack.c.h.b16 %v192
    %v1069 = vunpack.c.l.b16 %v193
    %v1070 = vunpack.c.l.b16 %v194
    %v1071 = vunpack.c.h.b16 %v194
    %v1072 = vunpack.c.l.b16 %v195
    %v1073 = vunpack.c.h.b16 %v195
    %v1074 = vunpack.c.l.b16 %v196
    %v1075 = vunpack.c.h.b16 %v196
    %v1076 = vunpack.c.l.b16 %v197
    %v1077 = vunpack.c.l.b16 %v198
    %v1078 = vunpack.c.h.b16 %v198
    %v1079 = vunpack.c.l.b16 %v199
    %v1080 = vunpack.c.h.b16 %v199
    %v1081 = vunpack.c.l.b16 %v200
    %v1082 = vunpack.c.h.b16 %v200
    %v1083 = vunpack.c.l.b16 %v201
    %v1084 = vunpack.c.l.b16 %v202
    %v1085 = vunpack.c.h.b16 %v202
    %v1086 = vunpack.c.l.b16 %v203
    %v1087 = vunpack.c.h.b16 %v203
    %v1088 = vunpack.c.l.b16 %v204
    %v1089 = vunpack.c.h.b16 %v204
    %v1090 = vunpack.c.l.b16 %v205
    %v1091 = vunpack.c.l.b16 %v206
    %v1092 = vunpack.c.h.b16 %v206
    %v1093 = vunpack.c.l.b16 %v207
    %v1094 = vunpack.c.h.b16 %v207
    %v1095 = vunpack.c.l.b16 %v208
    %v1096 = vunpack.c.h.b16 %v208
    %v1097 = vunpack.c.l.b16 %v209
    %v1098 = vunpack.c.l.b16 %v210
    %v1099 = vunpack.c.h.b16 %v210
    %v1100 = vunpack.c.l.b16 %v211
    %v1101 = vunpack.c.h.b16 %v211
    %v1102 = vunpack.c.l.b16 %v212
    %v1103 = vunpack.c.h.b16 %v212
    %v1104 = vunpack.c.l.b16 %v213
    %v1105 = vunpack.c.l.b16 %v214
    %v1106 = vunpack.c.h.b16 %v214
    %v1107 = vunpack.c.l.b16 %v215
    %v1108 = vunpack.c.h.b16 %v215
    %v1109 = vunpack.c.l.b16 %v216
    %v1110 = vunpack.c.h.b16 %v216
    %v1111 = vunpack.c.l.b16 %v217
    %v1112 = vunpack.c.l.b16 %v218
    %v1113 = vunpack.c.h.b16 %v218
    %v1114 = vunpack.c.l.b16 %v219
    %v1115 = vunpack.c.h.b16 %v219
    %v1116 = vunpack.c.l.b16 %v220
    %v1117 = vunpack.c.h.b16 %v220
    %v1118 = vunpack.c.l.b16 %v221
    %v1119 = vunpack.c.l.b16 %v222
    %v1120 = vunpack.c.h.b16 %v222
    %v1121 = vunpack.c.l.b16 %v223
    %v1122 = vunpack.c.h.b16 %v223
    %v1123 = vunpack.c.l.b16 %v224
    %v1124 = vunpack.c.h.b16 %v224
    %v1125 = vunpack.c.l.b16 %v225
    %v1126 = vunpack.c.l.b16 %v226
    %v1127 = vunpack.c.h.b16 %v226
    %v1128 = vunpack.c.l.b16 %v227
    %v1129 = vunpack.c.h.b16 %v227
    %v1130 = vunpack.c.l.b16 %v228
    %v1131 = vunpack.c.h.b16 %v228
    %v1132 = vunpack.c.l.b16 %v229
    %v1133 = vunpack.c.l.b16 %v230
    %v1134 = vunpack.c.h.b16 %v230
    %v1135 = vunpack.c.l.b16 %v231
    %v1136 = vunpack.c.h.b16 %v231
    %v1137 = vunpack.c.l.b16 %v232
    %v1138 = vunpack.c.h.b16 %v232
    %v1139 = vunpack.c.l.b16 %v233
    %v1140 = vunpack.c.l.b16 %v234
    %v1141 = vunpack.c.h.b16 %v234
    %v1142 = vunpack.c.l.b16 %v235
    %v1143 = vunpack.c.h.b16 %v235
    %v1144 = vunpack.c.l.b16 %v236
    %v1145 = vunpack.c.h.b16 %v236
    %v1146 = vunpack.c.l.b16 %v237
    %v1147 = vunpack.c.l.b16 %v238
    %v1148 = vunpack.c.h.b16 %v238
    %v1149 = vunpack.c.l.b16 %v239
    %v1150 = vunpack.c.h.b16 %v239
    %v1151 = vunpack.c.l.b16 %v240
    %v1152 = vunpack.c.h.b16 %v240
    %v1153 = vunpack.c.l.b16 %v241
    %v1154 = vunpack.c.l.b16 %v242
    %v1155 = vunpack.c.h.b16 %v242
    %v1156 = vunpack.c.l.b16 %v243
    %v1157 = vunpack.c.h.b16 %v243
    %v1158 = vunpack.c.l.b16 %v244
    %v1159 = vunpack.c.h.b16 %v244
    %v1160 = vunpack.c.l.b16 %v245
    %v1161 = vunpack.c.l.b16 %v246
    %v1162 = vunpack.c.h.b16 %v246
    %v1163 = vunpack.c.l.b16 %v247
    %v1164 = vunpack.c.h.b16 %v247
    %v1165 = vunpack.c.l.b16 %v248
    %v1166 = vunpack.c.h.b16 %v248
    %v1167 = vunpack.c.l.b16 %v249
    %v1168 = vunpack.c.l.b16 %v250
    %v1169 = vunpack.c.h.b16 %v250
    %v1170 = vunpack.c.l.b16 %v251
    %v1171 = vunpack.c.h.b16 %v251
    %v1172 = vunpack.c.l.b16 %v252
    %v1173 = vunpack.c.h.b16 %v252
    %v1174 = vunpack.c.l.b16 %v253
    %v1175 = vunpack.c.l.b16 %v254
    %v1176 = vunpack.c.h.b16 %v254
    %v1177 = vunpack.c.l.b16 %v255
    %v1178 = vunpack.c.h.b16 %v255
    %v1179 = vunpack.c.l.b16 %v256
    %v1180 = vunpack.c.h.b16 %v256
    %v1181 = vunpack.c.l.b16 %v257
    %v1182 = vunpack.c.l.b16 %v258
    %v1183 = vunpack.c.h.b16 %v258
    %v1184 = vunpack.c.l.b16 %v259
    %v1185 = vunpack.c.h.b16 %v259
    %v1186 = vunpack.c.l.b16 %v260
    %v1187 = vunpack.c.h.b16 %v260
    %v1188 = vunpack.c.l.b16 %v261
    %v1189 = vunpack.c.l.b16 %v262
    %v1190 = vunpack.c.h.b16 %v262
    %v1191 = vunpack.c.l.b16 %v263
    %v1192 = vunpack.c.h.b16 %v263
    %v1193 = vunpack.c.l.b16 %v264
    %v1194 = vunpack.c.h.b16 %v264
    %v1195 = vunpack.c.l.b16 %v265
    %v1196 = vunpack.c.l.b16 %v266
    %v1197 = vunpack.c.h.b16 %v266
    %v1198 = vunpack.c.l.b16 %v267
    %v1199 = vunpack.c.h.b16 %v267
    %v1200 = vunpack.c.l.b16 %v268
    %v1201 = vunpack.c.h.b16 %v268
    %v1202 = vunpack.c.l.b16 %v269
    %v1203 = vunpack.c.l.b16 %v270
    %v1204 = vunpack.c.h.b16 %v270
    %v1205 = vunpack.c.l.b16 %v271
    %v1206 = vunpack.c.h.b16 %v271
    %v1207 = vunpack.c.l.b16 %v272
    %v1208 = vunpack.c.h.b16 %v272
    %v1209 = vunpack.c.l.b16 %v273
    %v1210 = vunpack.c.l.b16 %v274
    %v1211 = vunpack.c.h.b16 %v274
    %v1212 = vunpack.c.l.b16 %v275
    %v1213 = vunpack.c.h.b16 %v275
    %v1214 = vunpack.c.l.b16 %v276
    %v1215 = vunpack.c.h.b16 %v276
    %v1216 = vunpack.c.l.b16 %v277
    %v1217 = vunpack.c.l.b16 %v278
    %v1218 = vunpack.c.h.b16 %v278
    %v1219 = vunpack.c.l.b16 %v279
    %v1220 = vunpack.c.h.b16 %v279
    %v1221 = vunpack.c.l.b16 %v280
    %v1222 = vunpack.c.h.b16 %v280
    %v1223 = vunpack.c.l.b16 %v281
    %v1224 = vunpack.c.l.b16 %v282
    %v1225 = vunpack.c.h.b16 %v282
    %v1226 = vunpack.c.l.b16 %v283
    %v1227 = vunpack.c.h.b16 %v283
    %v1228 = vunpack.c.l.b16 %v284
    %v1229 = vunpack.c.h.b16 %v284
    %v1230 = vunpack.c.l.b16 %v285
    %v1231 = vunpack.c.l.b16 %v286
    %v1232 = vunpack.c.h.b16 %v286
    %v1233 = vunpack.c.l.b16 %v287
    %v1234 = vunpack.c.h.b16 %v287
    %v1235 = vunpack.c.l.b16 %v288
    %v1236 = vunpack.c.h.b16 %v288
    %v1237 = vunpack.c.l.b16 %v289
    %v1238 = vunpack.c.l.b16 %v290
    %v1239 = vunpack.c.h.b16 %v290
    %v1240 = vunpack.c.l.b16 %v291
    %v1241 = vunpack.c.h.b16 %v291
    %v1242 = vunpack.c.l.b16 %v292
    %v1243 = vunpack.c.h.b16 %v292
    %v1244 = vunpack.c.l.b16 %v293
    %v1245 = vunpack.c.l.b16 %v294
    %v1246 = vunpack.c.h.b16 %v294
    %v1247 = vunpack.c.l.b16 %v295
    %v1248 = vunpack.c.h.b16 %v295
    %v1249 = vunpack.c.l.b16 %v296
    %v1250 = vunpack.c.h.b16 %v296
    %v1251 = vunpack.c.l.b16 %v297
    %v1252 = vunpack.c.l.b16 %v298
    %v1253 = vunpack.c.h.b16 %v298
    %v1254 = vunpack.c.l.b16 %v299
    %v1255 = vunpack.c.h.b16 %v299
    %v1256 = vunpack.c.l.b16 %v300
    %v1257 = vunpack.c.h.b16 %v300
    %v1258 = vunpack.c.l.b16 %v301
    %v1259 = vunpack.c.l.b16 %v302
    %v1260 = vunpack.c.h.b16 %v302
    %v1261 = vunpack.c.l.b16 %v303
    %v1262 = vunpack.c.h.b16 %v303
    %v1263 = vunpack.c.l.b16 %v304
    %v1264 = vunpack.c.h.b16 %v304
    %v1265 = vunpack.c.l.b16 %v305
    %v1266 = vunpack.c.l.b16 %v306
    %v1267 = vunpack.c.h.b16 %v306
    %v1268 = vunpack.c.l.b16 %v307
    %v1269 = vunpack.c.h.b16 %v307
    %v1270 = vunpack.c.l.b16 %v308
    %v1271 = vunpack.c.h.b16 %v308
    %v1272 = vunpack.c.l.b16 %v309
    %v1273 = vunpack.c.l.b16 %v310
    %v1274 = vunpack.c.h.b16 %v310
    %v1275 = vunpack.c.l.b16 %v311
    %v1276 = vunpack.c.h.b16 %v311
    %v1277 = vunpack.c.l.b16 %v312
    %v1278 = vunpack.c.h.b16 %v312
    %v1279 = vunpack.c.l.b16 %v313
    %v1280 = vunpack.c.l.b16 %v314
    %v1281 = vunpack.c.h.b16 %v314
    %v1282 = vunpack.c.l.b16 %v315
    %v1283 = vunpack.c.h.b16 %v315
    %v1284 = vunpack.c.l.b16 %v316
    %v1285 = vunpack.c.h.b16 %v316
    %v1286 = vunpack.c.l.b16 %v317
    %v1287 = vunpack.c.l.b16 %v318
    %v1288 = vunpack.c.h.b16 %v318
    %v1289 = vunpack.c.l.b16 %v319
    %v1290 = vunpack.c.h.b16 %v319
    %v1291 = vunpack.c.l.b16 %v320
    %v1292 = vunpack.c.h.b16 %v320
    %v1293 = vunpack.c.l.b16 %v321
    %v1294 = vunpack.c.l.b16 %v322
    %v1295 = vunpack.c.h.b16 %v322
    %v1296 = vunpack.c.l.b16 %v323
    %v1297 = vunpack.c.h.b16 %v323
    %v1298 = vunpack.c.l.b16 %v324
    %v1299 = vunpack.c.h.b16 %v324
    %v1300 = vunpack.c.l.b16 %v325
    %v1301 = vunpack.c.l.b16 %v326
    %v1302 = vunpack.c.h.b16 %v326
    %v1303 = vunpack.c.l.b16 %v327
    %v1304 = vunpack.c.h.b16 %v327
    %v1305 = vunpack.c.l.b16 %v328
    %v1306 = vunpack.c.h.b16 %v328
    %v1307 = vunpack.c.l.b16 %v329
    %v1308 = vunpack.c.l.b16 %v330
    %v1309 = vunpack.c.h.b16 %v330
    %v1310 = vunpack.c.l.b16 %v331
    %v1311 = vunpack.c.h.b16 %v331
    %v1312 = vunpack.c.l.b16 %v332
    %v1313 = vunpack.c.h.b16 %v332
    %v1314 = vunpack.c.l.b16 %v333
    %v1315 = vunpack.c.l.b16 %v334
    %v1316 = vunpack.c.h.b16 %v334
    %v1317 = vunpack.c.l.b16 %v335
    %v1318 = vunpack.c.h.b16 %v335
    %v1319 = vunpack.c.l.b16 %v336
    %v1320 = vunpack.c.h.b16 %v336
    %v1321 = vunpack.c.l.b16 %v337
    %v1322 = vunpack.c.l.b16 %v338
    %v1323 = vunpack.c.h.b16 %v338
    %v1324 = vunpack.c.l.b16 %v339
    %v1325 = vunpack.c.h.b16 %v339
    %v1326 = vunpack.c.l.b16 %v340
    %v1327 = vunpack.c.h.b16 %v340
    %v1328 = vunpack.c.l.b16 %v341
    %v1329 = vunpack.c.l.b16 %v342
    %v1330 = vunpack.c.h.b16 %v342
    %v1331 = vunpack.c.l.b16 %v343
    %v1332 = vunpack.c.h.b16 %v343
    %v1333 = vunpack.c.l.b16 %v344
    %v1334 = vunpack.c.h.b16 %v344
    %v1335 = vunpack.c.l.b16 %v345
    %v1336 = vunpack.c.l.b16 %v346
    %v1337 = vunpack.c.h.b16 %v346
    %v1338 = vunpack.c.l.b16 %v347
    %v1339 = vunpack.c.h.b16 %v347
    %v1340 = vunpack.c.l.b16 %v348
    %v1341 = vunpack.c.h.b16 %v348
    %v1342 = vunpack.c.l.b16 %v349
    %v1343 = vunpack.c.l.b16 %v350
    %v1344 = vunpack.c.h.b16 %v350
    %v1345 = vunpack.c.l.b16 %v351
    %v1346 = vunpack.c.h.b16 %v351
    %v1347 = vunpack.c.l.b16 %v352
    %v1348 = vunpack.c.h.b16 %v352
    %v1349 = vunpack.c.l.b16 %v353
    %v1350 = vunpack.c.l.b16 %v354
    %v1351 = vunpack.c.h.b16 %v354
    %v1352 = vunpack.c.l.b16 %v355
    %v1353 = vunpack.c.h.b16 %v355
    %v1354 = vunpack.c.l.b16 %v356
    %v1355 = vunpack.c.h.b16 %v356
    %v1356 = vunpack.c.l.b16 %v357
    %v1357 = vunpack.c.l.b16 %v358
    %v1358 = vunpack.c.h.b16 %v358
    %v1359 = vunpack.c.l.b16 %v359
    %v1360 = vunpack.c.h.b16 %v359
    %v1361 = vunpack.c.l.b16 %v360
    %v1362 = vunpack.c.h.b16 %v360
    %v1363 = vunpack.c.l.b16 %v361
    %v1364 = vunpack.c.l.b16 %v362
    %v1365 = vunpack.c.h.b16 %v362
    %v1366 = vunpack.c.l.b16 %v363
    %v1367 = vunpack.c.h.b16 %v363
    %v1368 = vunpack.c.l.b16 %v364
    %v1369 = vunpack.c.h.b16 %v364
    %v1370 = vunpack.c.l.b16 %v365
    %v1371 = vunpack.c.l.b16 %v366
    %v1372 = vunpack.c.h.b16 %v366
    %v1373 = vunpack.c.l.b16 %v367
    %v1374 = vunpack.c.h.b16 %v367
    %v1375 = vunpack.c.l.b16 %v368
    %v1376 = vunpack.c.h.b16 %v368
    %v1377 = vunpack.c.l.b16 %v369
    %v1378 = vunpack.c.l.b16 %v370
    %v1379 = vunpack.c.h.b16 %v370
    %v1380 = vunpack.c.l.b16 %v371
    %v1381 = vunpack.c.h.b16 %v371
    %v1382 = vunpack.c.l.b16 %v372
    %v1383 = vunpack.c.h.b16 %v372
    %v1384 = vunpack.c.l.b16 %v373
    %v1385 = vunpack.c.l.b16 %v374
    %v1386 = vunpack.c.h.b16 %v374
    %v1387 = vunpack.c.l.b16 %v375
    %v1388 = vunpack.c.h.b16 %v375
    %v1389 = vunpack.c.l.b16 %v376
    %v1390 = vunpack.c.h.b16 %v376
    %v1391 = vunpack.c.l.b16 %v377
    %v1392 = vunpack.c.l.b16 %v378
    %v1393 = vunpack.c.h.b16 %v378
    %v1394 = vunpack.c.l.b16 %v379
    %v1395 = vunpack.c.h.b16 %v379
    %v1396 = vunpack.c.l.b16 %v380
    %v1397 = vunpack.c.h.b16 %v380
    %v1398 = vunpack.c.l.b16 %v381
    %v1399 = vunpack.c.l.b16 %v382
    %v1400 = vunpack.c.h.b16 %v382
    %v1401 = vunpack.c.l.b16 %v383
    %v1402 = vunpack.c.h.b16 %v383
    %v1403 = vunpack.c.l.b16 %v384
    %v1404 = vunpack.c.h.b16 %v384
    %v1405 = vunpack.c.l.b16 %v385
    %v1406 = vunpack.c.l.b16 %v386
    %v1407 = vunpack.c.h.b16 %v386
    %v1408 = vunpack.c.l.b16 %v387
    %v1409 = vunpack.c.h.b16 %v387
    %v1410 = vunpack.c.l.b16 %v388
    %v1411 = vunpack.c.h.b16 %v388
    %v1412 = vunpack.c.l.b16 %v389
    %v1413 = vunpack.c.l.b16 %v390
    %v1414 = vunpack.c.h.b16 %v390
    %v1415 = vunpack.c.l.b16 %v391
    %v1416 = vunpack.c.h.b16 %v391
    %v1417 = vunpack.c.l.b16 %v392
    %v1418 = vunpack.c.h.b16 %v392
    %v1419 = vunpack.c.l.b16 %v393
    %v1420 = vunpack.c.l.b16 %v394
    %v1421 = vunpack.c.h.b16 %v394
    %v1422 = vunpack.c.l.b16 %v395
    %v1423 = vunpack.c.h.b16 %v395
    %v1424 = vunpack.c.l.b16 %v396
    %v1425 = vunpack.c.h.b16 %v396
    %v1426 = vunpack.c.l.b16 %v397
    %v1427 = vunpack.c.l.b16 %v398
    %v1428 = vunpack.c.h.b16 %v398
    %v1429 = vunpack.c.l.b16 %v399
    %v1430 = vunpack.c.h.b16 %v399
    %v1431 = vunpack.c.l.b16 %v400
    %v1432 = vunpack.c.h.b16 %v400
    %v1433 = vunpack.c.l.b16 %v401
    %v1434 = vunpack.c.l.b16 %v402
    %v1435 = vunpack.c.h.b16 %v402
    %v1436 = vunpack.c.l.b16 %v403
    %v1437 = vunpack.c.h.b16 %v403
    %v1438 = vunpack.c.l.b16 %v404
    %v1439 = vunpack.c.h.b16 %v404
    %v1440 = vunpack.c.l.b16 %v405
    %v1441 = vunpack.c.l.b16 %v406
    %v1442 = vunpack.c.h.b16 %v406
    %v1443 = vunpack.c.l.b16 %v407
    %v1444 = vunpack.c.h.b16 %v407
    %v1445 = vunpack.c.l.b16 %v408
    %v1446 = vunpack.c.h.b16 %v408
    %v1447 = vunpack.c.l.b16 %v409
    %v1448 = vunpack.c.l.b16 %v410
    %v1449 = vunpack.c.h.b16 %v410
    %v1450 = vunpack.c.l.b16 %v411
    %v1451 = vunpack.c.h.b16 %v411
    %v1452 = vunpack.c.l.b16 %v412
    %v1453 = vunpack.c.h.b16 %v412
    %v1454 = vunpack.c.l.b16 %v413
    %v1455 = vunpack.c.l.b16 %v414
    %v1456 = vunpack.c.h.b16 %v414
    %v1457 = vunpack.c.l.b16 %v415
    %v1458 = vunpack.c.h.b16 %v415
    %v1459 = vunpack.c.l.b16 %v416
    %v1460 = vunpack.c.h.b16 %v416
    %v1461 = vunpack.c.l.b16 %v417
    %v1462 = vunpack.c.l.b16 %v418
    %v1463 = vunpack.c.h.b16 %v418
    %v1464 = vunpack.c.l.b16 %v419
    %v1465 = vunpack.c.h.b16 %v419
    %v1466 = vunpack.c.l.b16 %v420
    %v1467 = vunpack.c.h.b16 %v420
    %v1468 = vunpack.c.l.b16 %v421
    %v1469 = vunpack.c.l.b16 %v422
    %v1470 = vunpack.c.h.b16 %v422
    %v1471 = vunpack.c.l.b16 %v423
    %v1472 = vunpack.c.h.b16 %v423
    %v1473 = vunpack.c.l.b16 %v424
    %v1474 = vunpack.c.h.b16 %v424
    %v1475 = vunpack.c.l.b16 %v425
    %v1476 = vunpack.c.l.b16 %v426
    %v1477 = vunpack.c.h.b16 %v426
    %v1478 = vunpack.c.l.b16 %v427
    %v1479 = vunpack.c.h.b16 %v427
    %v1480 = vunpack.c.l.b16 %v428
    %v1481 = vunpack.c.h.b16 %v428
    %v1482 = vunpack.c.l.b16 %v429
    %v1483 = vunpack.c.l.b16 %v430
    %v1484 = vunpack.c.h.b16 %v430
    %v1485 = vunpack.c.l.b16 %v431
    %v1486 = vunpack.c.h.b16 %v431
    %v1487 = vunpack.c.l.b16 %v432
    %v1488 = vunpack.c.h.b16 %v432
    %v1489 = vunpack.c.l.b16 %v433
    %v1490 = vunpack.c.l.b16 %v434
    %v1491 = vunpack.c.h.b16 %v434
    %v1492 = vunpack.c.l.b16 %v435
    %v1493 = vunpack.c.h.b16 %v435
    %v1494 = vunpack.c.l.b16 %v436
    %v1495 = vunpack.c.h.b16 %v436
    %v1496 = vunpack.c.l.b16 %v437
    %v1497 = vunpack.c.l.b16 %v438
    %v1498 = vunpack.c.h.b16 %v438
    %v1499 = vunpack.c.l.b16 %v439
    %v1500 = vunpack.c.h.b16 %v439
    %v1501 = vunpack.c.l.b16 %v440
    %v1502 = vunpack.c.h.b16 %v440
    %v1503 = vunpack.c.l.b16 %v441
    %v1504 = vunpack.c.l.b16 %v442
    %v1505 = vunpack.c.h.b16 %v442
    %v1506 = vunpack.c.l.b16 %v443
    %v1507 = vunpack.c.h.b16 %v443
    %v1508 = vunpack.c.l.b16 %v444
    %v1509 = vunpack.c.h.b16 %v444
    %v1510 = vunpack.c.l.b16 %v445
    %v1511 = vunpack.c.l.b16 %v446
    %v1512 = vunpack.c.h.b16 %v446
    %v1513 = vunpack.c.l.b16 %v447
    %v1514 = vunpack.c.h.b16 %v447
    %v1515 = vunpack.c.l.b16 %v448
    %v1516 = vunpack.c.h.b16 %v448
    %v1517 = vunpack.c.l.b16 %v449
    %v1518 = vunpack.c.l.b16 %v450
    %v1519 = vunpack.c.h.b16 %v450
    %v1520 = vunpack.c.l.b16 %v451
    %v1521 = vunpack.c.h.b16 %v451
    %v1522 = vunpack.c.l.b16 %v452
    %v1523 = vunpack.c.h.b16 %v452
    %v1524 = vunpack.c.l.b16 %v453
    %v1525 = vunpack.c.l.b16 %v454
    %v1526 = vunpack.c.h.b16 %v454
    %v1527 = vunpack.c.l.b16 %v455
    %v1528 = vunpack.c.h.b16 %v455
    %v1529 = vunpack.c.l.b16 %v456
    %v1530 = vunpack.c.h.b16 %v456
    %v1531 = vunpack.c.l.b16 %v457
    %v1532 = vunpack.c.l.b16 %v458
    %v1533 = vunpack.c.h.b16 %v458
    %v1534 = vunpack.c.l.b16 %v459
    %v1535 = vunpack.c.h.b16 %v459
    %v1536 = vunpack.c.l.b16 %v460
    %v1537 = vunpack.c.h.b16 %v460
    %v1538 = vunpack.c.l.b16 %v461
    %v1539 = vunpack.c.l.b16 %v462
    %v1540 = vunpack.c.h.b16 %v462
    %v1541 = vunpack.c.l.b16 %v463
    %v1542 = vunpack.c.h.b16 %v463
    %v1543 = vunpack.c.l.b16 %v464
    %v1544 = vunpack.c.h.b16 %v464
    %v1545 = vunpack.c.l.b16 %v465
    %v1546 = vunpack.c.l.b16 %v466
    %v1547 = vunpack.c.h.b16 %v466
    %v1548 = vunpack.c.l.b16 %v467
    %v1549 = vunpack.c.h.b16 %v467
    %v1550 = vunpack.c.l.b16 %v468
    %v1551 = vunpack.c.h.b16 %v468
    %v1552 = vunpack.c.l.b16 %v469
    %v1553 = vunpack.c.l.b16 %v470
    %v1554 = vunpack.c.h.b16 %v470
    %v1555 = vunpack.c.l.b16 %v471
    %v1556 = vunpack.c.h.b16 %v471
    %v1557 = vunpack.c.l.b16 %v472
    %v1558 = vunpack.c.h.b16 %v472
    %v1559 = vunpack.c.l.b16 %v473
    %v1560 = vunpack.c.l.b16 %v474
    %v1561 = vunpack.c.h.b16 %v474
    %v1562 = vunpack.c.l.b16 %v475
    %v1563 = vunpack.c.h.b16 %v475
    %v1564 = vunpack.c.l.b16 %v476
    %v1565 = vunpack.c.h.b16 %v476
    %v1566 = vunpack.c.l.b16 %v477
    %v1567 = vunpack.c.l.b16 %v478
    %v1568 = vunpack.c.h.b16 %v478
    %v1569 = vunpack.c.l.b16 %v479
    %v1570 = vunpack.c.h.b16 %v479
    %v1571 = vunpack.c.l.b16 %v480
    %v1572 = vunpack.c.h.b16 %v480
    %v1573 = vunpack.c.l.b16 %v481
    %v1574 = vunpack.c.l.b16 %v482
    %v1575 = vunpack.c.h.b16 %v482
    %v1576 = vunpack.c.l.b16 %v483
    %v1577 = vunpack.c.h.b16 %v483
    %v1578 = vunpack.c.l.b16 %v484
    %v1579 = vunpack.c.h.b16 %v484
    %v1580 = vunpack.c.l.b16 %v485
    %v1581 = vunpack.c.l.b16 %v486
    %v1582 = vunpack.c.h.b16 %v486
    %v1583 = vunpack.c.l.b16 %v487
    %v1584 = vunpack.c.h.b16 %v487
    %v1585 = vunpack.c.l.b16 %v488
    %v1586 = vunpack.c.h.b16 %v488
    %v1587 = vunpack.c.l.b16 %v489
    %v1588 = vunpack.c.l.b16 %v490
    %v1589 = vunpack.c.h.b16 %v490
    %v1590 = vunpack.c.l.b16 %v491
    %v1591 = vunpack.c.h.b16 %v491
    %v1592 = vunpack.c.l.b16 %v492
    %v1593 = vunpack.c.h.b16 %v492
    %v1594 = vunpack.c.l.b16 %v493
    %v1595 = vunpack.c.l.b16 %v494
    %v1596 = vunpack.c.h.b16 %v494
    %v1597 = vunpack.c.l.b16 %v495
    %v1598 = vunpack.c.h.b16 %v495
    %v1599 = vunpack.c.l.b16 %v496
    %v1600 = vunpack.c.h.b16 %v496
    %v1601 = vunpack.c.l.b16 %v497
    %v1602 = vunpack.c.l.b16 %v498
    %v1603 = vunpack.c.h.b16 %v498
    %v1604 = vunpack.c.l.b16 %v499
    %v1605 = vunpack.c.h.b16 %v499
    %v1606 = vunpack.c.l.b16 %v500
    %v1607 = vunpack.c.h.b16 %v500
    %v1608 = vunpack.c.l.b16 %v501
    %v1609 = vunpack.c.l.b16 %v502
    %v1610 = vunpack.c.h.b16 %v502
    %v1611 = vunpack.c.l.b16 %v503
    %v1612 = vunpack.c.h.b16 %v503
    %v1613 = vunpack.c.l.b16 %v504
    %v1614 = vunpack.c.h.b16 %v504
    %v1615 = vunpack.c.l.b16 %v505
    %v1616 = vunpack.c.l.b16 %v506
    %v1617 = vunpack.c.h.b16 %v506
    %v1618 = vunpack.c.l.b16 %v507
    %v1619 = vunpack.c.h.b16 %v507
    %v1620 = vunpack.c.l.b16 %v508
    %v1621 = vunpack.c.h.b16 %v508
    %v1622 = vunpack.c.l.b16 %v509
    %v1623 = vunpack.c.l.b16 %v510
    %v1624 = vunpack.c.h.b16 %v510
    %v1625 = vunpack.c.l.b16 %v511
    %v1626 = vunpack.c.h.b16 %v511
    %v1627 = vunpack.c.l.b16 %v512
    %v1628 = vunpack.c.h.b16 %v512
    %v1629 = vunpack.c.l.b16 %v513
    %v1630 = vunpack.c.l.b16 %v514
    %v1631 = vunpack.c.h.b16 %v514
    %v1632 = vunpack.c.l.b16 %v515
    %v1633 = vunpack.c.h.b16 %v515
    %v1634 = vunpack.c.l.b16 %v516
    %v1635 = vunpack.c.h.b16 %v516
    %v1636 = vunpack.c.l.b16 %v517
    %v1637 = vpack.c.b16 %v958, %v951
    %v1638 = vpack.c.b16 %v959, %v952
    %v1639 = vpack.c.b16 %v960, %v953
    %v1640 = vpack.c.b16 %v961, %v954
    %v1641 = vpack.c.b16 %v962, %v955
    %v1642 = vpack.c.b16 %v963, %v956
    %v1643 = vpack.c.b16 %v964, %v957
    %v1644 = vpack.c.b16 %v972, %v965
    %v1645 = vpack.c.b16 %v973, %v966
    %v1646 = vpack.c.b16 %v974, %v967
    %v1647 = vpack.c.b16 %v975, %v968
    %v1648 = vpack.c.b16 %v976, %v969
    %v1649 = vpack.c.b16 %v977, %v970
    %v1650 = vpack.c.b16 %v978, %v971
    %v1651 = vpack.c.b16 %v986, %v979
    %v1652 = vpack.c.b16 %v987, %v980
    %v1653 = vpack.c.b16 %v988, %v981
    %v1654 = vpack.c.b16 %v989, %v982
    %v1655 = vpack.c.b16 %v990, %v983
    %v1656 = vpack.c.b16 %v991, %v984
    %v1657 = vpack.c.b16 %v992, %v985
    %v1658 = vpack.c.b16 %v1000, %v993
    %v1659 = vpack.c.b16 %v1001, %v994
    %v1660 = vpack.c.b16 %v1002, %v995
    %v1661 = vpack.c.b16 %v1003, %v996
    %v1662 = vpack.c.b16 %v1004, %v997
    %v1663 = vpack.c.b16 %v1005, %v998
    %v1664 = vpack.c.b16 %v1006, %v999
    %v1665 = vpack.c.b16 %v1014, %v1007
    %v1666 = vpack.c.b16 %v1015, %v1008
    %v1667 = vpack.c.b16 %v1016, %v1009
    %v1668 = vpack.c.b16 %v1017, %v1010
    %v1669 = vpack.c.b16 %v1018, %v1011
    %v1670 = vpack.c.b16 %v1019, %v1012
    %v1671 = vpack.c.b16 %v1020, %v1013
    %v1672 = vpack.c.b16 %v1028, %v1021
    %v1673 = vpack.c.b16 %v1029, %v1022
    %v1674 = vpack.c.b16 %v1030, %v1023
    %v1675 = vpack.c.b16 %v1031, %v1024
    %v1676 = vpack.c.b16 %v1032, %v1025
    %v1677 = vpack.c.b16 %v1033, %v1026
    %v1678 = vpack.c.b16 %v1034, %v1027
    %v1679 = vpack.c.b16 %v1042, %v1035
    %v1680 = vpack.c.b16 %v1043, %v1036
    %v1681 = vpack.c.b16 %v1044, %v1037
    %v1682 = vpack.c.b16 %v1045, %v1038
    %v1683 = vpack.c.b16 %v1046, %v1039
    %v1684 = vpack.c.b16 %v1047, %v1040
    %v1685 = vpack.c.b16 %v1048, %v1041
    %v1686 = vpack.c.b16 %v1056, %v1049
    %v1687 = vpack.c.b16 %v1057, %v1050
    %v1688 = vpack.c.b16 %v1058, %v1051
    %v1689 = vpack.c.b16 %v1059, %v1052
    %v1690 = vpack.c.b16 %v1060, %v1053
    %v1691 = vpack.c.b16 %v1061, %v1054
    %v1692 = vpack.c.b16 %v1062, %v1055
    %v1693 = vpack.c.b16 %v1070, %v1063
    %v1694 = vpack.c.b16 %v1071, %v1064
    %v1695 = vpack.c.b16 %v1072, %v1065
    %v1696 = vpack.c.b16 %v1073, %v1066
    %v1697 = vpack.c.b16 %v1074, %v1067
    %v1698 = vpack.c.b16 %v1075, %v1068
    %v1699 = vpack.c.b16 %v1076, %v1069
    %v1700 = vpack.c.b16 %v1084, %v1077
    %v1701 = vpack.c.b16 %v1085, %v1078
    %v1702 = vpack.c.b16 %v1086, %v1079
    %v1703 = vpack.c.b16 %v1087, %v1080
    %v1704 = vpack.c.b16 %v1088, %v1081
    %v1705 = vpack.c.b16 %v1089, %v1082
    %v1706 = vpack.c.b16 %v1090, %v1083
    %v1707 = vpack.c.b16 %v1098, %v1091
    %v1708 = vpack.c.b16 %v1099, %v1092
    %v1709 = vpack.c.b16 %v1100, %v1093
    %v1710 = vpack.c.b16 %v1101, %v1094
    %v1711 = vpack.c.b16 %v1102, %v1095
    %v1712 = vpack.c.b16 %v1103, %v1096
    %v1713 = vpack.c.b16 %v1104, %v1097
    %v1714 = vpack.c.b16 %v1112, %v1105
    %v1715 = vpack.c.b16 %v1113, %v1106
    %v1716 = vpack.c.b16 %v1114, %v1107
    %v1717 = vpack.c.b16 %v1115, %v1108
    %v1718 = vpack.c.b16 %v1116, %v1109
    %v1719 = vpack.c.b16 %v1117, %v1110
    %v1720 = vpack.c.b16 %v1118, %v1111
    %v1721 = vpack.c.b16 %v1126, %v1119
    %v1722 = vpack.c.b16 %v1127, %v1120
    %v1723 = vpack.c.b16 %v1128, %v1121
    %v1724 = vpack.c.b16 %v1129, %v1122
    %v1725 = vpack.c.b16 %v1130, %v1123
    %v1726 = vpack.c.b16 %v1131, %v1124
    %v1727 = vpack.c.b16 %v1132, %v1125
    %v1728 = vpack.c.b16 %v1140, %v1133
    %v1729 = vpack.c.b16 %v1141, %v1134
    %v1730 = vpack.c.b16 %v1142, %v1135
    %v1731 = vpack.c.b16 %v1143, %v1136
    %v1732 = vpack.c.b16 %v1144, %v1137
    %v1733 = vpack.c.b16 %v1145, %v1138
    %v1734 = vpack.c.b16 %v1146, %v1139
    %v1735 = vpack.c.b16 %v1154, %v1147
    %v1736 = vpack.c.b16 %v1155, %v1148
    %v1737 = vpack.c.b16 %v1156, %v1149
    %v1738 = vpack.c.b16 %v1157, %v1150
    %v1739 = vpack.c.b16 %v1158, %v1151
    %v1740 = vpack.c.b16 %v1159, %v1152
    %v1741 = vpack.c.b16 %v1160, %v1153
    %v1742 = vpack.c.b16 %v1168, %v1161
    %v1743 = vpack.c.b16 %v1169, %v1162
    %v1744 = vpack.c.b16 %v1170, %v1163
    %v1745 = vpack.c.b16 %v1171, %v1164
    %v1746 = vpack.c.b16 %v1172, %v1165
    %v1747 = vpack.c.b16 %v1173, %v1166
    %v1748 = vpack.c.b16 %v1174, %v1167
    %v1749 = vpack.c.b16 %v1182, %v1175
    %v1750 = vpack.c.b16 %v1183, %v1176
    %v1751 = vpack.c.b16 %v1184, %v1177
    %v1752 = vpack.c.b16 %v1185, %v1178
    %v1753 = vpack.c.b16 %v1186, %v1179
    %v1754 = vpack.c.b16 %v1187, %v1180
    %v1755 = vpack.c.b16 %v1188, %v1181
    %v1756 = vpack.c.b16 %v1196, %v1189
    %v1757 = vpack.c.b16 %v1197, %v1190
    %v1758 = vpack.c.b16 %v1198, %v1191
    %v1759 = vpack.c.b16 %v1199, %v1192
    %v1760 = vpack.c.b16 %v1200, %v1193
    %v1761 = vpack.c.b16 %v1201, %v1194
    %v1762 = vpack.c.b16 %v1202, %v1195
    %v1763 = vpack.c.b16 %v1210, %v1203
    %v1764 = vpack.c.b16 %v1211, %v1204
    %v1765 = vpack.c.b16 %v1212, %v1205
    %v1766 = vpack.c.b16 %v1213, %v1206
    %v1767 = vpack.c.b16 %v1214, %v1207
    %v1768 = vpack.c.b16 %v1215, %v1208
    %v1769 = vpack.c.b16 %v1216, %v1209
    %v1770 = vpack.c.b16 %v1224, %v1217
    %v1771 = vpack.c.b16 %v1225, %v1218
    %v1772 = vpack.c.b16 %v1226, %v1219
    %v1773 = vpack.c.b16 %v1227, %v1220
    %v1774 = vpack.c.b16 %v1228, %v1221
    %v1775 = vpack.c.b16 %v1229, %v1222
    %v1776 = vpack.c.b16 %v1230, %v1223
    %v1777 = vpack.c.b16 %v1238, %v1231
    %v1778 = vpack.c.b16 %v1239, %v1232
    %v1779 = vpack.c.b16 %v1240, %v1233
    %v1780 = vpack.c.b16 %v1241, %v1234
    %v1781 = vpack.c.b16 %v1242, %v1235
    %v1782 = vpack.c.b16 %v1243, %v1236
    %v1783 = vpack.c.b16 %v1244, %v1237
    %v1784 = vpack.c.b16 %v1252, %v1245
    %v1785 = vpack.c.b16 %v1253, %v1246
    %v1786 = vpack.c.b16 %v1254, %v1247
    %v1787 = vpack.c.b16 %v1255, %v1248
    %v1788 = vpack.c.b16 %v1256, %v1249
    %v1789 = vpack.c.b16 %v1257, %v1250
    %v1790 = vpack.c.b16 %v1258, %v1251
    %v1791 = vpack.c.b16 %v1266, %v1259
    %v1792 = vpack.c.b16 %v1267, %v1260
    %v1793 = vpack.c.b16 %v1268, %v1261
    %v1794 = vpack.c.b16 %v1269, %v1262
    %v1795 = vpack.c.b16 %v1270, %v1263
    %v1796 = vpack.c.b16 %v1271, %v1264
    %v1797 = vpack.c.b16 %v1272, %v1265
    %v1798 = vpack.c.b16 %v1280, %v1273
    %v1799 = vpack.c.b16 %v1281, %v1274
    %v1800 = vpack.c.b16 %v1282, %v1275
    %v1801 = vpack.c.b16 %v1283, %v1276
    %v1802 = vpack.c.b16 %v1284, %v1277
    %v1803 = vpack.c.b16 %v1285, %v1278
    %v1804 = vpack.c.b16 %v1286, %v1279
    %v1805 = vpack.c.b16 %v1294, %v1287
    %v1806 = vpack.c.b16 %v1295, %v1288
    %v1807 = vpack.c.b16 %v1296, %v1289
    %v1808 = vpack.c.b16 %v1297, %v1290
    %v1809 = vpack.c.b16 %v1298, %v1291
    %v1810 = vpack.c.b16 %v1299, %v1292
    %v1811 = vpack.c.b16 %v1300, %v1293
    %v1812 = vpack.c.b16 %v1308, %v1301
    %v1813 = vpack.c.b16 %v1309, %v1302
    %v1814 = vpack.c.b16 %v1310, %v1303
    %v1815 = vpack.c.b16 %v1311, %v1304
    %v1816 = vpack.c.b16 %v1312, %v1305
    %v1817 = vpack.c.b16 %v1313, %v1306
    %v1818 = vpack.c.b16 %v1314, %v1307
    %v1819 = vpack.c.b16 %v1322, %v1315
    %v1820 = vpack.c.b16 %v1323, %v1316
    %v1821 = vpack.c.b16 %v1324, %v1317
    %v1822 = vpack.c.b16 %v1325, %v1318
    %v1823 = vpack.c.b16 %v1326, %v1319
    %v1824 = vpack.c.b16 %v1327, %v1320
    %v1825 = vpack.c.b16 %v1328, %v1321
    %v1826 = vpack.c.b16 %v1336, %v1329
    %v1827 = vpack.c.b16 %v1337, %v1330
    %v1828 = vpack.c.b16 %v1338, %v1331
    %v1829 = vpack.c.b16 %v1339, %v1332
    %v1830 = vpack.c.b16 %v1340, %v1333
    %v1831 = vpack.c.b16 %v1341, %v1334
    %v1832 = vpack.c.b16 %v1342, %v1335
    %v1833 = vpack.c.b16 %v1350, %v1343
    %v1834 = vpack.c.b16 %v1351, %v1344
    %v1835 = vpack.c.b16 %v1352, %v1345
    %v1836 = vpack.c.b16 %v1353, %v1346
    %v1837 = vpack.c.b16 %v1354, %v1347
    %v1838 = vpack.c.b16 %v1355, %v1348
    %v1839 = vpack.c.b16 %v1356, %v1349
    %v1840 = vpack.c.b16 %v1364, %v1357
    %v1841 = vpack.c.b16 %v1365, %v1358
    %v1842 = vpack.c.b16 %v1366, %v1359
    %v1843 = vpack.c.b16 %v1367, %v1360
    %v1844 = vpack.c.b16 %v1368, %v1361
    %v1845 = vpack.c.b16 %v1369, %v1362
    %v1846 = vpack.c.b16 %v1370, %v1363
    %v1847 = vpack.c.b16 %v1378, %v1371
    %v1848 = vpack.c.b16 %v1379, %v1372
    %v1849 = vpack.c.b16 %v1380, %v1373
    %v1850 = vpack.c.b16 %v1381, %v1374
    %v1851 = vpack.c.b16 %v1382, %v1375
    %v1852 = vpack.c.b16 %v1383, %v1376
    %v1853 = vpack.c.b16 %v1384, %v1377
    %v1854 = vpack.c.b16 %v1392, %v1385
    %v1855 = vpack.c.b16 %v1393, %v1386
    %v1856 = vpack.c.b16 %v1394, %v1387
    %v1857 = vpack.c.b16 %v1395, %v1388
    %v1858 = vpack.c.b16 %v1396, %v1389
    %v1859 = vpack.c.b16 %v1397, %v1390
    %v1860 = vpack.c.b16 %v1398, %v1391
    %v1861 = vpack.c.b16 %v1406, %v1399
    %v1862 = vpack.c.b16 %v1407, %v1400
    %v1863 = vpack.c.b16 %v1408, %v1401
    %v1864 = vpack.c.b16 %v1409, %v1402
    %v1865 = vpack.c.b16 %v1410, %v1403
    %v1866 = vpack.c.b16 %v1411, %v1404
    %v1867 = vpack.c.b16 %v1412, %v1405
    %v1868 = vpack.c.b16 %v1420, %v1413
    %v1869 = vpack.c.b16 %v1421, %v1414
    %v1870 = vpack.c.b16 %v1422, %v1415
    %v1871 = vpack.c.b16 %v1423, %v1416
    %v1872 = vpack.c.b16 %v1424, %v1417
    %v1873 = vpack.c.b16 %v1425, %v1418
    %v1874 = vpack.c.b16 %v1426, %v1419
    %v1875 = vpack.c.b16 %v1434, %v1427
    %v1876 = vpack.c.b16 %v1435, %v1428
    %v1877 = vpack.c.b16 %v1436, %v1429
    %v1878 = vpack.c.b16 %v1437, %v1430
    %v1879 = vpack.c.b16 %v1438, %v1431
    %v1880 = vpack.c.b16 %v1439, %v1432
    %v1881 = vpack.c.b16 %v1440, %v1433
    %v1882 = vpack.c.b16 %v1448, %v1441
    %v1883 = vpack.c.b16 %v1449, %v1442
    %v1884 = vpack.c.b16 %v1450, %v1443
    %v1885 = vpack.c.b16 %v1451, %v1444
    %v1886 = vpack.c.b16 %v1452, %v1445
    %v1887 = vpack.c.b16 %v1453, %v1446
    %v1888 = vpack.c.b16 %v1454, %v1447
    %v1889 = vpack.c.b16 %v1462, %v1455
    %v1890 = vpack.c.b16 %v1463, %v1456
    %v1891 = vpack.c.b16 %v1464, %v1457
    %v1892 = vpack.c.b16 %v1465, %v1458
    %v1893 = vpack.c.b16 %v1466, %v1459
    %v1894 = vpack.c.b16 %v1467, %v1460
    %v1895 = vpack.c.b16 %v1468, %v1461
    %v1896 = vpack.c.b16 %v1476, %v1469
    %v1897 = vpack.c.b16 %v1477, %v1470
    %v1898 = vpack.c.b16 %v1478, %v1471
    %v1899 = vpack.c.b16 %v1479, %v1472
    %v1900 = vpack.c.b16 %v1480, %v1473
    %v1901 = vpack.c.b16 %v1481, %v1474
    %v1902 = vpack.c.b16 %v1482, %v1475
    %v1903 = vpack.c.b16 %v1490, %v1483
    %v1904 = vpack.c.b16 %v1491, %v1484
    %v1905 = vpack.c.b16 %v1492, %v1485
    %v1906 = vpack.c.b16 %v1493, %v1486
    %v1907 = vpack.c.b16 %v1494, %v1487
    %v1908 = vpack.c.b16 %v1495, %v1488
    %v1909 = vpack.c.b16 %v1496, %v1489
    %v1910 = vpack.c.b16 %v1504, %v1497
    %v1911 = vpack.c.b16 %v1505, %v1498
    %v1912 = vpack.c.b16 %v1506, %v1499
    %v1913 = vpack.c.b16 %v1507, %v1500
    %v1914 = vpack.c.b16 %v1508, %v1501
    %v1915 = vpack.c.b16 %v1509, %v1502
    %v1916 = vpack.c.b16 %v1510, %v1503
    %v1917 = vpack.c.b16 %v1518, %v1511
    %v1918 = vpack.c.b16 %v1519, %v1512
    %v1919 = vpack.c.b16 %v1520, %v1513
    %v1920 = vpack.c.b16 %v1521, %v1514
    %v1921 = vpack.c.b16 %v1522, %v1515
    %v1922 = vpack.c.b16 %v1523, %v1516
    %v1923 = vpack.c.b16 %v1524, %v1517
    %v1924 = vpack.c.b16 %v1532, %v1525
    %v1925 = vpack.c.b16 %v1533, %v1526
    %v1926 = vpack.c.b16 %v1534, %v1527
    %v1927 = vpack.c.b16 %v1535, %v1528
    %v1928 = vpack.c.b16 %v1536, %v1529
    %v1929 = vpack.c.b16 %v1537, %v1530
    %v1930 = vpack.c.b16 %v1538, %v1531
    %v1931 = vpack.c.b16 %v1546, %v1539
    %v1932 = vpack.c.b16 %v1547, %v1540
    %v1933 = vpack.c.b16 %v1548, %v1541
    %v1934 = vpack.c.b16 %v1549, %v1542
    %v1935 = vpack.c.b16 %v1550, %v1543
    %v1936 = vpack.c.b16 %v1551, %v1544
    %v1937 = vpack.c.b16 %v1552, %v1545
    %v1938 = vpack.c.b16 %v1560, %v1553
    %v1939 = vpack.c.b16 %v1561, %v1554
    %v1940 = vpack.c.b16 %v1562, %v1555
    %v1941 = vpack.c.b16 %v1563, %v1556
    %v1942 = vpack.c.b16 %v1564, %v1557
    %v1943 = vpack.c.b16 %v1565, %v1558
    %v1944 = vpack.c.b16 %v1566, %v1559
    %v1945 = vpack.c.b16 %v1574, %v1567
    %v1946 = vpack.c.b16 %v1575, %v1568
    %v1947 = vpack.c.b16 %v1576, %v1569
    %v1948 = vpack.c.b16 %v1577, %v1570
    %v1949 = vpack.c.b16 %v1578, %v1571
    %v1950 = vpack.c.b16 %v1579, %v1572
    %v1951 = vpack.c.b16 %v1580, %v1573
    %v1952 = vpack.c.b16 %v1588, %v1581
    %v1953 = vpack.c.b16 %v1589, %v1582
    %v1954 = vpack.c.b16 %v1590, %v1583
    %v1955 = vpack.c.b16 %v1591, %v1584
    %v1956 = vpack.c.b16 %v1592, %v1585
    %v1957 = vpack.c.b16 %v1593, %v1586
    %v1958 = vpack.c.b16 %v1594, %v1587
    %v1959 = vpack.c.b16 %v1602, %v1595
    %v1960 = vpack.c.b16 %v1603, %v1596
    %v1961 = vpack.c.b16 %v1604, %v1597
    %v1962 = vpack.c.b16 %v1605, %v1598
    %v1963 = vpack.c.b16 %v1606, %v1599
    %v1964 = vpack.c.b16 %v1607, %v1600
    %v1965 = vpack.c.b16 %v1608, %v1601
    %v1966 = vpack.c.b16 %v1616, %v1609
    %v1967 = vpack.c.b16 %v1617, %v1610
    %v1968 = vpack.c.b16 %v1618, %v1611
    %v1969 = vpack.c.b16 %v1619, %v1612
    %v1970 = vpack.c.b16 %v1620, %v1613
    %v1971 = vpack.c.b16 %v1621, %v1614
    %v1972 = vpack.c.b16 %v1622, %v1615
    %v1973 = vpack.c.b16 %v1630, %v1623
    %v1974 = vpack.c.b16 %v1631, %v1624
    %v1975 = vpack.c.b16 %v1632, %v1625
    %v1976 = vpack.c.b16 %v1633, %v1626
    %v1977 = vpack.c.b16 %v1634, %v1627
    %v1978 = vpack.c.b16 %v1635, %v1628
    %v1979 = vpack.c.b16 %v1636, %v1629
    %vm2323 = vcmask 130048
    %v2325 = vsel %vm2323, %v125, 0
    %2327 = vmatprep.subr.bf16.mxu0 %v1687
    %2328 = vmatpush1.bf16.msra.mxu0 %v1686
    %2329 = vmatprep.subr.bf16.mxu0 %v1680
    %2330 = vmatpush1.bf16.msra.mxu0 %v1679
    %2331 = vmatprep.subr.bf16.mxu0 %v1673
    %2332 = vmatpush1.bf16.msra.mxu0 %v1672
    %2333 = vmatprep.subr.bf16.mxu0 %v1666
    %2334 = vmatpush1.bf16.msra.mxu0 %v1665
    %2335 = vmatprep.subr.bf16.mxu0 %v1659
    %2336 = vmatpush1.bf16.msra.mxu0 %v1658
    %2337 = vmatprep.subr.bf16.mxu0 %v1652
    %2338 = vmatpush1.bf16.msra.mxu0 %v1651
    %2339 = vmatprep.subr.bf16.mxu0 %v1645
    %2340 = vmatpush1.bf16.msra.mxu0 %v1644
    %2341 = vmatprep.subr.bf16.mxu0 %v1638
    %2342 = vmatpush1.bf16.msra.mxu0 %v1637
    %2343 = vmatprep.subr.bf16.mxu0 %v1743
    %2344 = vmatpush2.bf16.msra.mxu0 %v1742
    %2345 = vmatprep.subr.bf16.mxu0 %v1736
    %2346 = vmatpush2.bf16.msra.mxu0 %v1735
    %2347 = vmatprep.subr.bf16.mxu0 %v1729
    %2348 = vmatpush2.bf16.msra.mxu0 %v1728
    %2349 = vmatprep.subr.bf16.mxu0 %v1722
    %2350 = vmatpush2.bf16.msra.mxu0 %v1721
    %2351 = vmatprep.subr.bf16.mxu0 %v1715
    %2352 = vmatpush2.bf16.msra.mxu0 %v1714
    %2353 = vmatprep.subr.bf16.mxu0 %v1708
    %2354 = vmatpush2.bf16.msra.mxu0 %v1707
    %2355 = vmatprep.subr.bf16.mxu0 %v1701
    %2356 = vmatpush2.bf16.msra.mxu0 %v1700
    %2357 = vmatprep.subr.bf16.mxu0 %v1694
    %2358 = vmatpush2.bf16.msra.mxu0 %v1693
    %2359 = vmatprep.mubr.bf16.mxu0 %v120
    %2360 = vmatmul.mubr.bf16.gmra.mxu0 %v119
    %v2361 = vpop.f32.mrf.mxu0
    %v2362 = vadd.f32 %v527, %v2361
    %v2363 = vpop.f32.mrf.mxu0
    %v2364 = vadd.f32 %v531, %v2363
    %v2365 = vpop.f32.mrf.mxu0
    %v2366 = vpop.f32.mrf.mxu0
    %2367 = vdwg.mxu0
    %2368 = vmatprep.subr.bf16.mxu0 %v1799
    %2369 = vmatpush1.bf16.msra.mxu0 %v1798
    %2370 = vmatprep.subr.bf16.mxu0 %v1792
    %2371 = vmatpush1.bf16.msra.mxu0 %v1791
    %2372 = vmatprep.subr.bf16.mxu0 %v1785
    %2373 = vmatpush1.bf16.msra.mxu0 %v1784
    %2374 = vmatprep.subr.bf16.mxu0 %v1778
    %2375 = vmatpush1.bf16.msra.mxu0 %v1777
    %2376 = vmatprep.subr.bf16.mxu0 %v1771
    %2377 = vmatpush1.bf16.msra.mxu0 %v1770
    %2378 = vmatprep.subr.bf16.mxu0 %v1764
    %2379 = vmatpush1.bf16.msra.mxu0 %v1763
    %2380 = vmatprep.subr.bf16.mxu0 %v1757
    %2381 = vmatpush1.bf16.msra.mxu0 %v1756
    %2382 = vmatprep.subr.bf16.mxu0 %v1750
    %2383 = vmatpush1.bf16.msra.mxu0 %v1749
    %2384 = vmatprep.subr.bf16.mxu0 %v1855
    %2385 = vmatpush2.bf16.msra.mxu0 %v1854
    %2386 = vmatprep.subr.bf16.mxu0 %v1848
    %2387 = vmatpush2.bf16.msra.mxu0 %v1847
    %2388 = vmatprep.subr.bf16.mxu0 %v1841
    %2389 = vmatpush2.bf16.msra.mxu0 %v1840
    %2390 = vmatprep.subr.bf16.mxu0 %v1834
    %2391 = vmatpush2.bf16.msra.mxu0 %v1833
    %2392 = vmatprep.subr.bf16.mxu0 %v1827
    %2393 = vmatpush2.bf16.msra.mxu0 %v1826
    %2394 = vmatprep.subr.bf16.mxu0 %v1820
    %2395 = vmatpush2.bf16.msra.mxu0 %v1819
    %2396 = vmatprep.subr.bf16.mxu0 %v1813
    %2397 = vmatpush2.bf16.msra.mxu0 %v1812
    %2398 = vmatprep.subr.bf16.mxu0 %v1806
    %2399 = vmatpush2.bf16.msra.mxu0 %v1805
    %2400 = vmatprep.mubr.bf16.mxu0 %v122
    %2401 = vmatmul.mubr.bf16.gmra.mxu0 %v121
    %v2402 = vpop.f32.mrf.mxu0
    %v2403 = vadd.f32 %v2362, %v2402
    %v2404 = vpop.f32.mrf.mxu0
    %v2405 = vadd.f32 %v2364, %v2404
    %v2406 = vpop.f32.mrf.mxu0
    %v2407 = vpop.f32.mrf.mxu0
    %2408 = vdwg.mxu0
    %2409 = vmatprep.subr.bf16.mxu0 %v1911
    %2410 = vmatpush1.bf16.msra.mxu0 %v1910
    %2411 = vmatprep.subr.bf16.mxu0 %v1904
    %2412 = vmatpush1.bf16.msra.mxu0 %v1903
    %2413 = vmatprep.subr.bf16.mxu0 %v1897
    %2414 = vmatpush1.bf16.msra.mxu0 %v1896
    %2415 = vmatprep.subr.bf16.mxu0 %v1890
    %2416 = vmatpush1.bf16.msra.mxu0 %v1889
    %2417 = vmatprep.subr.bf16.mxu0 %v1883
    %2418 = vmatpush1.bf16.msra.mxu0 %v1882
    %2419 = vmatprep.subr.bf16.mxu0 %v1876
    %2420 = vmatpush1.bf16.msra.mxu0 %v1875
    %2421 = vmatprep.subr.bf16.mxu0 %v1869
    %2422 = vmatpush1.bf16.msra.mxu0 %v1868
    %2423 = vmatprep.subr.bf16.mxu0 %v1862
    %2424 = vmatpush1.bf16.msra.mxu0 %v1861
    %2425 = vmatprep.subr.bf16.mxu0 %v1967
    %2426 = vmatpush2.bf16.msra.mxu0 %v1966
    %2427 = vmatprep.subr.bf16.mxu0 %v1960
    %2428 = vmatpush2.bf16.msra.mxu0 %v1959
    %2429 = vmatprep.subr.bf16.mxu0 %v1953
    %2430 = vmatpush2.bf16.msra.mxu0 %v1952
    %2431 = vmatprep.subr.bf16.mxu0 %v1946
    %2432 = vmatpush2.bf16.msra.mxu0 %v1945
    %2433 = vmatprep.subr.bf16.mxu0 %v1939
    %2434 = vmatpush2.bf16.msra.mxu0 %v1938
    %2435 = vmatprep.subr.bf16.mxu0 %v1932
    %2436 = vmatpush2.bf16.msra.mxu0 %v1931
    %2437 = vmatprep.subr.bf16.mxu0 %v1925
    %2438 = vmatpush2.bf16.msra.mxu0 %v1924
    %2439 = vmatprep.subr.bf16.mxu0 %v1918
    %2440 = vmatpush2.bf16.msra.mxu0 %v1917
    %2441 = vmatprep.mubr.bf16.mxu0 %v124
    %2442 = vmatmul.mubr.bf16.gmra.mxu0 %v123
    %v2443 = vpop.f32.mrf.mxu0
    %v2444 = vadd.f32 %v2403, %v2443
    %v2445 = vpop.f32.mrf.mxu0
    %v2446 = vadd.f32 %v2405, %v2445
    %v2447 = vpop.f32.mrf.mxu0
    %v2448 = vpop.f32.mrf.mxu0
    %2449 = vdwg.mxu0
    %2450 = vmatprep.subr.bf16.mxu0 0
    %2451 = vmatpush1.bf16.msra.mxu0 0
    %2452 = vmatprep.subr.bf16.mxu0 0
    %2453 = vmatpush1.bf16.msra.mxu0 0
    %2454 = vmatprep.subr.bf16.mxu0 0
    %2455 = vmatpush1.bf16.msra.mxu0 0
    %2456 = vmatprep.subr.bf16.mxu0 0
    %2457 = vmatpush1.bf16.msra.mxu0 0
    %2458 = vmatprep.subr.bf16.mxu0 0
    %2459 = vmatpush1.bf16.msra.mxu0 0
    %2460 = vmatprep.subr.bf16.mxu0 0
    %2461 = vmatpush1.bf16.msra.mxu0 0
    %2462 = vmatprep.subr.bf16.mxu0 0
    %2463 = vmatpush1.bf16.msra.mxu0 0
    %2464 = vmatprep.subr.bf16.mxu0 %v1974
    %2465 = vmatpush1.bf16.msra.mxu0 %v1973
    %2466 = vmatprep.subr.bf16.mxu0 0
    %2467 = vmatpush2.bf16.msra.mxu0 0
    %2468 = vmatprep.subr.bf16.mxu0 0
    %2469 = vmatpush2.bf16.msra.mxu0 0
    %2470 = vmatprep.subr.bf16.mxu0 0
    %2471 = vmatpush2.bf16.msra.mxu0 0
    %2472 = vmatprep.subr.bf16.mxu0 0
    %2473 = vmatpush2.bf16.msra.mxu0 0
    %2474 = vmatprep.subr.bf16.mxu0 0
    %2475 = vmatpush2.bf16.msra.mxu0 0
    %2476 = vmatprep.subr.bf16.mxu0 0
    %2477 = vmatpush2.bf16.msra.mxu0 0
    %2478 = vmatprep.subr.bf16.mxu0 0
    %2479 = vmatpush2.bf16.msra.mxu0 0
    %2480 = vmatprep.subr.bf16.mxu0 0
    %2481 = vmatpush2.bf16.msra.mxu0 0
    %2482 = vmatprep.mubr.bf16.mxu0 0
    %2483 = vmatmul.mubr.bf16.gmra.mxu0 %v2325
    %v2484 = vpop.f32.mrf.mxu0
    %v2485 = vadd.f32 %v2444, %v2484
    %v2486 = vpop.f32.mrf.mxu0
    %v2487 = vadd.f32 %v2446, %v2486
    %v2488 = vpop.f32.mrf.mxu0
    %v2489 = vpop.f32.mrf.mxu0
    %2490 = vdwg.mxu0
    %2491 = vmatprep.subr.bf16.mxu0 %v1689
    %2492 = vmatpush1.bf16.msra.mxu0 %v1688
    %2493 = vmatprep.subr.bf16.mxu0 %v1682
    %2494 = vmatpush1.bf16.msra.mxu0 %v1681
    %2495 = vmatprep.subr.bf16.mxu0 %v1675
    %2496 = vmatpush1.bf16.msra.mxu0 %v1674
    %2497 = vmatprep.subr.bf16.mxu0 %v1668
    %2498 = vmatpush1.bf16.msra.mxu0 %v1667
    %2499 = vmatprep.subr.bf16.mxu0 %v1661
    %2500 = vmatpush1.bf16.msra.mxu0 %v1660
    %2501 = vmatprep.subr.bf16.mxu0 %v1654
    %2502 = vmatpush1.bf16.msra.mxu0 %v1653
    %2503 = vmatprep.subr.bf16.mxu0 %v1647
    %2504 = vmatpush1.bf16.msra.mxu0 %v1646
    %2505 = vmatprep.subr.bf16.mxu0 %v1640
    %2506 = vmatpush1.bf16.msra.mxu0 %v1639
    %2507 = vmatprep.subr.bf16.mxu0 %v1745
    %2508 = vmatpush2.bf16.msra.mxu0 %v1744
    %2509 = vmatprep.subr.bf16.mxu0 %v1738
    %2510 = vmatpush2.bf16.msra.mxu0 %v1737
    %2511 = vmatprep.subr.bf16.mxu0 %v1731
    %2512 = vmatpush2.bf16.msra.mxu0 %v1730
    %2513 = vmatprep.subr.bf16.mxu0 %v1724
    %2514 = vmatpush2.bf16.msra.mxu0 %v1723
    %2515 = vmatprep.subr.bf16.mxu0 %v1717
    %2516 = vmatpush2.bf16.msra.mxu0 %v1716
    %2517 = vmatprep.subr.bf16.mxu0 %v1710
    %2518 = vmatpush2.bf16.msra.mxu0 %v1709
    %2519 = vmatprep.subr.bf16.mxu0 %v1703
    %2520 = vmatpush2.bf16.msra.mxu0 %v1702
    %2521 = vmatprep.subr.bf16.mxu0 %v1696
    %2522 = vmatpush2.bf16.msra.mxu0 %v1695
    %2523 = vmatprep.mubr.bf16.mxu0 %v120
    %2524 = vmatmul.mubr.bf16.gmra.mxu0 %v119
    %v2525 = vpop.f32.mrf.mxu0
    %v2526 = vadd.f32 %v535, %v2525
    %v2527 = vpop.f32.mrf.mxu0
    %v2528 = vadd.f32 %v539, %v2527
    %v2529 = vpop.f32.mrf.mxu0
    %v2530 = vpop.f32.mrf.mxu0
    %2531 = vdwg.mxu0
    %2532 = vmatprep.subr.bf16.mxu0 %v1801
    %2533 = vmatpush1.bf16.msra.mxu0 %v1800
    %2534 = vmatprep.subr.bf16.mxu0 %v1794
    %2535 = vmatpush1.bf16.msra.mxu0 %v1793
    %2536 = vmatprep.subr.bf16.mxu0 %v1787
    %2537 = vmatpush1.bf16.msra.mxu0 %v1786
    %2538 = vmatprep.subr.bf16.mxu0 %v1780
    %2539 = vmatpush1.bf16.msra.mxu0 %v1779
    %2540 = vmatprep.subr.bf16.mxu0 %v1773
    %2541 = vmatpush1.bf16.msra.mxu0 %v1772
    %2542 = vmatprep.subr.bf16.mxu0 %v1766
    %2543 = vmatpush1.bf16.msra.mxu0 %v1765
    %2544 = vmatprep.subr.bf16.mxu0 %v1759
    %2545 = vmatpush1.bf16.msra.mxu0 %v1758
    %2546 = vmatprep.subr.bf16.mxu0 %v1752
    %2547 = vmatpush1.bf16.msra.mxu0 %v1751
    %2548 = vmatprep.subr.bf16.mxu0 %v1857
    %2549 = vmatpush2.bf16.msra.mxu0 %v1856
    %2550 = vmatprep.subr.bf16.mxu0 %v1850
    %2551 = vmatpush2.bf16.msra.mxu0 %v1849
    %2552 = vmatprep.subr.bf16.mxu0 %v1843
    %2553 = vmatpush2.bf16.msra.mxu0 %v1842
    %2554 = vmatprep.subr.bf16.mxu0 %v1836
    %2555 = vmatpush2.bf16.msra.mxu0 %v1835
    %2556 = vmatprep.subr.bf16.mxu0 %v1829
    %2557 = vmatpush2.bf16.msra.mxu0 %v1828
    %2558 = vmatprep.subr.bf16.mxu0 %v1822
    %2559 = vmatpush2.bf16.msra.mxu0 %v1821
    %2560 = vmatprep.subr.bf16.mxu0 %v1815
    %2561 = vmatpush2.bf16.msra.mxu0 %v1814
    %2562 = vmatprep.subr.bf16.mxu0 %v1808
    %2563 = vmatpush2.bf16.msra.mxu0 %v1807
    %2564 = vmatprep.mubr.bf16.mxu0 %v122
    %2565 = vmatmul.mubr.bf16.gmra.mxu0 %v121
    %v2566 = vpop.f32.mrf.mxu0
    %v2567 = vadd.f32 %v2526, %v2566
    %v2568 = vpop.f32.mrf.mxu0
    %v2569 = vadd.f32 %v2528, %v2568
    %v2570 = vpop.f32.mrf.mxu0
    %v2571 = vpop.f32.mrf.mxu0
    %2572 = vdwg.mxu0
    %2573 = vmatprep.subr.bf16.mxu0 %v1913
    %2574 = vmatpush1.bf16.msra.mxu0 %v1912
    %2575 = vmatprep.subr.bf16.mxu0 %v1906
    %2576 = vmatpush1.bf16.msra.mxu0 %v1905
    %2577 = vmatprep.subr.bf16.mxu0 %v1899
    %2578 = vmatpush1.bf16.msra.mxu0 %v1898
    %2579 = vmatprep.subr.bf16.mxu0 %v1892
    %2580 = vmatpush1.bf16.msra.mxu0 %v1891
    %2581 = vmatprep.subr.bf16.mxu0 %v1885
    %2582 = vmatpush1.bf16.msra.mxu0 %v1884
    %2583 = vmatprep.subr.bf16.mxu0 %v1878
    %2584 = vmatpush1.bf16.msra.mxu0 %v1877
    %2585 = vmatprep.subr.bf16.mxu0 %v1871
    %2586 = vmatpush1.bf16.msra.mxu0 %v1870
    %2587 = vmatprep.subr.bf16.mxu0 %v1864
    %2588 = vmatpush1.bf16.msra.mxu0 %v1863
    %2589 = vmatprep.subr.bf16.mxu0 %v1969
    %2590 = vmatpush2.bf16.msra.mxu0 %v1968
    %2591 = vmatprep.subr.bf16.mxu0 %v1962
    %2592 = vmatpush2.bf16.msra.mxu0 %v1961
    %2593 = vmatprep.subr.bf16.mxu0 %v1955
    %2594 = vmatpush2.bf16.msra.mxu0 %v1954
    %2595 = vmatprep.subr.bf16.mxu0 %v1948
    %2596 = vmatpush2.bf16.msra.mxu0 %v1947
    %2597 = vmatprep.subr.bf16.mxu0 %v1941
    %2598 = vmatpush2.bf16.msra.mxu0 %v1940
    %2599 = vmatprep.subr.bf16.mxu0 %v1934
    %2600 = vmatpush2.bf16.msra.mxu0 %v1933
    %2601 = vmatprep.subr.bf16.mxu0 %v1927
    %2602 = vmatpush2.bf16.msra.mxu0 %v1926
    %2603 = vmatprep.subr.bf16.mxu0 %v1920
    %2604 = vmatpush2.bf16.msra.mxu0 %v1919
    %2605 = vmatprep.mubr.bf16.mxu0 %v124
    %2606 = vmatmul.mubr.bf16.gmra.mxu0 %v123
    %v2607 = vpop.f32.mrf.mxu0
    %v2608 = vadd.f32 %v2567, %v2607
    %v2609 = vpop.f32.mrf.mxu0
    %v2610 = vadd.f32 %v2569, %v2609
    %v2611 = vpop.f32.mrf.mxu0
    %v2612 = vpop.f32.mrf.mxu0
    %2613 = vdwg.mxu0
    %2614 = vmatprep.subr.bf16.mxu0 0
    %2615 = vmatpush1.bf16.msra.mxu0 0
    %2616 = vmatprep.subr.bf16.mxu0 0
    %2617 = vmatpush1.bf16.msra.mxu0 0
    %2618 = vmatprep.subr.bf16.mxu0 0
    %2619 = vmatpush1.bf16.msra.mxu0 0
    %2620 = vmatprep.subr.bf16.mxu0 0
    %2621 = vmatpush1.bf16.msra.mxu0 0
    %2622 = vmatprep.subr.bf16.mxu0 0
    %2623 = vmatpush1.bf16.msra.mxu0 0
    %2624 = vmatprep.subr.bf16.mxu0 0
    %2625 = vmatpush1.bf16.msra.mxu0 0
    %2626 = vmatprep.subr.bf16.mxu0 0
    %2627 = vmatpush1.bf16.msra.mxu0 0
    %2628 = vmatprep.subr.bf16.mxu0 %v1976
    %2629 = vmatpush1.bf16.msra.mxu0 %v1975
    %2630 = vmatprep.subr.bf16.mxu0 0
    %2631 = vmatpush2.bf16.msra.mxu0 0
    %2632 = vmatprep.subr.bf16.mxu0 0
    %2633 = vmatpush2.bf16.msra.mxu0 0
    %2634 = vmatprep.subr.bf16.mxu0 0
    %2635 = vmatpush2.bf16.msra.mxu0 0
    %2636 = vmatprep.subr.bf16.mxu0 0
    %2637 = vmatpush2.bf16.msra.mxu0 0
    %2638 = vmatprep.subr.bf16.mxu0 0
    %2639 = vmatpush2.bf16.msra.mxu0 0
    %2640 = vmatprep.subr.bf16.mxu0 0
    %2641 = vmatpush2.bf16.msra.mxu0 0
    %2642 = vmatprep.subr.bf16.mxu0 0
    %2643 = vmatpush2.bf16.msra.mxu0 0
    %2644 = vmatprep.subr.bf16.mxu0 0
    %2645 = vmatpush2.bf16.msra.mxu0 0
    %2646 = vmatprep.mubr.bf16.mxu0 0
    %2647 = vmatmul.mubr.bf16.gmra.mxu0 %v2325
    %v2648 = vpop.f32.mrf.mxu0
    %v2649 = vadd.f32 %v2608, %v2648
    %v2650 = vpop.f32.mrf.mxu0
    %v2651 = vadd.f32 %v2610, %v2650
    %v2652 = vpop.f32.mrf.mxu0
    %v2653 = vpop.f32.mrf.mxu0
    %2654 = vdwg.mxu0
    %2655 = vmatprep.subr.bf16.mxu0 %v1691
    %2656 = vmatpush1.bf16.msra.mxu0 %v1690
    %2657 = vmatprep.subr.bf16.mxu0 %v1684
    %2658 = vmatpush1.bf16.msra.mxu0 %v1683
    %2659 = vmatprep.subr.bf16.mxu0 %v1677
    %2660 = vmatpush1.bf16.msra.mxu0 %v1676
    %2661 = vmatprep.subr.bf16.mxu0 %v1670
    %2662 = vmatpush1.bf16.msra.mxu0 %v1669
    %2663 = vmatprep.subr.bf16.mxu0 %v1663
    %2664 = vmatpush1.bf16.msra.mxu0 %v1662
    %2665 = vmatprep.subr.bf16.mxu0 %v1656
    %2666 = vmatpush1.bf16.msra.mxu0 %v1655
    %2667 = vmatprep.subr.bf16.mxu0 %v1649
    %2668 = vmatpush1.bf16.msra.mxu0 %v1648
    %2669 = vmatprep.subr.bf16.mxu0 %v1642
    %2670 = vmatpush1.bf16.msra.mxu0 %v1641
    %2671 = vmatprep.subr.bf16.mxu0 %v1747
    %2672 = vmatpush2.bf16.msra.mxu0 %v1746
    %2673 = vmatprep.subr.bf16.mxu0 %v1740
    %2674 = vmatpush2.bf16.msra.mxu0 %v1739
    %2675 = vmatprep.subr.bf16.mxu0 %v1733
    %2676 = vmatpush2.bf16.msra.mxu0 %v1732
    %2677 = vmatprep.subr.bf16.mxu0 %v1726
    %2678 = vmatpush2.bf16.msra.mxu0 %v1725
    %2679 = vmatprep.subr.bf16.mxu0 %v1719
    %2680 = vmatpush2.bf16.msra.mxu0 %v1718
    %2681 = vmatprep.subr.bf16.mxu0 %v1712
    %2682 = vmatpush2.bf16.msra.mxu0 %v1711
    %2683 = vmatprep.subr.bf16.mxu0 %v1705
    %2684 = vmatpush2.bf16.msra.mxu0 %v1704
    %2685 = vmatprep.subr.bf16.mxu0 %v1698
    %2686 = vmatpush2.bf16.msra.mxu0 %v1697
    %2687 = vmatprep.mubr.bf16.mxu0 %v120
    %2688 = vmatmul.mubr.bf16.gmra.mxu0 %v119
    %v2689 = vpop.f32.mrf.mxu0
    %v2690 = vadd.f32 %v543, %v2689
    %v2691 = vpop.f32.mrf.mxu0
    %v2692 = vadd.f32 %v547, %v2691
    %v2693 = vpop.f32.mrf.mxu0
    %v2694 = vpop.f32.mrf.mxu0
    %2695 = vdwg.mxu0
    %2696 = vmatprep.subr.bf16.mxu0 %v1803
    %2697 = vmatpush1.bf16.msra.mxu0 %v1802
    %2698 = vmatprep.subr.bf16.mxu0 %v1796
    %2699 = vmatpush1.bf16.msra.mxu0 %v1795
    %2700 = vmatprep.subr.bf16.mxu0 %v1789
    %2701 = vmatpush1.bf16.msra.mxu0 %v1788
    %2702 = vmatprep.subr.bf16.mxu0 %v1782
    %2703 = vmatpush1.bf16.msra.mxu0 %v1781
    %2704 = vmatprep.subr.bf16.mxu0 %v1775
    %2705 = vmatpush1.bf16.msra.mxu0 %v1774
    %2706 = vmatprep.subr.bf16.mxu0 %v1768
    %2707 = vmatpush1.bf16.msra.mxu0 %v1767
    %2708 = vmatprep.subr.bf16.mxu0 %v1761
    %2709 = vmatpush1.bf16.msra.mxu0 %v1760
    %2710 = vmatprep.subr.bf16.mxu0 %v1754
    %2711 = vmatpush1.bf16.msra.mxu0 %v1753
    %2712 = vmatprep.subr.bf16.mxu0 %v1859
    %2713 = vmatpush2.bf16.msra.mxu0 %v1858
    %2714 = vmatprep.subr.bf16.mxu0 %v1852
    %2715 = vmatpush2.bf16.msra.mxu0 %v1851
    %2716 = vmatprep.subr.bf16.mxu0 %v1845
    %2717 = vmatpush2.bf16.msra.mxu0 %v1844
    %2718 = vmatprep.subr.bf16.mxu0 %v1838
    %2719 = vmatpush2.bf16.msra.mxu0 %v1837
    %2720 = vmatprep.subr.bf16.mxu0 %v1831
    %2721 = vmatpush2.bf16.msra.mxu0 %v1830
    %2722 = vmatprep.subr.bf16.mxu0 %v1824
    %2723 = vmatpush2.bf16.msra.mxu0 %v1823
    %2724 = vmatprep.subr.bf16.mxu0 %v1817
    %2725 = vmatpush2.bf16.msra.mxu0 %v1816
    %2726 = vmatprep.subr.bf16.mxu0 %v1810
    %2727 = vmatpush2.bf16.msra.mxu0 %v1809
    %2728 = vmatprep.mubr.bf16.mxu0 %v122
    %2729 = vmatmul.mubr.bf16.gmra.mxu0 %v121
    %v2730 = vpop.f32.mrf.mxu0
    %v2731 = vadd.f32 %v2690, %v2730
    %v2732 = vpop.f32.mrf.mxu0
    %v2733 = vadd.f32 %v2692, %v2732
    %v2734 = vpop.f32.mrf.mxu0
    %v2735 = vpop.f32.mrf.mxu0
    %2736 = vdwg.mxu0
    %2737 = vmatprep.subr.bf16.mxu0 %v1915
    %2738 = vmatpush1.bf16.msra.mxu0 %v1914
    %2739 = vmatprep.subr.bf16.mxu0 %v1908
    %2740 = vmatpush1.bf16.msra.mxu0 %v1907
    %2741 = vmatprep.subr.bf16.mxu0 %v1901
    %2742 = vmatpush1.bf16.msra.mxu0 %v1900
    %2743 = vmatprep.subr.bf16.mxu0 %v1894
    %2744 = vmatpush1.bf16.msra.mxu0 %v1893
    %2745 = vmatprep.subr.bf16.mxu0 %v1887
    %2746 = vmatpush1.bf16.msra.mxu0 %v1886
    %2747 = vmatprep.subr.bf16.mxu0 %v1880
    %2748 = vmatpush1.bf16.msra.mxu0 %v1879
    %2749 = vmatprep.subr.bf16.mxu0 %v1873
    %2750 = vmatpush1.bf16.msra.mxu0 %v1872
    %2751 = vmatprep.subr.bf16.mxu0 %v1866
    %2752 = vmatpush1.bf16.msra.mxu0 %v1865
    %2753 = vmatprep.subr.bf16.mxu0 %v1971
    %2754 = vmatpush2.bf16.msra.mxu0 %v1970
    %2755 = vmatprep.subr.bf16.mxu0 %v1964
    %2756 = vmatpush2.bf16.msra.mxu0 %v1963
    %2757 = vmatprep.subr.bf16.mxu0 %v1957
    %2758 = vmatpush2.bf16.msra.mxu0 %v1956
    %2759 = vmatprep.subr.bf16.mxu0 %v1950
    %2760 = vmatpush2.bf16.msra.mxu0 %v1949
    %2761 = vmatprep.subr.bf16.mxu0 %v1943
    %2762 = vmatpush2.bf16.msra.mxu0 %v1942
    %2763 = vmatprep.subr.bf16.mxu0 %v1936
    %2764 = vmatpush2.bf16.msra.mxu0 %v1935
    %2765 = vmatprep.subr.bf16.mxu0 %v1929
    %2766 = vmatpush2.bf16.msra.mxu0 %v1928
    %2767 = vmatprep.subr.bf16.mxu0 %v1922
    %2768 = vmatpush2.bf16.msra.mxu0 %v1921
    %2769 = vmatprep.mubr.bf16.mxu0 %v124
    %2770 = vmatmul.mubr.bf16.gmra.mxu0 %v123
    %v2771 = vpop.f32.mrf.mxu0
    %v2772 = vadd.f32 %v2731, %v2771
    %v2773 = vpop.f32.mrf.mxu0
    %v2774 = vadd.f32 %v2733, %v2773
    %v2775 = vpop.f32.mrf.mxu0
    %v2776 = vpop.f32.mrf.mxu0
    %2777 = vdwg.mxu0
    %2778 = vmatprep.subr.bf16.mxu0 0
    %2779 = vmatpush1.bf16.msra.mxu0 0
    %2780 = vmatprep.subr.bf16.mxu0 0
    %2781 = vmatpush1.bf16.msra.mxu0 0
    %2782 = vmatprep.subr.bf16.mxu0 0
    %2783 = vmatpush1.bf16.msra.mxu0 0
    %2784 = vmatprep.subr.bf16.mxu0 0
    %2785 = vmatpush1.bf16.msra.mxu0 0
    %2786 = vmatprep.subr.bf16.mxu0 0
    %2787 = vmatpush1.bf16.msra.mxu0 0
    %2788 = vmatprep.subr.bf16.mxu0 0
    %2789 = vmatpush1.bf16.msra.mxu0 0
    %2790 = vmatprep.subr.bf16.mxu0 0
    %2791 = vmatpush1.bf16.msra.mxu0 0
    %2792 = vmatprep.subr.bf16.mxu0 %v1978
    %2793 = vmatpush1.bf16.msra.mxu0 %v1977
    %2794 = vmatprep.subr.bf16.mxu0 0
    %2795 = vmatpush2.bf16.msra.mxu0 0
    %2796 = vmatprep.subr.bf16.mxu0 0
    %2797 = vmatpush2.bf16.msra.mxu0 0
    %2798 = vmatprep.subr.bf16.mxu0 0
    %2799 = vmatpush2.bf16.msra.mxu0 0
    %2800 = vmatprep.subr.bf16.mxu0 0
    %2801 = vmatpush2.bf16.msra.mxu0 0
    %2802 = vmatprep.subr.bf16.mxu0 0
    %2803 = vmatpush2.bf16.msra.mxu0 0
    %2804 = vmatprep.subr.bf16.mxu0 0
    %2805 = vmatpush2.bf16.msra.mxu0 0
    %2806 = vmatprep.subr.bf16.mxu0 0
    %2807 = vmatpush2.bf16.msra.mxu0 0
    %2808 = vmatprep.subr.bf16.mxu0 0
    %2809 = vmatpush2.bf16.msra.mxu0 0
    %2810 = vmatprep.mubr.bf16.mxu0 0
    %2811 = vmatmul.mubr.bf16.gmra.mxu0 %v2325
    %v2812 = vpop.f32.mrf.mxu0
    %v2813 = vadd.f32 %v2772, %v2812
    %v2814 = vpop.f32.mrf.mxu0
    %v2815 = vadd.f32 %v2774, %v2814
    %v2816 = vpop.f32.mrf.mxu0
    %v2817 = vpop.f32.mrf.mxu0
    %2818 = vdwg.mxu0
    %2819 = vmatprep.subr.bf16.mxu0 0
    %2820 = vmatpush1.bf16.msra.mxu0 %v1692
    %2821 = vmatprep.subr.bf16.mxu0 0
    %2822 = vmatpush1.bf16.msra.mxu0 %v1685
    %2823 = vmatprep.subr.bf16.mxu0 0
    %2824 = vmatpush1.bf16.msra.mxu0 %v1678
    %2825 = vmatprep.subr.bf16.mxu0 0
    %2826 = vmatpush1.bf16.msra.mxu0 %v1671
    %2827 = vmatprep.subr.bf16.mxu0 0
    %2828 = vmatpush1.bf16.msra.mxu0 %v1664
    %2829 = vmatprep.subr.bf16.mxu0 0
    %2830 = vmatpush1.bf16.msra.mxu0 %v1657
    %2831 = vmatprep.subr.bf16.mxu0 0
    %2832 = vmatpush1.bf16.msra.mxu0 %v1650
    %2833 = vmatprep.subr.bf16.mxu0 0
    %2834 = vmatpush1.bf16.msra.mxu0 %v1643
    %2835 = vmatprep.subr.bf16.mxu0 0
    %2836 = vmatpush2.bf16.msra.mxu0 %v1748
    %2837 = vmatprep.subr.bf16.mxu0 0
    %2838 = vmatpush2.bf16.msra.mxu0 %v1741
    %2839 = vmatprep.subr.bf16.mxu0 0
    %2840 = vmatpush2.bf16.msra.mxu0 %v1734
    %2841 = vmatprep.subr.bf16.mxu0 0
    %2842 = vmatpush2.bf16.msra.mxu0 %v1727
    %2843 = vmatprep.subr.bf16.mxu0 0
    %2844 = vmatpush2.bf16.msra.mxu0 %v1720
    %2845 = vmatprep.subr.bf16.mxu0 0
    %2846 = vmatpush2.bf16.msra.mxu0 %v1713
    %2847 = vmatprep.subr.bf16.mxu0 0
    %2848 = vmatpush2.bf16.msra.mxu0 %v1706
    %2849 = vmatprep.subr.bf16.mxu0 0
    %2850 = vmatpush2.bf16.msra.mxu0 %v1699
    %2851 = vmatprep.mubr.bf16.mxu0 %v120
    %2852 = vmatmul.mubr.bf16.gmra.mxu0 %v119
    %v2853 = vpop.f32.mrf.mxu0
    %v2854 = vadd.f32 %v551, %v2853
    %v2855 = vpop.f32.mrf.mxu0
    %v2856 = vpop.f32.mrf.mxu0
    %v2857 = vpop.f32.mrf.mxu0
    %2858 = vdwg.mxu0
    %2859 = vmatprep.subr.bf16.mxu0 0
    %2860 = vmatpush1.bf16.msra.mxu0 %v1804
    %2861 = vmatprep.subr.bf16.mxu0 0
    %2862 = vmatpush1.bf16.msra.mxu0 %v1797
    %2863 = vmatprep.subr.bf16.mxu0 0
    %2864 = vmatpush1.bf16.msra.mxu0 %v1790
    %2865 = vmatprep.subr.bf16.mxu0 0
    %2866 = vmatpush1.bf16.msra.mxu0 %v1783
    %2867 = vmatprep.subr.bf16.mxu0 0
    %2868 = vmatpush1.bf16.msra.mxu0 %v1776
    %2869 = vmatprep.subr.bf16.mxu0 0
    %2870 = vmatpush1.bf16.msra.mxu0 %v1769
    %2871 = vmatprep.subr.bf16.mxu0 0
    %2872 = vmatpush1.bf16.msra.mxu0 %v1762
    %2873 = vmatprep.subr.bf16.mxu0 0
    %2874 = vmatpush1.bf16.msra.mxu0 %v1755
    %2875 = vmatprep.subr.bf16.mxu0 0
    %2876 = vmatpush2.bf16.msra.mxu0 %v1860
    %2877 = vmatprep.subr.bf16.mxu0 0
    %2878 = vmatpush2.bf16.msra.mxu0 %v1853
    %2879 = vmatprep.subr.bf16.mxu0 0
    %2880 = vmatpush2.bf16.msra.mxu0 %v1846
    %2881 = vmatprep.subr.bf16.mxu0 0
    %2882 = vmatpush2.bf16.msra.mxu0 %v1839
    %2883 = vmatprep.subr.bf16.mxu0 0
    %2884 = vmatpush2.bf16.msra.mxu0 %v1832
    %2885 = vmatprep.subr.bf16.mxu0 0
    %2886 = vmatpush2.bf16.msra.mxu0 %v1825
    %2887 = vmatprep.subr.bf16.mxu0 0
    %2888 = vmatpush2.bf16.msra.mxu0 %v1818
    %2889 = vmatprep.subr.bf16.mxu0 0
    %2890 = vmatpush2.bf16.msra.mxu0 %v1811
    %2891 = vmatprep.mubr.bf16.mxu0 %v122
    %2892 = vmatmul.mubr.bf16.gmra.mxu0 %v121
    %v2893 = vpop.f32.mrf.mxu0
    %v2894 = vadd.f32 %v2854, %v2893
    %v2895 = vpop.f32.mrf.mxu0
    %v2896 = vpop.f32.mrf.mxu0
    %v2897 = vpop.f32.mrf.mxu0
    %2898 = vdwg.mxu0
    %2899 = vmatprep.subr.bf16.mxu0 0
    %2900 = vmatpush1.bf16.msra.mxu0 %v1916
    %2901 = vmatprep.subr.bf16.mxu0 0
    %2902 = vmatpush1.bf16.msra.mxu0 %v1909
    %2903 = vmatprep.subr.bf16.mxu0 0
    %2904 = vmatpush1.bf16.msra.mxu0 %v1902
    %2905 = vmatprep.subr.bf16.mxu0 0
    %2906 = vmatpush1.bf16.msra.mxu0 %v1895
    %2907 = vmatprep.subr.bf16.mxu0 0
    %2908 = vmatpush1.bf16.msra.mxu0 %v1888
    %2909 = vmatprep.subr.bf16.mxu0 0
    %2910 = vmatpush1.bf16.msra.mxu0 %v1881
    %2911 = vmatprep.subr.bf16.mxu0 0
    %2912 = vmatpush1.bf16.msra.mxu0 %v1874
    %2913 = vmatprep.subr.bf16.mxu0 0
    %2914 = vmatpush1.bf16.msra.mxu0 %v1867
    %2915 = vmatprep.subr.bf16.mxu0 0
    %2916 = vmatpush2.bf16.msra.mxu0 %v1972
    %2917 = vmatprep.subr.bf16.mxu0 0
    %2918 = vmatpush2.bf16.msra.mxu0 %v1965
    %2919 = vmatprep.subr.bf16.mxu0 0
    %2920 = vmatpush2.bf16.msra.mxu0 %v1958
    %2921 = vmatprep.subr.bf16.mxu0 0
    %2922 = vmatpush2.bf16.msra.mxu0 %v1951
    %2923 = vmatprep.subr.bf16.mxu0 0
    %2924 = vmatpush2.bf16.msra.mxu0 %v1944
    %2925 = vmatprep.subr.bf16.mxu0 0
    %2926 = vmatpush2.bf16.msra.mxu0 %v1937
    %2927 = vmatprep.subr.bf16.mxu0 0
    %2928 = vmatpush2.bf16.msra.mxu0 %v1930
    %2929 = vmatprep.subr.bf16.mxu0 0
    %2930 = vmatpush2.bf16.msra.mxu0 %v1923
    %2931 = vmatprep.mubr.bf16.mxu0 %v124
    %2932 = vmatmul.mubr.bf16.gmra.mxu0 %v123
    %v2933 = vpop.f32.mrf.mxu0
    %v2934 = vadd.f32 %v2894, %v2933
    %v2935 = vpop.f32.mrf.mxu0
    %v2936 = vpop.f32.mrf.mxu0
    %v2937 = vpop.f32.mrf.mxu0
    %2938 = vdwg.mxu0
    %2939 = vmatprep.subr.bf16.mxu0 0
    %2940 = vmatpush1.bf16.msra.mxu0 0
    %2941 = vmatprep.subr.bf16.mxu0 0
    %2942 = vmatpush1.bf16.msra.mxu0 0
    %2943 = vmatprep.subr.bf16.mxu0 0
    %2944 = vmatpush1.bf16.msra.mxu0 0
    %2945 = vmatprep.subr.bf16.mxu0 0
    %2946 = vmatpush1.bf16.msra.mxu0 0
    %2947 = vmatprep.subr.bf16.mxu0 0
    %2948 = vmatpush1.bf16.msra.mxu0 0
    %2949 = vmatprep.subr.bf16.mxu0 0
    %2950 = vmatpush1.bf16.msra.mxu0 0
    %2951 = vmatprep.subr.bf16.mxu0 0
    %2952 = vmatpush1.bf16.msra.mxu0 0
    %2953 = vmatprep.subr.bf16.mxu0 0
    %2954 = vmatpush1.bf16.msra.mxu0 %v1979
    %2955 = vmatprep.subr.bf16.mxu0 0
    %2956 = vmatpush2.bf16.msra.mxu0 0
    %2957 = vmatprep.subr.bf16.mxu0 0
    %2958 = vmatpush2.bf16.msra.mxu0 0
    %2959 = vmatprep.subr.bf16.mxu0 0
    %2960 = vmatpush2.bf16.msra.mxu0 0
    %2961 = vmatprep.subr.bf16.mxu0 0
    %2962 = vmatpush2.bf16.msra.mxu0 0
    %2963 = vmatprep.subr.bf16.mxu0 0
    %2964 = vmatpush2.bf16.msra.mxu0 0
    %2965 = vmatprep.subr.bf16.mxu0 0
    %2966 = vmatpush2.bf16.msra.mxu0 0
    %2967 = vmatprep.subr.bf16.mxu0 0
    %2968 = vmatpush2.bf16.msra.mxu0 0
    %2969 = vmatprep.subr.bf16.mxu0 0
    %2970 = vmatpush2.bf16.msra.mxu0 0
    %2971 = vmatprep.mubr.bf16.mxu0 0
    %2972 = vmatmul.mubr.bf16.gmra.mxu0 %v2325
    %v2973 = vpop.f32.mrf.mxu0
    %v2974 = vadd.f32 %v2934, %v2973
    %v2975 = vpop.f32.mrf.mxu0
    %v2976 = vpop.f32.mrf.mxu0
    %v2977 = vpop.f32.mrf.mxu0
    %2978 = vdwg.mxu0
    %vm2979 = vcmask 1041408
    %v2980 = vsel %vm2979, %v2485, 0.0
    %v2981 = vrot.slane %v2980, 4
    %v2982 = vadd.f32 %v2980, %v2981
    %v2983 = vrot.slane %v2982, 2
    %v2984 = vadd.f32 %v2982, %v2983
    %v2985 = vrot.slane %v2984, 1
    %v2986 = vadd.f32 %v2984, %v2985
    %v2987 = vsel %vm2979, %v2487, 0.0
    %v2988 = vrot.slane %v2987, 4
    %v2989 = vadd.f32 %v2987, %v2988
    %v2990 = vrot.slane %v2989, 2
    %v2991 = vadd.f32 %v2989, %v2990
    %v2992 = vrot.slane %v2991, 1
    %v2993 = vadd.f32 %v2991, %v2992
    %v2994 = vsel %vm2979, %v2649, 0.0
    %v2995 = vrot.slane %v2994, 4
    %v2996 = vadd.f32 %v2994, %v2995
    %v2997 = vrot.slane %v2996, 2
    %v2998 = vadd.f32 %v2996, %v2997
    %v2999 = vrot.slane %v2998, 1
    %v3000 = vadd.f32 %v2998, %v2999
    %v3001 = vsel %vm2979, %v2651, 0.0
    %v3002 = vrot.slane %v3001, 4
    %v3003 = vadd.f32 %v3001, %v3002
    %v3004 = vrot.slane %v3003, 2
    %v3005 = vadd.f32 %v3003, %v3004
    %v3006 = vrot.slane %v3005, 1
    %v3007 = vadd.f32 %v3005, %v3006
    %v3008 = vsel %vm2979, %v2813, 0.0
    %v3009 = vrot.slane %v3008, 4
    %v3010 = vadd.f32 %v3008, %v3009
    %v3011 = vrot.slane %v3010, 2
    %v3012 = vadd.f32 %v3010, %v3011
    %v3013 = vrot.slane %v3012, 1
    %v3014 = vadd.f32 %v3012, %v3013
    %v3015 = vsel %vm2979, %v2815, 0.0
    %v3016 = vrot.slane %v3015, 4
    %v3017 = vadd.f32 %v3015, %v3016
    %v3018 = vrot.slane %v3017, 2
    %v3019 = vadd.f32 %v3017, %v3018
    %v3020 = vrot.slane %v3019, 1
    %v3021 = vadd.f32 %v3019, %v3020
    %vm3022 = vcmask 779264
    %v3023 = vsel %vm3022, %v2974, 0.0
    %v3024 = vrot.slane %v3023, 4
    %v3025 = vadd.f32 %v3023, %v3024
    %v3026 = vrot.slane %v3025, 2
    %v3027 = vadd.f32 %v3025, %v3026
    %v3028 = vrot.slane %v3027, 1
    %v3029 = vadd.f32 %v3027, %v3028
    %v3030 = vmul.f32 %v2485, %v2485
    %v3031 = vmul.f32 %v2487, %v2487
    %v3032 = vmul.f32 %v2649, %v2649
    %v3033 = vmul.f32 %v2651, %v2651
    %v3034 = vmul.f32 %v2813, %v2813
    %v3035 = vmul.f32 %v2815, %v2815
    %v3036 = vmul.f32 %v2974, %v2974
    %v3037 = vsel %vm2979, %v3030, 0.0
    %v3038 = vrot.slane %v3037, 4
    %v3039 = vadd.f32 %v3037, %v3038
    %v3040 = vrot.slane %v3039, 2
    %v3041 = vadd.f32 %v3039, %v3040
    %v3042 = vrot.slane %v3041, 1
    %v3043 = vadd.f32 %v3041, %v3042
    %v3044 = vsel %vm2979, %v3031, 0.0
    %v3045 = vrot.slane %v3044, 4
    %v3046 = vadd.f32 %v3044, %v3045
    %v3047 = vrot.slane %v3046, 2
    %v3048 = vadd.f32 %v3046, %v3047
    %v3049 = vrot.slane %v3048, 1
    %v3050 = vadd.f32 %v3048, %v3049
    %v3051 = vsel %vm2979, %v3032, 0.0
    %v3052 = vrot.slane %v3051, 4
    %v3053 = vadd.f32 %v3051, %v3052
    %v3054 = vrot.slane %v3053, 2
    %v3055 = vadd.f32 %v3053, %v3054
    %v3056 = vrot.slane %v3055, 1
    %v3057 = vadd.f32 %v3055, %v3056
    %v3058 = vsel %vm2979, %v3033, 0.0
    %v3059 = vrot.slane %v3058, 4
    %v3060 = vadd.f32 %v3058, %v3059
    %v3061 = vrot.slane %v3060, 2
    %v3062 = vadd.f32 %v3060, %v3061
    %v3063 = vrot.slane %v3062, 1
    %v3064 = vadd.f32 %v3062, %v3063
    %v3065 = vsel %vm2979, %v3034, 0.0
    %v3066 = vrot.slane %v3065, 4
    %v3067 = vadd.f32 %v3065, %v3066
    %v3068 = vrot.slane %v3067, 2
    %v3069 = vadd.f32 %v3067, %v3068
    %v3070 = vrot.slane %v3069, 1
    %v3071 = vadd.f32 %v3069, %v3070
    %v3072 = vsel %vm2979, %v3035, 0.0
    %v3073 = vrot.slane %v3072, 4
    %v3074 = vadd.f32 %v3072, %v3073
    %v3075 = vrot.slane %v3074, 2
    %v3076 = vadd.f32 %v3074, %v3075
    %v3077 = vrot.slane %v3076, 1
    %v3078 = vadd.f32 %v3076, %v3077
    %v3079 = vsel %vm3022, %v3036, 0.0
    %v3080 = vrot.slane %v3079, 4
    %v3081 = vadd.f32 %v3079, %v3080
    %v3082 = vrot.slane %v3081, 2
    %v3083 = vadd.f32 %v3081, %v3082
    %v3084 = vrot.slane %v3083, 1
    %v3085 = vadd.f32 %v3083, %v3084
    %vm3086 = vcmask 1040384
    %v3087 = vsel %vm3086, %v2986, %v3043
    %v3088 = vsel %vm3086, %v2993, %v3050
    %v3089 = vsel %vm3086, %v3000, %v3057
    %v3090 = vsel %vm3086, %v3007, %v3064
    %v3091 = vsel %vm3086, %v3014, %v3071
    %v3092 = vsel %vm3086, %v3021, %v3078
    %v3093 = vsel %vm3086, %v3029, %v3085
    %v3094 = vld [vmem:[%s17] sm:$0xff]
    %v3095 = vld [vmem:[%s17 + $0x8] sm:$0xff]
    %v3096 = vld [vmem:[%s17 + $0x10] sm:$0xff]
    %v3097 = vld [vmem:[%s17 + $0x18] sm:$0xff]
    %v3098 = vld [vmem:[%s17 + $0x20] sm:$0xff]
    %v3099 = vld [vmem:[%s17 + $0x28] sm:$0xff]
    %v3100 = vld [vmem:[%s17 + $0x30] sm:$0xff]
    %v3101 = vld [vmem:[%s17 + $0x38] sm:$0xff]
    %v3102 = vld [vmem:[%s17 + $0x40] sm:$0xff]
    %v3103 = vld [vmem:[%s17 + $0x48] sm:$0xff]
    %v3104 = vld [vmem:[%s17 + $0x50] sm:$0xff]
    %v3105 = vld [vmem:[%s17 + $0x58] sm:$0xff]
    %v3106 = vld [vmem:[%s17 + $0x60] sm:$0xff]
    %v3107 = vld [vmem:[%s17 + $0x68] sm:$0xff]
    %v3108 = vld [vmem:[%s17 + $0x70] sm:$0xff]
    %v3109 = vld [vmem:[%s17 + $0x78] sm:$0xff]
    %v3110 = vld [vmem:[%s17 + $0x80] sm:$0xff]
    %v3111 = vld [vmem:[%s17 + $0x88] sm:$0xff]
    %v3112 = vld [vmem:[%s17 + $0x90] sm:$0xff]
    %v3113 = vld [vmem:[%s17 + $0x98] sm:$0xff]
    %v3114 = vld [vmem:[%s17 + $0xa0] sm:$0xff]
    %v3115 = vld [vmem:[%s17 + $0xa8] sm:$0xff]
    %v3116 = vld [vmem:[%s17 + $0xb0] sm:$0xff]
    %v3117 = vld [vmem:[%s17 + $0xb8] sm:$0xff]
    %v3118 = vld [vmem:[%s17 + $0xc0] sm:$0xff]
    %v3119 = vld [vmem:[%s17 + $0xc8] sm:$0xff]
    %v3120 = vld [vmem:[%s17 + $0xd0] sm:$0xff]
    %v3121 = vld [vmem:[%s17 + $0xd8] sm:$0xff]
    %v3122 = vld [vmem:[%s17 + $0xe0] sm:$0xff]
    %v3123 = vld [vmem:[%s17 + $0xe8] sm:$0xff]
    %v3124 = vld [vmem:[%s17 + $0xf0] sm:$0xff]
    %v3125 = vld [vmem:[%s17 + $0xf8] sm:$0xff]
    %v3126 = vld [vmem:[%s17 + $0x100] sm:$0xff]
    %v3127 = vld [vmem:[%s17 + $0x108] sm:$0xff]
    %v3128 = vld [vmem:[%s17 + $0x110] sm:$0xff]
    %v3129 = vld [vmem:[%s17 + $0x118] sm:$0xff]
    %v3130 = vld [vmem:[%s17 + $0x120] sm:$0xff]
    %v3131 = vld [vmem:[%s17 + $0x128] sm:$0xff]
    %v3132 = vld [vmem:[%s17 + $0x130] sm:$0xff]
    %v3133 = vld [vmem:[%s17 + $0x138] sm:$0xff]
    %v3134 = vld [vmem:[%s17 + $0x140] sm:$0xff]
    %v3135 = vld [vmem:[%s17 + $0x148] sm:$0xff]
    %v3136 = vld [vmem:[%s17 + $0x150] sm:$0xff]
    %v3137 = vld [vmem:[%s17 + $0x158] sm:$0xff]
    %v3138 = vld [vmem:[%s17 + $0x160] sm:$0xff]
    %v3139 = vld [vmem:[%s17 + $0x168] sm:$0xff]
    %v3140 = vld [vmem:[%s17 + $0x170] sm:$0xff]
    %v3141 = vld [vmem:[%s17 + $0x178] sm:$0xff]
    %v3142 = vld [vmem:[%s17 + $0x180] sm:$0xff]
    %v3143 = vld [vmem:[%s17 + $0x188] sm:$0xff]
    %v3144 = vld [vmem:[%s17 + $0x190] sm:$0xff]
    %v3145 = vld [vmem:[%s17 + $0x198] sm:$0xff]
    %v3146 = vld [vmem:[%s17 + $0x1a0] sm:$0xff]
    %v3147 = vld [vmem:[%s17 + $0x1a8] sm:$0xff]
    %v3148 = vld [vmem:[%s17 + $0x1b0] sm:$0xff]
    %v3149 = vld [vmem:[%s17 + $0x1b8] sm:$0xff]
    %v3150 = vld [vmem:[%s17 + $0x1c0] sm:$0xff]
    %v3151 = vld [vmem:[%s17 + $0x1c8] sm:$0xff]
    %v3152 = vld [vmem:[%s17 + $0x1d0] sm:$0xff]
    %v3153 = vld [vmem:[%s17 + $0x1d8] sm:$0xff]
    %v3154 = vld [vmem:[%s17 + $0x1e0] sm:$0xff]
    %v3155 = vld [vmem:[%s17 + $0x1e8] sm:$0xff]
    %v3156 = vld [vmem:[%s17 + $0x1f0] sm:$0xff]
    %v3157 = vld [vmem:[%s17 + $0x1f8] sm:$0xff]
    %v3158 = vld [vmem:[%s17 + $0x200] sm:$0xff]
    %v3159 = vld [vmem:[%s17 + $0x208] sm:$0xff]
    %v3160 = vld [vmem:[%s17 + $0x210] sm:$0xff]
    %v3161 = vld [vmem:[%s17 + $0x218] sm:$0xff]
    %v3162 = vld [vmem:[%s17 + $0x220] sm:$0xff]
    %v3163 = vld [vmem:[%s17 + $0x228] sm:$0xff]
    %v3164 = vld [vmem:[%s17 + $0x230] sm:$0xff]
    %v3165 = vld [vmem:[%s17 + $0x238] sm:$0xff]
    %v3166 = vld [vmem:[%s17 + $0x240] sm:$0xff]
    %v3167 = vld [vmem:[%s17 + $0x248] sm:$0xff]
    %v3168 = vld [vmem:[%s17 + $0x250] sm:$0xff]
    %v3169 = vld [vmem:[%s17 + $0x258] sm:$0xff]
    %v3170 = vld [vmem:[%s17 + $0x260] sm:$0xff]
    %v3171 = vld [vmem:[%s17 + $0x268] sm:$0xff]
    %v3172 = vld [vmem:[%s17 + $0x270] sm:$0xff]
    %v3173 = vld [vmem:[%s17 + $0x278] sm:$0xff]
    %v3174 = vld [vmem:[%s17 + $0x280] sm:$0xff]
    %v3175 = vld [vmem:[%s17 + $0x288] sm:$0xff]
    %v3176 = vld [vmem:[%s17 + $0x290] sm:$0xff]
    %v3177 = vld [vmem:[%s17 + $0x298] sm:$0xff]
    %v3178 = vld [vmem:[%s17 + $0x2a0] sm:$0xff]
    %v3179 = vld [vmem:[%s17 + $0x2a8] sm:$0xff]
    %v3180 = vld [vmem:[%s17 + $0x2b0] sm:$0xff]
    %v3181 = vld [vmem:[%s17 + $0x2b8] sm:$0xff]
    %v3182 = vld [vmem:[%s17 + $0x2c0] sm:$0xff]
    %v3183 = vld [vmem:[%s17 + $0x2c8] sm:$0xff]
    %v3184 = vld [vmem:[%s17 + $0x2d0] sm:$0xff]
    %v3185 = vld [vmem:[%s17 + $0x2d8] sm:$0xff]
    %v3186 = vld [vmem:[%s17 + $0x2e0] sm:$0xff]
    %v3187 = vld [vmem:[%s17 + $0x2e8] sm:$0xff]
    %v3188 = vld [vmem:[%s17 + $0x2f0] sm:$0xff]
    %v3189 = vld [vmem:[%s17 + $0x2f8] sm:$0xff]
    %v3190 = vld [vmem:[%s17 + $0x300] sm:$0xff]
    %v3191 = vld [vmem:[%s17 + $0x308] sm:$0xff]
    %v3192 = vld [vmem:[%s17 + $0x310] sm:$0xff]
    %v3193 = vld [vmem:[%s17 + $0x318] sm:$0xff]
    %v3194 = vld [vmem:[%s17 + $0x320] sm:$0xff]
    %v3195 = vld [vmem:[%s17 + $0x328] sm:$0xff]
    %v3196 = vld [vmem:[%s17 + $0x330] sm:$0xff]
    %v3197 = vld [vmem:[%s17 + $0x338] sm:$0xff]
    %v3198 = vld [vmem:[%s17 + $0x340] sm:$0xff]
    %v3199 = vld [vmem:[%s17 + $0x348] sm:$0xff]
    %v3200 = vld [vmem:[%s17 + $0x350] sm:$0xff]
    %v3201 = vld [vmem:[%s17 + $0x358] sm:$0xff]
    %vm3202 = vcmask 785408
    %v3204 = vsel %vm3202, %v3093, 0
    %3206 = vmatprep.subr.mxu0 0.0
    %3207 = vmatpush1.msra.mxu0 %v3109
    %3208 = vmatprep.subr.mxu0 0.0
    %3209 = vmatpush1.msra.mxu0 %v3108
    %3210 = vmatprep.subr.mxu0 0.0
    %3211 = vmatpush1.msra.mxu0 %v3107
    %3212 = vmatprep.subr.mxu0 0.0
    %3213 = vmatpush1.msra.mxu0 %v3106
    %3214 = vmatprep.subr.mxu0 0.0
    %3215 = vmatpush1.msra.mxu0 %v3105
    %3216 = vmatprep.subr.mxu0 0.0
    %3217 = vmatpush1.msra.mxu0 %v3104
    %3218 = vmatprep.subr.mxu0 0.0
    %3219 = vmatpush1.msra.mxu0 %v3103
    %3220 = vmatprep.subr.mxu0 0.0
    %3221 = vmatpush1.msra.mxu0 %v3102
    %3222 = vmatprep.subr.mxu0 0.0
    %3223 = vmatpush1.msra.mxu0 %v3101
    %3224 = vmatprep.subr.mxu0 0.0
    %3225 = vmatpush1.msra.mxu0 %v3100
    %3226 = vmatprep.subr.mxu0 0.0
    %3227 = vmatpush1.msra.mxu0 %v3099
    %3228 = vmatprep.subr.mxu0 0.0
    %3229 = vmatpush1.msra.mxu0 %v3098
    %3230 = vmatprep.subr.mxu0 0.0
    %3231 = vmatpush1.msra.mxu0 %v3097
    %3232 = vmatprep.subr.mxu0 0.0
    %3233 = vmatpush1.msra.mxu0 %v3096
    %3234 = vmatprep.subr.mxu0 0.0
    %3235 = vmatpush1.msra.mxu0 %v3095
    %3236 = vmatprep.subr.mxu0 0.0
    %3237 = vmatpush1.msra.mxu0 %v3094
    %3238 = vmatprep.subr.mxu0 0.0
    %3239 = vmatpush2.msra.mxu0 %v3125
    %3240 = vmatprep.subr.mxu0 0.0
    %3241 = vmatpush2.msra.mxu0 %v3124
    %3242 = vmatprep.subr.mxu0 0.0
    %3243 = vmatpush2.msra.mxu0 %v3123
    %3244 = vmatprep.subr.mxu0 0.0
    %3245 = vmatpush2.msra.mxu0 %v3122
    %3246 = vmatprep.subr.mxu0 0.0
    %3247 = vmatpush2.msra.mxu0 %v3121
    %3248 = vmatprep.subr.mxu0 0.0
    %3249 = vmatpush2.msra.mxu0 %v3120
    %3250 = vmatprep.subr.mxu0 0.0
    %3251 = vmatpush2.msra.mxu0 %v3119
    %3252 = vmatprep.subr.mxu0 0.0
    %3253 = vmatpush2.msra.mxu0 %v3118
    %3254 = vmatprep.subr.mxu0 0.0
    %3255 = vmatpush2.msra.mxu0 %v3117
    %3256 = vmatprep.subr.mxu0 0.0
    %3257 = vmatpush2.msra.mxu0 %v3116
    %3258 = vmatprep.subr.mxu0 0.0
    %3259 = vmatpush2.msra.mxu0 %v3115
    %3260 = vmatprep.subr.mxu0 0.0
    %3261 = vmatpush2.msra.mxu0 %v3114
    %3262 = vmatprep.subr.mxu0 0.0
    %3263 = vmatpush2.msra.mxu0 %v3113
    %3264 = vmatprep.subr.mxu0 0.0
    %3265 = vmatpush2.msra.mxu0 %v3112
    %3266 = vmatprep.subr.mxu0 0.0
    %3267 = vmatpush2.msra.mxu0 %v3111
    %3268 = vmatprep.subr.mxu0 0.0
    %3269 = vmatpush2.msra.mxu0 %v3110
    %3270 = vmatprep.mubr.f32.mxu0 %v3088
    %3271 = vmatmul.mubr.f32.gmra.mxu0 %v3087
    %v3272 = vpop.f32.mrf.mxu0
    %v3273 = vadd.f32 0.0, %v3272
    %v3274 = vpop.f32.mrf.mxu0
    %3275 = vdwg.mxu0
    %3276 = vmatprep.subr.mxu0 0.0
    %3277 = vmatpush1.msra.mxu0 %v3141
    %3278 = vmatprep.subr.mxu0 0.0
    %3279 = vmatpush1.msra.mxu0 %v3140
    %3280 = vmatprep.subr.mxu0 0.0
    %3281 = vmatpush1.msra.mxu0 %v3139
    %3282 = vmatprep.subr.mxu0 0.0
    %3283 = vmatpush1.msra.mxu0 %v3138
    %3284 = vmatprep.subr.mxu0 0.0
    %3285 = vmatpush1.msra.mxu0 %v3137
    %3286 = vmatprep.subr.mxu0 0.0
    %3287 = vmatpush1.msra.mxu0 %v3136
    %3288 = vmatprep.subr.mxu0 0.0
    %3289 = vmatpush1.msra.mxu0 %v3135
    %3290 = vmatprep.subr.mxu0 0.0
    %3291 = vmatpush1.msra.mxu0 %v3134
    %3292 = vmatprep.subr.mxu0 0.0
    %3293 = vmatpush1.msra.mxu0 %v3133
    %3294 = vmatprep.subr.mxu0 0.0
    %3295 = vmatpush1.msra.mxu0 %v3132
    %3296 = vmatprep.subr.mxu0 0.0
    %3297 = vmatpush1.msra.mxu0 %v3131
    %3298 = vmatprep.subr.mxu0 0.0
    %3299 = vmatpush1.msra.mxu0 %v3130
    %3300 = vmatprep.subr.mxu0 0.0
    %3301 = vmatpush1.msra.mxu0 %v3129
    %3302 = vmatprep.subr.mxu0 0.0
    %3303 = vmatpush1.msra.mxu0 %v3128
    %3304 = vmatprep.subr.mxu0 0.0
    %3305 = vmatpush1.msra.mxu0 %v3127
    %3306 = vmatprep.subr.mxu0 0.0
    %3307 = vmatpush1.msra.mxu0 %v3126
    %3308 = vmatprep.subr.mxu0 0.0
    %3309 = vmatpush2.msra.mxu0 %v3157
    %3310 = vmatprep.subr.mxu0 0.0
    %3311 = vmatpush2.msra.mxu0 %v3156
    %3312 = vmatprep.subr.mxu0 0.0
    %3313 = vmatpush2.msra.mxu0 %v3155
    %3314 = vmatprep.subr.mxu0 0.0
    %3315 = vmatpush2.msra.mxu0 %v3154
    %3316 = vmatprep.subr.mxu0 0.0
    %3317 = vmatpush2.msra.mxu0 %v3153
    %3318 = vmatprep.subr.mxu0 0.0
    %3319 = vmatpush2.msra.mxu0 %v3152
    %3320 = vmatprep.subr.mxu0 0.0
    %3321 = vmatpush2.msra.mxu0 %v3151
    %3322 = vmatprep.subr.mxu0 0.0
    %3323 = vmatpush2.msra.mxu0 %v3150
    %3324 = vmatprep.subr.mxu0 0.0
    %3325 = vmatpush2.msra.mxu0 %v3149
    %3326 = vmatprep.subr.mxu0 0.0
    %3327 = vmatpush2.msra.mxu0 %v3148
    %3328 = vmatprep.subr.mxu0 0.0
    %3329 = vmatpush2.msra.mxu0 %v3147
    %3330 = vmatprep.subr.mxu0 0.0
    %3331 = vmatpush2.msra.mxu0 %v3146
    %3332 = vmatprep.subr.mxu0 0.0
    %3333 = vmatpush2.msra.mxu0 %v3145
    %3334 = vmatprep.subr.mxu0 0.0
    %3335 = vmatpush2.msra.mxu0 %v3144
    %3336 = vmatprep.subr.mxu0 0.0
    %3337 = vmatpush2.msra.mxu0 %v3143
    %3338 = vmatprep.subr.mxu0 0.0
    %3339 = vmatpush2.msra.mxu0 %v3142
    %3340 = vmatprep.mubr.f32.mxu0 %v3090
    %3341 = vmatmul.mubr.f32.gmra.mxu0 %v3089
    %v3342 = vpop.f32.mrf.mxu0
    %v3343 = vadd.f32 %v3273, %v3342
    %v3344 = vpop.f32.mrf.mxu0
    %3345 = vdwg.mxu0
    %3346 = vmatprep.subr.mxu0 0.0
    %3347 = vmatpush1.msra.mxu0 %v3173
    %3348 = vmatprep.subr.mxu0 0.0
    %3349 = vmatpush1.msra.mxu0 %v3172
    %3350 = vmatprep.subr.mxu0 0.0
    %3351 = vmatpush1.msra.mxu0 %v3171
    %3352 = vmatprep.subr.mxu0 0.0
    %3353 = vmatpush1.msra.mxu0 %v3170
    %3354 = vmatprep.subr.mxu0 0.0
    %3355 = vmatpush1.msra.mxu0 %v3169
    %3356 = vmatprep.subr.mxu0 0.0
    %3357 = vmatpush1.msra.mxu0 %v3168
    %3358 = vmatprep.subr.mxu0 0.0
    %3359 = vmatpush1.msra.mxu0 %v3167
    %3360 = vmatprep.subr.mxu0 0.0
    %3361 = vmatpush1.msra.mxu0 %v3166
    %3362 = vmatprep.subr.mxu0 0.0
    %3363 = vmatpush1.msra.mxu0 %v3165
    %3364 = vmatprep.subr.mxu0 0.0
    %3365 = vmatpush1.msra.mxu0 %v3164
    %3366 = vmatprep.subr.mxu0 0.0
    %3367 = vmatpush1.msra.mxu0 %v3163
    %3368 = vmatprep.subr.mxu0 0.0
    %3369 = vmatpush1.msra.mxu0 %v3162
    %3370 = vmatprep.subr.mxu0 0.0
    %3371 = vmatpush1.msra.mxu0 %v3161
    %3372 = vmatprep.subr.mxu0 0.0
    %3373 = vmatpush1.msra.mxu0 %v3160
    %3374 = vmatprep.subr.mxu0 0.0
    %3375 = vmatpush1.msra.mxu0 %v3159
    %3376 = vmatprep.subr.mxu0 0.0
    %3377 = vmatpush1.msra.mxu0 %v3158
    %3378 = vmatprep.subr.mxu0 0.0
    %3379 = vmatpush2.msra.mxu0 %v3189
    %3380 = vmatprep.subr.mxu0 0.0
    %3381 = vmatpush2.msra.mxu0 %v3188
    %3382 = vmatprep.subr.mxu0 0.0
    %3383 = vmatpush2.msra.mxu0 %v3187
    %3384 = vmatprep.subr.mxu0 0.0
    %3385 = vmatpush2.msra.mxu0 %v3186
    %3386 = vmatprep.subr.mxu0 0.0
    %3387 = vmatpush2.msra.mxu0 %v3185
    %3388 = vmatprep.subr.mxu0 0.0
    %3389 = vmatpush2.msra.mxu0 %v3184
    %3390 = vmatprep.subr.mxu0 0.0
    %3391 = vmatpush2.msra.mxu0 %v3183
    %3392 = vmatprep.subr.mxu0 0.0
    %3393 = vmatpush2.msra.mxu0 %v3182
    %3394 = vmatprep.subr.mxu0 0.0
    %3395 = vmatpush2.msra.mxu0 %v3181
    %3396 = vmatprep.subr.mxu0 0.0
    %3397 = vmatpush2.msra.mxu0 %v3180
    %3398 = vmatprep.subr.mxu0 0.0
    %3399 = vmatpush2.msra.mxu0 %v3179
    %3400 = vmatprep.subr.mxu0 0.0
    %3401 = vmatpush2.msra.mxu0 %v3178
    %3402 = vmatprep.subr.mxu0 0.0
    %3403 = vmatpush2.msra.mxu0 %v3177
    %3404 = vmatprep.subr.mxu0 0.0
    %3405 = vmatpush2.msra.mxu0 %v3176
    %3406 = vmatprep.subr.mxu0 0.0
    %3407 = vmatpush2.msra.mxu0 %v3175
    %3408 = vmatprep.subr.mxu0 0.0
    %3409 = vmatpush2.msra.mxu0 %v3174
    %3410 = vmatprep.mubr.f32.mxu0 %v3092
    %3411 = vmatmul.mubr.f32.gmra.mxu0 %v3091
    %v3412 = vpop.f32.mrf.mxu0
    %v3413 = vadd.f32 %v3343, %v3412
    %v3414 = vpop.f32.mrf.mxu0
    %3415 = vdwg.mxu0
    %3416 = vmatprep.subr.mxu0 0.0
    %3417 = vmatpush1.msra.mxu0 0.0
    %3418 = vmatprep.subr.mxu0 0.0
    %3419 = vmatpush1.msra.mxu0 0.0
    %3420 = vmatprep.subr.mxu0 0.0
    %3421 = vmatpush1.msra.mxu0 0.0
    %3422 = vmatprep.subr.mxu0 0.0
    %3423 = vmatpush1.msra.mxu0 0.0
    %3424 = vmatprep.subr.mxu0 0.0
    %3425 = vmatpush1.msra.mxu0 %v3201
    %3426 = vmatprep.subr.mxu0 0.0
    %3427 = vmatpush1.msra.mxu0 %v3200
    %3428 = vmatprep.subr.mxu0 0.0
    %3429 = vmatpush1.msra.mxu0 %v3199
    %3430 = vmatprep.subr.mxu0 0.0
    %3431 = vmatpush1.msra.mxu0 %v3198
    %3432 = vmatprep.subr.mxu0 0.0
    %3433 = vmatpush1.msra.mxu0 %v3197
    %3434 = vmatprep.subr.mxu0 0.0
    %3435 = vmatpush1.msra.mxu0 %v3196
    %3436 = vmatprep.subr.mxu0 0.0
    %3437 = vmatpush1.msra.mxu0 %v3195
    %3438 = vmatprep.subr.mxu0 0.0
    %3439 = vmatpush1.msra.mxu0 %v3194
    %3440 = vmatprep.subr.mxu0 0.0
    %3441 = vmatpush1.msra.mxu0 %v3193
    %3442 = vmatprep.subr.mxu0 0.0
    %3443 = vmatpush1.msra.mxu0 %v3192
    %3444 = vmatprep.subr.mxu0 0.0
    %3445 = vmatpush1.msra.mxu0 %v3191
    %3446 = vmatprep.subr.mxu0 0.0
    %3447 = vmatpush1.msra.mxu0 %v3190
    %3448 = vmatprep.subr.mxu0 0.0
    %3449 = vmatpush2.msra.mxu0 0.0
    %3450 = vmatprep.subr.mxu0 0.0
    %3451 = vmatpush2.msra.mxu0 0.0
    %3452 = vmatprep.subr.mxu0 0.0
    %3453 = vmatpush2.msra.mxu0 0.0
    %3454 = vmatprep.subr.mxu0 0.0
    %3455 = vmatpush2.msra.mxu0 0.0
    %3456 = vmatprep.subr.mxu0 0.0
    %3457 = vmatpush2.msra.mxu0 0.0
    %3458 = vmatprep.subr.mxu0 0.0
    %3459 = vmatpush2.msra.mxu0 0.0
    %3460 = vmatprep.subr.mxu0 0.0
    %3461 = vmatpush2.msra.mxu0 0.0
    %3462 = vmatprep.subr.mxu0 0.0
    %3463 = vmatpush2.msra.mxu0 0.0
    %3464 = vmatprep.subr.mxu0 0.0
    %3465 = vmatpush2.msra.mxu0 0.0
    %3466 = vmatprep.subr.mxu0 0.0
    %3467 = vmatpush2.msra.mxu0 0.0
    %3468 = vmatprep.subr.mxu0 0.0
    %3469 = vmatpush2.msra.mxu0 0.0
    %3470 = vmatprep.subr.mxu0 0.0
    %3471 = vmatpush2.msra.mxu0 0.0
    %3472 = vmatprep.subr.mxu0 0.0
    %3473 = vmatpush2.msra.mxu0 0.0
    %3474 = vmatprep.subr.mxu0 0.0
    %3475 = vmatpush2.msra.mxu0 0.0
    %3476 = vmatprep.subr.mxu0 0.0
    %3477 = vmatpush2.msra.mxu0 0.0
    %3478 = vmatprep.subr.mxu0 0.0
    %3479 = vmatpush2.msra.mxu0 0.0
    %3480 = vmatprep.mubr.f32.mxu0 0.0
    %3481 = vmatmul.mubr.f32.gmra.mxu0 %v3204
    %v3482 = vpop.f32.mrf.mxu0
    %v3483 = vadd.f32 %v3413, %v3482
    %v3484 = vpop.f32.mrf.mxu0
    %3485 = vdwg.mxu0
    %v3486 = vmul.f32 %v3483, 0.0034722222
    %v3487 = vmul.f32 %v3486, %v3486
    %v3489 = vrot.slane %v3487, 7
    %v3491 = vsub.f32 %v3486, %v3489
    %v3492 = vmax.f32 %v3491, 0.0
    %v3493 = vadd.f32 %v3492, 1e-05
    %v3494 = vrsqrt.pop %v3493
    %v3495 = vsel %vm3086, %v3486, %v3494
    %v3496 = vld [vmem:[%s18] sm:$0x3f]
    %v3497 = vld [vmem:[%s18 + $0x8] sm:$0x3f]
    %v3498 = vld [vmem:[%s18 + $0x10] sm:$0x3f]
    %v3499 = vld [vmem:[%s18 + $0x18] sm:$0x3f]
    %v3500 = vld [vmem:[%s18 + $0x20] sm:$0x3f]
    %v3501 = vld [vmem:[%s18 + $0x28] sm:$0x3f]
    %v3502 = vld [vmem:[%s18 + $0x30] sm:$0x3f]
    %vm3503 = vcmask 48128
    %v3505 = vsel %vm3503, %v3495, 0
    %vm3507 = vcmask 1045504
    %v3509 = vsel %vm3507, %v3496, 0
    %v3512 = vsel %vm3507, %v3497, 0
    %v3515 = vsel %vm3507, %v3498, 0
    %v3518 = vsel %vm3507, %v3499, 0
    %v3521 = vsel %vm3507, %v3500, 0
    %v3524 = vsel %vm3507, %v3501, 0
    %v3527 = vsel %vm3507, %v3502, 0
    %3529 = vmatprep.subr.mxu0 0.0
    %3530 = vmatpush1.msra.mxu0 0.0
    %3531 = vmatprep.subr.mxu0 0.0
    %3532 = vmatpush1.msra.mxu0 0.0
    %3533 = vmatprep.subr.mxu0 0.0
    %3534 = vmatpush1.msra.mxu0 0.0
    %3535 = vmatprep.subr.mxu0 0.0
    %3536 = vmatpush1.msra.mxu0 0.0
    %3537 = vmatprep.subr.mxu0 0.0
    %3538 = vmatpush1.msra.mxu0 0.0
    %3539 = vmatprep.subr.mxu0 0.0
    %3540 = vmatpush1.msra.mxu0 0.0
    %3541 = vmatprep.subr.mxu0 0.0
    %3542 = vmatpush1.msra.mxu0 0.0
    %3543 = vmatprep.subr.mxu0 0.0
    %3544 = vmatpush1.msra.mxu0 0.0
    %3545 = vmatprep.subr.mxu0 0.0
    %3546 = vmatpush1.msra.mxu0 0.0
    %3547 = vmatprep.subr.mxu0 0.0
    %3548 = vmatpush1.msra.mxu0 0.0
    %3549 = vmatprep.subr.mxu0 0.0
    %3550 = vmatpush1.msra.mxu0 0.0
    %3551 = vmatprep.subr.mxu0 0.0
    %3552 = vmatpush1.msra.mxu0 0.0
    %3553 = vmatprep.subr.mxu0 0.0
    %3554 = vmatpush1.msra.mxu0 0.0
    %3555 = vmatprep.subr.mxu0 0.0
    %3556 = vmatpush1.msra.mxu0 0.0
    %3557 = vmatprep.subr.mxu0 0.0
    %3558 = vmatpush1.msra.mxu0 0.0
    %3559 = vmatprep.subr.mxu0 %v3512
    %3560 = vmatpush1.msra.mxu0 %v3509
    %3561 = vmatprep.subr.mxu0 0.0
    %3562 = vmatpush2.msra.mxu0 0.0
    %3563 = vmatprep.subr.mxu0 0.0
    %3564 = vmatpush2.msra.mxu0 0.0
    %3565 = vmatprep.subr.mxu0 0.0
    %3566 = vmatpush2.msra.mxu0 0.0
    %3567 = vmatprep.subr.mxu0 0.0
    %3568 = vmatpush2.msra.mxu0 0.0
    %3569 = vmatprep.subr.mxu0 0.0
    %3570 = vmatpush2.msra.mxu0 0.0
    %3571 = vmatprep.subr.mxu0 0.0
    %3572 = vmatpush2.msra.mxu0 0.0
    %3573 = vmatprep.subr.mxu0 0.0
    %3574 = vmatpush2.msra.mxu0 0.0
    %3575 = vmatprep.subr.mxu0 0.0
    %3576 = vmatpush2.msra.mxu0 0.0
    %3577 = vmatprep.subr.mxu0 0.0
    %3578 = vmatpush2.msra.mxu0 0.0
    %3579 = vmatprep.subr.mxu0 0.0
    %3580 = vmatpush2.msra.mxu0 0.0
    %3581 = vmatprep.subr.mxu0 0.0
    %3582 = vmatpush2.msra.mxu0 0.0
    %3583 = vmatprep.subr.mxu0 0.0
    %3584 = vmatpush2.msra.mxu0 0.0
    %3585 = vmatprep.subr.mxu0 0.0
    %3586 = vmatpush2.msra.mxu0 0.0
    %3587 = vmatprep.subr.mxu0 0.0
    %3588 = vmatpush2.msra.mxu0 0.0
    %3589 = vmatprep.subr.mxu0 0.0
    %3590 = vmatpush2.msra.mxu0 0.0
    %3591 = vmatprep.subr.mxu0 0.0
    %3592 = vmatpush2.msra.mxu0 0.0
    %3593 = vmatprep.mubr.f32.mxu0 0.0
    %3594 = vmatmul.mubr.f32.gmra.mxu0 %v3505
    %v3595 = vpop.f32.mrf.mxu0
    %v3596 = vadd.f32 0.0, %v3595
    %v3597 = vpop.f32.mrf.mxu0
    %v3598 = vadd.f32 0.0, %v3597
    %3599 = vdwg.mxu0
    %3600 = vmatprep.subr.mxu0 0.0
    %3601 = vmatpush1.msra.mxu0 0.0
    %3602 = vmatprep.subr.mxu0 0.0
    %3603 = vmatpush1.msra.mxu0 0.0
    %3604 = vmatprep.subr.mxu0 0.0
    %3605 = vmatpush1.msra.mxu0 0.0
    %3606 = vmatprep.subr.mxu0 0.0
    %3607 = vmatpush1.msra.mxu0 0.0
    %3608 = vmatprep.subr.mxu0 0.0
    %3609 = vmatpush1.msra.mxu0 0.0
    %3610 = vmatprep.subr.mxu0 0.0
    %3611 = vmatpush1.msra.mxu0 0.0
    %3612 = vmatprep.subr.mxu0 0.0
    %3613 = vmatpush1.msra.mxu0 0.0
    %3614 = vmatprep.subr.mxu0 0.0
    %3615 = vmatpush1.msra.mxu0 0.0
    %3616 = vmatprep.subr.mxu0 0.0
    %3617 = vmatpush1.msra.mxu0 0.0
    %3618 = vmatprep.subr.mxu0 0.0
    %3619 = vmatpush1.msra.mxu0 0.0
    %3620 = vmatprep.subr.mxu0 0.0
    %3621 = vmatpush1.msra.mxu0 0.0
    %3622 = vmatprep.subr.mxu0 0.0
    %3623 = vmatpush1.msra.mxu0 0.0
    %3624 = vmatprep.subr.mxu0 0.0
    %3625 = vmatpush1.msra.mxu0 0.0
    %3626 = vmatprep.subr.mxu0 0.0
    %3627 = vmatpush1.msra.mxu0 0.0
    %3628 = vmatprep.subr.mxu0 0.0
    %3629 = vmatpush1.msra.mxu0 0.0
    %3630 = vmatprep.subr.mxu0 %v3518
    %3631 = vmatpush1.msra.mxu0 %v3515
    %3632 = vmatprep.subr.mxu0 0.0
    %3633 = vmatpush2.msra.mxu0 0.0
    %3634 = vmatprep.subr.mxu0 0.0
    %3635 = vmatpush2.msra.mxu0 0.0
    %3636 = vmatprep.subr.mxu0 0.0
    %3637 = vmatpush2.msra.mxu0 0.0
    %3638 = vmatprep.subr.mxu0 0.0
    %3639 = vmatpush2.msra.mxu0 0.0
    %3640 = vmatprep.subr.mxu0 0.0
    %3641 = vmatpush2.msra.mxu0 0.0
    %3642 = vmatprep.subr.mxu0 0.0
    %3643 = vmatpush2.msra.mxu0 0.0
    %3644 = vmatprep.subr.mxu0 0.0
    %3645 = vmatpush2.msra.mxu0 0.0
    %3646 = vmatprep.subr.mxu0 0.0
    %3647 = vmatpush2.msra.mxu0 0.0
    %3648 = vmatprep.subr.mxu0 0.0
    %3649 = vmatpush2.msra.mxu0 0.0
    %3650 = vmatprep.subr.mxu0 0.0
    %3651 = vmatpush2.msra.mxu0 0.0
    %3652 = vmatprep.subr.mxu0 0.0
    %3653 = vmatpush2.msra.mxu0 0.0
    %3654 = vmatprep.subr.mxu0 0.0
    %3655 = vmatpush2.msra.mxu0 0.0
    %3656 = vmatprep.subr.mxu0 0.0
    %3657 = vmatpush2.msra.mxu0 0.0
    %3658 = vmatprep.subr.mxu0 0.0
    %3659 = vmatpush2.msra.mxu0 0.0
    %3660 = vmatprep.subr.mxu0 0.0
    %3661 = vmatpush2.msra.mxu0 0.0
    %3662 = vmatprep.subr.mxu0 0.0
    %3663 = vmatpush2.msra.mxu0 0.0
    %3664 = vmatprep.mubr.f32.mxu0 0.0
    %3665 = vmatmul.mubr.f32.gmra.mxu0 %v3505
    %v3666 = vpop.f32.mrf.mxu0
    %v3667 = vadd.f32 0.0, %v3666
    %v3668 = vpop.f32.mrf.mxu0
    %v3669 = vadd.f32 0.0, %v3668
    %3670 = vdwg.mxu0
    %3671 = vmatprep.subr.mxu0 0.0
    %3672 = vmatpush1.msra.mxu0 0.0
    %3673 = vmatprep.subr.mxu0 0.0
    %3674 = vmatpush1.msra.mxu0 0.0
    %3675 = vmatprep.subr.mxu0 0.0
    %3676 = vmatpush1.msra.mxu0 0.0
    %3677 = vmatprep.subr.mxu0 0.0
    %3678 = vmatpush1.msra.mxu0 0.0
    %3679 = vmatprep.subr.mxu0 0.0
    %3680 = vmatpush1.msra.mxu0 0.0
    %3681 = vmatprep.subr.mxu0 0.0
    %3682 = vmatpush1.msra.mxu0 0.0
    %3683 = vmatprep.subr.mxu0 0.0
    %3684 = vmatpush1.msra.mxu0 0.0
    %3685 = vmatprep.subr.mxu0 0.0
    %3686 = vmatpush1.msra.mxu0 0.0
    %3687 = vmatprep.subr.mxu0 0.0
    %3688 = vmatpush1.msra.mxu0 0.0
    %3689 = vmatprep.subr.mxu0 0.0
    %3690 = vmatpush1.msra.mxu0 0.0
    %3691 = vmatprep.subr.mxu0 0.0
    %3692 = vmatpush1.msra.mxu0 0.0
    %3693 = vmatprep.subr.mxu0 0.0
    %3694 = vmatpush1.msra.mxu0 0.0
    %3695 = vmatprep.subr.mxu0 0.0
    %3696 = vmatpush1.msra.mxu0 0.0
    %3697 = vmatprep.subr.mxu0 0.0
    %3698 = vmatpush1.msra.mxu0 0.0
    %3699 = vmatprep.subr.mxu0 0.0
    %3700 = vmatpush1.msra.mxu0 0.0
    %3701 = vmatprep.subr.mxu0 %v3524
    %3702 = vmatpush1.msra.mxu0 %v3521
    %3703 = vmatprep.subr.mxu0 0.0
    %3704 = vmatpush2.msra.mxu0 0.0
    %3705 = vmatprep.subr.mxu0 0.0
    %3706 = vmatpush2.msra.mxu0 0.0
    %3707 = vmatprep.subr.mxu0 0.0
    %3708 = vmatpush2.msra.mxu0 0.0
    %3709 = vmatprep.subr.mxu0 0.0
    %3710 = vmatpush2.msra.mxu0 0.0
    %3711 = vmatprep.subr.mxu0 0.0
    %3712 = vmatpush2.msra.mxu0 0.0
    %3713 = vmatprep.subr.mxu0 0.0
    %3714 = vmatpush2.msra.mxu0 0.0
    %3715 = vmatprep.subr.mxu0 0.0
    %3716 = vmatpush2.msra.mxu0 0.0
    %3717 = vmatprep.subr.mxu0 0.0
    %3718 = vmatpush2.msra.mxu0 0.0
    %3719 = vmatprep.subr.mxu0 0.0
    %3720 = vmatpush2.msra.mxu0 0.0
    %3721 = vmatprep.subr.mxu0 0.0
    %3722 = vmatpush2.msra.mxu0 0.0
    %3723 = vmatprep.subr.mxu0 0.0
    %3724 = vmatpush2.msra.mxu0 0.0
    %3725 = vmatprep.subr.mxu0 0.0
    %3726 = vmatpush2.msra.mxu0 0.0
    %3727 = vmatprep.subr.mxu0 0.0
    %3728 = vmatpush2.msra.mxu0 0.0
    %3729 = vmatprep.subr.mxu0 0.0
    %3730 = vmatpush2.msra.mxu0 0.0
    %3731 = vmatprep.subr.mxu0 0.0
    %3732 = vmatpush2.msra.mxu0 0.0
    %3733 = vmatprep.subr.mxu0 0.0
    %3734 = vmatpush2.msra.mxu0 0.0
    %3735 = vmatprep.mubr.f32.mxu0 0.0
    %3736 = vmatmul.mubr.f32.gmra.mxu0 %v3505
    %v3737 = vpop.f32.mrf.mxu0
    %v3738 = vadd.f32 0.0, %v3737
    %v3739 = vpop.f32.mrf.mxu0
    %v3740 = vadd.f32 0.0, %v3739
    %3741 = vdwg.mxu0
    %3742 = vmatprep.subr.mxu0 0.0
    %3743 = vmatpush1.msra.mxu0 0.0
    %3744 = vmatprep.subr.mxu0 0.0
    %3745 = vmatpush1.msra.mxu0 0.0
    %3746 = vmatprep.subr.mxu0 0.0
    %3747 = vmatpush1.msra.mxu0 0.0
    %3748 = vmatprep.subr.mxu0 0.0
    %3749 = vmatpush1.msra.mxu0 0.0
    %3750 = vmatprep.subr.mxu0 0.0
    %3751 = vmatpush1.msra.mxu0 0.0
    %3752 = vmatprep.subr.mxu0 0.0
    %3753 = vmatpush1.msra.mxu0 0.0
    %3754 = vmatprep.subr.mxu0 0.0
    %3755 = vmatpush1.msra.mxu0 0.0
    %3756 = vmatprep.subr.mxu0 0.0
    %3757 = vmatpush1.msra.mxu0 0.0
    %3758 = vmatprep.subr.mxu0 0.0
    %3759 = vmatpush1.msra.mxu0 0.0
    %3760 = vmatprep.subr.mxu0 0.0
    %3761 = vmatpush1.msra.mxu0 0.0
    %3762 = vmatprep.subr.mxu0 0.0
    %3763 = vmatpush1.msra.mxu0 0.0
    %3764 = vmatprep.subr.mxu0 0.0
    %3765 = vmatpush1.msra.mxu0 0.0
    %3766 = vmatprep.subr.mxu0 0.0
    %3767 = vmatpush1.msra.mxu0 0.0
    %3768 = vmatprep.subr.mxu0 0.0
    %3769 = vmatpush1.msra.mxu0 0.0
    %3770 = vmatprep.subr.mxu0 0.0
    %3771 = vmatpush1.msra.mxu0 0.0
    %3772 = vmatprep.subr.mxu0 0.0
    %3773 = vmatpush1.msra.mxu0 %v3527
    %3774 = vmatprep.subr.mxu0 0.0
    %3775 = vmatpush2.msra.mxu0 0.0
    %3776 = vmatprep.subr.mxu0 0.0
    %3777 = vmatpush2.msra.mxu0 0.0
    %3778 = vmatprep.subr.mxu0 0.0
    %3779 = vmatpush2.msra.mxu0 0.0
    %3780 = vmatprep.subr.mxu0 0.0
    %3781 = vmatpush2.msra.mxu0 0.0
    %3782 = vmatprep.subr.mxu0 0.0
    %3783 = vmatpush2.msra.mxu0 0.0
    %3784 = vmatprep.subr.mxu0 0.0
    %3785 = vmatpush2.msra.mxu0 0.0
    %3786 = vmatprep.subr.mxu0 0.0
    %3787 = vmatpush2.msra.mxu0 0.0
    %3788 = vmatprep.subr.mxu0 0.0
    %3789 = vmatpush2.msra.mxu0 0.0
    %3790 = vmatprep.subr.mxu0 0.0
    %3791 = vmatpush2.msra.mxu0 0.0
    %3792 = vmatprep.subr.mxu0 0.0
    %3793 = vmatpush2.msra.mxu0 0.0
    %3794 = vmatprep.subr.mxu0 0.0
    %3795 = vmatpush2.msra.mxu0 0.0
    %3796 = vmatprep.subr.mxu0 0.0
    %3797 = vmatpush2.msra.mxu0 0.0
    %3798 = vmatprep.subr.mxu0 0.0
    %3799 = vmatpush2.msra.mxu0 0.0
    %3800 = vmatprep.subr.mxu0 0.0
    %3801 = vmatpush2.msra.mxu0 0.0
    %3802 = vmatprep.subr.mxu0 0.0
    %3803 = vmatpush2.msra.mxu0 0.0
    %3804 = vmatprep.subr.mxu0 0.0
    %3805 = vmatpush2.msra.mxu0 0.0
    %3806 = vmatprep.mubr.f32.mxu0 0.0
    %3807 = vmatmul.mubr.f32.gmra.mxu0 %v3505
    %v3808 = vpop.f32.mrf.mxu0
    %v3809 = vadd.f32 0.0, %v3808
    %v3810 = vpop.f32.mrf.mxu0
    %3811 = vdwg.mxu0
    %v3819 = vcombine.low %v3596, %v3598
    %v3820 = vcombine.low %v3667, %v3669
    %v3821 = vcombine.low %v3738, %v3740
    %v3823 = vunpack.c.l.s4 1966171168
    %v3824 = vunpack.c.0.s8 %v3823
    %v3825 = vlaneseq
    %v3826 = vshrl.u32 %v3825, 7
    %v3827 = vsub.s32 %v3824, %v3826
    %v3828 = vrot.slane %v3819, %v3827
    %v3830 = vunpack.c.l.s4 1966171168
    %v3831 = vunpack.c.0.s8 %v3830
    %v3832 = vlaneseq
    %v3833 = vshrl.u32 %v3832, 7
    %v3834 = vsub.s32 %v3831, %v3833
    %v3835 = vrot.slane %v3820, %v3834
    %v3837 = vunpack.c.l.s4 1966171168
    %v3838 = vunpack.c.0.s8 %v3837
    %v3839 = vlaneseq
    %v3840 = vshrl.u32 %v3839, 7
    %v3841 = vsub.s32 %v3838, %v3840
    %v3842 = vrot.slane %v3821, %v3841
    %v3844 = vunpack.c.l.s4 1966171168
    %v3845 = vunpack.c.0.s8 %v3844
    %v3846 = vlaneseq
    %v3847 = vshrl.u32 %v3846, 7
    %v3848 = vsub.s32 %v3845, %v3847
    %v3849 = vrot.slane %v3809, %v3848
    %v3850 = vcombine.high %v3828, %v3835
    %v3851 = vcombine.high %v3842, %v3849
    %v3853 = vunpack.c.l.s4 1966171168
    %v3854 = vunpack.c.0.s8 %v3853
    %v3855 = vlaneseq
    %v3856 = vshrl.u32 %v3855, 7
    %v3857 = vsub.s32 %v3854, %v3856
    %v3858 = vrot.slane %v3850, %v3857
    %v3860 = vunpack.c.l.s4 1966171168
    %v3861 = vunpack.c.0.s8 %v3860
    %v3862 = vlaneseq
    %v3863 = vshrl.u32 %v3862, 7
    %v3864 = vsub.s32 %v3861, %v3863
    %v3865 = vrot.slane %v3851, %v3864
    %v3866 = vcombine.low %v3858, %v3865
    %v3868 = vmul.f32 %v520, %v3866
    %v3870 = vlaneseq
    %v3871 = vshrl.u32 %v3870, 7
    %v3872 = vsub.s32 0, %v3871
    %v3873 = vrot.slane %v3868, %v3872
    %v3874 = vlaneseq
    %v3875 = vshrl.u32 %v3874, 7
    %v3876 = vsub.s32 1, %v3875
    %v3877 = vrot.slane %v3868, %v3876
    %v3878 = vlaneseq
    %v3879 = vshrl.u32 %v3878, 7
    %v3880 = vsub.s32 2, %v3879
    %v3881 = vrot.slane %v3868, %v3880
    %v3882 = vlaneseq
    %v3883 = vshrl.u32 %v3882, 7
    %v3884 = vsub.s32 3, %v3883
    %v3885 = vrot.slane %v3868, %v3884
    %v3886 = vlaneseq
    %v3887 = vshrl.u32 %v3886, 7
    %v3888 = vsub.s32 4, %v3887
    %v3889 = vrot.slane %v3868, %v3888
    %v3890 = vlaneseq
    %v3891 = vshrl.u32 %v3890, 7
    %v3892 = vsub.s32 5, %v3891
    %v3893 = vrot.slane %v3868, %v3892
    %v3894 = vlaneseq
    %v3895 = vshrl.u32 %v3894, 7
    %v3896 = vsub.s32 6, %v3895
    %v3897 = vrot.slane %v3868, %v3896
    %v3905 = vmul.f32 %v3596, %v3873
    %v3906 = vmul.f32 %v3598, %v3877
    %v3907 = vmul.f32 %v3667, %v3881
    %v3908 = vmul.f32 %v3669, %v3885
    %v3909 = vmul.f32 %v3738, %v3889
    %v3910 = vmul.f32 %v3740, %v3893
    %v3911 = vmul.f32 %v3809, %v3897
    %v3919 = vcombine.low %v3905, %v3906
    %v3920 = vcombine.low %v3907, %v3908
    %v3921 = vcombine.low %v3909, %v3910
    %v3923 = vunpack.c.l.s4 1966171168
    %v3924 = vunpack.c.0.s8 %v3923
    %v3925 = vlaneseq
    %v3926 = vshrl.u32 %v3925, 7
    %v3927 = vsub.s32 %v3924, %v3926
    %v3928 = vrot.slane %v3919, %v3927
    %v3930 = vunpack.c.l.s4 1966171168
    %v3931 = vunpack.c.0.s8 %v3930
    %v3932 = vlaneseq
    %v3933 = vshrl.u32 %v3932, 7
    %v3934 = vsub.s32 %v3931, %v3933
    %v3935 = vrot.slane %v3920, %v3934
    %v3937 = vunpack.c.l.s4 1966171168
    %v3938 = vunpack.c.0.s8 %v3937
    %v3939 = vlaneseq
    %v3940 = vshrl.u32 %v3939, 7
    %v3941 = vsub.s32 %v3938, %v3940
    %v3942 = vrot.slane %v3921, %v3941
    %v3944 = vunpack.c.l.s4 1966171168
    %v3945 = vunpack.c.0.s8 %v3944
    %v3946 = vlaneseq
    %v3947 = vshrl.u32 %v3946, 7
    %v3948 = vsub.s32 %v3945, %v3947
    %v3949 = vrot.slane %v3911, %v3948
    %v3950 = vcombine.low %v3928, %v3935
    %v3951 = vcombine.low %v3942, %v3949
    %v3953 = vunpack.c.l.s4 1966171168
    %v3954 = vunpack.c.0.s8 %v3953
    %v3955 = vlaneseq
    %v3956 = vshrl.u32 %v3955, 7
    %v3957 = vsub.s32 %v3954, %v3956
    %v3958 = vrot.slane %v3950, %v3957
    %v3960 = vunpack.c.l.s4 1966171168
    %v3961 = vunpack.c.0.s8 %v3960
    %v3962 = vlaneseq
    %v3963 = vshrl.u32 %v3962, 7
    %v3964 = vsub.s32 %v3961, %v3963
    %v3965 = vrot.slane %v3951, %v3964
    %v3966 = vcombine.low %v3958, %v3965
    %v3968 = vsub.f32 %v522, %v3966
    %v3969 = vmul.f32 %v2485, %v3873
    %v3970 = vmul.f32 %v2487, %v3877
    %v3971 = vmul.f32 %v2649, %v3881
    %v3972 = vmul.f32 %v2651, %v3885
    %v3973 = vmul.f32 %v2813, %v3889
    %v3974 = vmul.f32 %v2815, %v3893
    %v3975 = vmul.f32 %v2974, %v3897
    %v3977 = vlaneseq
    %v3978 = vshrl.u32 %v3977, 7
    %v3979 = vsub.s32 0, %v3978
    %v3980 = vrot.slane %v3968, %v3979
    %v3981 = vlaneseq
    %v3982 = vshrl.u32 %v3981, 7
    %v3983 = vsub.s32 1, %v3982
    %v3984 = vrot.slane %v3968, %v3983
    %v3985 = vlaneseq
    %v3986 = vshrl.u32 %v3985, 7
    %v3987 = vsub.s32 2, %v3986
    %v3988 = vrot.slane %v3968, %v3987
    %v3989 = vlaneseq
    %v3990 = vshrl.u32 %v3989, 7
    %v3991 = vsub.s32 3, %v3990
    %v3992 = vrot.slane %v3968, %v3991
    %v3993 = vlaneseq
    %v3994 = vshrl.u32 %v3993, 7
    %v3995 = vsub.s32 4, %v3994
    %v3996 = vrot.slane %v3968, %v3995
    %v3997 = vlaneseq
    %v3998 = vshrl.u32 %v3997, 7
    %v3999 = vsub.s32 5, %v3998
    %v4000 = vrot.slane %v3968, %v3999
    %v4001 = vlaneseq
    %v4002 = vshrl.u32 %v4001, 7
    %v4003 = vsub.s32 6, %v4002
    %v4004 = vrot.slane %v3968, %v4003
    %v4012 = vadd.f32 %v3969, %v3980
    %v4013 = vadd.f32 %v3970, %v3984
    %v4014 = vadd.f32 %v3971, %v3988
    %v4015 = vadd.f32 %v3972, %v3992
    %v4016 = vadd.f32 %v3973, %v3996
    %v4017 = vadd.f32 %v3974, %v4000
    %v4018 = vadd.f32 %v3975, %v4004
    %v4019 = vmax.f32 %v4012, 0.0
    %v4020 = vmax.f32 %v4013, 0.0
    %v4021 = vmax.f32 %v4014, 0.0
    %v4022 = vmax.f32 %v4015, 0.0
    %v4023 = vmax.f32 %v4016, 0.0
    %v4024 = vmax.f32 %v4017, 0.0
    %v4025 = vmax.f32 %v4018, 0.0
    %v4026 = vpack.c.bf16 %v4019, %v4019
    %v4027 = vpack.c.bf16 %v4020, %v4020
    %v4028 = vpack.c.bf16 %v4021, %v4021
    %v4029 = vpack.c.bf16 %v4022, %v4022
    %v4030 = vpack.c.bf16 %v4023, %v4023
    %v4031 = vpack.c.bf16 %v4024, %v4024
    %v4032 = vpack.c.bf16 %v4025, %v4025
    %v4033 = vld [vmem:[%s3] sm:$0xff]
    %v4034 = vld [vmem:[%s3 + $0x8] sm:$0xff]
    %v4035 = vld [vmem:[%s3 + $0x10] sm:$0xff]
    %v4036 = vld [vmem:[%s3 + $0x18] sm:$0xff]
    %v4037 = vld [vmem:[%s3 + $0x20] sm:$0xff]
    %v4038 = vld [vmem:[%s3 + $0x28] sm:$0xff]
    %v4039 = vld [vmem:[%s3 + $0x30] sm:$0xff]
    %v4040 = vld [vmem:[%s3 + $0x38] sm:$0xff]
    %v4041 = vld [vmem:[%s3 + $0x40] sm:$0xff]
    %v4042 = vld [vmem:[%s3 + $0x48] sm:$0xff]
    %v4043 = vld [vmem:[%s3 + $0x50] sm:$0xff]
    %v4044 = vld [vmem:[%s3 + $0x58] sm:$0xff]
    %v4045 = vld [vmem:[%s3 + $0x60] sm:$0xff]
    %v4046 = vld [vmem:[%s3 + $0x68] sm:$0xff]
    %v4047 = vld [vmem:[%s3 + $0x70] sm:$0xff]
    %v4048 = vld [vmem:[%s3 + $0x78] sm:$0xff]
    %v4049 = vld [vmem:[%s3 + $0x80] sm:$0xff]
    %v4050 = vld [vmem:[%s3 + $0x88] sm:$0xff]
    %v4051 = vld [vmem:[%s3 + $0x90] sm:$0xff]
    %v4052 = vld [vmem:[%s3 + $0x98] sm:$0xff]
    %v4053 = vld [vmem:[%s3 + $0xa0] sm:$0xff]
    %v4054 = vld [vmem:[%s3 + $0xa8] sm:$0xff]
    %v4055 = vld [vmem:[%s3 + $0xb0] sm:$0xff]
    %v4056 = vld [vmem:[%s3 + $0xb8] sm:$0xff]
    %v4057 = vld [vmem:[%s3 + $0xc0] sm:$0xff]
    %v4058 = vld [vmem:[%s3 + $0xc8] sm:$0xff]
    %v4059 = vld [vmem:[%s3 + $0xd0] sm:$0xff]
    %v4060 = vld [vmem:[%s3 + $0xd8] sm:$0xff]
    %v4061 = vld [vmem:[%s3 + $0xe0] sm:$0xff]
    %v4062 = vld [vmem:[%s3 + $0xe8] sm:$0xff]
    %v4063 = vld [vmem:[%s3 + $0xf0] sm:$0xff]
    %v4064 = vld [vmem:[%s3 + $0xf8] sm:$0xff]
    %v4065 = vld [vmem:[%s3 + $0x100] sm:$0xff]
    %v4066 = vld [vmem:[%s3 + $0x108] sm:$0xff]
    %v4067 = vld [vmem:[%s3 + $0x110] sm:$0xff]
    %v4068 = vld [vmem:[%s3 + $0x118] sm:$0xff]
    %v4069 = vld [vmem:[%s3 + $0x120] sm:$0xff]
    %v4070 = vld [vmem:[%s3 + $0x128] sm:$0xff]
    %v4071 = vld [vmem:[%s3 + $0x130] sm:$0xff]
    %v4072 = vld [vmem:[%s3 + $0x138] sm:$0xff]
    %v4073 = vld [vmem:[%s3 + $0x140] sm:$0xff]
    %v4074 = vld [vmem:[%s3 + $0x148] sm:$0xff]
    %v4075 = vld [vmem:[%s3 + $0x150] sm:$0xff]
    %v4076 = vld [vmem:[%s3 + $0x158] sm:$0xff]
    %v4077 = vld [vmem:[%s3 + $0x160] sm:$0xff]
    %v4078 = vld [vmem:[%s3 + $0x168] sm:$0xff]
    %v4079 = vld [vmem:[%s3 + $0x170] sm:$0xff]
    %v4080 = vld [vmem:[%s3 + $0x178] sm:$0xff]
    %v4081 = vld [vmem:[%s3 + $0x180] sm:$0xff]
    %v4082 = vld [vmem:[%s3 + $0x188] sm:$0xff]
    %v4083 = vld [vmem:[%s3 + $0x190] sm:$0xff]
    %v4084 = vld [vmem:[%s3 + $0x198] sm:$0xff]
    %v4085 = vld [vmem:[%s3 + $0x1a0] sm:$0xff]
    %v4086 = vld [vmem:[%s3 + $0x1a8] sm:$0xff]
    %v4087 = vld [vmem:[%s3 + $0x1b0] sm:$0xff]
    %v4088 = vld [vmem:[%s3 + $0x1b8] sm:$0xff]
    %v4089 = vld [vmem:[%s3 + $0x1c0] sm:$0xff]
    %v4090 = vld [vmem:[%s3 + $0x1c8] sm:$0xff]
    %v4091 = vld [vmem:[%s3 + $0x1d0] sm:$0xff]
    %v4092 = vld [vmem:[%s3 + $0x1d8] sm:$0xff]
    %v4093 = vld [vmem:[%s3 + $0x1e0] sm:$0xff]
    %v4094 = vld [vmem:[%s3 + $0x1e8] sm:$0xff]
    %v4095 = vld [vmem:[%s3 + $0x1f0] sm:$0xff]
    %v4096 = vld [vmem:[%s3 + $0x1f8] sm:$0xff]
    %v4097 = vld [vmem:[%s3 + $0x200] sm:$0xff]
    %v4098 = vld [vmem:[%s3 + $0x208] sm:$0xff]
    %v4099 = vld [vmem:[%s3 + $0x210] sm:$0xff]
    %v4100 = vld [vmem:[%s3 + $0x218] sm:$0xff]
    %v4101 = vld [vmem:[%s3 + $0x220] sm:$0xff]
    %v4102 = vld [vmem:[%s3 + $0x228] sm:$0xff]
    %v4103 = vld [vmem:[%s3 + $0x230] sm:$0xff]
    %v4104 = vld [vmem:[%s3 + $0x238] sm:$0xff]
    %v4105 = vld [vmem:[%s3 + $0x240] sm:$0xff]
    %v4106 = vld [vmem:[%s3 + $0x248] sm:$0xff]
    %v4107 = vld [vmem:[%s3 + $0x250] sm:$0xff]
    %v4108 = vld [vmem:[%s3 + $0x258] sm:$0xff]
    %v4109 = vld [vmem:[%s3 + $0x260] sm:$0xff]
    %v4110 = vld [vmem:[%s3 + $0x268] sm:$0xff]
    %v4111 = vld [vmem:[%s3 + $0x270] sm:$0xff]
    %v4112 = vld [vmem:[%s3 + $0x278] sm:$0xff]
    %v4113 = vld [vmem:[%s3 + $0x280] sm:$0xff]
    %v4114 = vld [vmem:[%s3 + $0x288] sm:$0xff]
    %v4115 = vld [vmem:[%s3 + $0x290] sm:$0xff]
    %v4116 = vld [vmem:[%s3 + $0x298] sm:$0xff]
    %v4117 = vld [vmem:[%s3 + $0x2a0] sm:$0xff]
    %v4118 = vld [vmem:[%s3 + $0x2a8] sm:$0xff]
    %v4119 = vld [vmem:[%s3 + $0x2b0] sm:$0xff]
    %v4120 = vld [vmem:[%s3 + $0x2b8] sm:$0xff]
    %v4121 = vld [vmem:[%s3 + $0x2c0] sm:$0xff]
    %v4122 = vld [vmem:[%s3 + $0x2c8] sm:$0xff]
    %v4123 = vld [vmem:[%s3 + $0x2d0] sm:$0xff]
    %v4124 = vld [vmem:[%s3 + $0x2d8] sm:$0xff]
    %v4125 = vld [vmem:[%s3 + $0x2e0] sm:$0xff]
    %v4126 = vld [vmem:[%s3 + $0x2e8] sm:$0xff]
    %v4127 = vld [vmem:[%s3 + $0x2f0] sm:$0xff]
    %v4128 = vld [vmem:[%s3 + $0x2f8] sm:$0xff]
    %v4129 = vld [vmem:[%s3 + $0x300] sm:$0xff]
    %v4130 = vld [vmem:[%s3 + $0x308] sm:$0xff]
    %v4131 = vld [vmem:[%s3 + $0x310] sm:$0xff]
    %v4132 = vld [vmem:[%s3 + $0x318] sm:$0xff]
    %v4133 = vld [vmem:[%s3 + $0x320] sm:$0xff]
    %v4134 = vld [vmem:[%s3 + $0x328] sm:$0xff]
    %v4135 = vld [vmem:[%s3 + $0x330] sm:$0xff]
    %v4136 = vld [vmem:[%s3 + $0x338] sm:$0xff]
    %v4137 = vld [vmem:[%s3 + $0x340] sm:$0xff]
    %v4138 = vld [vmem:[%s3 + $0x348] sm:$0xff]
    %v4139 = vld [vmem:[%s3 + $0x350] sm:$0xff]
    %v4140 = vld [vmem:[%s3 + $0x358] sm:$0xff]
    %v4141 = vld [vmem:[%s4] ss:$4 sm:$0x3]
    %s4142 = scalar_lea.vmem %s4, 1
    %v4143 = vld [vmem:[%s4142] ss:$4 sm:$0x3]
    %s4144 = scalar_lea.vmem %s4, 2
    %v4145 = vld [vmem:[%s4144] ss:$4 sm:$0x3]
    %v4147 = vlaneseq
    %v4148 = vshrl.u32 %v4147, 7
    %v4149 = vsub.s32 0, %v4148
    %v4150 = vrot.slane %v4141, %v4149
    %v4151 = vlaneseq
    %v4152 = vshrl.u32 %v4151, 7
    %v4153 = vsub.s32 1, %v4152
    %v4154 = vrot.slane %v4141, %v4153
    %v4265 = vunpack.c.l.b16 %v4033
    %v4266 = vunpack.c.h.b16 %v4033
    %v4267 = vunpack.c.l.b16 %v4034
    %v4268 = vunpack.c.h.b16 %v4034
    %v4269 = vunpack.c.l.b16 %v4035
    %v4270 = vunpack.c.h.b16 %v4035
    %v4271 = vunpack.c.l.b16 %v4036
    %v4272 = vunpack.c.h.b16 %v4036
    %v4273 = vunpack.c.l.b16 %v4037
    %v4274 = vunpack.c.h.b16 %v4037
    %v4275 = vunpack.c.l.b16 %v4038
    %v4276 = vunpack.c.h.b16 %v4038
    %v4277 = vunpack.c.l.b16 %v4039
    %v4278 = vunpack.c.h.b16 %v4039
    %v4279 = vunpack.c.l.b16 %v4040
    %v4280 = vunpack.c.h.b16 %v4040
    %v4281 = vunpack.c.l.b16 %v4041
    %v4282 = vunpack.c.h.b16 %v4041
    %v4283 = vunpack.c.l.b16 %v4042
    %v4284 = vunpack.c.h.b16 %v4042
    %v4285 = vunpack.c.l.b16 %v4043
    %v4286 = vunpack.c.h.b16 %v4043
    %v4287 = vunpack.c.l.b16 %v4044
    %v4288 = vunpack.c.h.b16 %v4044
    %v4289 = vunpack.c.l.b16 %v4045
    %v4290 = vunpack.c.h.b16 %v4045
    %v4291 = vunpack.c.l.b16 %v4046
    %v4292 = vunpack.c.h.b16 %v4046
    %v4293 = vunpack.c.l.b16 %v4047
    %v4294 = vunpack.c.h.b16 %v4047
    %v4295 = vunpack.c.l.b16 %v4048
    %v4296 = vunpack.c.h.b16 %v4048
    %v4297 = vunpack.c.l.b16 %v4049
    %v4298 = vunpack.c.h.b16 %v4049
    %v4299 = vunpack.c.l.b16 %v4050
    %v4300 = vunpack.c.h.b16 %v4050
    %v4301 = vunpack.c.l.b16 %v4051
    %v4302 = vunpack.c.h.b16 %v4051
    %v4303 = vunpack.c.l.b16 %v4052
    %v4304 = vunpack.c.h.b16 %v4052
    %v4305 = vunpack.c.l.b16 %v4053
    %v4306 = vunpack.c.h.b16 %v4053
    %v4307 = vunpack.c.l.b16 %v4054
    %v4308 = vunpack.c.h.b16 %v4054
    %v4309 = vunpack.c.l.b16 %v4055
    %v4310 = vunpack.c.h.b16 %v4055
    %v4311 = vunpack.c.l.b16 %v4056
    %v4312 = vunpack.c.h.b16 %v4056
    %v4313 = vunpack.c.l.b16 %v4057
    %v4314 = vunpack.c.h.b16 %v4057
    %v4315 = vunpack.c.l.b16 %v4058
    %v4316 = vunpack.c.h.b16 %v4058
    %v4317 = vunpack.c.l.b16 %v4059
    %v4318 = vunpack.c.h.b16 %v4059
    %v4319 = vunpack.c.l.b16 %v4060
    %v4320 = vunpack.c.h.b16 %v4060
    %v4321 = vunpack.c.l.b16 %v4061
    %v4322 = vunpack.c.h.b16 %v4061
    %v4323 = vunpack.c.l.b16 %v4062
    %v4324 = vunpack.c.h.b16 %v4062
    %v4325 = vunpack.c.l.b16 %v4063
    %v4326 = vunpack.c.h.b16 %v4063
    %v4327 = vunpack.c.l.b16 %v4064
    %v4328 = vunpack.c.h.b16 %v4064
    %v4329 = vunpack.c.l.b16 %v4065
    %v4330 = vunpack.c.h.b16 %v4065
    %v4331 = vunpack.c.l.b16 %v4066
    %v4332 = vunpack.c.h.b16 %v4066
    %v4333 = vunpack.c.l.b16 %v4067
    %v4334 = vunpack.c.h.b16 %v4067
    %v4335 = vunpack.c.l.b16 %v4068
    %v4336 = vunpack.c.h.b16 %v4068
    %v4337 = vunpack.c.l.b16 %v4069
    %v4338 = vunpack.c.h.b16 %v4069
    %v4339 = vunpack.c.l.b16 %v4070
    %v4340 = vunpack.c.h.b16 %v4070
    %v4341 = vunpack.c.l.b16 %v4071
    %v4342 = vunpack.c.h.b16 %v4071
    %v4343 = vunpack.c.l.b16 %v4072
    %v4344 = vunpack.c.h.b16 %v4072
    %v4345 = vunpack.c.l.b16 %v4073
    %v4346 = vunpack.c.h.b16 %v4073
    %v4347 = vunpack.c.l.b16 %v4074
    %v4348 = vunpack.c.h.b16 %v4074
    %v4349 = vunpack.c.l.b16 %v4075
    %v4350 = vunpack.c.h.b16 %v4075
    %v4351 = vunpack.c.l.b16 %v4076
    %v4352 = vunpack.c.h.b16 %v4076
    %v4353 = vunpack.c.l.b16 %v4077
    %v4354 = vunpack.c.h.b16 %v4077
    %v4355 = vunpack.c.l.b16 %v4078
    %v4356 = vunpack.c.h.b16 %v4078
    %v4357 = vunpack.c.l.b16 %v4079
    %v4358 = vunpack.c.h.b16 %v4079
    %v4359 = vunpack.c.l.b16 %v4080
    %v4360 = vunpack.c.h.b16 %v4080
    %v4361 = vunpack.c.l.b16 %v4081
    %v4362 = vunpack.c.h.b16 %v4081
    %v4363 = vunpack.c.l.b16 %v4082
    %v4364 = vunpack.c.h.b16 %v4082
    %v4365 = vunpack.c.l.b16 %v4083
    %v4366 = vunpack.c.h.b16 %v4083
    %v4367 = vunpack.c.l.b16 %v4084
    %v4368 = vunpack.c.h.b16 %v4084
    %v4369 = vunpack.c.l.b16 %v4085
    %v4370 = vunpack.c.h.b16 %v4085
    %v4371 = vunpack.c.l.b16 %v4086
    %v4372 = vunpack.c.h.b16 %v4086
    %v4373 = vunpack.c.l.b16 %v4087
    %v4374 = vunpack.c.h.b16 %v4087
    %v4375 = vunpack.c.l.b16 %v4088
    %v4376 = vunpack.c.h.b16 %v4088
    %v4377 = vunpack.c.l.b16 %v4089
    %v4378 = vunpack.c.h.b16 %v4089
    %v4379 = vunpack.c.l.b16 %v4090
    %v4380 = vunpack.c.h.b16 %v4090
    %v4381 = vunpack.c.l.b16 %v4091
    %v4382 = vunpack.c.h.b16 %v4091
    %v4383 = vunpack.c.l.b16 %v4092
    %v4384 = vunpack.c.h.b16 %v4092
    %v4385 = vunpack.c.l.b16 %v4093
    %v4386 = vunpack.c.h.b16 %v4093
    %v4387 = vunpack.c.l.b16 %v4094
    %v4388 = vunpack.c.h.b16 %v4094
    %v4389 = vunpack.c.l.b16 %v4095
    %v4390 = vunpack.c.h.b16 %v4095
    %v4391 = vunpack.c.l.b16 %v4096
    %v4392 = vunpack.c.h.b16 %v4096
    %v4393 = vunpack.c.l.b16 %v4097
    %v4394 = vunpack.c.h.b16 %v4097
    %v4395 = vunpack.c.l.b16 %v4098
    %v4396 = vunpack.c.h.b16 %v4098
    %v4397 = vunpack.c.l.b16 %v4099
    %v4398 = vunpack.c.h.b16 %v4099
    %v4399 = vunpack.c.l.b16 %v4100
    %v4400 = vunpack.c.h.b16 %v4100
    %v4401 = vunpack.c.l.b16 %v4101
    %v4402 = vunpack.c.h.b16 %v4101
    %v4403 = vunpack.c.l.b16 %v4102
    %v4404 = vunpack.c.h.b16 %v4102
    %v4405 = vunpack.c.l.b16 %v4103
    %v4406 = vunpack.c.h.b16 %v4103
    %v4407 = vunpack.c.l.b16 %v4104
    %v4408 = vunpack.c.h.b16 %v4104
    %v4409 = vunpack.c.l.b16 %v4105
    %v4410 = vunpack.c.h.b16 %v4105
    %v4411 = vunpack.c.l.b16 %v4106
    %v4412 = vunpack.c.h.b16 %v4106
    %v4413 = vunpack.c.l.b16 %v4107
    %v4414 = vunpack.c.h.b16 %v4107
    %v4415 = vunpack.c.l.b16 %v4108
    %v4416 = vunpack.c.h.b16 %v4108
    %v4417 = vunpack.c.l.b16 %v4109
    %v4418 = vunpack.c.h.b16 %v4109
    %v4419 = vunpack.c.l.b16 %v4110
    %v4420 = vunpack.c.h.b16 %v4110
    %v4421 = vunpack.c.l.b16 %v4111
    %v4422 = vunpack.c.h.b16 %v4111
    %v4423 = vunpack.c.l.b16 %v4112
    %v4424 = vunpack.c.h.b16 %v4112
    %v4425 = vunpack.c.l.b16 %v4113
    %v4426 = vunpack.c.h.b16 %v4113
    %v4427 = vunpack.c.l.b16 %v4114
    %v4428 = vunpack.c.h.b16 %v4114
    %v4429 = vunpack.c.l.b16 %v4115
    %v4430 = vunpack.c.h.b16 %v4115
    %v4431 = vunpack.c.l.b16 %v4116
    %v4432 = vunpack.c.h.b16 %v4116
    %v4433 = vunpack.c.l.b16 %v4117
    %v4434 = vunpack.c.h.b16 %v4117
    %v4435 = vunpack.c.l.b16 %v4118
    %v4436 = vunpack.c.h.b16 %v4118
    %v4437 = vunpack.c.l.b16 %v4119
    %v4438 = vunpack.c.h.b16 %v4119
    %v4439 = vunpack.c.l.b16 %v4120
    %v4440 = vunpack.c.h.b16 %v4120
    %v4441 = vunpack.c.l.b16 %v4121
    %v4442 = vunpack.c.h.b16 %v4121
    %v4443 = vunpack.c.l.b16 %v4122
    %v4444 = vunpack.c.h.b16 %v4122
    %v4445 = vunpack.c.l.b16 %v4123
    %v4446 = vunpack.c.h.b16 %v4123
    %v4447 = vunpack.c.l.b16 %v4124
    %v4448 = vunpack.c.h.b16 %v4124
    %v4449 = vunpack.c.l.b16 %v4125
    %v4450 = vunpack.c.h.b16 %v4125
    %v4451 = vunpack.c.l.b16 %v4126
    %v4452 = vunpack.c.h.b16 %v4126
    %v4453 = vunpack.c.l.b16 %v4127
    %v4454 = vunpack.c.h.b16 %v4127
    %v4455 = vunpack.c.l.b16 %v4128
    %v4456 = vunpack.c.h.b16 %v4128
    %v4457 = vunpack.c.l.b16 %v4129
    %v4458 = vunpack.c.h.b16 %v4129
    %v4459 = vunpack.c.l.b16 %v4130
    %v4460 = vunpack.c.h.b16 %v4130
    %v4461 = vunpack.c.l.b16 %v4131
    %v4462 = vunpack.c.h.b16 %v4131
    %v4463 = vunpack.c.l.b16 %v4132
    %v4464 = vunpack.c.h.b16 %v4132
    %v4465 = vunpack.c.l.b16 %v4133
    %v4466 = vunpack.c.h.b16 %v4133
    %v4467 = vunpack.c.l.b16 %v4134
    %v4468 = vunpack.c.h.b16 %v4134
    %v4469 = vunpack.c.l.b16 %v4135
    %v4470 = vunpack.c.h.b16 %v4135
    %v4471 = vunpack.c.l.b16 %v4136
    %v4472 = vunpack.c.h.b16 %v4136
    %v4473 = vunpack.c.l.b16 %v4137
    %v4474 = vunpack.c.h.b16 %v4137
    %v4475 = vunpack.c.l.b16 %v4138
    %v4476 = vunpack.c.h.b16 %v4138
    %v4477 = vunpack.c.l.b16 %v4139
    %v4478 = vunpack.c.h.b16 %v4139
    %v4479 = vunpack.c.l.b16 %v4140
    %v4480 = vunpack.c.h.b16 %v4140
    %v4481 = vpack.c.b16 %v4267, %v4265
    %v4482 = vpack.c.b16 %v4268, %v4266
    %v4483 = vpack.c.b16 %v4271, %v4269
    %v4484 = vpack.c.b16 %v4272, %v4270
    %v4485 = vpack.c.b16 %v4275, %v4273
    %v4486 = vpack.c.b16 %v4276, %v4274
    %v4487 = vpack.c.b16 %v4279, %v4277
    %v4488 = vpack.c.b16 %v4280, %v4278
    %v4489 = vpack.c.b16 %v4283, %v4281
    %v4490 = vpack.c.b16 %v4284, %v4282
    %v4491 = vpack.c.b16 %v4287, %v4285
    %v4492 = vpack.c.b16 %v4288, %v4286
    %v4493 = vpack.c.b16 %v4291, %v4289
    %v4494 = vpack.c.b16 %v4292, %v4290
    %v4495 = vpack.c.b16 %v4295, %v4293
    %v4496 = vpack.c.b16 %v4296, %v4294
    %v4497 = vpack.c.b16 %v4299, %v4297
    %v4498 = vpack.c.b16 %v4300, %v4298
    %v4499 = vpack.c.b16 %v4303, %v4301
    %v4500 = vpack.c.b16 %v4304, %v4302
    %v4501 = vpack.c.b16 %v4307, %v4305
    %v4502 = vpack.c.b16 %v4308, %v4306
    %v4503 = vpack.c.b16 %v4311, %v4309
    %v4504 = vpack.c.b16 %v4312, %v4310
    %v4505 = vpack.c.b16 %v4315, %v4313
    %v4506 = vpack.c.b16 %v4316, %v4314
    %v4507 = vpack.c.b16 %v4319, %v4317
    %v4508 = vpack.c.b16 %v4320, %v4318
    %v4509 = vpack.c.b16 %v4323, %v4321
    %v4510 = vpack.c.b16 %v4324, %v4322
    %v4511 = vpack.c.b16 %v4327, %v4325
    %v4512 = vpack.c.b16 %v4328, %v4326
    %v4513 = vpack.c.b16 %v4331, %v4329
    %v4514 = vpack.c.b16 %v4332, %v4330
    %v4515 = vpack.c.b16 %v4335, %v4333
    %v4516 = vpack.c.b16 %v4336, %v4334
    %v4517 = vpack.c.b16 %v4339, %v4337
    %v4518 = vpack.c.b16 %v4340, %v4338
    %v4519 = vpack.c.b16 %v4343, %v4341
    %v4520 = vpack.c.b16 %v4344, %v4342
    %v4521 = vpack.c.b16 %v4347, %v4345
    %v4522 = vpack.c.b16 %v4348, %v4346
    %v4523 = vpack.c.b16 %v4351, %v4349
    %v4524 = vpack.c.b16 %v4352, %v4350
    %v4525 = vpack.c.b16 %v4355, %v4353
    %v4526 = vpack.c.b16 %v4356, %v4354
    %v4527 = vpack.c.b16 %v4359, %v4357
    %v4528 = vpack.c.b16 %v4360, %v4358
    %v4529 = vpack.c.b16 %v4363, %v4361
    %v4530 = vpack.c.b16 %v4364, %v4362
    %v4531 = vpack.c.b16 %v4367, %v4365
    %v4532 = vpack.c.b16 %v4368, %v4366
    %v4533 = vpack.c.b16 %v4371, %v4369
    %v4534 = vpack.c.b16 %v4372, %v4370
    %v4535 = vpack.c.b16 %v4375, %v4373
    %v4536 = vpack.c.b16 %v4376, %v4374
    %v4537 = vpack.c.b16 %v4379, %v4377
    %v4538 = vpack.c.b16 %v4380, %v4378
    %v4539 = vpack.c.b16 %v4383, %v4381
    %v4540 = vpack.c.b16 %v4384, %v4382
    %v4541 = vpack.c.b16 %v4387, %v4385
    %v4542 = vpack.c.b16 %v4388, %v4386
    %v4543 = vpack.c.b16 %v4391, %v4389
    %v4544 = vpack.c.b16 %v4392, %v4390
    %v4545 = vpack.c.b16 %v4395, %v4393
    %v4546 = vpack.c.b16 %v4396, %v4394
    %v4547 = vpack.c.b16 %v4399, %v4397
    %v4548 = vpack.c.b16 %v4400, %v4398
    %v4549 = vpack.c.b16 %v4403, %v4401
    %v4550 = vpack.c.b16 %v4404, %v4402
    %v4551 = vpack.c.b16 %v4407, %v4405
    %v4552 = vpack.c.b16 %v4408, %v4406
    %v4553 = vpack.c.b16 %v4411, %v4409
    %v4554 = vpack.c.b16 %v4412, %v4410
    %v4555 = vpack.c.b16 %v4415, %v4413
    %v4556 = vpack.c.b16 %v4416, %v4414
    %v4557 = vpack.c.b16 %v4419, %v4417
    %v4558 = vpack.c.b16 %v4420, %v4418
    %v4559 = vpack.c.b16 %v4423, %v4421
    %v4560 = vpack.c.b16 %v4424, %v4422
    %v4561 = vpack.c.b16 %v4427, %v4425
    %v4562 = vpack.c.b16 %v4428, %v4426
    %v4563 = vpack.c.b16 %v4431, %v4429
    %v4564 = vpack.c.b16 %v4432, %v4430
    %v4565 = vpack.c.b16 %v4435, %v4433
    %v4566 = vpack.c.b16 %v4436, %v4434
    %v4567 = vpack.c.b16 %v4439, %v4437
    %v4568 = vpack.c.b16 %v4440, %v4438
    %v4569 = vpack.c.b16 %v4443, %v4441
    %v4570 = vpack.c.b16 %v4444, %v4442
    %v4571 = vpack.c.b16 %v4447, %v4445
    %v4572 = vpack.c.b16 %v4448, %v4446
    %v4573 = vpack.c.b16 %v4451, %v4449
    %v4574 = vpack.c.b16 %v4452, %v4450
    %v4575 = vpack.c.b16 %v4455, %v4453
    %v4576 = vpack.c.b16 %v4456, %v4454
    %v4577 = vpack.c.b16 %v4459, %v4457
    %v4578 = vpack.c.b16 %v4460, %v4458
    %v4579 = vpack.c.b16 %v4463, %v4461
    %v4580 = vpack.c.b16 %v4464, %v4462
    %v4581 = vpack.c.b16 %v4467, %v4465
    %v4582 = vpack.c.b16 %v4468, %v4466
    %v4583 = vpack.c.b16 %v4471, %v4469
    %v4584 = vpack.c.b16 %v4472, %v4470
    %v4585 = vpack.c.b16 %v4475, %v4473
    %v4586 = vpack.c.b16 %v4476, %v4474
    %v4587 = vpack.c.b16 %v4479, %v4477
    %v4588 = vpack.c.b16 %v4480, %v4478
    %v4698 = vsel %vm3202, %v4032, 0
    %4700 = vmatprep.subr.bf16.mxu0 %v4496
    %4701 = vmatpush1.bf16.msra.mxu0 %v4495
    %4702 = vmatprep.subr.bf16.mxu0 %v4494
    %4703 = vmatpush1.bf16.msra.mxu0 %v4493
    %4704 = vmatprep.subr.bf16.mxu0 %v4492
    %4705 = vmatpush1.bf16.msra.mxu0 %v4491
    %4706 = vmatprep.subr.bf16.mxu0 %v4490
    %4707 = vmatpush1.bf16.msra.mxu0 %v4489
    %4708 = vmatprep.subr.bf16.mxu0 %v4488
    %4709 = vmatpush1.bf16.msra.mxu0 %v4487
    %4710 = vmatprep.subr.bf16.mxu0 %v4486
    %4711 = vmatpush1.bf16.msra.mxu0 %v4485
    %4712 = vmatprep.subr.bf16.mxu0 %v4484
    %4713 = vmatpush1.bf16.msra.mxu0 %v4483
    %4714 = vmatprep.subr.bf16.mxu0 %v4482
    %4715 = vmatpush1.bf16.msra.mxu0 %v4481
    %4716 = vmatprep.subr.bf16.mxu0 %v4512
    %4717 = vmatpush2.bf16.msra.mxu0 %v4511
    %4718 = vmatprep.subr.bf16.mxu0 %v4510
    %4719 = vmatpush2.bf16.msra.mxu0 %v4509
    %4720 = vmatprep.subr.bf16.mxu0 %v4508
    %4721 = vmatpush2.bf16.msra.mxu0 %v4507
    %4722 = vmatprep.subr.bf16.mxu0 %v4506
    %4723 = vmatpush2.bf16.msra.mxu0 %v4505
    %4724 = vmatprep.subr.bf16.mxu0 %v4504
    %4725 = vmatpush2.bf16.msra.mxu0 %v4503
    %4726 = vmatprep.subr.bf16.mxu0 %v4502
    %4727 = vmatpush2.bf16.msra.mxu0 %v4501
    %4728 = vmatprep.subr.bf16.mxu0 %v4500
    %4729 = vmatpush2.bf16.msra.mxu0 %v4499
    %4730 = vmatprep.subr.bf16.mxu0 %v4498
    %4731 = vmatpush2.bf16.msra.mxu0 %v4497
    %4732 = vmatprep.mubr.bf16.mxu0 %v4027
    %4733 = vmatmul.mubr.bf16.gmra.mxu0 %v4026
    %v4734 = vpop.f32.mrf.mxu0
    %v4735 = vadd.f32 %v4150, %v4734
    %v4736 = vpop.f32.mrf.mxu0
    %v4737 = vadd.f32 %v4154, %v4736
    %v4738 = vpop.f32.mrf.mxu0
    %v4739 = vpop.f32.mrf.mxu0
    %4740 = vdwg.mxu0
    %4741 = vmatprep.subr.bf16.mxu0 %v4528
    %4742 = vmatpush1.bf16.msra.mxu0 %v4527
    %4743 = vmatprep.subr.bf16.mxu0 %v4526
    %4744 = vmatpush1.bf16.msra.mxu0 %v4525
    %4745 = vmatprep.subr.bf16.mxu0 %v4524
    %4746 = vmatpush1.bf16.msra.mxu0 %v4523
    %4747 = vmatprep.subr.bf16.mxu0 %v4522
    %4748 = vmatpush1.bf16.msra.mxu0 %v4521
    %4749 = vmatprep.subr.bf16.mxu0 %v4520
    %4750 = vmatpush1.bf16.msra.mxu0 %v4519
    %4751 = vmatprep.subr.bf16.mxu0 %v4518
    %4752 = vmatpush1.bf16.msra.mxu0 %v4517
    %4753 = vmatprep.subr.bf16.mxu0 %v4516
    %4754 = vmatpush1.bf16.msra.mxu0 %v4515
    %4755 = vmatprep.subr.bf16.mxu0 %v4514
    %4756 = vmatpush1.bf16.msra.mxu0 %v4513
    %4757 = vmatprep.subr.bf16.mxu0 %v4544
    %4758 = vmatpush2.bf16.msra.mxu0 %v4543
    %4759 = vmatprep.subr.bf16.mxu0 %v4542
    %4760 = vmatpush2.bf16.msra.mxu0 %v4541
    %4761 = vmatprep.subr.bf16.mxu0 %v4540
    %4762 = vmatpush2.bf16.msra.mxu0 %v4539
    %4763 = vmatprep.subr.bf16.mxu0 %v4538
    %4764 = vmatpush2.bf16.msra.mxu0 %v4537
    %4765 = vmatprep.subr.bf16.mxu0 %v4536
    %4766 = vmatpush2.bf16.msra.mxu0 %v4535
    %4767 = vmatprep.subr.bf16.mxu0 %v4534
    %4768 = vmatpush2.bf16.msra.mxu0 %v4533
    %4769 = vmatprep.subr.bf16.mxu0 %v4532
    %4770 = vmatpush2.bf16.msra.mxu0 %v4531
    %4771 = vmatprep.subr.bf16.mxu0 %v4530
    %4772 = vmatpush2.bf16.msra.mxu0 %v4529
    %4773 = vmatprep.mubr.bf16.mxu0 %v4029
    %4774 = vmatmul.mubr.bf16.gmra.mxu0 %v4028
    %v4775 = vpop.f32.mrf.mxu0
    %v4776 = vadd.f32 %v4735, %v4775
    %v4777 = vpop.f32.mrf.mxu0
    %v4778 = vadd.f32 %v4737, %v4777
    %v4779 = vpop.f32.mrf.mxu0
    %v4780 = vpop.f32.mrf.mxu0
    %4781 = vdwg.mxu0
    %4782 = vmatprep.subr.bf16.mxu0 %v4560
    %4783 = vmatpush1.bf16.msra.mxu0 %v4559
    %4784 = vmatprep.subr.bf16.mxu0 %v4558
    %4785 = vmatpush1.bf16.msra.mxu0 %v4557
    %4786 = vmatprep.subr.bf16.mxu0 %v4556
    %4787 = vmatpush1.bf16.msra.mxu0 %v4555
    %4788 = vmatprep.subr.bf16.mxu0 %v4554
    %4789 = vmatpush1.bf16.msra.mxu0 %v4553
    %4790 = vmatprep.subr.bf16.mxu0 %v4552
    %4791 = vmatpush1.bf16.msra.mxu0 %v4551
    %4792 = vmatprep.subr.bf16.mxu0 %v4550
    %4793 = vmatpush1.bf16.msra.mxu0 %v4549
    %4794 = vmatprep.subr.bf16.mxu0 %v4548
    %4795 = vmatpush1.bf16.msra.mxu0 %v4547
    %4796 = vmatprep.subr.bf16.mxu0 %v4546
    %4797 = vmatpush1.bf16.msra.mxu0 %v4545
    %4798 = vmatprep.subr.bf16.mxu0 %v4576
    %4799 = vmatpush2.bf16.msra.mxu0 %v4575
    %4800 = vmatprep.subr.bf16.mxu0 %v4574
    %4801 = vmatpush2.bf16.msra.mxu0 %v4573
    %4802 = vmatprep.subr.bf16.mxu0 %v4572
    %4803 = vmatpush2.bf16.msra.mxu0 %v4571
    %4804 = vmatprep.subr.bf16.mxu0 %v4570
    %4805 = vmatpush2.bf16.msra.mxu0 %v4569
    %4806 = vmatprep.subr.bf16.mxu0 %v4568
    %4807 = vmatpush2.bf16.msra.mxu0 %v4567
    %4808 = vmatprep.subr.bf16.mxu0 %v4566
    %4809 = vmatpush2.bf16.msra.mxu0 %v4565
    %4810 = vmatprep.subr.bf16.mxu0 %v4564
    %4811 = vmatpush2.bf16.msra.mxu0 %v4563
    %4812 = vmatprep.subr.bf16.mxu0 %v4562
    %4813 = vmatpush2.bf16.msra.mxu0 %v4561
    %4814 = vmatprep.mubr.bf16.mxu0 %v4031
    %4815 = vmatmul.mubr.bf16.gmra.mxu0 %v4030
    %v4816 = vpop.f32.mrf.mxu0
    %v4817 = vadd.f32 %v4776, %v4816
    %v4818 = vpop.f32.mrf.mxu0
    %v4819 = vadd.f32 %v4778, %v4818
    %v4820 = vpop.f32.mrf.mxu0
    %v4821 = vpop.f32.mrf.mxu0
    %4822 = vdwg.mxu0
    %4823 = vmatprep.subr.bf16.mxu0 0
    %4824 = vmatpush1.bf16.msra.mxu0 0
    %4825 = vmatprep.subr.bf16.mxu0 0
    %4826 = vmatpush1.bf16.msra.mxu0 0
    %4827 = vmatprep.subr.bf16.mxu0 %v4588
    %4828 = vmatpush1.bf16.msra.mxu0 %v4587
    %4829 = vmatprep.subr.bf16.mxu0 %v4586
    %4830 = vmatpush1.bf16.msra.mxu0 %v4585
    %4831 = vmatprep.subr.bf16.mxu0 %v4584
    %4832 = vmatpush1.bf16.msra.mxu0 %v4583
    %4833 = vmatprep.subr.bf16.mxu0 %v4582
    %4834 = vmatpush1.bf16.msra.mxu0 %v4581
    %4835 = vmatprep.subr.bf16.mxu0 %v4580
    %4836 = vmatpush1.bf16.msra.mxu0 %v4579
    %4837 = vmatprep.subr.bf16.mxu0 %v4578
    %4838 = vmatpush1.bf16.msra.mxu0 %v4577
    %4839 = vmatprep.subr.bf16.mxu0 0
    %4840 = vmatpush2.bf16.msra.mxu0 0
    %4841 = vmatprep.subr.bf16.mxu0 0
    %4842 = vmatpush2.bf16.msra.mxu0 0
    %4843 = vmatprep.subr.bf16.mxu0 0
    %4844 = vmatpush2.bf16.msra.mxu0 0
    %4845 = vmatprep.subr.bf16.mxu0 0
    %4846 = vmatpush2.bf16.msra.mxu0 0
    %4847 = vmatprep.subr.bf16.mxu0 0
    %4848 = vmatpush2.bf16.msra.mxu0 0
    %4849 = vmatprep.subr.bf16.mxu0 0
    %4850 = vmatpush2.bf16.msra.mxu0 0
    %4851 = vmatprep.subr.bf16.mxu0 0
    %4852 = vmatpush2.bf16.msra.mxu0 0
    %4853 = vmatprep.subr.bf16.mxu0 0
    %4854 = vmatpush2.bf16.msra.mxu0 0
    %4855 = vmatprep.mubr.bf16.mxu0 0
    %4856 = vmatmul.mubr.bf16.gmra.mxu0 %v4698
    %v4857 = vpop.f32.mrf.mxu0
    %v4858 = vadd.f32 %v4817, %v4857
    %v4859 = vpop.f32.mrf.mxu0
    %v4860 = vadd.f32 %v4819, %v4859
    %v4861 = vpop.f32.mrf.mxu0
    %v4862 = vpop.f32.mrf.mxu0
    %4863 = vdwg.mxu0
    %v4864 = vsel %vm2979, %v4858, 0.0
    %v4865 = vrot.slane %v4864, 4
    %v4866 = vadd.f32 %v4864, %v4865
    %v4867 = vrot.slane %v4866, 2
    %v4868 = vadd.f32 %v4866, %v4867
    %v4869 = vrot.slane %v4868, 1
    %v4870 = vadd.f32 %v4868, %v4869
    %v4871 = vsel %vm2979, %v4860, 0.0
    %v4872 = vrot.slane %v4871, 4
    %v4873 = vadd.f32 %v4871, %v4872
    %v4874 = vrot.slane %v4873, 2
    %v4875 = vadd.f32 %v4873, %v4874
    %v4876 = vrot.slane %v4875, 1
    %v4877 = vadd.f32 %v4875, %v4876
    %v4878 = vmul.f32 %v4858, %v4858
    %v4879 = vmul.f32 %v4860, %v4860
    %v4880 = vsel %vm2979, %v4878, 0.0
    %v4881 = vrot.slane %v4880, 4
    %v4882 = vadd.f32 %v4880, %v4881
    %v4883 = vrot.slane %v4882, 2
    %v4884 = vadd.f32 %v4882, %v4883
    %v4885 = vrot.slane %v4884, 1
    %v4886 = vadd.f32 %v4884, %v4885
    %v4887 = vsel %vm2979, %v4879, 0.0
    %v4888 = vrot.slane %v4887, 4
    %v4889 = vadd.f32 %v4887, %v4888
    %v4890 = vrot.slane %v4889, 2
    %v4891 = vadd.f32 %v4889, %v4890
    %v4892 = vrot.slane %v4891, 1
    %v4893 = vadd.f32 %v4891, %v4892
    %v4894 = vsel %vm3086, %v4870, %v4886
    %v4895 = vsel %vm3086, %v4877, %v4893
    %v4896 = vld [vmem:[%s19] sm:$0xff]
    %v4897 = vld [vmem:[%s19 + $0x8] sm:$0xff]
    %v4898 = vld [vmem:[%s19 + $0x10] sm:$0xff]
    %v4899 = vld [vmem:[%s19 + $0x18] sm:$0xff]
    %v4900 = vld [vmem:[%s19 + $0x20] sm:$0xff]
    %v4901 = vld [vmem:[%s19 + $0x28] sm:$0xff]
    %v4902 = vld [vmem:[%s19 + $0x30] sm:$0xff]
    %v4903 = vld [vmem:[%s19 + $0x38] sm:$0xff]
    %v4904 = vld [vmem:[%s19 + $0x40] sm:$0xff]
    %v4905 = vld [vmem:[%s19 + $0x48] sm:$0xff]
    %v4906 = vld [vmem:[%s19 + $0x50] sm:$0xff]
    %v4907 = vld [vmem:[%s19 + $0x58] sm:$0xff]
    %v4908 = vld [vmem:[%s19 + $0x60] sm:$0xff]
    %v4909 = vld [vmem:[%s19 + $0x68] sm:$0xff]
    %v4910 = vld [vmem:[%s19 + $0x70] sm:$0xff]
    %v4911 = vld [vmem:[%s19 + $0x78] sm:$0xff]
    %v4912 = vld [vmem:[%s19 + $0x80] sm:$0xff]
    %v4913 = vld [vmem:[%s19 + $0x88] sm:$0xff]
    %v4914 = vld [vmem:[%s19 + $0x90] sm:$0xff]
    %v4915 = vld [vmem:[%s19 + $0x98] sm:$0xff]
    %v4916 = vld [vmem:[%s19 + $0xa0] sm:$0xff]
    %v4917 = vld [vmem:[%s19 + $0xa8] sm:$0xff]
    %v4918 = vld [vmem:[%s19 + $0xb0] sm:$0xff]
    %v4919 = vld [vmem:[%s19 + $0xb8] sm:$0xff]
    %v4920 = vld [vmem:[%s19 + $0xc0] sm:$0xff]
    %v4921 = vld [vmem:[%s19 + $0xc8] sm:$0xff]
    %v4922 = vld [vmem:[%s19 + $0xd0] sm:$0xff]
    %v4923 = vld [vmem:[%s19 + $0xd8] sm:$0xff]
    %v4924 = vld [vmem:[%s19 + $0xe0] sm:$0xff]
    %v4925 = vld [vmem:[%s19 + $0xe8] sm:$0xff]
    %v4926 = vld [vmem:[%s19 + $0xf0] sm:$0xff]
    %v4927 = vld [vmem:[%s19 + $0xf8] sm:$0xff]
    %4928 = vmatprep.subr.mxu0 0.0
    %4929 = vmatpush1.msra.mxu0 %v4911
    %4930 = vmatprep.subr.mxu0 0.0
    %4931 = vmatpush1.msra.mxu0 %v4910
    %4932 = vmatprep.subr.mxu0 0.0
    %4933 = vmatpush1.msra.mxu0 %v4909
    %4934 = vmatprep.subr.mxu0 0.0
    %4935 = vmatpush1.msra.mxu0 %v4908
    %4936 = vmatprep.subr.mxu0 0.0
    %4937 = vmatpush1.msra.mxu0 %v4907
    %4938 = vmatprep.subr.mxu0 0.0
    %4939 = vmatpush1.msra.mxu0 %v4906
    %4940 = vmatprep.subr.mxu0 0.0
    %4941 = vmatpush1.msra.mxu0 %v4905
    %4942 = vmatprep.subr.mxu0 0.0
    %4943 = vmatpush1.msra.mxu0 %v4904
    %4944 = vmatprep.subr.mxu0 0.0
    %4945 = vmatpush1.msra.mxu0 %v4903
    %4946 = vmatprep.subr.mxu0 0.0
    %4947 = vmatpush1.msra.mxu0 %v4902
    %4948 = vmatprep.subr.mxu0 0.0
    %4949 = vmatpush1.msra.mxu0 %v4901
    %4950 = vmatprep.subr.mxu0 0.0
    %4951 = vmatpush1.msra.mxu0 %v4900
    %4952 = vmatprep.subr.mxu0 0.0
    %4953 = vmatpush1.msra.mxu0 %v4899
    %4954 = vmatprep.subr.mxu0 0.0
    %4955 = vmatpush1.msra.mxu0 %v4898
    %4956 = vmatprep.subr.mxu0 0.0
    %4957 = vmatpush1.msra.mxu0 %v4897
    %4958 = vmatprep.subr.mxu0 0.0
    %4959 = vmatpush1.msra.mxu0 %v4896
    %4960 = vmatprep.subr.mxu0 0.0
    %4961 = vmatpush2.msra.mxu0 %v4927
    %4962 = vmatprep.subr.mxu0 0.0
    %4963 = vmatpush2.msra.mxu0 %v4926
    %4964 = vmatprep.subr.mxu0 0.0
    %4965 = vmatpush2.msra.mxu0 %v4925
    %4966 = vmatprep.subr.mxu0 0.0
    %4967 = vmatpush2.msra.mxu0 %v4924
    %4968 = vmatprep.subr.mxu0 0.0
    %4969 = vmatpush2.msra.mxu0 %v4923
    %4970 = vmatprep.subr.mxu0 0.0
    %4971 = vmatpush2.msra.mxu0 %v4922
    %4972 = vmatprep.subr.mxu0 0.0
    %4973 = vmatpush2.msra.mxu0 %v4921
    %4974 = vmatprep.subr.mxu0 0.0
    %4975 = vmatpush2.msra.mxu0 %v4920
    %4976 = vmatprep.subr.mxu0 0.0
    %4977 = vmatpush2.msra.mxu0 %v4919
    %4978 = vmatprep.subr.mxu0 0.0
    %4979 = vmatpush2.msra.mxu0 %v4918
    %4980 = vmatprep.subr.mxu0 0.0
    %4981 = vmatpush2.msra.mxu0 %v4917
    %4982 = vmatprep.subr.mxu0 0.0
    %4983 = vmatpush2.msra.mxu0 %v4916
    %4984 = vmatprep.subr.mxu0 0.0
    %4985 = vmatpush2.msra.mxu0 %v4915
    %4986 = vmatprep.subr.mxu0 0.0
    %4987 = vmatpush2.msra.mxu0 %v4914
    %4988 = vmatprep.subr.mxu0 0.0
    %4989 = vmatpush2.msra.mxu0 %v4913
    %4990 = vmatprep.subr.mxu0 0.0
    %4991 = vmatpush2.msra.mxu0 %v4912
    %4992 = vmatprep.mubr.f32.mxu0 %v4895
    %4993 = vmatmul.mubr.f32.gmra.mxu0 %v4894
    %v4994 = vpop.f32.mrf.mxu0
    %v4995 = vadd.f32 0.0, %v4994
    %v4996 = vpop.f32.mrf.mxu0
    %4997 = vdwg.mxu0
    %v4998 = vmul.f32 %v4995, 0.03125
    %v4999 = vmul.f32 %v4998, %v4998
    %v5001 = vrot.slane %v4999, 7
    %v5003 = vsub.f32 %v4998, %v5001
    %v5004 = vmax.f32 %v5003, 0.0
    %v5005 = vadd.f32 %v5004, 1e-05
    %v5006 = vrsqrt.pop %v5005
    %v5007 = vsel %vm3086, %v4998, %v5006
    %v5008 = vld [vmem:[%s20] sm:$0xff]
    %v5009 = vld [vmem:[%s20 + $0x8] sm:$0xff]
    %v5010 = vld [vmem:[%s20 + $0x10] sm:$0xff]
    %v5011 = vld [vmem:[%s20 + $0x18] sm:$0xff]
    %v5013 = vsel %vm2323, %v5007, 0
    %5015 = vmatprep.subr.mxu0 0.0
    %5016 = vmatpush1.msra.mxu0 0.0
    %5017 = vmatprep.subr.mxu0 0.0
    %5018 = vmatpush1.msra.mxu0 0.0
    %5019 = vmatprep.subr.mxu0 0.0
    %5020 = vmatpush1.msra.mxu0 0.0
    %5021 = vmatprep.subr.mxu0 0.0
    %5022 = vmatpush1.msra.mxu0 0.0
    %5023 = vmatprep.subr.mxu0 0.0
    %5024 = vmatpush1.msra.mxu0 0.0
    %5025 = vmatprep.subr.mxu0 0.0
    %5026 = vmatpush1.msra.mxu0 0.0
    %5027 = vmatprep.subr.mxu0 0.0
    %5028 = vmatpush1.msra.mxu0 0.0
    %5029 = vmatprep.subr.mxu0 0.0
    %5030 = vmatpush1.msra.mxu0 0.0
    %5031 = vmatprep.subr.mxu0 0.0
    %5032 = vmatpush1.msra.mxu0 0.0
    %5033 = vmatprep.subr.mxu0 0.0
    %5034 = vmatpush1.msra.mxu0 0.0
    %5035 = vmatprep.subr.mxu0 0.0
    %5036 = vmatpush1.msra.mxu0 0.0
    %5037 = vmatprep.subr.mxu0 0.0
    %5038 = vmatpush1.msra.mxu0 0.0
    %5039 = vmatprep.subr.mxu0 0.0
    %5040 = vmatpush1.msra.mxu0 0.0
    %5041 = vmatprep.subr.mxu0 0.0
    %5042 = vmatpush1.msra.mxu0 0.0
    %5043 = vmatprep.subr.mxu0 %v5011
    %5044 = vmatpush1.msra.mxu0 %v5010
    %5045 = vmatprep.subr.mxu0 %v5009
    %5046 = vmatpush1.msra.mxu0 %v5008
    %5047 = vmatprep.subr.mxu0 0.0
    %5048 = vmatpush2.msra.mxu0 0.0
    %5049 = vmatprep.subr.mxu0 0.0
    %5050 = vmatpush2.msra.mxu0 0.0
    %5051 = vmatprep.subr.mxu0 0.0
    %5052 = vmatpush2.msra.mxu0 0.0
    %5053 = vmatprep.subr.mxu0 0.0
    %5054 = vmatpush2.msra.mxu0 0.0
    %5055 = vmatprep.subr.mxu0 0.0
    %5056 = vmatpush2.msra.mxu0 0.0
    %5057 = vmatprep.subr.mxu0 0.0
    %5058 = vmatpush2.msra.mxu0 0.0
    %5059 = vmatprep.subr.mxu0 0.0
    %5060 = vmatpush2.msra.mxu0 0.0
    %5061 = vmatprep.subr.mxu0 0.0
    %5062 = vmatpush2.msra.mxu0 0.0
    %5063 = vmatprep.subr.mxu0 0.0
    %5064 = vmatpush2.msra.mxu0 0.0
    %5065 = vmatprep.subr.mxu0 0.0
    %5066 = vmatpush2.msra.mxu0 0.0
    %5067 = vmatprep.subr.mxu0 0.0
    %5068 = vmatpush2.msra.mxu0 0.0
    %5069 = vmatprep.subr.mxu0 0.0
    %5070 = vmatpush2.msra.mxu0 0.0
    %5071 = vmatprep.subr.mxu0 0.0
    %5072 = vmatpush2.msra.mxu0 0.0
    %5073 = vmatprep.subr.mxu0 0.0
    %5074 = vmatpush2.msra.mxu0 0.0
    %5075 = vmatprep.subr.mxu0 0.0
    %5076 = vmatpush2.msra.mxu0 0.0
    %5077 = vmatprep.subr.mxu0 0.0
    %5078 = vmatpush2.msra.mxu0 0.0
    %5079 = vmatprep.mubr.f32.mxu0 0.0
    %5080 = vmatmul.mubr.f32.gmra.mxu0 %v5013
    %v5081 = vpop.f32.mrf.mxu0
    %v5082 = vadd.f32 0.0, %v5081
    %v5083 = vpop.f32.mrf.mxu0
    %v5084 = vadd.f32 0.0, %v5083
    %5085 = vdwg.mxu0
    %v5088 = vcombine.low %v5082, %v5084
    %v5090 = vunpack.c.l.s4 1966171168
    %v5091 = vunpack.c.0.s8 %v5090
    %v5092 = vlaneseq
    %v5093 = vshrl.u32 %v5092, 7
    %v5094 = vsub.s32 %v5091, %v5093
    %v5095 = vrot.slane %v5088, %v5094
    %v5096 = vcombine.high %v5095, %v5095
    %v5098 = vunpack.c.l.s4 1966171168
    %v5099 = vunpack.c.0.s8 %v5098
    %v5100 = vlaneseq
    %v5101 = vshrl.u32 %v5100, 7
    %v5102 = vsub.s32 %v5099, %v5101
    %v5103 = vrot.slane %v5096, %v5102
    %v5105 = vmul.f32 %v4143, %v5103
    %v5107 = vlaneseq
    %v5108 = vshrl.u32 %v5107, 7
    %v5109 = vsub.s32 0, %v5108
    %v5110 = vrot.slane %v5105, %v5109
    %v5111 = vlaneseq
    %v5112 = vshrl.u32 %v5111, 7
    %v5113 = vsub.s32 1, %v5112
    %v5114 = vrot.slane %v5105, %v5113
    %v5117 = vmul.f32 %v5082, %v5110
    %v5118 = vmul.f32 %v5084, %v5114
    %v5121 = vcombine.low %v5117, %v5118
    %v5123 = vunpack.c.l.s4 1966171168
    %v5124 = vunpack.c.0.s8 %v5123
    %v5125 = vlaneseq
    %v5126 = vshrl.u32 %v5125, 7
    %v5127 = vsub.s32 %v5124, %v5126
    %v5128 = vrot.slane %v5121, %v5127
    %v5130 = vunpack.c.l.s4 1966171168
    %v5131 = vunpack.c.0.s8 %v5130
    %v5132 = vlaneseq
    %v5133 = vshrl.u32 %v5132, 7
    %v5134 = vsub.s32 %v5131, %v5133
    %v5135 = vrot.slane %v5128, %v5134
    %v5137 = vsub.f32 %v4145, %v5135
    %v5138 = vmul.f32 %v4858, %v5110
    %v5139 = vmul.f32 %v4860, %v5114
    %v5141 = vlaneseq
    %v5142 = vshrl.u32 %v5141, 7
    %v5143 = vsub.s32 0, %v5142
    %v5144 = vrot.slane %v5137, %v5143
    %v5145 = vlaneseq
    %v5146 = vshrl.u32 %v5145, 7
    %v5147 = vsub.s32 1, %v5146
    %v5148 = vrot.slane %v5137, %v5147
    %v5151 = vadd.f32 %v5138, %v5144
    %v5152 = vadd.f32 %v5139, %v5148
    %v5153 = vmax.f32 %v5151, 0.0
    %v5154 = vmax.f32 %v5152, 0.0
    %v5155 = vpack.c.bf16 %v5153, %v5153
    %v5156 = vpack.c.bf16 %v5154, %v5154
    %v5157 = vld [vmem:[%s5] sm:$0xf]
    %v5158 = vld [vmem:[%s5 + $0x4] sm:$0xf]
    %v5159 = vld [vmem:[%s5 + $0x8] sm:$0xf]
    %v5160 = vld [vmem:[%s5 + $0xc] sm:$0xf]
    %v5161 = vld [vmem:[%s5 + $0x10] sm:$0xf]
    %v5162 = vld [vmem:[%s5 + $0x14] sm:$0xf]
    %v5163 = vld [vmem:[%s5 + $0x18] sm:$0xf]
    %v5164 = vld [vmem:[%s5 + $0x1c] sm:$0xf]
    %v5165 = vld [vmem:[%s5 + $0x20] sm:$0xf]
    %v5166 = vld [vmem:[%s5 + $0x24] sm:$0xf]
    %v5167 = vld [vmem:[%s5 + $0x28] sm:$0xf]
    %v5168 = vld [vmem:[%s5 + $0x2c] sm:$0xf]
    %v5169 = vld [vmem:[%s5 + $0x30] sm:$0xf]
    %v5170 = vld [vmem:[%s5 + $0x34] sm:$0xf]
    %v5171 = vld [vmem:[%s5 + $0x38] sm:$0xf]
    %v5172 = vld [vmem:[%s5 + $0x3c] sm:$0xf]
    %v5173 = vld [vmem:[%s5 + $0x40] sm:$0xf]
    %v5174 = vld [vmem:[%s5 + $0x44] sm:$0xf]
    %v5175 = vld [vmem:[%s5 + $0x48] sm:$0xf]
    %v5176 = vld [vmem:[%s5 + $0x4c] sm:$0xf]
    %v5177 = vld [vmem:[%s5 + $0x50] sm:$0xf]
    %v5178 = vld [vmem:[%s5 + $0x54] sm:$0xf]
    %v5179 = vld [vmem:[%s5 + $0x58] sm:$0xf]
    %v5180 = vld [vmem:[%s5 + $0x5c] sm:$0xf]
    %v5181 = vld [vmem:[%s5 + $0x60] sm:$0xf]
    %v5182 = vld [vmem:[%s5 + $0x64] sm:$0xf]
    %v5183 = vld [vmem:[%s5 + $0x68] sm:$0xf]
    %v5184 = vld [vmem:[%s5 + $0x6c] sm:$0xf]
    %v5185 = vld [vmem:[%s5 + $0x70] sm:$0xf]
    %v5186 = vld [vmem:[%s5 + $0x74] sm:$0xf]
    %v5187 = vld [vmem:[%s5 + $0x78] sm:$0xf]
    %v5188 = vld [vmem:[%s5 + $0x7c] sm:$0xf]
    %v5189 = vld [vmem:[%s6] sm:$0x1]
    %v5190 = vld [vmem:[%s6 + $0x1] sm:$0x1]
    %v5191 = vld [vmem:[%s6 + $0x2] sm:$0x1]
    %v5192 = vlaneseq
    %v5193 = vshrl.u32 %v5192, 7
    %v5194 = vsub.s32 0, %v5193
    %v5195 = vrot.slane %v5189, %v5194
    %v5228 = vunpack.c.l.b16 %v5157
    %v5229 = vunpack.c.l.b16 %v5158
    %v5230 = vunpack.c.l.b16 %v5159
    %v5231 = vunpack.c.l.b16 %v5160
    %v5232 = vunpack.c.l.b16 %v5161
    %v5233 = vunpack.c.l.b16 %v5162
    %v5234 = vunpack.c.l.b16 %v5163
    %v5235 = vunpack.c.l.b16 %v5164
    %v5236 = vunpack.c.l.b16 %v5165
    %v5237 = vunpack.c.l.b16 %v5166
    %v5238 = vunpack.c.l.b16 %v5167
    %v5239 = vunpack.c.l.b16 %v5168
    %v5240 = vunpack.c.l.b16 %v5169
    %v5241 = vunpack.c.l.b16 %v5170
    %v5242 = vunpack.c.l.b16 %v5171
    %v5243 = vunpack.c.l.b16 %v5172
    %v5244 = vunpack.c.l.b16 %v5173
    %v5245 = vunpack.c.l.b16 %v5174
    %v5246 = vunpack.c.l.b16 %v5175
    %v5247 = vunpack.c.l.b16 %v5176
    %v5248 = vunpack.c.l.b16 %v5177
    %v5249 = vunpack.c.l.b16 %v5178
    %v5250 = vunpack.c.l.b16 %v5179
    %v5251 = vunpack.c.l.b16 %v5180
    %v5252 = vunpack.c.l.b16 %v5181
    %v5253 = vunpack.c.l.b16 %v5182
    %v5254 = vunpack.c.l.b16 %v5183
    %v5255 = vunpack.c.l.b16 %v5184
    %v5256 = vunpack.c.l.b16 %v5185
    %v5257 = vunpack.c.l.b16 %v5186
    %v5258 = vunpack.c.l.b16 %v5187
    %v5259 = vunpack.c.l.b16 %v5188
    %v5260 = vpack.c.b16 %v5229, %v5228
    %v5261 = vpack.c.b16 %v5231, %v5230
    %v5262 = vpack.c.b16 %v5233, %v5232
    %v5263 = vpack.c.b16 %v5235, %v5234
    %v5264 = vpack.c.b16 %v5237, %v5236
    %v5265 = vpack.c.b16 %v5239, %v5238
    %v5266 = vpack.c.b16 %v5241, %v5240
    %v5267 = vpack.c.b16 %v5243, %v5242
    %v5268 = vpack.c.b16 %v5245, %v5244
    %v5269 = vpack.c.b16 %v5247, %v5246
    %v5270 = vpack.c.b16 %v5249, %v5248
    %v5271 = vpack.c.b16 %v5251, %v5250
    %v5272 = vpack.c.b16 %v5253, %v5252
    %v5273 = vpack.c.b16 %v5255, %v5254
    %v5274 = vpack.c.b16 %v5257, %v5256
    %v5275 = vpack.c.b16 %v5259, %v5258
    %5292 = vmatprep.subr.bf16.mxu0 0
    %5293 = vmatpush1.bf16.msra.mxu0 %v5267
    %5294 = vmatprep.subr.bf16.mxu0 0
    %5295 = vmatpush1.bf16.msra.mxu0 %v5266
    %5296 = vmatprep.subr.bf16.mxu0 0
    %5297 = vmatpush1.bf16.msra.mxu0 %v5265
    %5298 = vmatprep.subr.bf16.mxu0 0
    %5299 = vmatpush1.bf16.msra.mxu0 %v5264
    %5300 = vmatprep.subr.bf16.mxu0 0
    %5301 = vmatpush1.bf16.msra.mxu0 %v5263
    %5302 = vmatprep.subr.bf16.mxu0 0
    %5303 = vmatpush1.bf16.msra.mxu0 %v5262
    %5304 = vmatprep.subr.bf16.mxu0 0
    %5305 = vmatpush1.bf16.msra.mxu0 %v5261
    %5306 = vmatprep.subr.bf16.mxu0 0
    %5307 = vmatpush1.bf16.msra.mxu0 %v5260
    %5308 = vmatprep.subr.bf16.mxu0 0
    %5309 = vmatpush2.bf16.msra.mxu0 %v5275
    %5310 = vmatprep.subr.bf16.mxu0 0
    %5311 = vmatpush2.bf16.msra.mxu0 %v5274
    %5312 = vmatprep.subr.bf16.mxu0 0
    %5313 = vmatpush2.bf16.msra.mxu0 %v5273
    %5314 = vmatprep.subr.bf16.mxu0 0
    %5315 = vmatpush2.bf16.msra.mxu0 %v5272
    %5316 = vmatprep.subr.bf16.mxu0 0
    %5317 = vmatpush2.bf16.msra.mxu0 %v5271
    %5318 = vmatprep.subr.bf16.mxu0 0
    %5319 = vmatpush2.bf16.msra.mxu0 %v5270
    %5320 = vmatprep.subr.bf16.mxu0 0
    %5321 = vmatpush2.bf16.msra.mxu0 %v5269
    %5322 = vmatprep.subr.bf16.mxu0 0
    %5323 = vmatpush2.bf16.msra.mxu0 %v5268
    %5324 = vmatprep.mubr.bf16.mxu0 %v5156
    %5325 = vmatmul.mubr.bf16.gmra.mxu0 %v5155
    %v5326 = vpop.f32.mrf.mxu0
    %v5327 = vadd.f32 %v5195, %v5326
    %v5328 = vpop.f32.mrf.mxu0
    %v5329 = vpop.f32.mrf.mxu0
    %v5330 = vpop.f32.mrf.mxu0
    %5331 = vdwg.mxu0
    %vm5332 = vcmask 254976
    %v5333 = vsel %vm5332, %v5327, 0.0
    %v5334 = vrot.slane %v5333, 4
    %v5335 = vadd.f32 %v5333, %v5334
    %v5336 = vrot.slane %v5335, 2
    %v5337 = vadd.f32 %v5335, %v5336
    %v5338 = vrot.slane %v5337, 1
    %v5339 = vadd.f32 %v5337, %v5338
    %v5340 = vmul.f32 %v5327, %v5327
    %v5341 = vsel %vm5332, %v5340, 0.0
    %v5342 = vrot.slane %v5341, 4
    %v5343 = vadd.f32 %v5341, %v5342
    %v5344 = vrot.slane %v5343, 2
    %v5345 = vadd.f32 %v5343, %v5344
    %v5346 = vrot.slane %v5345, 1
    %v5347 = vadd.f32 %v5345, %v5346
    %v5348 = vsel %vm3086, %v5339, %v5347
    %v5349 = vmul.f32 %v5348, 0.5
    %v5350 = vmul.f32 %v5349, %v5349
    %v5352 = vrot.slane %v5350, 7
    %v5354 = vsub.f32 %v5349, %v5352
    %v5355 = vmax.f32 %v5354, 0.0
    %v5356 = vadd.f32 %v5355, 1e-05
    %v5357 = vrsqrt.pop %v5356
    %v5358 = vsel %vm3086, %v5349, %v5357
    %v5360 = vrot.slane %v5358, 1
    %v5362 = vmul.f32 %v5190, %v5360
    %v5363 = vmul.f32 %v5358, %v5362
    %v5364 = vsub.f32 %v5191, %v5363
    %v5365 = vlaneseq
    %v5366 = vshrl.u32 %v5365, 7
    %v5367 = vsub.s32 0, %v5366
    %v5368 = vrot.slane %v5362, %v5367
    %v5369 = vmul.f32 %v5327, %v5368
    %v5370 = vlaneseq
    %v5371 = vshrl.u32 %v5370, 7
    %v5372 = vsub.s32 0, %v5371
    %v5373 = vrot.slane %v5364, %v5372
    %v5374 = vadd.f32 %v5369, %v5373
    %v5375 = vmax.f32 %v5374, 0.0
    %5376 = vst.msk [vmem:[%s23] sm:$0x3] %vm5332, %v5375
    %v5377 = vpack.c.bf16 %v5375, %v5375
    %v5378 = vld [vmem:[%s7] sm:$0xf]
    %v5379 = vld [vmem:[%s7 + $0x4] sm:$0xf]
    %v5380 = vld [vmem:[%s7 + $0x8] sm:$0xf]
    %v5381 = vld [vmem:[%s7 + $0xc] sm:$0xf]
    %v5382 = vld [vmem:[%s8] sm:$0x1]
    %v5384 = vlaneseq
    %v5385 = vshrl.u32 %v5384, 7
    %v5386 = vsub.s32 0, %v5385
    %v5387 = vrot.slane %v5382, %v5386
    %v5393 = vunpack.c.l.b16 %v5378
    %v5394 = vunpack.c.l.b16 %v5379
    %v5395 = vunpack.c.l.b16 %v5380
    %v5396 = vunpack.c.l.b16 %v5381
    %v5397 = vpack.c.b16 %v5394, %v5393
    %v5398 = vpack.c.b16 %v5396, %v5395
    %vm5401 = vcmask 261120
    %v5403 = vsel %vm5401, %v5377, 0
    %5405 = vmatprep.subr.bf16.mxu0 0
    %5406 = vmatpush1.bf16.msra.mxu0 0
    %5407 = vmatprep.subr.bf16.mxu0 0
    %5408 = vmatpush1.bf16.msra.mxu0 0
    %5409 = vmatprep.subr.bf16.mxu0 0
    %5410 = vmatpush1.bf16.msra.mxu0 0
    %5411 = vmatprep.subr.bf16.mxu0 0
    %5412 = vmatpush1.bf16.msra.mxu0 0
    %5413 = vmatprep.subr.bf16.mxu0 0
    %5414 = vmatpush1.bf16.msra.mxu0 0
    %5415 = vmatprep.subr.bf16.mxu0 0
    %5416 = vmatpush1.bf16.msra.mxu0 0
    %5417 = vmatprep.subr.bf16.mxu0 0
    %5418 = vmatpush1.bf16.msra.mxu0 %v5398
    %5419 = vmatprep.subr.bf16.mxu0 0
    %5420 = vmatpush1.bf16.msra.mxu0 %v5397
    %5421 = vmatprep.subr.bf16.mxu0 0
    %5422 = vmatpush2.bf16.msra.mxu0 0
    %5423 = vmatprep.subr.bf16.mxu0 0
    %5424 = vmatpush2.bf16.msra.mxu0 0
    %5425 = vmatprep.subr.bf16.mxu0 0
    %5426 = vmatpush2.bf16.msra.mxu0 0
    %5427 = vmatprep.subr.bf16.mxu0 0
    %5428 = vmatpush2.bf16.msra.mxu0 0
    %5429 = vmatprep.subr.bf16.mxu0 0
    %5430 = vmatpush2.bf16.msra.mxu0 0
    %5431 = vmatprep.subr.bf16.mxu0 0
    %5432 = vmatpush2.bf16.msra.mxu0 0
    %5433 = vmatprep.subr.bf16.mxu0 0
    %5434 = vmatpush2.bf16.msra.mxu0 0
    %5435 = vmatprep.subr.bf16.mxu0 0
    %5436 = vmatpush2.bf16.msra.mxu0 0
    %5437 = vmatprep.mubr.bf16.mxu0 0
    %5438 = vmatmul.mubr.bf16.gmra.mxu0 %v5403
    %v5439 = vpop.f32.mrf.mxu0
    %v5440 = vadd.f32 %v5387, %v5439
    %v5441 = vpop.f32.mrf.mxu0
    %v5442 = vpop.f32.mrf.mxu0
    %v5443 = vpop.f32.mrf.mxu0
    %5444 = vdwg.mxu0
    %v5445 = vmax.f32 %v5440, 0.0
    %v5446 = vpack.c.bf16 %v5445, %v5445
    %v5447 = vld [vmem:[%s9] sm:$0xf]
    %v5448 = vld [vmem:[%s9 + $0x4] sm:$0xf]
    %v5449 = vld [vmem:[%s9 + $0x8] sm:$0x3]
    %v5450 = vld [vmem:[%s10] sm:$0x1]
    %v5452 = vlaneseq
    %v5453 = vshrl.u32 %v5452, 7
    %v5454 = vsub.s32 0, %v5453
    %v5455 = vrot.slane %v5450, %v5454
    %v5460 = vunpack.c.l.b16 %v5447
    %v5461 = vunpack.c.l.b16 %v5448
    %v5462 = vunpack.c.l.b16 %v5449
    %v5463 = vpack.c.b16 %v5461, %v5460
    %v5464 = vpack.c.b16 %v5462, %v5462
    %vm5466 = vcmask 162816
    %v5468 = vsel %vm5466, %v5446, 0
    %v5471 = vsel %vm2979, %v5464, 0
    %5473 = vmatprep.subr.bf16.mxu0 0
    %5474 = vmatpush1.bf16.msra.mxu0 0
    %5475 = vmatprep.subr.bf16.mxu0 0
    %5476 = vmatpush1.bf16.msra.mxu0 0
    %5477 = vmatprep.subr.bf16.mxu0 0
    %5478 = vmatpush1.bf16.msra.mxu0 0
    %5479 = vmatprep.subr.bf16.mxu0 0
    %5480 = vmatpush1.bf16.msra.mxu0 0
    %5481 = vmatprep.subr.bf16.mxu0 0
    %5482 = vmatpush1.bf16.msra.mxu0 0
    %5483 = vmatprep.subr.bf16.mxu0 0
    %5484 = vmatpush1.bf16.msra.mxu0 0
    %5485 = vmatprep.subr.bf16.mxu0 0
    %5486 = vmatpush1.bf16.msra.mxu0 %v5471
    %5487 = vmatprep.subr.bf16.mxu0 0
    %5488 = vmatpush1.bf16.msra.mxu0 %v5463
    %5489 = vmatprep.subr.bf16.mxu0 0
    %5490 = vmatpush2.bf16.msra.mxu0 0
    %5491 = vmatprep.subr.bf16.mxu0 0
    %5492 = vmatpush2.bf16.msra.mxu0 0
    %5493 = vmatprep.subr.bf16.mxu0 0
    %5494 = vmatpush2.bf16.msra.mxu0 0
    %5495 = vmatprep.subr.bf16.mxu0 0
    %5496 = vmatpush2.bf16.msra.mxu0 0
    %5497 = vmatprep.subr.bf16.mxu0 0
    %5498 = vmatpush2.bf16.msra.mxu0 0
    %5499 = vmatprep.subr.bf16.mxu0 0
    %5500 = vmatpush2.bf16.msra.mxu0 0
    %5501 = vmatprep.subr.bf16.mxu0 0
    %5502 = vmatpush2.bf16.msra.mxu0 0
    %5503 = vmatprep.subr.bf16.mxu0 0
    %5504 = vmatpush2.bf16.msra.mxu0 0
    %5505 = vmatprep.mubr.bf16.mxu0 0
    %5506 = vmatmul.mubr.bf16.gmra.mxu0 %v5468
    %v5507 = vpop.f32.mrf.mxu0
    %v5508 = vadd.f32 %v5455, %v5507
    %v5509 = vpop.f32.mrf.mxu0
    %v5510 = vpop.f32.mrf.mxu0
    %v5511 = vpop.f32.mrf.mxu0
    %5512 = vdwg.mxu0
    %vm5513 = vcmask 74752
    %5514 = vst.msk [vmem:[#allocation3] sm:$0x3] %vm5513, %v5508
    %v5515 = vmax.f32 %v5375, 0.0
    %v5516 = vpack.c.bf16 %v5515, %v5515
    %v5517 = vld [vmem:[%s11] sm:$0xff]
    %v5518 = vld [vmem:[%s11 + $0x8] sm:$0xff]
    %v5519 = vld [vmem:[%s11 + $0x10] sm:$0xff]
    %v5520 = vld [vmem:[%s11 + $0x18] sm:$0xff]
    %v5521 = vld [vmem:[%s12] ss:$4 sm:$0x3]
    %s5522 = scalar_lea.vmem %s12, 1
    %v5523 = vld [vmem:[%s5522] ss:$4 sm:$0x3]
    %s5524 = scalar_lea.vmem %s12, 2
    %v5525 = vld [vmem:[%s5524] ss:$4 sm:$0x3]
    %v5527 = vlaneseq
    %v5528 = vshrl.u32 %v5527, 7
    %v5529 = vsub.s32 0, %v5528
    %v5530 = vrot.slane %v5521, %v5529
    %v5531 = vlaneseq
    %v5532 = vshrl.u32 %v5531, 7
    %v5533 = vsub.s32 1, %v5532
    %v5534 = vrot.slane %v5521, %v5533
    %v5541 = vunpack.c.l.b16 %v5517
    %v5542 = vunpack.c.h.b16 %v5517
    %v5543 = vunpack.c.l.b16 %v5518
    %v5544 = vunpack.c.h.b16 %v5518
    %v5545 = vunpack.c.l.b16 %v5519
    %v5546 = vunpack.c.h.b16 %v5519
    %v5547 = vunpack.c.l.b16 %v5520
    %v5548 = vunpack.c.h.b16 %v5520
    %v5549 = vpack.c.b16 %v5543, %v5541
    %v5550 = vpack.c.b16 %v5544, %v5542
    %v5551 = vpack.c.b16 %v5547, %v5545
    %v5552 = vpack.c.b16 %v5548, %v5546
    %v5558 = vsel %vm5401, %v5516, 0
    %5560 = vmatprep.subr.bf16.mxu0 0
    %5561 = vmatpush1.bf16.msra.mxu0 0
    %5562 = vmatprep.subr.bf16.mxu0 0
    %5563 = vmatpush1.bf16.msra.mxu0 0
    %5564 = vmatprep.subr.bf16.mxu0 0
    %5565 = vmatpush1.bf16.msra.mxu0 0
    %5566 = vmatprep.subr.bf16.mxu0 0
    %5567 = vmatpush1.bf16.msra.mxu0 0
    %5568 = vmatprep.subr.bf16.mxu0 0
    %5569 = vmatpush1.bf16.msra.mxu0 0
    %5570 = vmatprep.subr.bf16.mxu0 0
    %5571 = vmatpush1.bf16.msra.mxu0 0
    %5572 = vmatprep.subr.bf16.mxu0 %v5552
    %5573 = vmatpush1.bf16.msra.mxu0 %v5551
    %5574 = vmatprep.subr.bf16.mxu0 %v5550
    %5575 = vmatpush1.bf16.msra.mxu0 %v5549
    %5576 = vmatprep.subr.bf16.mxu0 0
    %5577 = vmatpush2.bf16.msra.mxu0 0
    %5578 = vmatprep.subr.bf16.mxu0 0
    %5579 = vmatpush2.bf16.msra.mxu0 0
    %5580 = vmatprep.subr.bf16.mxu0 0
    %5581 = vmatpush2.bf16.msra.mxu0 0
    %5582 = vmatprep.subr.bf16.mxu0 0
    %5583 = vmatpush2.bf16.msra.mxu0 0
    %5584 = vmatprep.subr.bf16.mxu0 0
    %5585 = vmatpush2.bf16.msra.mxu0 0
    %5586 = vmatprep.subr.bf16.mxu0 0
    %5587 = vmatpush2.bf16.msra.mxu0 0
    %5588 = vmatprep.subr.bf16.mxu0 0
    %5589 = vmatpush2.bf16.msra.mxu0 0
    %5590 = vmatprep.subr.bf16.mxu0 0
    %5591 = vmatpush2.bf16.msra.mxu0 0
    %5592 = vmatprep.mubr.bf16.mxu0 0
    %5593 = vmatmul.mubr.bf16.gmra.mxu0 %v5558
    %v5594 = vpop.f32.mrf.mxu0
    %v5595 = vadd.f32 %v5530, %v5594
    %v5596 = vpop.f32.mrf.mxu0
    %v5597 = vadd.f32 %v5534, %v5596
    %v5598 = vpop.f32.mrf.mxu0
    %v5599 = vpop.f32.mrf.mxu0
    %5600 = vdwg.mxu0
    %v5601 = vsel %vm2979, %v5595, 0.0
    %v5602 = vrot.slane %v5601, 4
    %v5603 = vadd.f32 %v5601, %v5602
    %v5604 = vrot.slane %v5603, 2
    %v5605 = vadd.f32 %v5603, %v5604
    %v5606 = vrot.slane %v5605, 1
    %v5607 = vadd.f32 %v5605, %v5606
    %v5608 = vsel %vm2979, %v5597, 0.0
    %v5609 = vrot.slane %v5608, 4
    %v5610 = vadd.f32 %v5608, %v5609
    %v5611 = vrot.slane %v5610, 2
    %v5612 = vadd.f32 %v5610, %v5611
    %v5613 = vrot.slane %v5612, 1
    %v5614 = vadd.f32 %v5612, %v5613
    %v5615 = vmul.f32 %v5595, %v5595
    %v5616 = vmul.f32 %v5597, %v5597
    %v5617 = vsel %vm2979, %v5615, 0.0
    %v5618 = vrot.slane %v5617, 4
    %v5619 = vadd.f32 %v5617, %v5618
    %v5620 = vrot.slane %v5619, 2
    %v5621 = vadd.f32 %v5619, %v5620
    %v5622 = vrot.slane %v5621, 1
    %v5623 = vadd.f32 %v5621, %v5622
    %v5624 = vsel %vm2979, %v5616, 0.0
    %v5625 = vrot.slane %v5624, 4
    %v5626 = vadd.f32 %v5624, %v5625
    %v5627 = vrot.slane %v5626, 2
    %v5628 = vadd.f32 %v5626, %v5627
    %v5629 = vrot.slane %v5628, 1
    %v5630 = vadd.f32 %v5628, %v5629
    %v5631 = vsel %vm3086, %v5607, %v5623
    %v5632 = vsel %vm3086, %v5614, %v5630
    %v5633 = vld [vmem:[%s19] sm:$0xff]
    %v5634 = vld [vmem:[%s19 + $0x8] sm:$0xff]
    %v5635 = vld [vmem:[%s19 + $0x10] sm:$0xff]
    %v5636 = vld [vmem:[%s19 + $0x18] sm:$0xff]
    %v5637 = vld [vmem:[%s19 + $0x20] sm:$0xff]
    %v5638 = vld [vmem:[%s19 + $0x28] sm:$0xff]
    %v5639 = vld [vmem:[%s19 + $0x30] sm:$0xff]
    %v5640 = vld [vmem:[%s19 + $0x38] sm:$0xff]
    %v5641 = vld [vmem:[%s19 + $0x40] sm:$0xff]
    %v5642 = vld [vmem:[%s19 + $0x48] sm:$0xff]
    %v5643 = vld [vmem:[%s19 + $0x50] sm:$0xff]
    %v5644 = vld [vmem:[%s19 + $0x58] sm:$0xff]
    %v5645 = vld [vmem:[%s19 + $0x60] sm:$0xff]
    %v5646 = vld [vmem:[%s19 + $0x68] sm:$0xff]
    %v5647 = vld [vmem:[%s19 + $0x70] sm:$0xff]
    %v5648 = vld [vmem:[%s19 + $0x78] sm:$0xff]
    %v5649 = vld [vmem:[%s19 + $0x80] sm:$0xff]
    %v5650 = vld [vmem:[%s19 + $0x88] sm:$0xff]
    %v5651 = vld [vmem:[%s19 + $0x90] sm:$0xff]
    %v5652 = vld [vmem:[%s19 + $0x98] sm:$0xff]
    %v5653 = vld [vmem:[%s19 + $0xa0] sm:$0xff]
    %v5654 = vld [vmem:[%s19 + $0xa8] sm:$0xff]
    %v5655 = vld [vmem:[%s19 + $0xb0] sm:$0xff]
    %v5656 = vld [vmem:[%s19 + $0xb8] sm:$0xff]
    %v5657 = vld [vmem:[%s19 + $0xc0] sm:$0xff]
    %v5658 = vld [vmem:[%s19 + $0xc8] sm:$0xff]
    %v5659 = vld [vmem:[%s19 + $0xd0] sm:$0xff]
    %v5660 = vld [vmem:[%s19 + $0xd8] sm:$0xff]
    %v5661 = vld [vmem:[%s19 + $0xe0] sm:$0xff]
    %v5662 = vld [vmem:[%s19 + $0xe8] sm:$0xff]
    %v5663 = vld [vmem:[%s19 + $0xf0] sm:$0xff]
    %v5664 = vld [vmem:[%s19 + $0xf8] sm:$0xff]
    %5665 = vmatprep.subr.mxu0 0.0
    %5666 = vmatpush1.msra.mxu0 %v5648
    %5667 = vmatprep.subr.mxu0 0.0
    %5668 = vmatpush1.msra.mxu0 %v5647
    %5669 = vmatprep.subr.mxu0 0.0
    %5670 = vmatpush1.msra.mxu0 %v5646
    %5671 = vmatprep.subr.mxu0 0.0
    %5672 = vmatpush1.msra.mxu0 %v5645
    %5673 = vmatprep.subr.mxu0 0.0
    %5674 = vmatpush1.msra.mxu0 %v5644
    %5675 = vmatprep.subr.mxu0 0.0
    %5676 = vmatpush1.msra.mxu0 %v5643
    %5677 = vmatprep.subr.mxu0 0.0
    %5678 = vmatpush1.msra.mxu0 %v5642
    %5679 = vmatprep.subr.mxu0 0.0
    %5680 = vmatpush1.msra.mxu0 %v5641
    %5681 = vmatprep.subr.mxu0 0.0
    %5682 = vmatpush1.msra.mxu0 %v5640
    %5683 = vmatprep.subr.mxu0 0.0
    %5684 = vmatpush1.msra.mxu0 %v5639
    %5685 = vmatprep.subr.mxu0 0.0
    %5686 = vmatpush1.msra.mxu0 %v5638
    %5687 = vmatprep.subr.mxu0 0.0
    %5688 = vmatpush1.msra.mxu0 %v5637
    %5689 = vmatprep.subr.mxu0 0.0
    %5690 = vmatpush1.msra.mxu0 %v5636
    %5691 = vmatprep.subr.mxu0 0.0
    %5692 = vmatpush1.msra.mxu0 %v5635
    %5693 = vmatprep.subr.mxu0 0.0
    %5694 = vmatpush1.msra.mxu0 %v5634
    %5695 = vmatprep.subr.mxu0 0.0
    %5696 = vmatpush1.msra.mxu0 %v5633
    %5697 = vmatprep.subr.mxu0 0.0
    %5698 = vmatpush2.msra.mxu0 %v5664
    %5699 = vmatprep.subr.mxu0 0.0
    %5700 = vmatpush2.msra.mxu0 %v5663
    %5701 = vmatprep.subr.mxu0 0.0
    %5702 = vmatpush2.msra.mxu0 %v5662
    %5703 = vmatprep.subr.mxu0 0.0
    %5704 = vmatpush2.msra.mxu0 %v5661
    %5705 = vmatprep.subr.mxu0 0.0
    %5706 = vmatpush2.msra.mxu0 %v5660
    %5707 = vmatprep.subr.mxu0 0.0
    %5708 = vmatpush2.msra.mxu0 %v5659
    %5709 = vmatprep.subr.mxu0 0.0
    %5710 = vmatpush2.msra.mxu0 %v5658
    %5711 = vmatprep.subr.mxu0 0.0
    %5712 = vmatpush2.msra.mxu0 %v5657
    %5713 = vmatprep.subr.mxu0 0.0
    %5714 = vmatpush2.msra.mxu0 %v5656
    %5715 = vmatprep.subr.mxu0 0.0
    %5716 = vmatpush2.msra.mxu0 %v5655
    %5717 = vmatprep.subr.mxu0 0.0
    %5718 = vmatpush2.msra.mxu0 %v5654
    %5719 = vmatprep.subr.mxu0 0.0
    %5720 = vmatpush2.msra.mxu0 %v5653
    %5721 = vmatprep.subr.mxu0 0.0
    %5722 = vmatpush2.msra.mxu0 %v5652
    %5723 = vmatprep.subr.mxu0 0.0
    %5724 = vmatpush2.msra.mxu0 %v5651
    %5725 = vmatprep.subr.mxu0 0.0
    %5726 = vmatpush2.msra.mxu0 %v5650
    %5727 = vmatprep.subr.mxu0 0.0
    %5728 = vmatpush2.msra.mxu0 %v5649
    %5729 = vmatprep.mubr.f32.mxu0 %v5632
    %5730 = vmatmul.mubr.f32.gmra.mxu0 %v5631
    %v5731 = vpop.f32.mrf.mxu0
    %v5732 = vadd.f32 0.0, %v5731
    %v5733 = vpop.f32.mrf.mxu0
    %5734 = vdwg.mxu0
    %v5735 = vmul.f32 %v5732, 0.03125
    %v5736 = vmul.f32 %v5735, %v5735
    %v5738 = vrot.slane %v5736, 7
    %v5740 = vsub.f32 %v5735, %v5738
    %v5741 = vmax.f32 %v5740, 0.0
    %v5742 = vadd.f32 %v5741, 1e-05
    %v5743 = vrsqrt.pop %v5742
    %v5744 = vsel %vm3086, %v5735, %v5743
    %v5745 = vld [vmem:[%s20] sm:$0xff]
    %v5746 = vld [vmem:[%s20 + $0x8] sm:$0xff]
    %v5747 = vld [vmem:[%s20 + $0x10] sm:$0xff]
    %v5748 = vld [vmem:[%s20 + $0x18] sm:$0xff]
    %v5750 = vsel %vm2323, %v5744, 0
    %5752 = vmatprep.subr.mxu0 0.0
    %5753 = vmatpush1.msra.mxu0 0.0
    %5754 = vmatprep.subr.mxu0 0.0
    %5755 = vmatpush1.msra.mxu0 0.0
    %5756 = vmatprep.subr.mxu0 0.0
    %5757 = vmatpush1.msra.mxu0 0.0
    %5758 = vmatprep.subr.mxu0 0.0
    %5759 = vmatpush1.msra.mxu0 0.0
    %5760 = vmatprep.subr.mxu0 0.0
    %5761 = vmatpush1.msra.mxu0 0.0
    %5762 = vmatprep.subr.mxu0 0.0
    %5763 = vmatpush1.msra.mxu0 0.0
    %5764 = vmatprep.subr.mxu0 0.0
    %5765 = vmatpush1.msra.mxu0 0.0
    %5766 = vmatprep.subr.mxu0 0.0
    %5767 = vmatpush1.msra.mxu0 0.0
    %5768 = vmatprep.subr.mxu0 0.0
    %5769 = vmatpush1.msra.mxu0 0.0
    %5770 = vmatprep.subr.mxu0 0.0
    %5771 = vmatpush1.msra.mxu0 0.0
    %5772 = vmatprep.subr.mxu0 0.0
    %5773 = vmatpush1.msra.mxu0 0.0
    %5774 = vmatprep.subr.mxu0 0.0
    %5775 = vmatpush1.msra.mxu0 0.0
    %5776 = vmatprep.subr.mxu0 0.0
    %5777 = vmatpush1.msra.mxu0 0.0
    %5778 = vmatprep.subr.mxu0 0.0
    %5779 = vmatpush1.msra.mxu0 0.0
    %5780 = vmatprep.subr.mxu0 %v5748
    %5781 = vmatpush1.msra.mxu0 %v5747
    %5782 = vmatprep.subr.mxu0 %v5746
    %5783 = vmatpush1.msra.mxu0 %v5745
    %5784 = vmatprep.subr.mxu0 0.0
    %5785 = vmatpush2.msra.mxu0 0.0
    %5786 = vmatprep.subr.mxu0 0.0
    %5787 = vmatpush2.msra.mxu0 0.0
    %5788 = vmatprep.subr.mxu0 0.0
    %5789 = vmatpush2.msra.mxu0 0.0
    %5790 = vmatprep.subr.mxu0 0.0
    %5791 = vmatpush2.msra.mxu0 0.0
    %5792 = vmatprep.subr.mxu0 0.0
    %5793 = vmatpush2.msra.mxu0 0.0
    %5794 = vmatprep.subr.mxu0 0.0
    %5795 = vmatpush2.msra.mxu0 0.0
    %5796 = vmatprep.subr.mxu0 0.0
    %5797 = vmatpush2.msra.mxu0 0.0
    %5798 = vmatprep.subr.mxu0 0.0
    %5799 = vmatpush2.msra.mxu0 0.0
    %5800 = vmatprep.subr.mxu0 0.0
    %5801 = vmatpush2.msra.mxu0 0.0
    %5802 = vmatprep.subr.mxu0 0.0
    %5803 = vmatpush2.msra.mxu0 0.0
    %5804 = vmatprep.subr.mxu0 0.0
    %5805 = vmatpush2.msra.mxu0 0.0
    %5806 = vmatprep.subr.mxu0 0.0
    %5807 = vmatpush2.msra.mxu0 0.0
    %5808 = vmatprep.subr.mxu0 0.0
    %5809 = vmatpush2.msra.mxu0 0.0
    %5810 = vmatprep.subr.mxu0 0.0
    %5811 = vmatpush2.msra.mxu0 0.0
    %5812 = vmatprep.subr.mxu0 0.0
    %5813 = vmatpush2.msra.mxu0 0.0
    %5814 = vmatprep.subr.mxu0 0.0
    %5815 = vmatpush2.msra.mxu0 0.0
    %5816 = vmatprep.mubr.f32.mxu0 0.0
    %5817 = vmatmul.mubr.f32.gmra.mxu0 %v5750
    %v5818 = vpop.f32.mrf.mxu0
    %v5819 = vadd.f32 0.0, %v5818
    %v5820 = vpop.f32.mrf.mxu0
    %v5821 = vadd.f32 0.0, %v5820
    %5822 = vdwg.mxu0
    %v5825 = vcombine.low %v5819, %v5821
    %v5827 = vunpack.c.l.s4 1966171168
    %v5828 = vunpack.c.0.s8 %v5827
    %v5829 = vlaneseq
    %v5830 = vshrl.u32 %v5829, 7
    %v5831 = vsub.s32 %v5828, %v5830
    %v5832 = vrot.slane %v5825, %v5831
    %v5833 = vcombine.high %v5832, %v5832
    %v5835 = vunpack.c.l.s4 1966171168
    %v5836 = vunpack.c.0.s8 %v5835
    %v5837 = vlaneseq
    %v5838 = vshrl.u32 %v5837, 7
    %v5839 = vsub.s32 %v5836, %v5838
    %v5840 = vrot.slane %v5833, %v5839
    %v5842 = vmul.f32 %v5523, %v5840
    %v5844 = vlaneseq
    %v5845 = vshrl.u32 %v5844, 7
    %v5846 = vsub.s32 0, %v5845
    %v5847 = vrot.slane %v5842, %v5846
    %v5848 = vlaneseq
    %v5849 = vshrl.u32 %v5848, 7
    %v5850 = vsub.s32 1, %v5849
    %v5851 = vrot.slane %v5842, %v5850
    %v5854 = vmul.f32 %v5819, %v5847
    %v5855 = vmul.f32 %v5821, %v5851
    %v5858 = vcombine.low %v5854, %v5855
    %v5860 = vunpack.c.l.s4 1966171168
    %v5861 = vunpack.c.0.s8 %v5860
    %v5862 = vlaneseq
    %v5863 = vshrl.u32 %v5862, 7
    %v5864 = vsub.s32 %v5861, %v5863
    %v5865 = vrot.slane %v5858, %v5864
    %v5867 = vunpack.c.l.s4 1966171168
    %v5868 = vunpack.c.0.s8 %v5867
    %v5869 = vlaneseq
    %v5870 = vshrl.u32 %v5869, 7
    %v5871 = vsub.s32 %v5868, %v5870
    %v5872 = vrot.slane %v5865, %v5871
    %v5874 = vsub.f32 %v5525, %v5872
    %v5875 = vmul.f32 %v5595, %v5847
    %v5876 = vmul.f32 %v5597, %v5851
    %v5878 = vlaneseq
    %v5879 = vshrl.u32 %v5878, 7
    %v5880 = vsub.s32 0, %v5879
    %v5881 = vrot.slane %v5874, %v5880
    %v5882 = vlaneseq
    %v5883 = vshrl.u32 %v5882, 7
    %v5884 = vsub.s32 1, %v5883
    %v5885 = vrot.slane %v5874, %v5884
    %v5888 = vadd.f32 %v5875, %v5881
    %v5889 = vadd.f32 %v5876, %v5885
    %v5890 = vmax.f32 %v5888, 0.0
    %v5891 = vmax.f32 %v5889, 0.0
    %v5892 = vpack.c.bf16 %v5890, %v5890
    %v5893 = vpack.c.bf16 %v5891, %v5891
    %v5894 = vld [vmem:[%s13] sm:$0xff]
    %v5895 = vld [vmem:[%s13 + $0x8] sm:$0xff]
    %v5896 = vld [vmem:[%s13 + $0x10] sm:$0xff]
    %v5897 = vld [vmem:[%s13 + $0x18] sm:$0xf]
    %v5898 = vld [vmem:[%s13 + $0x1c] sm:$0xff]
    %v5899 = vld [vmem:[%s13 + $0x24] sm:$0xff]
    %v5900 = vld [vmem:[%s13 + $0x2c] sm:$0xff]
    %v5901 = vld [vmem:[%s13 + $0x34] sm:$0xf]
    %v5902 = vld [vmem:[%s13 + $0x38] sm:$0xff]
    %v5903 = vld [vmem:[%s13 + $0x40] sm:$0xff]
    %v5904 = vld [vmem:[%s13 + $0x48] sm:$0xff]
    %v5905 = vld [vmem:[%s13 + $0x50] sm:$0xf]
    %v5906 = vld [vmem:[%s13 + $0x54] sm:$0xff]
    %v5907 = vld [vmem:[%s13 + $0x5c] sm:$0xff]
    %v5908 = vld [vmem:[%s13 + $0x64] sm:$0xff]
    %v5909 = vld [vmem:[%s13 + $0x6c] sm:$0xf]
    %v5910 = vld [vmem:[%s13 + $0x70] sm:$0xff]
    %v5911 = vld [vmem:[%s13 + $0x78] sm:$0xff]
    %v5912 = vld [vmem:[%s13 + $0x80] sm:$0xff]
    %v5913 = vld [vmem:[%s13 + $0x88] sm:$0xf]
    %v5914 = vld [vmem:[%s13 + $0x8c] sm:$0xff]
    %v5915 = vld [vmem:[%s13 + $0x94] sm:$0xff]
    %v5916 = vld [vmem:[%s13 + $0x9c] sm:$0xff]
    %v5917 = vld [vmem:[%s13 + $0xa4] sm:$0xf]
    %v5918 = vld [vmem:[%s13 + $0xa8] sm:$0xff]
    %v5919 = vld [vmem:[%s13 + $0xb0] sm:$0xff]
    %v5920 = vld [vmem:[%s13 + $0xb8] sm:$0xff]
    %v5921 = vld [vmem:[%s13 + $0xc0] sm:$0xf]
    %v5922 = vld [vmem:[%s13 + $0xc4] sm:$0xff]
    %v5923 = vld [vmem:[%s13 + $0xcc] sm:$0xff]
    %v5924 = vld [vmem:[%s13 + $0xd4] sm:$0xff]
    %v5925 = vld [vmem:[%s13 + $0xdc] sm:$0xf]
    %v5926 = vld [vmem:[%s13 + $0xe0] sm:$0xff]
    %v5927 = vld [vmem:[%s13 + $0xe8] sm:$0xff]
    %v5928 = vld [vmem:[%s13 + $0xf0] sm:$0xff]
    %v5929 = vld [vmem:[%s13 + $0xf8] sm:$0xf]
    %v5930 = vld [vmem:[%s13 + $0xfc] sm:$0xff]
    %v5931 = vld [vmem:[%s13 + $0x104] sm:$0xff]
    %v5932 = vld [vmem:[%s13 + $0x10c] sm:$0xff]
    %v5933 = vld [vmem:[%s13 + $0x114] sm:$0xf]
    %v5934 = vld [vmem:[%s13 + $0x118] sm:$0xff]
    %v5935 = vld [vmem:[%s13 + $0x120] sm:$0xff]
    %v5936 = vld [vmem:[%s13 + $0x128] sm:$0xff]
    %v5937 = vld [vmem:[%s13 + $0x130] sm:$0xf]
    %v5938 = vld [vmem:[%s13 + $0x134] sm:$0xff]
    %v5939 = vld [vmem:[%s13 + $0x13c] sm:$0xff]
    %v5940 = vld [vmem:[%s13 + $0x144] sm:$0xff]
    %v5941 = vld [vmem:[%s13 + $0x14c] sm:$0xf]
    %v5942 = vld [vmem:[%s13 + $0x150] sm:$0xff]
    %v5943 = vld [vmem:[%s13 + $0x158] sm:$0xff]
    %v5944 = vld [vmem:[%s13 + $0x160] sm:$0xff]
    %v5945 = vld [vmem:[%s13 + $0x168] sm:$0xf]
    %v5946 = vld [vmem:[%s13 + $0x16c] sm:$0xff]
    %v5947 = vld [vmem:[%s13 + $0x174] sm:$0xff]
    %v5948 = vld [vmem:[%s13 + $0x17c] sm:$0xff]
    %v5949 = vld [vmem:[%s13 + $0x184] sm:$0xf]
    %v5950 = vld [vmem:[%s13 + $0x188] sm:$0xff]
    %v5951 = vld [vmem:[%s13 + $0x190] sm:$0xff]
    %v5952 = vld [vmem:[%s13 + $0x198] sm:$0xff]
    %v5953 = vld [vmem:[%s13 + $0x1a0] sm:$0xf]
    %v5954 = vld [vmem:[%s13 + $0x1a4] sm:$0xff]
    %v5955 = vld [vmem:[%s13 + $0x1ac] sm:$0xff]
    %v5956 = vld [vmem:[%s13 + $0x1b4] sm:$0xff]
    %v5957 = vld [vmem:[%s13 + $0x1bc] sm:$0xf]
    %v5958 = vld [vmem:[%s13 + $0x1c0] sm:$0xff]
    %v5959 = vld [vmem:[%s13 + $0x1c8] sm:$0xff]
    %v5960 = vld [vmem:[%s13 + $0x1d0] sm:$0xff]
    %v5961 = vld [vmem:[%s13 + $0x1d8] sm:$0xf]
    %v5962 = vld [vmem:[%s13 + $0x1dc] sm:$0xff]
    %v5963 = vld [vmem:[%s13 + $0x1e4] sm:$0xff]
    %v5964 = vld [vmem:[%s13 + $0x1ec] sm:$0xff]
    %v5965 = vld [vmem:[%s13 + $0x1f4] sm:$0xf]
    %v5966 = vld [vmem:[%s13 + $0x1f8] sm:$0xff]
    %v5967 = vld [vmem:[%s13 + $0x200] sm:$0xff]
    %v5968 = vld [vmem:[%s13 + $0x208] sm:$0xff]
    %v5969 = vld [vmem:[%s13 + $0x210] sm:$0xf]
    %v5970 = vld [vmem:[%s13 + $0x214] sm:$0xff]
    %v5971 = vld [vmem:[%s13 + $0x21c] sm:$0xff]
    %v5972 = vld [vmem:[%s13 + $0x224] sm:$0xff]
    %v5973 = vld [vmem:[%s13 + $0x22c] sm:$0xf]
    %v5974 = vld [vmem:[%s13 + $0x230] sm:$0xff]
    %v5975 = vld [vmem:[%s13 + $0x238] sm:$0xff]
    %v5976 = vld [vmem:[%s13 + $0x240] sm:$0xff]
    %v5977 = vld [vmem:[%s13 + $0x248] sm:$0xf]
    %v5978 = vld [vmem:[%s13 + $0x24c] sm:$0xff]
    %v5979 = vld [vmem:[%s13 + $0x254] sm:$0xff]
    %v5980 = vld [vmem:[%s13 + $0x25c] sm:$0xff]
    %v5981 = vld [vmem:[%s13 + $0x264] sm:$0xf]
    %v5982 = vld [vmem:[%s13 + $0x268] sm:$0xff]
    %v5983 = vld [vmem:[%s13 + $0x270] sm:$0xff]
    %v5984 = vld [vmem:[%s13 + $0x278] sm:$0xff]
    %v5985 = vld [vmem:[%s13 + $0x280] sm:$0xf]
    %v5986 = vld [vmem:[%s13 + $0x284] sm:$0xff]
    %v5987 = vld [vmem:[%s13 + $0x28c] sm:$0xff]
    %v5988 = vld [vmem:[%s13 + $0x294] sm:$0xff]
    %v5989 = vld [vmem:[%s13 + $0x29c] sm:$0xf]
    %v5990 = vld [vmem:[%s13 + $0x2a0] sm:$0xff]
    %v5991 = vld [vmem:[%s13 + $0x2a8] sm:$0xff]
    %v5992 = vld [vmem:[%s13 + $0x2b0] sm:$0xff]
    %v5993 = vld [vmem:[%s13 + $0x2b8] sm:$0xf]
    %v5994 = vld [vmem:[%s13 + $0x2bc] sm:$0xff]
    %v5995 = vld [vmem:[%s13 + $0x2c4] sm:$0xff]
    %v5996 = vld [vmem:[%s13 + $0x2cc] sm:$0xff]
    %v5997 = vld [vmem:[%s13 + $0x2d4] sm:$0xf]
    %v5998 = vld [vmem:[%s13 + $0x2d8] sm:$0xff]
    %v5999 = vld [vmem:[%s13 + $0x2e0] sm:$0xff]
    %v6000 = vld [vmem:[%s13 + $0x2e8] sm:$0xff]
    %v6001 = vld [vmem:[%s13 + $0x2f0] sm:$0xf]
    %v6002 = vld [vmem:[%s13 + $0x2f4] sm:$0xff]
    %v6003 = vld [vmem:[%s13 + $0x2fc] sm:$0xff]
    %v6004 = vld [vmem:[%s13 + $0x304] sm:$0xff]
    %v6005 = vld [vmem:[%s13 + $0x30c] sm:$0xf]
    %v6006 = vld [vmem:[%s13 + $0x310] sm:$0xff]
    %v6007 = vld [vmem:[%s13 + $0x318] sm:$0xff]
    %v6008 = vld [vmem:[%s13 + $0x320] sm:$0xff]
    %v6009 = vld [vmem:[%s13 + $0x328] sm:$0xf]
    %v6010 = vld [vmem:[%s13 + $0x32c] sm:$0xff]
    %v6011 = vld [vmem:[%s13 + $0x334] sm:$0xff]
    %v6012 = vld [vmem:[%s13 + $0x33c] sm:$0xff]
    %v6013 = vld [vmem:[%s13 + $0x344] sm:$0xf]
    %v6014 = vld [vmem:[%s13 + $0x348] sm:$0xff]
    %v6015 = vld [vmem:[%s13 + $0x350] sm:$0xff]
    %v6016 = vld [vmem:[%s13 + $0x358] sm:$0xff]
    %v6017 = vld [vmem:[%s13 + $0x360] sm:$0xf]
    %v6018 = vld [vmem:[%s13 + $0x364] sm:$0xff]
    %v6019 = vld [vmem:[%s13 + $0x36c] sm:$0xff]
    %v6020 = vld [vmem:[%s13 + $0x374] sm:$0xff]
    %v6021 = vld [vmem:[%s13 + $0x37c] sm:$0xf]
    %v6022 = vld [vmem:[%s14] ss:$4 sm:$0x7f]
    %s6023 = scalar_lea.vmem %s14, 1
    %v6024 = vld [vmem:[%s6023] ss:$4 sm:$0x7f]
    %s6025 = scalar_lea.vmem %s14, 2
    %v6026 = vld [vmem:[%s6025] ss:$4 sm:$0x7f]
    %v6028 = vlaneseq
    %v6029 = vshrl.u32 %v6028, 7
    %v6030 = vsub.s32 0, %v6029
    %v6031 = vrot.slane %v6022, %v6030
    %v6032 = vlaneseq
    %v6033 = vshrl.u32 %v6032, 7
    %v6034 = vsub.s32 1, %v6033
    %v6035 = vrot.slane %v6022, %v6034
    %v6036 = vlaneseq
    %v6037 = vshrl.u32 %v6036, 7
    %v6038 = vsub.s32 2, %v6037
    %v6039 = vrot.slane %v6022, %v6038
    %v6040 = vlaneseq
    %v6041 = vshrl.u32 %v6040, 7
    %v6042 = vsub.s32 3, %v6041
    %v6043 = vrot.slane %v6022, %v6042
    %v6044 = vlaneseq
    %v6045 = vshrl.u32 %v6044, 7
    %v6046 = vsub.s32 4, %v6045
    %v6047 = vrot.slane %v6022, %v6046
    %v6048 = vlaneseq
    %v6049 = vshrl.u32 %v6048, 7
    %v6050 = vsub.s32 5, %v6049
    %v6051 = vrot.slane %v6022, %v6050
    %v6052 = vlaneseq
    %v6053 = vshrl.u32 %v6052, 7
    %v6054 = vsub.s32 6, %v6053
    %v6055 = vrot.slane %v6022, %v6054
    %v6191 = vunpack.c.l.b16 %v5894
    %v6192 = vunpack.c.h.b16 %v5894
    %v6193 = vunpack.c.l.b16 %v5895
    %v6194 = vunpack.c.h.b16 %v5895
    %v6195 = vunpack.c.l.b16 %v5896
    %v6196 = vunpack.c.h.b16 %v5896
    %v6197 = vunpack.c.l.b16 %v5897
    %v6198 = vunpack.c.l.b16 %v5898
    %v6199 = vunpack.c.h.b16 %v5898
    %v6200 = vunpack.c.l.b16 %v5899
    %v6201 = vunpack.c.h.b16 %v5899
    %v6202 = vunpack.c.l.b16 %v5900
    %v6203 = vunpack.c.h.b16 %v5900
    %v6204 = vunpack.c.l.b16 %v5901
    %v6205 = vunpack.c.l.b16 %v5902
    %v6206 = vunpack.c.h.b16 %v5902
    %v6207 = vunpack.c.l.b16 %v5903
    %v6208 = vunpack.c.h.b16 %v5903
    %v6209 = vunpack.c.l.b16 %v5904
    %v6210 = vunpack.c.h.b16 %v5904
    %v6211 = vunpack.c.l.b16 %v5905
    %v6212 = vunpack.c.l.b16 %v5906
    %v6213 = vunpack.c.h.b16 %v5906
    %v6214 = vunpack.c.l.b16 %v5907
    %v6215 = vunpack.c.h.b16 %v5907
    %v6216 = vunpack.c.l.b16 %v5908
    %v6217 = vunpack.c.h.b16 %v5908
    %v6218 = vunpack.c.l.b16 %v5909
    %v6219 = vunpack.c.l.b16 %v5910
    %v6220 = vunpack.c.h.b16 %v5910
    %v6221 = vunpack.c.l.b16 %v5911
    %v6222 = vunpack.c.h.b16 %v5911
    %v6223 = vunpack.c.l.b16 %v5912
    %v6224 = vunpack.c.h.b16 %v5912
    %v6225 = vunpack.c.l.b16 %v5913
    %v6226 = vunpack.c.l.b16 %v5914
    %v6227 = vunpack.c.h.b16 %v5914
    %v6228 = vunpack.c.l.b16 %v5915
    %v6229 = vunpack.c.h.b16 %v5915
    %v6230 = vunpack.c.l.b16 %v5916
    %v6231 = vunpack.c.h.b16 %v5916
    %v6232 = vunpack.c.l.b16 %v5917
    %v6233 = vunpack.c.l.b16 %v5918
    %v6234 = vunpack.c.h.b16 %v5918
    %v6235 = vunpack.c.l.b16 %v5919
    %v6236 = vunpack.c.h.b16 %v5919
    %v6237 = vunpack.c.l.b16 %v5920
    %v6238 = vunpack.c.h.b16 %v5920
    %v6239 = vunpack.c.l.b16 %v5921
    %v6240 = vunpack.c.l.b16 %v5922
    %v6241 = vunpack.c.h.b16 %v5922
    %v6242 = vunpack.c.l.b16 %v5923
    %v6243 = vunpack.c.h.b16 %v5923
    %v6244 = vunpack.c.l.b16 %v5924
    %v6245 = vunpack.c.h.b16 %v5924
    %v6246 = vunpack.c.l.b16 %v5925
    %v6247 = vunpack.c.l.b16 %v5926
    %v6248 = vunpack.c.h.b16 %v5926
    %v6249 = vunpack.c.l.b16 %v5927
    %v6250 = vunpack.c.h.b16 %v5927
    %v6251 = vunpack.c.l.b16 %v5928
    %v6252 = vunpack.c.h.b16 %v5928
    %v6253 = vunpack.c.l.b16 %v5929
    %v6254 = vunpack.c.l.b16 %v5930
    %v6255 = vunpack.c.h.b16 %v5930
    %v6256 = vunpack.c.l.b16 %v5931
    %v6257 = vunpack.c.h.b16 %v5931
    %v6258 = vunpack.c.l.b16 %v5932
    %v6259 = vunpack.c.h.b16 %v5932
    %v6260 = vunpack.c.l.b16 %v5933
    %v6261 = vunpack.c.l.b16 %v5934
    %v6262 = vunpack.c.h.b16 %v5934
    %v6263 = vunpack.c.l.b16 %v5935
    %v6264 = vunpack.c.h.b16 %v5935
    %v6265 = vunpack.c.l.b16 %v5936
    %v6266 = vunpack.c.h.b16 %v5936
    %v6267 = vunpack.c.l.b16 %v5937
    %v6268 = vunpack.c.l.b16 %v5938
    %v6269 = vunpack.c.h.b16 %v5938
    %v6270 = vunpack.c.l.b16 %v5939
    %v6271 = vunpack.c.h.b16 %v5939
    %v6272 = vunpack.c.l.b16 %v5940
    %v6273 = vunpack.c.h.b16 %v5940
    %v6274 = vunpack.c.l.b16 %v5941
    %v6275 = vunpack.c.l.b16 %v5942
    %v6276 = vunpack.c.h.b16 %v5942
    %v6277 = vunpack.c.l.b16 %v5943
    %v6278 = vunpack.c.h.b16 %v5943
    %v6279 = vunpack.c.l.b16 %v5944
    %v6280 = vunpack.c.h.b16 %v5944
    %v6281 = vunpack.c.l.b16 %v5945
    %v6282 = vunpack.c.l.b16 %v5946
    %v6283 = vunpack.c.h.b16 %v5946
    %v6284 = vunpack.c.l.b16 %v5947
    %v6285 = vunpack.c.h.b16 %v5947
    %v6286 = vunpack.c.l.b16 %v5948
    %v6287 = vunpack.c.h.b16 %v5948
    %v6288 = vunpack.c.l.b16 %v5949
    %v6289 = vunpack.c.l.b16 %v5950
    %v6290 = vunpack.c.h.b16 %v5950
    %v6291 = vunpack.c.l.b16 %v5951
    %v6292 = vunpack.c.h.b16 %v5951
    %v6293 = vunpack.c.l.b16 %v5952
    %v6294 = vunpack.c.h.b16 %v5952
    %v6295 = vunpack.c.l.b16 %v5953
    %v6296 = vunpack.c.l.b16 %v5954
    %v6297 = vunpack.c.h.b16 %v5954
    %v6298 = vunpack.c.l.b16 %v5955
    %v6299 = vunpack.c.h.b16 %v5955
    %v6300 = vunpack.c.l.b16 %v5956
    %v6301 = vunpack.c.h.b16 %v5956
    %v6302 = vunpack.c.l.b16 %v5957
    %v6303 = vunpack.c.l.b16 %v5958
    %v6304 = vunpack.c.h.b16 %v5958
    %v6305 = vunpack.c.l.b16 %v5959
    %v6306 = vunpack.c.h.b16 %v5959
    %v6307 = vunpack.c.l.b16 %v5960
    %v6308 = vunpack.c.h.b16 %v5960
    %v6309 = vunpack.c.l.b16 %v5961
    %v6310 = vunpack.c.l.b16 %v5962
    %v6311 = vunpack.c.h.b16 %v5962
    %v6312 = vunpack.c.l.b16 %v5963
    %v6313 = vunpack.c.h.b16 %v5963
    %v6314 = vunpack.c.l.b16 %v5964
    %v6315 = vunpack.c.h.b16 %v5964
    %v6316 = vunpack.c.l.b16 %v5965
    %v6317 = vunpack.c.l.b16 %v5966
    %v6318 = vunpack.c.h.b16 %v5966
    %v6319 = vunpack.c.l.b16 %v5967
    %v6320 = vunpack.c.h.b16 %v5967
    %v6321 = vunpack.c.l.b16 %v5968
    %v6322 = vunpack.c.h.b16 %v5968
    %v6323 = vunpack.c.l.b16 %v5969
    %v6324 = vunpack.c.l.b16 %v5970
    %v6325 = vunpack.c.h.b16 %v5970
    %v6326 = vunpack.c.l.b16 %v5971
    %v6327 = vunpack.c.h.b16 %v5971
    %v6328 = vunpack.c.l.b16 %v5972
    %v6329 = vunpack.c.h.b16 %v5972
    %v6330 = vunpack.c.l.b16 %v5973
    %v6331 = vunpack.c.l.b16 %v5974
    %v6332 = vunpack.c.h.b16 %v5974
    %v6333 = vunpack.c.l.b16 %v5975
    %v6334 = vunpack.c.h.b16 %v5975
    %v6335 = vunpack.c.l.b16 %v5976
    %v6336 = vunpack.c.h.b16 %v5976
    %v6337 = vunpack.c.l.b16 %v5977
    %v6338 = vunpack.c.l.b16 %v5978
    %v6339 = vunpack.c.h.b16 %v5978
    %v6340 = vunpack.c.l.b16 %v5979
    %v6341 = vunpack.c.h.b16 %v5979
    %v6342 = vunpack.c.l.b16 %v5980
    %v6343 = vunpack.c.h.b16 %v5980
    %v6344 = vunpack.c.l.b16 %v5981
    %v6345 = vunpack.c.l.b16 %v5982
    %v6346 = vunpack.c.h.b16 %v5982
    %v6347 = vunpack.c.l.b16 %v5983
    %v6348 = vunpack.c.h.b16 %v5983
    %v6349 = vunpack.c.l.b16 %v5984
    %v6350 = vunpack.c.h.b16 %v5984
    %v6351 = vunpack.c.l.b16 %v5985
    %v6352 = vunpack.c.l.b16 %v5986
    %v6353 = vunpack.c.h.b16 %v5986
    %v6354 = vunpack.c.l.b16 %v5987
    %v6355 = vunpack.c.h.b16 %v5987
    %v6356 = vunpack.c.l.b16 %v5988
    %v6357 = vunpack.c.h.b16 %v5988
    %v6358 = vunpack.c.l.b16 %v5989
    %v6359 = vunpack.c.l.b16 %v5990
    %v6360 = vunpack.c.h.b16 %v5990
    %v6361 = vunpack.c.l.b16 %v5991
    %v6362 = vunpack.c.h.b16 %v5991
    %v6363 = vunpack.c.l.b16 %v5992
    %v6364 = vunpack.c.h.b16 %v5992
    %v6365 = vunpack.c.l.b16 %v5993
    %v6366 = vunpack.c.l.b16 %v5994
    %v6367 = vunpack.c.h.b16 %v5994
    %v6368 = vunpack.c.l.b16 %v5995
    %v6369 = vunpack.c.h.b16 %v5995
    %v6370 = vunpack.c.l.b16 %v5996
    %v6371 = vunpack.c.h.b16 %v5996
    %v6372 = vunpack.c.l.b16 %v5997
    %v6373 = vunpack.c.l.b16 %v5998
    %v6374 = vunpack.c.h.b16 %v5998
    %v6375 = vunpack.c.l.b16 %v5999
    %v6376 = vunpack.c.h.b16 %v5999
    %v6377 = vunpack.c.l.b16 %v6000
    %v6378 = vunpack.c.h.b16 %v6000
    %v6379 = vunpack.c.l.b16 %v6001
    %v6380 = vunpack.c.l.b16 %v6002
    %v6381 = vunpack.c.h.b16 %v6002
    %v6382 = vunpack.c.l.b16 %v6003
    %v6383 = vunpack.c.h.b16 %v6003
    %v6384 = vunpack.c.l.b16 %v6004
    %v6385 = vunpack.c.h.b16 %v6004
    %v6386 = vunpack.c.l.b16 %v6005
    %v6387 = vunpack.c.l.b16 %v6006
    %v6388 = vunpack.c.h.b16 %v6006
    %v6389 = vunpack.c.l.b16 %v6007
    %v6390 = vunpack.c.h.b16 %v6007
    %v6391 = vunpack.c.l.b16 %v6008
    %v6392 = vunpack.c.h.b16 %v6008
    %v6393 = vunpack.c.l.b16 %v6009
    %v6394 = vunpack.c.l.b16 %v6010
    %v6395 = vunpack.c.h.b16 %v6010
    %v6396 = vunpack.c.l.b16 %v6011
    %v6397 = vunpack.c.h.b16 %v6011
    %v6398 = vunpack.c.l.b16 %v6012
    %v6399 = vunpack.c.h.b16 %v6012
    %v6400 = vunpack.c.l.b16 %v6013
    %v6401 = vunpack.c.l.b16 %v6014
    %v6402 = vunpack.c.h.b16 %v6014
    %v6403 = vunpack.c.l.b16 %v6015
    %v6404 = vunpack.c.h.b16 %v6015
    %v6405 = vunpack.c.l.b16 %v6016
    %v6406 = vunpack.c.h.b16 %v6016
    %v6407 = vunpack.c.l.b16 %v6017
    %v6408 = vunpack.c.l.b16 %v6018
    %v6409 = vunpack.c.h.b16 %v6018
    %v6410 = vunpack.c.l.b16 %v6019
    %v6411 = vunpack.c.h.b16 %v6019
    %v6412 = vunpack.c.l.b16 %v6020
    %v6413 = vunpack.c.h.b16 %v6020
    %v6414 = vunpack.c.l.b16 %v6021
    %v6415 = vpack.c.b16 %v6198, %v6191
    %v6416 = vpack.c.b16 %v6199, %v6192
    %v6417 = vpack.c.b16 %v6200, %v6193
    %v6418 = vpack.c.b16 %v6201, %v6194
    %v6419 = vpack.c.b16 %v6202, %v6195
    %v6420 = vpack.c.b16 %v6203, %v6196
    %v6421 = vpack.c.b16 %v6204, %v6197
    %v6422 = vpack.c.b16 %v6212, %v6205
    %v6423 = vpack.c.b16 %v6213, %v6206
    %v6424 = vpack.c.b16 %v6214, %v6207
    %v6425 = vpack.c.b16 %v6215, %v6208
    %v6426 = vpack.c.b16 %v6216, %v6209
    %v6427 = vpack.c.b16 %v6217, %v6210
    %v6428 = vpack.c.b16 %v6218, %v6211
    %v6429 = vpack.c.b16 %v6226, %v6219
    %v6430 = vpack.c.b16 %v6227, %v6220
    %v6431 = vpack.c.b16 %v6228, %v6221
    %v6432 = vpack.c.b16 %v6229, %v6222
    %v6433 = vpack.c.b16 %v6230, %v6223
    %v6434 = vpack.c.b16 %v6231, %v6224
    %v6435 = vpack.c.b16 %v6232, %v6225
    %v6436 = vpack.c.b16 %v6240, %v6233
    %v6437 = vpack.c.b16 %v6241, %v6234
    %v6438 = vpack.c.b16 %v6242, %v6235
    %v6439 = vpack.c.b16 %v6243, %v6236
    %v6440 = vpack.c.b16 %v6244, %v6237
    %v6441 = vpack.c.b16 %v6245, %v6238
    %v6442 = vpack.c.b16 %v6246, %v6239
    %v6443 = vpack.c.b16 %v6254, %v6247
    %v6444 = vpack.c.b16 %v6255, %v6248
    %v6445 = vpack.c.b16 %v6256, %v6249
    %v6446 = vpack.c.b16 %v6257, %v6250
    %v6447 = vpack.c.b16 %v6258, %v6251
    %v6448 = vpack.c.b16 %v6259, %v6252
    %v6449 = vpack.c.b16 %v6260, %v6253
    %v6450 = vpack.c.b16 %v6268, %v6261
    %v6451 = vpack.c.b16 %v6269, %v6262
    %v6452 = vpack.c.b16 %v6270, %v6263
    %v6453 = vpack.c.b16 %v6271, %v6264
    %v6454 = vpack.c.b16 %v6272, %v6265
    %v6455 = vpack.c.b16 %v6273, %v6266
    %v6456 = vpack.c.b16 %v6274, %v6267
    %v6457 = vpack.c.b16 %v6282, %v6275
    %v6458 = vpack.c.b16 %v6283, %v6276
    %v6459 = vpack.c.b16 %v6284, %v6277
    %v6460 = vpack.c.b16 %v6285, %v6278
    %v6461 = vpack.c.b16 %v6286, %v6279
    %v6462 = vpack.c.b16 %v6287, %v6280
    %v6463 = vpack.c.b16 %v6288, %v6281
    %v6464 = vpack.c.b16 %v6296, %v6289
    %v6465 = vpack.c.b16 %v6297, %v6290
    %v6466 = vpack.c.b16 %v6298, %v6291
    %v6467 = vpack.c.b16 %v6299, %v6292
    %v6468 = vpack.c.b16 %v6300, %v6293
    %v6469 = vpack.c.b16 %v6301, %v6294
    %v6470 = vpack.c.b16 %v6302, %v6295
    %v6471 = vpack.c.b16 %v6310, %v6303
    %v6472 = vpack.c.b16 %v6311, %v6304
    %v6473 = vpack.c.b16 %v6312, %v6305
    %v6474 = vpack.c.b16 %v6313, %v6306
    %v6475 = vpack.c.b16 %v6314, %v6307
    %v6476 = vpack.c.b16 %v6315, %v6308
    %v6477 = vpack.c.b16 %v6316, %v6309
    %v6478 = vpack.c.b16 %v6324, %v6317
    %v6479 = vpack.c.b16 %v6325, %v6318
    %v6480 = vpack.c.b16 %v6326, %v6319
    %v6481 = vpack.c.b16 %v6327, %v6320
    %v6482 = vpack.c.b16 %v6328, %v6321
    %v6483 = vpack.c.b16 %v6329, %v6322
    %v6484 = vpack.c.b16 %v6330, %v6323
    %v6485 = vpack.c.b16 %v6338, %v6331
    %v6486 = vpack.c.b16 %v6339, %v6332
    %v6487 = vpack.c.b16 %v6340, %v6333
    %v6488 = vpack.c.b16 %v6341, %v6334
    %v6489 = vpack.c.b16 %v6342, %v6335
    %v6490 = vpack.c.b16 %v6343, %v6336
    %v6491 = vpack.c.b16 %v6344, %v6337
    %v6492 = vpack.c.b16 %v6352, %v6345
    %v6493 = vpack.c.b16 %v6353, %v6346
    %v6494 = vpack.c.b16 %v6354, %v6347
    %v6495 = vpack.c.b16 %v6355, %v6348
    %v6496 = vpack.c.b16 %v6356, %v6349
    %v6497 = vpack.c.b16 %v6357, %v6350
    %v6498 = vpack.c.b16 %v6358, %v6351
    %v6499 = vpack.c.b16 %v6366, %v6359
    %v6500 = vpack.c.b16 %v6367, %v6360
    %v6501 = vpack.c.b16 %v6368, %v6361
    %v6502 = vpack.c.b16 %v6369, %v6362
    %v6503 = vpack.c.b16 %v6370, %v6363
    %v6504 = vpack.c.b16 %v6371, %v6364
    %v6505 = vpack.c.b16 %v6372, %v6365
    %v6506 = vpack.c.b16 %v6380, %v6373
    %v6507 = vpack.c.b16 %v6381, %v6374
    %v6508 = vpack.c.b16 %v6382, %v6375
    %v6509 = vpack.c.b16 %v6383, %v6376
    %v6510 = vpack.c.b16 %v6384, %v6377
    %v6511 = vpack.c.b16 %v6385, %v6378
    %v6512 = vpack.c.b16 %v6386, %v6379
    %v6513 = vpack.c.b16 %v6394, %v6387
    %v6514 = vpack.c.b16 %v6395, %v6388
    %v6515 = vpack.c.b16 %v6396, %v6389
    %v6516 = vpack.c.b16 %v6397, %v6390
    %v6517 = vpack.c.b16 %v6398, %v6391
    %v6518 = vpack.c.b16 %v6399, %v6392
    %v6519 = vpack.c.b16 %v6400, %v6393
    %v6520 = vpack.c.b16 %v6408, %v6401
    %v6521 = vpack.c.b16 %v6409, %v6402
    %v6522 = vpack.c.b16 %v6410, %v6403
    %v6523 = vpack.c.b16 %v6411, %v6404
    %v6524 = vpack.c.b16 %v6412, %v6405
    %v6525 = vpack.c.b16 %v6413, %v6406
    %v6526 = vpack.c.b16 %v6414, %v6407
    %6639 = vmatprep.subr.bf16.mxu0 %v6465
    %6640 = vmatpush1.bf16.msra.mxu0 %v6464
    %6641 = vmatprep.subr.bf16.mxu0 %v6458
    %6642 = vmatpush1.bf16.msra.mxu0 %v6457
    %6643 = vmatprep.subr.bf16.mxu0 %v6451
    %6644 = vmatpush1.bf16.msra.mxu0 %v6450
    %6645 = vmatprep.subr.bf16.mxu0 %v6444
    %6646 = vmatpush1.bf16.msra.mxu0 %v6443
    %6647 = vmatprep.subr.bf16.mxu0 %v6437
    %6648 = vmatpush1.bf16.msra.mxu0 %v6436
    %6649 = vmatprep.subr.bf16.mxu0 %v6430
    %6650 = vmatpush1.bf16.msra.mxu0 %v6429
    %6651 = vmatprep.subr.bf16.mxu0 %v6423
    %6652 = vmatpush1.bf16.msra.mxu0 %v6422
    %6653 = vmatprep.subr.bf16.mxu0 %v6416
    %6654 = vmatpush1.bf16.msra.mxu0 %v6415
    %6655 = vmatprep.subr.bf16.mxu0 %v6521
    %6656 = vmatpush2.bf16.msra.mxu0 %v6520
    %6657 = vmatprep.subr.bf16.mxu0 %v6514
    %6658 = vmatpush2.bf16.msra.mxu0 %v6513
    %6659 = vmatprep.subr.bf16.mxu0 %v6507
    %6660 = vmatpush2.bf16.msra.mxu0 %v6506
    %6661 = vmatprep.subr.bf16.mxu0 %v6500
    %6662 = vmatpush2.bf16.msra.mxu0 %v6499
    %6663 = vmatprep.subr.bf16.mxu0 %v6493
    %6664 = vmatpush2.bf16.msra.mxu0 %v6492
    %6665 = vmatprep.subr.bf16.mxu0 %v6486
    %6666 = vmatpush2.bf16.msra.mxu0 %v6485
    %6667 = vmatprep.subr.bf16.mxu0 %v6479
    %6668 = vmatpush2.bf16.msra.mxu0 %v6478
    %6669 = vmatprep.subr.bf16.mxu0 %v6472
    %6670 = vmatpush2.bf16.msra.mxu0 %v6471
    %6671 = vmatprep.mubr.bf16.mxu0 %v5893
    %6672 = vmatmul.mubr.bf16.gmra.mxu0 %v5892
    %v6673 = vpop.f32.mrf.mxu0
    %v6674 = vadd.f32 %v6031, %v6673
    %v6675 = vpop.f32.mrf.mxu0
    %v6676 = vadd.f32 %v6035, %v6675
    %v6677 = vpop.f32.mrf.mxu0
    %v6678 = vpop.f32.mrf.mxu0
    %6679 = vdwg.mxu0
    %6680 = vmatprep.subr.bf16.mxu0 %v6467
    %6681 = vmatpush1.bf16.msra.mxu0 %v6466
    %6682 = vmatprep.subr.bf16.mxu0 %v6460
    %6683 = vmatpush1.bf16.msra.mxu0 %v6459
    %6684 = vmatprep.subr.bf16.mxu0 %v6453
    %6685 = vmatpush1.bf16.msra.mxu0 %v6452
    %6686 = vmatprep.subr.bf16.mxu0 %v6446
    %6687 = vmatpush1.bf16.msra.mxu0 %v6445
    %6688 = vmatprep.subr.bf16.mxu0 %v6439
    %6689 = vmatpush1.bf16.msra.mxu0 %v6438
    %6690 = vmatprep.subr.bf16.mxu0 %v6432
    %6691 = vmatpush1.bf16.msra.mxu0 %v6431
    %6692 = vmatprep.subr.bf16.mxu0 %v6425
    %6693 = vmatpush1.bf16.msra.mxu0 %v6424
    %6694 = vmatprep.subr.bf16.mxu0 %v6418
    %6695 = vmatpush1.bf16.msra.mxu0 %v6417
    %6696 = vmatprep.subr.bf16.mxu0 %v6523
    %6697 = vmatpush2.bf16.msra.mxu0 %v6522
    %6698 = vmatprep.subr.bf16.mxu0 %v6516
    %6699 = vmatpush2.bf16.msra.mxu0 %v6515
    %6700 = vmatprep.subr.bf16.mxu0 %v6509
    %6701 = vmatpush2.bf16.msra.mxu0 %v6508
    %6702 = vmatprep.subr.bf16.mxu0 %v6502
    %6703 = vmatpush2.bf16.msra.mxu0 %v6501
    %6704 = vmatprep.subr.bf16.mxu0 %v6495
    %6705 = vmatpush2.bf16.msra.mxu0 %v6494
    %6706 = vmatprep.subr.bf16.mxu0 %v6488
    %6707 = vmatpush2.bf16.msra.mxu0 %v6487
    %6708 = vmatprep.subr.bf16.mxu0 %v6481
    %6709 = vmatpush2.bf16.msra.mxu0 %v6480
    %6710 = vmatprep.subr.bf16.mxu0 %v6474
    %6711 = vmatpush2.bf16.msra.mxu0 %v6473
    %6712 = vmatprep.mubr.bf16.mxu0 %v5893
    %6713 = vmatmul.mubr.bf16.gmra.mxu0 %v5892
    %v6714 = vpop.f32.mrf.mxu0
    %v6715 = vadd.f32 %v6039, %v6714
    %v6716 = vpop.f32.mrf.mxu0
    %v6717 = vadd.f32 %v6043, %v6716
    %v6718 = vpop.f32.mrf.mxu0
    %v6719 = vpop.f32.mrf.mxu0
    %6720 = vdwg.mxu0
    %6721 = vmatprep.subr.bf16.mxu0 %v6469
    %6722 = vmatpush1.bf16.msra.mxu0 %v6468
    %6723 = vmatprep.subr.bf16.mxu0 %v6462
    %6724 = vmatpush1.bf16.msra.mxu0 %v6461
    %6725 = vmatprep.subr.bf16.mxu0 %v6455
    %6726 = vmatpush1.bf16.msra.mxu0 %v6454
    %6727 = vmatprep.subr.bf16.mxu0 %v6448
    %6728 = vmatpush1.bf16.msra.mxu0 %v6447
    %6729 = vmatprep.subr.bf16.mxu0 %v6441
    %6730 = vmatpush1.bf16.msra.mxu0 %v6440
    %6731 = vmatprep.subr.bf16.mxu0 %v6434
    %6732 = vmatpush1.bf16.msra.mxu0 %v6433
    %6733 = vmatprep.subr.bf16.mxu0 %v6427
    %6734 = vmatpush1.bf16.msra.mxu0 %v6426
    %6735 = vmatprep.subr.bf16.mxu0 %v6420
    %6736 = vmatpush1.bf16.msra.mxu0 %v6419
    %6737 = vmatprep.subr.bf16.mxu0 %v6525
    %6738 = vmatpush2.bf16.msra.mxu0 %v6524
    %6739 = vmatprep.subr.bf16.mxu0 %v6518
    %6740 = vmatpush2.bf16.msra.mxu0 %v6517
    %6741 = vmatprep.subr.bf16.mxu0 %v6511
    %6742 = vmatpush2.bf16.msra.mxu0 %v6510
    %6743 = vmatprep.subr.bf16.mxu0 %v6504
    %6744 = vmatpush2.bf16.msra.mxu0 %v6503
    %6745 = vmatprep.subr.bf16.mxu0 %v6497
    %6746 = vmatpush2.bf16.msra.mxu0 %v6496
    %6747 = vmatprep.subr.bf16.mxu0 %v6490
    %6748 = vmatpush2.bf16.msra.mxu0 %v6489
    %6749 = vmatprep.subr.bf16.mxu0 %v6483
    %6750 = vmatpush2.bf16.msra.mxu0 %v6482
    %6751 = vmatprep.subr.bf16.mxu0 %v6476
    %6752 = vmatpush2.bf16.msra.mxu0 %v6475
    %6753 = vmatprep.mubr.bf16.mxu0 %v5893
    %6754 = vmatmul.mubr.bf16.gmra.mxu0 %v5892
    %v6755 = vpop.f32.mrf.mxu0
    %v6756 = vadd.f32 %v6047, %v6755
    %v6757 = vpop.f32.mrf.mxu0
    %v6758 = vadd.f32 %v6051, %v6757
    %v6759 = vpop.f32.mrf.mxu0
    %v6760 = vpop.f32.mrf.mxu0
    %6761 = vdwg.mxu0
    %6762 = vmatprep.subr.bf16.mxu0 0
    %6763 = vmatpush1.bf16.msra.mxu0 %v6470
    %6764 = vmatprep.subr.bf16.mxu0 0
    %6765 = vmatpush1.bf16.msra.mxu0 %v6463
    %6766 = vmatprep.subr.bf16.mxu0 0
    %6767 = vmatpush1.bf16.msra.mxu0 %v6456
    %6768 = vmatprep.subr.bf16.mxu0 0
    %6769 = vmatpush1.bf16.msra.mxu0 %v6449
    %6770 = vmatprep.subr.bf16.mxu0 0
    %6771 = vmatpush1.bf16.msra.mxu0 %v6442
    %6772 = vmatprep.subr.bf16.mxu0 0
    %6773 = vmatpush1.bf16.msra.mxu0 %v6435
    %6774 = vmatprep.subr.bf16.mxu0 0
    %6775 = vmatpush1.bf16.msra.mxu0 %v6428
    %6776 = vmatprep.subr.bf16.mxu0 0
    %6777 = vmatpush1.bf16.msra.mxu0 %v6421
    %6778 = vmatprep.subr.bf16.mxu0 0
    %6779 = vmatpush2.bf16.msra.mxu0 %v6526
    %6780 = vmatprep.subr.bf16.mxu0 0
    %6781 = vmatpush2.bf16.msra.mxu0 %v6519
    %6782 = vmatprep.subr.bf16.mxu0 0
    %6783 = vmatpush2.bf16.msra.mxu0 %v6512
    %6784 = vmatprep.subr.bf16.mxu0 0
    %6785 = vmatpush2.bf16.msra.mxu0 %v6505
    %6786 = vmatprep.subr.bf16.mxu0 0
    %6787 = vmatpush2.bf16.msra.mxu0 %v6498
    %6788 = vmatprep.subr.bf16.mxu0 0
    %6789 = vmatpush2.bf16.msra.mxu0 %v6491
    %6790 = vmatprep.subr.bf16.mxu0 0
    %6791 = vmatpush2.bf16.msra.mxu0 %v6484
    %6792 = vmatprep.subr.bf16.mxu0 0
    %6793 = vmatpush2.bf16.msra.mxu0 %v6477
    %6794 = vmatprep.mubr.bf16.mxu0 %v5893
    %6795 = vmatmul.mubr.bf16.gmra.mxu0 %v5892
    %v6796 = vpop.f32.mrf.mxu0
    %v6797 = vadd.f32 %v6055, %v6796
    %v6798 = vpop.f32.mrf.mxu0
    %v6799 = vpop.f32.mrf.mxu0
    %v6800 = vpop.f32.mrf.mxu0
    %6801 = vdwg.mxu0
    %v6802 = vsel %vm2979, %v6674, 0.0
    %v6803 = vrot.slane %v6802, 4
    %v6804 = vadd.f32 %v6802, %v6803
    %v6805 = vrot.slane %v6804, 2
    %v6806 = vadd.f32 %v6804, %v6805
    %v6807 = vrot.slane %v6806, 1
    %v6808 = vadd.f32 %v6806, %v6807
    %v6809 = vsel %vm2979, %v6676, 0.0
    %v6810 = vrot.slane %v6809, 4
    %v6811 = vadd.f32 %v6809, %v6810
    %v6812 = vrot.slane %v6811, 2
    %v6813 = vadd.f32 %v6811, %v6812
    %v6814 = vrot.slane %v6813, 1
    %v6815 = vadd.f32 %v6813, %v6814
    %v6816 = vsel %vm2979, %v6715, 0.0
    %v6817 = vrot.slane %v6816, 4
    %v6818 = vadd.f32 %v6816, %v6817
    %v6819 = vrot.slane %v6818, 2
    %v6820 = vadd.f32 %v6818, %v6819
    %v6821 = vrot.slane %v6820, 1
    %v6822 = vadd.f32 %v6820, %v6821
    %v6823 = vsel %vm2979, %v6717, 0.0
    %v6824 = vrot.slane %v6823, 4
    %v6825 = vadd.f32 %v6823, %v6824
    %v6826 = vrot.slane %v6825, 2
    %v6827 = vadd.f32 %v6825, %v6826
    %v6828 = vrot.slane %v6827, 1
    %v6829 = vadd.f32 %v6827, %v6828
    %v6830 = vsel %vm2979, %v6756, 0.0
    %v6831 = vrot.slane %v6830, 4
    %v6832 = vadd.f32 %v6830, %v6831
    %v6833 = vrot.slane %v6832, 2
    %v6834 = vadd.f32 %v6832, %v6833
    %v6835 = vrot.slane %v6834, 1
    %v6836 = vadd.f32 %v6834, %v6835
    %v6837 = vsel %vm2979, %v6758, 0.0
    %v6838 = vrot.slane %v6837, 4
    %v6839 = vadd.f32 %v6837, %v6838
    %v6840 = vrot.slane %v6839, 2
    %v6841 = vadd.f32 %v6839, %v6840
    %v6842 = vrot.slane %v6841, 1
    %v6843 = vadd.f32 %v6841, %v6842
    %v6844 = vsel %vm3022, %v6797, 0.0
    %v6845 = vrot.slane %v6844, 4
    %v6846 = vadd.f32 %v6844, %v6845
    %v6847 = vrot.slane %v6846, 2
    %v6848 = vadd.f32 %v6846, %v6847
    %v6849 = vrot.slane %v6848, 1
    %v6850 = vadd.f32 %v6848, %v6849
    %v6851 = vmul.f32 %v6674, %v6674
    %v6852 = vmul.f32 %v6676, %v6676
    %v6853 = vmul.f32 %v6715, %v6715
    %v6854 = vmul.f32 %v6717, %v6717
    %v6855 = vmul.f32 %v6756, %v6756
    %v6856 = vmul.f32 %v6758, %v6758
    %v6857 = vmul.f32 %v6797, %v6797
    %v6858 = vsel %vm2979, %v6851, 0.0
    %v6859 = vrot.slane %v6858, 4
    %v6860 = vadd.f32 %v6858, %v6859
    %v6861 = vrot.slane %v6860, 2
    %v6862 = vadd.f32 %v6860, %v6861
    %v6863 = vrot.slane %v6862, 1
    %v6864 = vadd.f32 %v6862, %v6863
    %v6865 = vsel %vm2979, %v6852, 0.0
    %v6866 = vrot.slane %v6865, 4
    %v6867 = vadd.f32 %v6865, %v6866
    %v6868 = vrot.slane %v6867, 2
    %v6869 = vadd.f32 %v6867, %v6868
    %v6870 = vrot.slane %v6869, 1
    %v6871 = vadd.f32 %v6869, %v6870
    %v6872 = vsel %vm2979, %v6853, 0.0
    %v6873 = vrot.slane %v6872, 4
    %v6874 = vadd.f32 %v6872, %v6873
    %v6875 = vrot.slane %v6874, 2
    %v6876 = vadd.f32 %v6874, %v6875
    %v6877 = vrot.slane %v6876, 1
    %v6878 = vadd.f32 %v6876, %v6877
    %v6879 = vsel %vm2979, %v6854, 0.0
    %v6880 = vrot.slane %v6879, 4
    %v6881 = vadd.f32 %v6879, %v6880
    %v6882 = vrot.slane %v6881, 2
    %v6883 = vadd.f32 %v6881, %v6882
    %v6884 = vrot.slane %v6883, 1
    %v6885 = vadd.f32 %v6883, %v6884
    %v6886 = vsel %vm2979, %v6855, 0.0
    %v6887 = vrot.slane %v6886, 4
    %v6888 = vadd.f32 %v6886, %v6887
    %v6889 = vrot.slane %v6888, 2
    %v6890 = vadd.f32 %v6888, %v6889
    %v6891 = vrot.slane %v6890, 1
    %v6892 = vadd.f32 %v6890, %v6891
    %v6893 = vsel %vm2979, %v6856, 0.0
    %v6894 = vrot.slane %v6893, 4
    %v6895 = vadd.f32 %v6893, %v6894
    %v6896 = vrot.slane %v6895, 2
    %v6897 = vadd.f32 %v6895, %v6896
    %v6898 = vrot.slane %v6897, 1
    %v6899 = vadd.f32 %v6897, %v6898
    %v6900 = vsel %vm3022, %v6857, 0.0
    %v6901 = vrot.slane %v6900, 4
    %v6902 = vadd.f32 %v6900, %v6901
    %v6903 = vrot.slane %v6902, 2
    %v6904 = vadd.f32 %v6902, %v6903
    %v6905 = vrot.slane %v6904, 1
    %v6906 = vadd.f32 %v6904, %v6905
    %v6907 = vsel %vm3086, %v6808, %v6864
    %v6908 = vsel %vm3086, %v6815, %v6871
    %v6909 = vsel %vm3086, %v6822, %v6878
    %v6910 = vsel %vm3086, %v6829, %v6885
    %v6911 = vsel %vm3086, %v6836, %v6892
    %v6912 = vsel %vm3086, %v6843, %v6899
    %v6913 = vsel %vm3086, %v6850, %v6906
    %v6914 = vld [vmem:[%s17] sm:$0xff]
    %v6915 = vld [vmem:[%s17 + $0x8] sm:$0xff]
    %v6916 = vld [vmem:[%s17 + $0x10] sm:$0xff]
    %v6917 = vld [vmem:[%s17 + $0x18] sm:$0xff]
    %v6918 = vld [vmem:[%s17 + $0x20] sm:$0xff]
    %v6919 = vld [vmem:[%s17 + $0x28] sm:$0xff]
    %v6920 = vld [vmem:[%s17 + $0x30] sm:$0xff]
    %v6921 = vld [vmem:[%s17 + $0x38] sm:$0xff]
    %v6922 = vld [vmem:[%s17 + $0x40] sm:$0xff]
    %v6923 = vld [vmem:[%s17 + $0x48] sm:$0xff]
    %v6924 = vld [vmem:[%s17 + $0x50] sm:$0xff]
    %v6925 = vld [vmem:[%s17 + $0x58] sm:$0xff]
    %v6926 = vld [vmem:[%s17 + $0x60] sm:$0xff]
    %v6927 = vld [vmem:[%s17 + $0x68] sm:$0xff]
    %v6928 = vld [vmem:[%s17 + $0x70] sm:$0xff]
    %v6929 = vld [vmem:[%s17 + $0x78] sm:$0xff]
    %v6930 = vld [vmem:[%s17 + $0x80] sm:$0xff]
    %v6931 = vld [vmem:[%s17 + $0x88] sm:$0xff]
    %v6932 = vld [vmem:[%s17 + $0x90] sm:$0xff]
    %v6933 = vld [vmem:[%s17 + $0x98] sm:$0xff]
    %v6934 = vld [vmem:[%s17 + $0xa0] sm:$0xff]
    %v6935 = vld [vmem:[%s17 + $0xa8] sm:$0xff]
    %v6936 = vld [vmem:[%s17 + $0xb0] sm:$0xff]
    %v6937 = vld [vmem:[%s17 + $0xb8] sm:$0xff]
    %v6938 = vld [vmem:[%s17 + $0xc0] sm:$0xff]
    %v6939 = vld [vmem:[%s17 + $0xc8] sm:$0xff]
    %v6940 = vld [vmem:[%s17 + $0xd0] sm:$0xff]
    %v6941 = vld [vmem:[%s17 + $0xd8] sm:$0xff]
    %v6942 = vld [vmem:[%s17 + $0xe0] sm:$0xff]
    %v6943 = vld [vmem:[%s17 + $0xe8] sm:$0xff]
    %v6944 = vld [vmem:[%s17 + $0xf0] sm:$0xff]
    %v6945 = vld [vmem:[%s17 + $0xf8] sm:$0xff]
    %v6946 = vld [vmem:[%s17 + $0x100] sm:$0xff]
    %v6947 = vld [vmem:[%s17 + $0x108] sm:$0xff]
    %v6948 = vld [vmem:[%s17 + $0x110] sm:$0xff]
    %v6949 = vld [vmem:[%s17 + $0x118] sm:$0xff]
    %v6950 = vld [vmem:[%s17 + $0x120] sm:$0xff]
    %v6951 = vld [vmem:[%s17 + $0x128] sm:$0xff]
    %v6952 = vld [vmem:[%s17 + $0x130] sm:$0xff]
    %v6953 = vld [vmem:[%s17 + $0x138] sm:$0xff]
    %v6954 = vld [vmem:[%s17 + $0x140] sm:$0xff]
    %v6955 = vld [vmem:[%s17 + $0x148] sm:$0xff]
    %v6956 = vld [vmem:[%s17 + $0x150] sm:$0xff]
    %v6957 = vld [vmem:[%s17 + $0x158] sm:$0xff]
    %v6958 = vld [vmem:[%s17 + $0x160] sm:$0xff]
    %v6959 = vld [vmem:[%s17 + $0x168] sm:$0xff]
    %v6960 = vld [vmem:[%s17 + $0x170] sm:$0xff]
    %v6961 = vld [vmem:[%s17 + $0x178] sm:$0xff]
    %v6962 = vld [vmem:[%s17 + $0x180] sm:$0xff]
    %v6963 = vld [vmem:[%s17 + $0x188] sm:$0xff]
    %v6964 = vld [vmem:[%s17 + $0x190] sm:$0xff]
    %v6965 = vld [vmem:[%s17 + $0x198] sm:$0xff]
    %v6966 = vld [vmem:[%s17 + $0x1a0] sm:$0xff]
    %v6967 = vld [vmem:[%s17 + $0x1a8] sm:$0xff]
    %v6968 = vld [vmem:[%s17 + $0x1b0] sm:$0xff]
    %v6969 = vld [vmem:[%s17 + $0x1b8] sm:$0xff]
    %v6970 = vld [vmem:[%s17 + $0x1c0] sm:$0xff]
    %v6971 = vld [vmem:[%s17 + $0x1c8] sm:$0xff]
    %v6972 = vld [vmem:[%s17 + $0x1d0] sm:$0xff]
    %v6973 = vld [vmem:[%s17 + $0x1d8] sm:$0xff]
    %v6974 = vld [vmem:[%s17 + $0x1e0] sm:$0xff]
    %v6975 = vld [vmem:[%s17 + $0x1e8] sm:$0xff]
    %v6976 = vld [vmem:[%s17 + $0x1f0] sm:$0xff]
    %v6977 = vld [vmem:[%s17 + $0x1f8] sm:$0xff]
    %v6978 = vld [vmem:[%s17 + $0x200] sm:$0xff]
    %v6979 = vld [vmem:[%s17 + $0x208] sm:$0xff]
    %v6980 = vld [vmem:[%s17 + $0x210] sm:$0xff]
    %v6981 = vld [vmem:[%s17 + $0x218] sm:$0xff]
    %v6982 = vld [vmem:[%s17 + $0x220] sm:$0xff]
    %v6983 = vld [vmem:[%s17 + $0x228] sm:$0xff]
    %v6984 = vld [vmem:[%s17 + $0x230] sm:$0xff]
    %v6985 = vld [vmem:[%s17 + $0x238] sm:$0xff]
    %v6986 = vld [vmem:[%s17 + $0x240] sm:$0xff]
    %v6987 = vld [vmem:[%s17 + $0x248] sm:$0xff]
    %v6988 = vld [vmem:[%s17 + $0x250] sm:$0xff]
    %v6989 = vld [vmem:[%s17 + $0x258] sm:$0xff]
    %v6990 = vld [vmem:[%s17 + $0x260] sm:$0xff]
    %v6991 = vld [vmem:[%s17 + $0x268] sm:$0xff]
    %v6992 = vld [vmem:[%s17 + $0x270] sm:$0xff]
    %v6993 = vld [vmem:[%s17 + $0x278] sm:$0xff]
    %v6994 = vld [vmem:[%s17 + $0x280] sm:$0xff]
    %v6995 = vld [vmem:[%s17 + $0x288] sm:$0xff]
    %v6996 = vld [vmem:[%s17 + $0x290] sm:$0xff]
    %v6997 = vld [vmem:[%s17 + $0x298] sm:$0xff]
    %v6998 = vld [vmem:[%s17 + $0x2a0] sm:$0xff]
    %v6999 = vld [vmem:[%s17 + $0x2a8] sm:$0xff]
    %v7000 = vld [vmem:[%s17 + $0x2b0] sm:$0xff]
    %v7001 = vld [vmem:[%s17 + $0x2b8] sm:$0xff]
    %v7002 = vld [vmem:[%s17 + $0x2c0] sm:$0xff]
    %v7003 = vld [vmem:[%s17 + $0x2c8] sm:$0xff]
    %v7004 = vld [vmem:[%s17 + $0x2d0] sm:$0xff]
    %v7005 = vld [vmem:[%s17 + $0x2d8] sm:$0xff]
    %v7006 = vld [vmem:[%s17 + $0x2e0] sm:$0xff]
    %v7007 = vld [vmem:[%s17 + $0x2e8] sm:$0xff]
    %v7008 = vld [vmem:[%s17 + $0x2f0] sm:$0xff]
    %v7009 = vld [vmem:[%s17 + $0x2f8] sm:$0xff]
    %v7010 = vld [vmem:[%s17 + $0x300] sm:$0xff]
    %v7011 = vld [vmem:[%s17 + $0x308] sm:$0xff]
    %v7012 = vld [vmem:[%s17 + $0x310] sm:$0xff]
    %v7013 = vld [vmem:[%s17 + $0x318] sm:$0xff]
    %v7014 = vld [vmem:[%s17 + $0x320] sm:$0xff]
    %v7015 = vld [vmem:[%s17 + $0x328] sm:$0xff]
    %v7016 = vld [vmem:[%s17 + $0x330] sm:$0xff]
    %v7017 = vld [vmem:[%s17 + $0x338] sm:$0xff]
    %v7018 = vld [vmem:[%s17 + $0x340] sm:$0xff]
    %v7019 = vld [vmem:[%s17 + $0x348] sm:$0xff]
    %v7020 = vld [vmem:[%s17 + $0x350] sm:$0xff]
    %v7021 = vld [vmem:[%s17 + $0x358] sm:$0xff]
    %v7023 = vsel %vm3202, %v6913, 0
    %7025 = vmatprep.subr.mxu0 0.0
    %7026 = vmatpush1.msra.mxu0 %v6929
    %7027 = vmatprep.subr.mxu0 0.0
    %7028 = vmatpush1.msra.mxu0 %v6928
    %7029 = vmatprep.subr.mxu0 0.0
    %7030 = vmatpush1.msra.mxu0 %v6927
    %7031 = vmatprep.subr.mxu0 0.0
    %7032 = vmatpush1.msra.mxu0 %v6926
    %7033 = vmatprep.subr.mxu0 0.0
    %7034 = vmatpush1.msra.mxu0 %v6925
    %7035 = vmatprep.subr.mxu0 0.0
    %7036 = vmatpush1.msra.mxu0 %v6924
    %7037 = vmatprep.subr.mxu0 0.0
    %7038 = vmatpush1.msra.mxu0 %v6923
    %7039 = vmatprep.subr.mxu0 0.0
    %7040 = vmatpush1.msra.mxu0 %v6922
    %7041 = vmatprep.subr.mxu0 0.0
    %7042 = vmatpush1.msra.mxu0 %v6921
    %7043 = vmatprep.subr.mxu0 0.0
    %7044 = vmatpush1.msra.mxu0 %v6920
    %7045 = vmatprep.subr.mxu0 0.0
    %7046 = vmatpush1.msra.mxu0 %v6919
    %7047 = vmatprep.subr.mxu0 0.0
    %7048 = vmatpush1.msra.mxu0 %v6918
    %7049 = vmatprep.subr.mxu0 0.0
    %7050 = vmatpush1.msra.mxu0 %v6917
    %7051 = vmatprep.subr.mxu0 0.0
    %7052 = vmatpush1.msra.mxu0 %v6916
    %7053 = vmatprep.subr.mxu0 0.0
    %7054 = vmatpush1.msra.mxu0 %v6915
    %7055 = vmatprep.subr.mxu0 0.0
    %7056 = vmatpush1.msra.mxu0 %v6914
    %7057 = vmatprep.subr.mxu0 0.0
    %7058 = vmatpush2.msra.mxu0 %v6945
    %7059 = vmatprep.subr.mxu0 0.0
    %7060 = vmatpush2.msra.mxu0 %v6944
    %7061 = vmatprep.subr.mxu0 0.0
    %7062 = vmatpush2.msra.mxu0 %v6943
    %7063 = vmatprep.subr.mxu0 0.0
    %7064 = vmatpush2.msra.mxu0 %v6942
    %7065 = vmatprep.subr.mxu0 0.0
    %7066 = vmatpush2.msra.mxu0 %v6941
    %7067 = vmatprep.subr.mxu0 0.0
    %7068 = vmatpush2.msra.mxu0 %v6940
    %7069 = vmatprep.subr.mxu0 0.0
    %7070 = vmatpush2.msra.mxu0 %v6939
    %7071 = vmatprep.subr.mxu0 0.0
    %7072 = vmatpush2.msra.mxu0 %v6938
    %7073 = vmatprep.subr.mxu0 0.0
    %7074 = vmatpush2.msra.mxu0 %v6937
    %7075 = vmatprep.subr.mxu0 0.0
    %7076 = vmatpush2.msra.mxu0 %v6936
    %7077 = vmatprep.subr.mxu0 0.0
    %7078 = vmatpush2.msra.mxu0 %v6935
    %7079 = vmatprep.subr.mxu0 0.0
    %7080 = vmatpush2.msra.mxu0 %v6934
    %7081 = vmatprep.subr.mxu0 0.0
    %7082 = vmatpush2.msra.mxu0 %v6933
    %7083 = vmatprep.subr.mxu0 0.0
    %7084 = vmatpush2.msra.mxu0 %v6932
    %7085 = vmatprep.subr.mxu0 0.0
    %7086 = vmatpush2.msra.mxu0 %v6931
    %7087 = vmatprep.subr.mxu0 0.0
    %7088 = vmatpush2.msra.mxu0 %v6930
    %7089 = vmatprep.mubr.f32.mxu0 %v6908
    %7090 = vmatmul.mubr.f32.gmra.mxu0 %v6907
    %v7091 = vpop.f32.mrf.mxu0
    %v7092 = vadd.f32 0.0, %v7091
    %v7093 = vpop.f32.mrf.mxu0
    %7094 = vdwg.mxu0
    %7095 = vmatprep.subr.mxu0 0.0
    %7096 = vmatpush1.msra.mxu0 %v6961
    %7097 = vmatprep.subr.mxu0 0.0
    %7098 = vmatpush1.msra.mxu0 %v6960
    %7099 = vmatprep.subr.mxu0 0.0
    %7100 = vmatpush1.msra.mxu0 %v6959
    %7101 = vmatprep.subr.mxu0 0.0
    %7102 = vmatpush1.msra.mxu0 %v6958
    %7103 = vmatprep.subr.mxu0 0.0
    %7104 = vmatpush1.msra.mxu0 %v6957
    %7105 = vmatprep.subr.mxu0 0.0
    %7106 = vmatpush1.msra.mxu0 %v6956
    %7107 = vmatprep.subr.mxu0 0.0
    %7108 = vmatpush1.msra.mxu0 %v6955
    %7109 = vmatprep.subr.mxu0 0.0
    %7110 = vmatpush1.msra.mxu0 %v6954
    %7111 = vmatprep.subr.mxu0 0.0
    %7112 = vmatpush1.msra.mxu0 %v6953
    %7113 = vmatprep.subr.mxu0 0.0
    %7114 = vmatpush1.msra.mxu0 %v6952
    %7115 = vmatprep.subr.mxu0 0.0
    %7116 = vmatpush1.msra.mxu0 %v6951
    %7117 = vmatprep.subr.mxu0 0.0
    %7118 = vmatpush1.msra.mxu0 %v6950
    %7119 = vmatprep.subr.mxu0 0.0
    %7120 = vmatpush1.msra.mxu0 %v6949
    %7121 = vmatprep.subr.mxu0 0.0
    %7122 = vmatpush1.msra.mxu0 %v6948
    %7123 = vmatprep.subr.mxu0 0.0
    %7124 = vmatpush1.msra.mxu0 %v6947
    %7125 = vmatprep.subr.mxu0 0.0
    %7126 = vmatpush1.msra.mxu0 %v6946
    %7127 = vmatprep.subr.mxu0 0.0
    %7128 = vmatpush2.msra.mxu0 %v6977
    %7129 = vmatprep.subr.mxu0 0.0
    %7130 = vmatpush2.msra.mxu0 %v6976
    %7131 = vmatprep.subr.mxu0 0.0
    %7132 = vmatpush2.msra.mxu0 %v6975
    %7133 = vmatprep.subr.mxu0 0.0
    %7134 = vmatpush2.msra.mxu0 %v6974
    %7135 = vmatprep.subr.mxu0 0.0
    %7136 = vmatpush2.msra.mxu0 %v6973
    %7137 = vmatprep.subr.mxu0 0.0
    %7138 = vmatpush2.msra.mxu0 %v6972
    %7139 = vmatprep.subr.mxu0 0.0
    %7140 = vmatpush2.msra.mxu0 %v6971
    %7141 = vmatprep.subr.mxu0 0.0
    %7142 = vmatpush2.msra.mxu0 %v6970
    %7143 = vmatprep.subr.mxu0 0.0
    %7144 = vmatpush2.msra.mxu0 %v6969
    %7145 = vmatprep.subr.mxu0 0.0
    %7146 = vmatpush2.msra.mxu0 %v6968
    %7147 = vmatprep.subr.mxu0 0.0
    %7148 = vmatpush2.msra.mxu0 %v6967
    %7149 = vmatprep.subr.mxu0 0.0
    %7150 = vmatpush2.msra.mxu0 %v6966
    %7151 = vmatprep.subr.mxu0 0.0
    %7152 = vmatpush2.msra.mxu0 %v6965
    %7153 = vmatprep.subr.mxu0 0.0
    %7154 = vmatpush2.msra.mxu0 %v6964
    %7155 = vmatprep.subr.mxu0 0.0
    %7156 = vmatpush2.msra.mxu0 %v6963
    %7157 = vmatprep.subr.mxu0 0.0
    %7158 = vmatpush2.msra.mxu0 %v6962
    %7159 = vmatprep.mubr.f32.mxu0 %v6910
    %7160 = vmatmul.mubr.f32.gmra.mxu0 %v6909
    %v7161 = vpop.f32.mrf.mxu0
    %v7162 = vadd.f32 %v7092, %v7161
    %v7163 = vpop.f32.mrf.mxu0
    %7164 = vdwg.mxu0
    %7165 = vmatprep.subr.mxu0 0.0
    %7166 = vmatpush1.msra.mxu0 %v6993
    %7167 = vmatprep.subr.mxu0 0.0
    %7168 = vmatpush1.msra.mxu0 %v6992
    %7169 = vmatprep.subr.mxu0 0.0
    %7170 = vmatpush1.msra.mxu0 %v6991
    %7171 = vmatprep.subr.mxu0 0.0
    %7172 = vmatpush1.msra.mxu0 %v6990
    %7173 = vmatprep.subr.mxu0 0.0
    %7174 = vmatpush1.msra.mxu0 %v6989
    %7175 = vmatprep.subr.mxu0 0.0
    %7176 = vmatpush1.msra.mxu0 %v6988
    %7177 = vmatprep.subr.mxu0 0.0
    %7178 = vmatpush1.msra.mxu0 %v6987
    %7179 = vmatprep.subr.mxu0 0.0
    %7180 = vmatpush1.msra.mxu0 %v6986
    %7181 = vmatprep.subr.mxu0 0.0
    %7182 = vmatpush1.msra.mxu0 %v6985
    %7183 = vmatprep.subr.mxu0 0.0
    %7184 = vmatpush1.msra.mxu0 %v6984
    %7185 = vmatprep.subr.mxu0 0.0
    %7186 = vmatpush1.msra.mxu0 %v6983
    %7187 = vmatprep.subr.mxu0 0.0
    %7188 = vmatpush1.msra.mxu0 %v6982
    %7189 = vmatprep.subr.mxu0 0.0
    %7190 = vmatpush1.msra.mxu0 %v6981
    %7191 = vmatprep.subr.mxu0 0.0
    %7192 = vmatpush1.msra.mxu0 %v6980
    %7193 = vmatprep.subr.mxu0 0.0
    %7194 = vmatpush1.msra.mxu0 %v6979
    %7195 = vmatprep.subr.mxu0 0.0
    %7196 = vmatpush1.msra.mxu0 %v6978
    %7197 = vmatprep.subr.mxu0 0.0
    %7198 = vmatpush2.msra.mxu0 %v7009
    %7199 = vmatprep.subr.mxu0 0.0
    %7200 = vmatpush2.msra.mxu0 %v7008
    %7201 = vmatprep.subr.mxu0 0.0
    %7202 = vmatpush2.msra.mxu0 %v7007
    %7203 = vmatprep.subr.mxu0 0.0
    %7204 = vmatpush2.msra.mxu0 %v7006
    %7205 = vmatprep.subr.mxu0 0.0
    %7206 = vmatpush2.msra.mxu0 %v7005
    %7207 = vmatprep.subr.mxu0 0.0
    %7208 = vmatpush2.msra.mxu0 %v7004
    %7209 = vmatprep.subr.mxu0 0.0
    %7210 = vmatpush2.msra.mxu0 %v7003
    %7211 = vmatprep.subr.mxu0 0.0
    %7212 = vmatpush2.msra.mxu0 %v7002
    %7213 = vmatprep.subr.mxu0 0.0
    %7214 = vmatpush2.msra.mxu0 %v7001
    %7215 = vmatprep.subr.mxu0 0.0
    %7216 = vmatpush2.msra.mxu0 %v7000
    %7217 = vmatprep.subr.mxu0 0.0
    %7218 = vmatpush2.msra.mxu0 %v6999
    %7219 = vmatprep.subr.mxu0 0.0
    %7220 = vmatpush2.msra.mxu0 %v6998
    %7221 = vmatprep.subr.mxu0 0.0
    %7222 = vmatpush2.msra.mxu0 %v6997
    %7223 = vmatprep.subr.mxu0 0.0
    %7224 = vmatpush2.msra.mxu0 %v6996
    %7225 = vmatprep.subr.mxu0 0.0
    %7226 = vmatpush2.msra.mxu0 %v6995
    %7227 = vmatprep.subr.mxu0 0.0
    %7228 = vmatpush2.msra.mxu0 %v6994
    %7229 = vmatprep.mubr.f32.mxu0 %v6912
    %7230 = vmatmul.mubr.f32.gmra.mxu0 %v6911
    %v7231 = vpop.f32.mrf.mxu0
    %v7232 = vadd.f32 %v7162, %v7231
    %v7233 = vpop.f32.mrf.mxu0
    %7234 = vdwg.mxu0
    %7235 = vmatprep.subr.mxu0 0.0
    %7236 = vmatpush1.msra.mxu0 0.0
    %7237 = vmatprep.subr.mxu0 0.0
    %7238 = vmatpush1.msra.mxu0 0.0
    %7239 = vmatprep.subr.mxu0 0.0
    %7240 = vmatpush1.msra.mxu0 0.0
    %7241 = vmatprep.subr.mxu0 0.0
    %7242 = vmatpush1.msra.mxu0 0.0
    %7243 = vmatprep.subr.mxu0 0.0
    %7244 = vmatpush1.msra.mxu0 %v7021
    %7245 = vmatprep.subr.mxu0 0.0
    %7246 = vmatpush1.msra.mxu0 %v7020
    %7247 = vmatprep.subr.mxu0 0.0
    %7248 = vmatpush1.msra.mxu0 %v7019
    %7249 = vmatprep.subr.mxu0 0.0
    %7250 = vmatpush1.msra.mxu0 %v7018
    %7251 = vmatprep.subr.mxu0 0.0
    %7252 = vmatpush1.msra.mxu0 %v7017
    %7253 = vmatprep.subr.mxu0 0.0
    %7254 = vmatpush1.msra.mxu0 %v7016
    %7255 = vmatprep.subr.mxu0 0.0
    %7256 = vmatpush1.msra.mxu0 %v7015
    %7257 = vmatprep.subr.mxu0 0.0
    %7258 = vmatpush1.msra.mxu0 %v7014
    %7259 = vmatprep.subr.mxu0 0.0
    %7260 = vmatpush1.msra.mxu0 %v7013
    %7261 = vmatprep.subr.mxu0 0.0
    %7262 = vmatpush1.msra.mxu0 %v7012
    %7263 = vmatprep.subr.mxu0 0.0
    %7264 = vmatpush1.msra.mxu0 %v7011
    %7265 = vmatprep.subr.mxu0 0.0
    %7266 = vmatpush1.msra.mxu0 %v7010
    %7267 = vmatprep.subr.mxu0 0.0
    %7268 = vmatpush2.msra.mxu0 0.0
    %7269 = vmatprep.subr.mxu0 0.0
    %7270 = vmatpush2.msra.mxu0 0.0
    %7271 = vmatprep.subr.mxu0 0.0
    %7272 = vmatpush2.msra.mxu0 0.0
    %7273 = vmatprep.subr.mxu0 0.0
    %7274 = vmatpush2.msra.mxu0 0.0
    %7275 = vmatprep.subr.mxu0 0.0
    %7276 = vmatpush2.msra.mxu0 0.0
    %7277 = vmatprep.subr.mxu0 0.0
    %7278 = vmatpush2.msra.mxu0 0.0
    %7279 = vmatprep.subr.mxu0 0.0
    %7280 = vmatpush2.msra.mxu0 0.0
    %7281 = vmatprep.subr.mxu0 0.0
    %7282 = vmatpush2.msra.mxu0 0.0
    %7283 = vmatprep.subr.mxu0 0.0
    %7284 = vmatpush2.msra.mxu0 0.0
    %7285 = vmatprep.subr.mxu0 0.0
    %7286 = vmatpush2.msra.mxu0 0.0
    %7287 = vmatprep.subr.mxu0 0.0
    %7288 = vmatpush2.msra.mxu0 0.0
    %7289 = vmatprep.subr.mxu0 0.0
    %7290 = vmatpush2.msra.mxu0 0.0
    %7291 = vmatprep.subr.mxu0 0.0
    %7292 = vmatpush2.msra.mxu0 0.0
    %7293 = vmatprep.subr.mxu0 0.0
    %7294 = vmatpush2.msra.mxu0 0.0
    %7295 = vmatprep.subr.mxu0 0.0
    %7296 = vmatpush2.msra.mxu0 0.0
    %7297 = vmatprep.subr.mxu0 0.0
    %7298 = vmatpush2.msra.mxu0 0.0
    %7299 = vmatprep.mubr.f32.mxu0 0.0
    %7300 = vmatmul.mubr.f32.gmra.mxu0 %v7023
    %v7301 = vpop.f32.mrf.mxu0
    %v7302 = vadd.f32 %v7232, %v7301
    %v7303 = vpop.f32.mrf.mxu0
    %7304 = vdwg.mxu0
    %v7305 = vmul.f32 %v7302, 0.0034722222
    %v7306 = vmul.f32 %v7305, %v7305
    %v7308 = vrot.slane %v7306, 7
    %v7310 = vsub.f32 %v7305, %v7308
    %v7311 = vmax.f32 %v7310, 0.0
    %v7312 = vadd.f32 %v7311, 1e-05
    %v7313 = vrsqrt.pop %v7312
    %v7314 = vsel %vm3086, %v7305, %v7313
    %v7315 = vld [vmem:[%s18] sm:$0x3f]
    %v7316 = vld [vmem:[%s18 + $0x8] sm:$0x3f]
    %v7317 = vld [vmem:[%s18 + $0x10] sm:$0x3f]
    %v7318 = vld [vmem:[%s18 + $0x18] sm:$0x3f]
    %v7319 = vld [vmem:[%s18 + $0x20] sm:$0x3f]
    %v7320 = vld [vmem:[%s18 + $0x28] sm:$0x3f]
    %v7321 = vld [vmem:[%s18 + $0x30] sm:$0x3f]
    %v7323 = vsel %vm3503, %v7314, 0
    %v7326 = vsel %vm3507, %v7315, 0
    %v7329 = vsel %vm3507, %v7316, 0
    %v7332 = vsel %vm3507, %v7317, 0
    %v7335 = vsel %vm3507, %v7318, 0
    %v7338 = vsel %vm3507, %v7319, 0
    %v7341 = vsel %vm3507, %v7320, 0
    %v7344 = vsel %vm3507, %v7321, 0
    %7346 = vmatprep.subr.mxu0 0.0
    %7347 = vmatpush1.msra.mxu0 0.0
    %7348 = vmatprep.subr.mxu0 0.0
    %7349 = vmatpush1.msra.mxu0 0.0
    %7350 = vmatprep.subr.mxu0 0.0
    %7351 = vmatpush1.msra.mxu0 0.0
    %7352 = vmatprep.subr.mxu0 0.0
    %7353 = vmatpush1.msra.mxu0 0.0
    %7354 = vmatprep.subr.mxu0 0.0
    %7355 = vmatpush1.msra.mxu0 0.0
    %7356 = vmatprep.subr.mxu0 0.0
    %7357 = vmatpush1.msra.mxu0 0.0
    %7358 = vmatprep.subr.mxu0 0.0
    %7359 = vmatpush1.msra.mxu0 0.0
    %7360 = vmatprep.subr.mxu0 0.0
    %7361 = vmatpush1.msra.mxu0 0.0
    %7362 = vmatprep.subr.mxu0 0.0
    %7363 = vmatpush1.msra.mxu0 0.0
    %7364 = vmatprep.subr.mxu0 0.0
    %7365 = vmatpush1.msra.mxu0 0.0
    %7366 = vmatprep.subr.mxu0 0.0
    %7367 = vmatpush1.msra.mxu0 0.0
    %7368 = vmatprep.subr.mxu0 0.0
    %7369 = vmatpush1.msra.mxu0 0.0
    %7370 = vmatprep.subr.mxu0 0.0
    %7371 = vmatpush1.msra.mxu0 0.0
    %7372 = vmatprep.subr.mxu0 0.0
    %7373 = vmatpush1.msra.mxu0 0.0
    %7374 = vmatprep.subr.mxu0 0.0
    %7375 = vmatpush1.msra.mxu0 0.0
    %7376 = vmatprep.subr.mxu0 %v7329
    %7377 = vmatpush1.msra.mxu0 %v7326
    %7378 = vmatprep.subr.mxu0 0.0
    %7379 = vmatpush2.msra.mxu0 0.0
    %7380 = vmatprep.subr.mxu0 0.0
    %7381 = vmatpush2.msra.mxu0 0.0
    %7382 = vmatprep.subr.mxu0 0.0
    %7383 = vmatpush2.msra.mxu0 0.0
    %7384 = vmatprep.subr.mxu0 0.0
    %7385 = vmatpush2.msra.mxu0 0.0
    %7386 = vmatprep.subr.mxu0 0.0
    %7387 = vmatpush2.msra.mxu0 0.0
    %7388 = vmatprep.subr.mxu0 0.0
    %7389 = vmatpush2.msra.mxu0 0.0
    %7390 = vmatprep.subr.mxu0 0.0
    %7391 = vmatpush2.msra.mxu0 0.0
    %7392 = vmatprep.subr.mxu0 0.0
    %7393 = vmatpush2.msra.mxu0 0.0
    %7394 = vmatprep.subr.mxu0 0.0
    %7395 = vmatpush2.msra.mxu0 0.0
    %7396 = vmatprep.subr.mxu0 0.0
    %7397 = vmatpush2.msra.mxu0 0.0
    %7398 = vmatprep.subr.mxu0 0.0
    %7399 = vmatpush2.msra.mxu0 0.0
    %7400 = vmatprep.subr.mxu0 0.0
    %7401 = vmatpush2.msra.mxu0 0.0
    %7402 = vmatprep.subr.mxu0 0.0
    %7403 = vmatpush2.msra.mxu0 0.0
    %7404 = vmatprep.subr.mxu0 0.0
    %7405 = vmatpush2.msra.mxu0 0.0
    %7406 = vmatprep.subr.mxu0 0.0
    %7407 = vmatpush2.msra.mxu0 0.0
    %7408 = vmatprep.subr.mxu0 0.0
    %7409 = vmatpush2.msra.mxu0 0.0
    %7410 = vmatprep.mubr.f32.mxu0 0.0
    %7411 = vmatmul.mubr.f32.gmra.mxu0 %v7323
    %v7412 = vpop.f32.mrf.mxu0
    %v7413 = vadd.f32 0.0, %v7412
    %v7414 = vpop.f32.mrf.mxu0
    %v7415 = vadd.f32 0.0, %v7414
    %7416 = vdwg.mxu0
    %7417 = vmatprep.subr.mxu0 0.0
    %7418 = vmatpush1.msra.mxu0 0.0
    %7419 = vmatprep.subr.mxu0 0.0
    %7420 = vmatpush1.msra.mxu0 0.0
    %7421 = vmatprep.subr.mxu0 0.0
    %7422 = vmatpush1.msra.mxu0 0.0
    %7423 = vmatprep.subr.mxu0 0.0
    %7424 = vmatpush1.msra.mxu0 0.0
    %7425 = vmatprep.subr.mxu0 0.0
    %7426 = vmatpush1.msra.mxu0 0.0
    %7427 = vmatprep.subr.mxu0 0.0
    %7428 = vmatpush1.msra.mxu0 0.0
    %7429 = vmatprep.subr.mxu0 0.0
    %7430 = vmatpush1.msra.mxu0 0.0
    %7431 = vmatprep.subr.mxu0 0.0
    %7432 = vmatpush1.msra.mxu0 0.0
    %7433 = vmatprep.subr.mxu0 0.0
    %7434 = vmatpush1.msra.mxu0 0.0
    %7435 = vmatprep.subr.mxu0 0.0
    %7436 = vmatpush1.msra.mxu0 0.0
    %7437 = vmatprep.subr.mxu0 0.0
    %7438 = vmatpush1.msra.mxu0 0.0
    %7439 = vmatprep.subr.mxu0 0.0
    %7440 = vmatpush1.msra.mxu0 0.0
    %7441 = vmatprep.subr.mxu0 0.0
    %7442 = vmatpush1.msra.mxu0 0.0
    %7443 = vmatprep.subr.mxu0 0.0
    %7444 = vmatpush1.msra.mxu0 0.0
    %7445 = vmatprep.subr.mxu0 0.0
    %7446 = vmatpush1.msra.mxu0 0.0
    %7447 = vmatprep.subr.mxu0 %v7335
    %7448 = vmatpush1.msra.mxu0 %v7332
    %7449 = vmatprep.subr.mxu0 0.0
    %7450 = vmatpush2.msra.mxu0 0.0
    %7451 = vmatprep.subr.mxu0 0.0
    %7452 = vmatpush2.msra.mxu0 0.0
    %7453 = vmatprep.subr.mxu0 0.0
    %7454 = vmatpush2.msra.mxu0 0.0
    %7455 = vmatprep.subr.mxu0 0.0
    %7456 = vmatpush2.msra.mxu0 0.0
    %7457 = vmatprep.subr.mxu0 0.0
    %7458 = vmatpush2.msra.mxu0 0.0
    %7459 = vmatprep.subr.mxu0 0.0
    %7460 = vmatpush2.msra.mxu0 0.0
    %7461 = vmatprep.subr.mxu0 0.0
    %7462 = vmatpush2.msra.mxu0 0.0
    %7463 = vmatprep.subr.mxu0 0.0
    %7464 = vmatpush2.msra.mxu0 0.0
    %7465 = vmatprep.subr.mxu0 0.0
    %7466 = vmatpush2.msra.mxu0 0.0
    %7467 = vmatprep.subr.mxu0 0.0
    %7468 = vmatpush2.msra.mxu0 0.0
    %7469 = vmatprep.subr.mxu0 0.0
    %7470 = vmatpush2.msra.mxu0 0.0
    %7471 = vmatprep.subr.mxu0 0.0
    %7472 = vmatpush2.msra.mxu0 0.0
    %7473 = vmatprep.subr.mxu0 0.0
    %7474 = vmatpush2.msra.mxu0 0.0
    %7475 = vmatprep.subr.mxu0 0.0
    %7476 = vmatpush2.msra.mxu0 0.0
    %7477 = vmatprep.subr.mxu0 0.0
    %7478 = vmatpush2.msra.mxu0 0.0
    %7479 = vmatprep.subr.mxu0 0.0
    %7480 = vmatpush2.msra.mxu0 0.0
    %7481 = vmatprep.mubr.f32.mxu0 0.0
    %7482 = vmatmul.mubr.f32.gmra.mxu0 %v7323
    %v7483 = vpop.f32.mrf.mxu0
    %v7484 = vadd.f32 0.0, %v7483
    %v7485 = vpop.f32.mrf.mxu0
    %v7486 = vadd.f32 0.0, %v7485
    %7487 = vdwg.mxu0
    %7488 = vmatprep.subr.mxu0 0.0
    %7489 = vmatpush1.msra.mxu0 0.0
    %7490 = vmatprep.subr.mxu0 0.0
    %7491 = vmatpush1.msra.mxu0 0.0
    %7492 = vmatprep.subr.mxu0 0.0
    %7493 = vmatpush1.msra.mxu0 0.0
    %7494 = vmatprep.subr.mxu0 0.0
    %7495 = vmatpush1.msra.mxu0 0.0
    %7496 = vmatprep.subr.mxu0 0.0
    %7497 = vmatpush1.msra.mxu0 0.0
    %7498 = vmatprep.subr.mxu0 0.0
    %7499 = vmatpush1.msra.mxu0 0.0
    %7500 = vmatprep.subr.mxu0 0.0
    %7501 = vmatpush1.msra.mxu0 0.0
    %7502 = vmatprep.subr.mxu0 0.0
    %7503 = vmatpush1.msra.mxu0 0.0
    %7504 = vmatprep.subr.mxu0 0.0
    %7505 = vmatpush1.msra.mxu0 0.0
    %7506 = vmatprep.subr.mxu0 0.0
    %7507 = vmatpush1.msra.mxu0 0.0
    %7508 = vmatprep.subr.mxu0 0.0
    %7509 = vmatpush1.msra.mxu0 0.0
    %7510 = vmatprep.subr.mxu0 0.0
    %7511 = vmatpush1.msra.mxu0 0.0
    %7512 = vmatprep.subr.mxu0 0.0
    %7513 = vmatpush1.msra.mxu0 0.0
    %7514 = vmatprep.subr.mxu0 0.0
    %7515 = vmatpush1.msra.mxu0 0.0
    %7516 = vmatprep.subr.mxu0 0.0
    %7517 = vmatpush1.msra.mxu0 0.0
    %7518 = vmatprep.subr.mxu0 %v7341
    %7519 = vmatpush1.msra.mxu0 %v7338
    %7520 = vmatprep.subr.mxu0 0.0
    %7521 = vmatpush2.msra.mxu0 0.0
    %7522 = vmatprep.subr.mxu0 0.0
    %7523 = vmatpush2.msra.mxu0 0.0
    %7524 = vmatprep.subr.mxu0 0.0
    %7525 = vmatpush2.msra.mxu0 0.0
    %7526 = vmatprep.subr.mxu0 0.0
    %7527 = vmatpush2.msra.mxu0 0.0
    %7528 = vmatprep.subr.mxu0 0.0
    %7529 = vmatpush2.msra.mxu0 0.0
    %7530 = vmatprep.subr.mxu0 0.0
    %7531 = vmatpush2.msra.mxu0 0.0
    %7532 = vmatprep.subr.mxu0 0.0
    %7533 = vmatpush2.msra.mxu0 0.0
    %7534 = vmatprep.subr.mxu0 0.0
    %7535 = vmatpush2.msra.mxu0 0.0
    %7536 = vmatprep.subr.mxu0 0.0
    %7537 = vmatpush2.msra.mxu0 0.0
    %7538 = vmatprep.subr.mxu0 0.0
    %7539 = vmatpush2.msra.mxu0 0.0
    %7540 = vmatprep.subr.mxu0 0.0
    %7541 = vmatpush2.msra.mxu0 0.0
    %7542 = vmatprep.subr.mxu0 0.0
    %7543 = vmatpush2.msra.mxu0 0.0
    %7544 = vmatprep.subr.mxu0 0.0
    %7545 = vmatpush2.msra.mxu0 0.0
    %7546 = vmatprep.subr.mxu0 0.0
    %7547 = vmatpush2.msra.mxu0 0.0
    %7548 = vmatprep.subr.mxu0 0.0
    %7549 = vmatpush2.msra.mxu0 0.0
    %7550 = vmatprep.subr.mxu0 0.0
    %7551 = vmatpush2.msra.mxu0 0.0
    %7552 = vmatprep.mubr.f32.mxu0 0.0
    %7553 = vmatmul.mubr.f32.gmra.mxu0 %v7323
    %v7554 = vpop.f32.mrf.mxu0
    %v7555 = vadd.f32 0.0, %v7554
    %v7556 = vpop.f32.mrf.mxu0
    %v7557 = vadd.f32 0.0, %v7556
    %7558 = vdwg.mxu0
    %7559 = vmatprep.subr.mxu0 0.0
    %7560 = vmatpush1.msra.mxu0 0.0
    %7561 = vmatprep.subr.mxu0 0.0
    %7562 = vmatpush1.msra.mxu0 0.0
    %7563 = vmatprep.subr.mxu0 0.0
    %7564 = vmatpush1.msra.mxu0 0.0
    %7565 = vmatprep.subr.mxu0 0.0
    %7566 = vmatpush1.msra.mxu0 0.0
    %7567 = vmatprep.subr.mxu0 0.0
    %7568 = vmatpush1.msra.mxu0 0.0
    %7569 = vmatprep.subr.mxu0 0.0
    %7570 = vmatpush1.msra.mxu0 0.0
    %7571 = vmatprep.subr.mxu0 0.0
    %7572 = vmatpush1.msra.mxu0 0.0
    %7573 = vmatprep.subr.mxu0 0.0
    %7574 = vmatpush1.msra.mxu0 0.0
    %7575 = vmatprep.subr.mxu0 0.0
    %7576 = vmatpush1.msra.mxu0 0.0
    %7577 = vmatprep.subr.mxu0 0.0
    %7578 = vmatpush1.msra.mxu0 0.0
    %7579 = vmatprep.subr.mxu0 0.0
    %7580 = vmatpush1.msra.mxu0 0.0
    %7581 = vmatprep.subr.mxu0 0.0
    %7582 = vmatpush1.msra.mxu0 0.0
    %7583 = vmatprep.subr.mxu0 0.0
    %7584 = vmatpush1.msra.mxu0 0.0
    %7585 = vmatprep.subr.mxu0 0.0
    %7586 = vmatpush1.msra.mxu0 0.0
    %7587 = vmatprep.subr.mxu0 0.0
    %7588 = vmatpush1.msra.mxu0 0.0
    %7589 = vmatprep.subr.mxu0 0.0
    %7590 = vmatpush1.msra.mxu0 %v7344
    %7591 = vmatprep.subr.mxu0 0.0
    %7592 = vmatpush2.msra.mxu0 0.0
    %7593 = vmatprep.subr.mxu0 0.0
    %7594 = vmatpush2.msra.mxu0 0.0
    %7595 = vmatprep.subr.mxu0 0.0
    %7596 = vmatpush2.msra.mxu0 0.0
    %7597 = vmatprep.subr.mxu0 0.0
    %7598 = vmatpush2.msra.mxu0 0.0
    %7599 = vmatprep.subr.mxu0 0.0
    %7600 = vmatpush2.msra.mxu0 0.0
    %7601 = vmatprep.subr.mxu0 0.0
    %7602 = vmatpush2.msra.mxu0 0.0
    %7603 = vmatprep.subr.mxu0 0.0
    %7604 = vmatpush2.msra.mxu0 0.0
    %7605 = vmatprep.subr.mxu0 0.0
    %7606 = vmatpush2.msra.mxu0 0.0
    %7607 = vmatprep.subr.mxu0 0.0
    %7608 = vmatpush2.msra.mxu0 0.0
    %7609 = vmatprep.subr.mxu0 0.0
    %7610 = vmatpush2.msra.mxu0 0.0
    %7611 = vmatprep.subr.mxu0 0.0
    %7612 = vmatpush2.msra.mxu0 0.0
    %7613 = vmatprep.subr.mxu0 0.0
    %7614 = vmatpush2.msra.mxu0 0.0
    %7615 = vmatprep.subr.mxu0 0.0
    %7616 = vmatpush2.msra.mxu0 0.0
    %7617 = vmatprep.subr.mxu0 0.0
    %7618 = vmatpush2.msra.mxu0 0.0
    %7619 = vmatprep.subr.mxu0 0.0
    %7620 = vmatpush2.msra.mxu0 0.0
    %7621 = vmatprep.subr.mxu0 0.0
    %7622 = vmatpush2.msra.mxu0 0.0
    %7623 = vmatprep.mubr.f32.mxu0 0.0
    %7624 = vmatmul.mubr.f32.gmra.mxu0 %v7323
    %v7625 = vpop.f32.mrf.mxu0
    %v7626 = vadd.f32 0.0, %v7625
    %v7627 = vpop.f32.mrf.mxu0
    %7628 = vdwg.mxu0
    %v7636 = vcombine.low %v7413, %v7415
    %v7637 = vcombine.low %v7484, %v7486
    %v7638 = vcombine.low %v7555, %v7557
    %v7640 = vunpack.c.l.s4 1966171168
    %v7641 = vunpack.c.0.s8 %v7640
    %v7642 = vlaneseq
    %v7643 = vshrl.u32 %v7642, 7
    %v7644 = vsub.s32 %v7641, %v7643
    %v7645 = vrot.slane %v7636, %v7644
    %v7647 = vunpack.c.l.s4 1966171168
    %v7648 = vunpack.c.0.s8 %v7647
    %v7649 = vlaneseq
    %v7650 = vshrl.u32 %v7649, 7
    %v7651 = vsub.s32 %v7648, %v7650
    %v7652 = vrot.slane %v7637, %v7651
    %v7654 = vunpack.c.l.s4 1966171168
    %v7655 = vunpack.c.0.s8 %v7654
    %v7656 = vlaneseq
    %v7657 = vshrl.u32 %v7656, 7
    %v7658 = vsub.s32 %v7655, %v7657
    %v7659 = vrot.slane %v7638, %v7658
    %v7661 = vunpack.c.l.s4 1966171168
    %v7662 = vunpack.c.0.s8 %v7661
    %v7663 = vlaneseq
    %v7664 = vshrl.u32 %v7663, 7
    %v7665 = vsub.s32 %v7662, %v7664
    %v7666 = vrot.slane %v7626, %v7665
    %v7667 = vcombine.high %v7645, %v7652
    %v7668 = vcombine.high %v7659, %v7666
    %v7670 = vunpack.c.l.s4 1966171168
    %v7671 = vunpack.c.0.s8 %v7670
    %v7672 = vlaneseq
    %v7673 = vshrl.u32 %v7672, 7
    %v7674 = vsub.s32 %v7671, %v7673
    %v7675 = vrot.slane %v7667, %v7674
    %v7677 = vunpack.c.l.s4 1966171168
    %v7678 = vunpack.c.0.s8 %v7677
    %v7679 = vlaneseq
    %v7680 = vshrl.u32 %v7679, 7
    %v7681 = vsub.s32 %v7678, %v7680
    %v7682 = vrot.slane %v7668, %v7681
    %v7683 = vcombine.low %v7675, %v7682
    %v7685 = vmul.f32 %v6024, %v7683
    %v7687 = vlaneseq
    %v7688 = vshrl.u32 %v7687, 7
    %v7689 = vsub.s32 0, %v7688
    %v7690 = vrot.slane %v7685, %v7689
    %v7691 = vlaneseq
    %v7692 = vshrl.u32 %v7691, 7
    %v7693 = vsub.s32 1, %v7692
    %v7694 = vrot.slane %v7685, %v7693
    %v7695 = vlaneseq
    %v7696 = vshrl.u32 %v7695, 7
    %v7697 = vsub.s32 2, %v7696
    %v7698 = vrot.slane %v7685, %v7697
    %v7699 = vlaneseq
    %v7700 = vshrl.u32 %v7699, 7
    %v7701 = vsub.s32 3, %v7700
    %v7702 = vrot.slane %v7685, %v7701
    %v7703 = vlaneseq
    %v7704 = vshrl.u32 %v7703, 7
    %v7705 = vsub.s32 4, %v7704
    %v7706 = vrot.slane %v7685, %v7705
    %v7707 = vlaneseq
    %v7708 = vshrl.u32 %v7707, 7
    %v7709 = vsub.s32 5, %v7708
    %v7710 = vrot.slane %v7685, %v7709
    %v7711 = vlaneseq
    %v7712 = vshrl.u32 %v7711, 7
    %v7713 = vsub.s32 6, %v7712
    %v7714 = vrot.slane %v7685, %v7713
    %v7722 = vmul.f32 %v7413, %v7690
    %v7723 = vmul.f32 %v7415, %v7694
    %v7724 = vmul.f32 %v7484, %v7698
    %v7725 = vmul.f32 %v7486, %v7702
    %v7726 = vmul.f32 %v7555, %v7706
    %v7727 = vmul.f32 %v7557, %v7710
    %v7728 = vmul.f32 %v7626, %v7714
    %v7736 = vcombine.low %v7722, %v7723
    %v7737 = vcombine.low %v7724, %v7725
    %v7738 = vcombine.low %v7726, %v7727
    %v7740 = vunpack.c.l.s4 1966171168
    %v7741 = vunpack.c.0.s8 %v7740
    %v7742 = vlaneseq
    %v7743 = vshrl.u32 %v7742, 7
    %v7744 = vsub.s32 %v7741, %v7743
    %v7745 = vrot.slane %v7736, %v7744
    %v7747 = vunpack.c.l.s4 1966171168
    %v7748 = vunpack.c.0.s8 %v7747
    %v7749 = vlaneseq
    %v7750 = vshrl.u32 %v7749, 7
    %v7751 = vsub.s32 %v7748, %v7750
    %v7752 = vrot.slane %v7737, %v7751
    %v7754 = vunpack.c.l.s4 1966171168
    %v7755 = vunpack.c.0.s8 %v7754
    %v7756 = vlaneseq
    %v7757 = vshrl.u32 %v7756, 7
    %v7758 = vsub.s32 %v7755, %v7757
    %v7759 = vrot.slane %v7738, %v7758
    %v7761 = vunpack.c.l.s4 1966171168
    %v7762 = vunpack.c.0.s8 %v7761
    %v7763 = vlaneseq
    %v7764 = vshrl.u32 %v7763, 7
    %v7765 = vsub.s32 %v7762, %v7764
    %v7766 = vrot.slane %v7728, %v7765
    %v7767 = vcombine.low %v7745, %v7752
    %v7768 = vcombine.low %v7759, %v7766
    %v7770 = vunpack.c.l.s4 1966171168
    %v7771 = vunpack.c.0.s8 %v7770
    %v7772 = vlaneseq
    %v7773 = vshrl.u32 %v7772, 7
    %v7774 = vsub.s32 %v7771, %v7773
    %v7775 = vrot.slane %v7767, %v7774
    %v7777 = vunpack.c.l.s4 1966171168
    %v7778 = vunpack.c.0.s8 %v7777
    %v7779 = vlaneseq
    %v7780 = vshrl.u32 %v7779, 7
    %v7781 = vsub.s32 %v7778, %v7780
    %v7782 = vrot.slane %v7768, %v7781
    %v7783 = vcombine.low %v7775, %v7782
    %v7785 = vsub.f32 %v6026, %v7783
    %v7786 = vmul.f32 %v6674, %v7690
    %v7787 = vmul.f32 %v6676, %v7694
    %v7788 = vmul.f32 %v6715, %v7698
    %v7789 = vmul.f32 %v6717, %v7702
    %v7790 = vmul.f32 %v6756, %v7706
    %v7791 = vmul.f32 %v6758, %v7710
    %v7792 = vmul.f32 %v6797, %v7714
    %v7794 = vlaneseq
    %v7795 = vshrl.u32 %v7794, 7
    %v7796 = vsub.s32 0, %v7795
    %v7797 = vrot.slane %v7785, %v7796
    %v7798 = vlaneseq
    %v7799 = vshrl.u32 %v7798, 7
    %v7800 = vsub.s32 1, %v7799
    %v7801 = vrot.slane %v7785, %v7800
    %v7802 = vlaneseq
    %v7803 = vshrl.u32 %v7802, 7
    %v7804 = vsub.s32 2, %v7803
    %v7805 = vrot.slane %v7785, %v7804
    %v7806 = vlaneseq
    %v7807 = vshrl.u32 %v7806, 7
    %v7808 = vsub.s32 3, %v7807
    %v7809 = vrot.slane %v7785, %v7808
    %v7810 = vlaneseq
    %v7811 = vshrl.u32 %v7810, 7
    %v7812 = vsub.s32 4, %v7811
    %v7813 = vrot.slane %v7785, %v7812
    %v7814 = vlaneseq
    %v7815 = vshrl.u32 %v7814, 7
    %v7816 = vsub.s32 5, %v7815
    %v7817 = vrot.slane %v7785, %v7816
    %v7818 = vlaneseq
    %v7819 = vshrl.u32 %v7818, 7
    %v7820 = vsub.s32 6, %v7819
    %v7821 = vrot.slane %v7785, %v7820
    %v7829 = vadd.f32 %v7786, %v7797
    %v7830 = vadd.f32 %v7787, %v7801
    %v7831 = vadd.f32 %v7788, %v7805
    %v7832 = vadd.f32 %v7789, %v7809
    %v7833 = vadd.f32 %v7790, %v7813
    %v7834 = vadd.f32 %v7791, %v7817
    %v7835 = vadd.f32 %v7792, %v7821
    %v7836 = vmax.f32 %v7829, 0.0
    %v7837 = vmax.f32 %v7830, 0.0
    %v7838 = vmax.f32 %v7831, 0.0
    %v7839 = vmax.f32 %v7832, 0.0
    %v7840 = vmax.f32 %v7833, 0.0
    %v7841 = vmax.f32 %v7834, 0.0
    %v7842 = vmax.f32 %v7835, 0.0
    %v7843 = vpack.c.bf16 %v7836, %v7836
    %v7844 = vpack.c.bf16 %v7837, %v7837
    %v7845 = vpack.c.bf16 %v7838, %v7838
    %v7846 = vpack.c.bf16 %v7839, %v7839
    %v7847 = vpack.c.bf16 %v7840, %v7840
    %v7848 = vpack.c.bf16 %v7841, %v7841
    %v7849 = vpack.c.bf16 %v7842, %v7842
    %v7850 = vld [vmem:[%s15] sm:$0xff]
    %v7851 = vld [vmem:[%s15 + $0x8] sm:$0xff]
    %v7852 = vld [vmem:[%s15 + $0x10] sm:$0xff]
    %v7853 = vld [vmem:[%s15 + $0x18] sm:$0xf]
    %v7854 = vld [vmem:[%s15 + $0x1c] sm:$0xff]
    %v7855 = vld [vmem:[%s15 + $0x24] sm:$0xff]
    %v7856 = vld [vmem:[%s15 + $0x2c] sm:$0xff]
    %v7857 = vld [vmem:[%s15 + $0x34] sm:$0xf]
    %v7858 = vld [vmem:[%s15 + $0x38] sm:$0xff]
    %v7859 = vld [vmem:[%s15 + $0x40] sm:$0xff]
    %v7860 = vld [vmem:[%s15 + $0x48] sm:$0xff]
    %v7861 = vld [vmem:[%s15 + $0x50] sm:$0xf]
    %v7862 = vld [vmem:[%s15 + $0x54] sm:$0xff]
    %v7863 = vld [vmem:[%s15 + $0x5c] sm:$0xff]
    %v7864 = vld [vmem:[%s15 + $0x64] sm:$0xff]
    %v7865 = vld [vmem:[%s15 + $0x6c] sm:$0xf]
    %v7866 = vld [vmem:[%s15 + $0x70] sm:$0xff]
    %v7867 = vld [vmem:[%s15 + $0x78] sm:$0xff]
    %v7868 = vld [vmem:[%s15 + $0x80] sm:$0xff]
    %v7869 = vld [vmem:[%s15 + $0x88] sm:$0xf]
    %v7870 = vld [vmem:[%s15 + $0x8c] sm:$0xff]
    %v7871 = vld [vmem:[%s15 + $0x94] sm:$0xff]
    %v7872 = vld [vmem:[%s15 + $0x9c] sm:$0xff]
    %v7873 = vld [vmem:[%s15 + $0xa4] sm:$0xf]
    %v7874 = vld [vmem:[%s15 + $0xa8] sm:$0xff]
    %v7875 = vld [vmem:[%s15 + $0xb0] sm:$0xff]
    %v7876 = vld [vmem:[%s15 + $0xb8] sm:$0xff]
    %v7877 = vld [vmem:[%s15 + $0xc0] sm:$0xf]
    %v7878 = vld [vmem:[%s15 + $0xc4] sm:$0xff]
    %v7879 = vld [vmem:[%s15 + $0xcc] sm:$0xff]
    %v7880 = vld [vmem:[%s15 + $0xd4] sm:$0xff]
    %v7881 = vld [vmem:[%s15 + $0xdc] sm:$0xf]
    %v7882 = vld [vmem:[%s15 + $0xe0] sm:$0xff]
    %v7883 = vld [vmem:[%s15 + $0xe8] sm:$0xff]
    %v7884 = vld [vmem:[%s15 + $0xf0] sm:$0xff]
    %v7885 = vld [vmem:[%s15 + $0xf8] sm:$0xf]
    %v7886 = vld [vmem:[%s15 + $0xfc] sm:$0xff]
    %v7887 = vld [vmem:[%s15 + $0x104] sm:$0xff]
    %v7888 = vld [vmem:[%s15 + $0x10c] sm:$0xff]
    %v7889 = vld [vmem:[%s15 + $0x114] sm:$0xf]
    %v7890 = vld [vmem:[%s15 + $0x118] sm:$0xff]
    %v7891 = vld [vmem:[%s15 + $0x120] sm:$0xff]
    %v7892 = vld [vmem:[%s15 + $0x128] sm:$0xff]
    %v7893 = vld [vmem:[%s15 + $0x130] sm:$0xf]
    %v7894 = vld [vmem:[%s15 + $0x134] sm:$0xff]
    %v7895 = vld [vmem:[%s15 + $0x13c] sm:$0xff]
    %v7896 = vld [vmem:[%s15 + $0x144] sm:$0xff]
    %v7897 = vld [vmem:[%s15 + $0x14c] sm:$0xf]
    %v7898 = vld [vmem:[%s15 + $0x150] sm:$0xff]
    %v7899 = vld [vmem:[%s15 + $0x158] sm:$0xff]
    %v7900 = vld [vmem:[%s15 + $0x160] sm:$0xff]
    %v7901 = vld [vmem:[%s15 + $0x168] sm:$0xf]
    %v7902 = vld [vmem:[%s15 + $0x16c] sm:$0xff]
    %v7903 = vld [vmem:[%s15 + $0x174] sm:$0xff]
    %v7904 = vld [vmem:[%s15 + $0x17c] sm:$0xff]
    %v7905 = vld [vmem:[%s15 + $0x184] sm:$0xf]
    %v7906 = vld [vmem:[%s15 + $0x188] sm:$0xff]
    %v7907 = vld [vmem:[%s15 + $0x190] sm:$0xff]
    %v7908 = vld [vmem:[%s15 + $0x198] sm:$0xff]
    %v7909 = vld [vmem:[%s15 + $0x1a0] sm:$0xf]
    %v7910 = vld [vmem:[%s15 + $0x1a4] sm:$0xff]
    %v7911 = vld [vmem:[%s15 + $0x1ac] sm:$0xff]
    %v7912 = vld [vmem:[%s15 + $0x1b4] sm:$0xff]
    %v7913 = vld [vmem:[%s15 + $0x1bc] sm:$0xf]
    %v7914 = vld [vmem:[%s15 + $0x1c0] sm:$0xff]
    %v7915 = vld [vmem:[%s15 + $0x1c8] sm:$0xff]
    %v7916 = vld [vmem:[%s15 + $0x1d0] sm:$0xff]
    %v7917 = vld [vmem:[%s15 + $0x1d8] sm:$0xf]
    %v7918 = vld [vmem:[%s15 + $0x1dc] sm:$0xff]
    %v7919 = vld [vmem:[%s15 + $0x1e4] sm:$0xff]
    %v7920 = vld [vmem:[%s15 + $0x1ec] sm:$0xff]
    %v7921 = vld [vmem:[%s15 + $0x1f4] sm:$0xf]
    %v7922 = vld [vmem:[%s15 + $0x1f8] sm:$0xff]
    %v7923 = vld [vmem:[%s15 + $0x200] sm:$0xff]
    %v7924 = vld [vmem:[%s15 + $0x208] sm:$0xff]
    %v7925 = vld [vmem:[%s15 + $0x210] sm:$0xf]
    %v7926 = vld [vmem:[%s15 + $0x214] sm:$0xff]
    %v7927 = vld [vmem:[%s15 + $0x21c] sm:$0xff]
    %v7928 = vld [vmem:[%s15 + $0x224] sm:$0xff]
    %v7929 = vld [vmem:[%s15 + $0x22c] sm:$0xf]
    %v7930 = vld [vmem:[%s15 + $0x230] sm:$0xff]
    %v7931 = vld [vmem:[%s15 + $0x238] sm:$0xff]
    %v7932 = vld [vmem:[%s15 + $0x240] sm:$0xff]
    %v7933 = vld [vmem:[%s15 + $0x248] sm:$0xf]
    %v7934 = vld [vmem:[%s15 + $0x24c] sm:$0xff]
    %v7935 = vld [vmem:[%s15 + $0x254] sm:$0xff]
    %v7936 = vld [vmem:[%s15 + $0x25c] sm:$0xff]
    %v7937 = vld [vmem:[%s15 + $0x264] sm:$0xf]
    %v7938 = vld [vmem:[%s15 + $0x268] sm:$0xff]
    %v7939 = vld [vmem:[%s15 + $0x270] sm:$0xff]
    %v7940 = vld [vmem:[%s15 + $0x278] sm:$0xff]
    %v7941 = vld [vmem:[%s15 + $0x280] sm:$0xf]
    %v7942 = vld [vmem:[%s15 + $0x284] sm:$0xff]
    %v7943 = vld [vmem:[%s15 + $0x28c] sm:$0xff]
    %v7944 = vld [vmem:[%s15 + $0x294] sm:$0xff]
    %v7945 = vld [vmem:[%s15 + $0x29c] sm:$0xf]
    %v7946 = vld [vmem:[%s15 + $0x2a0] sm:$0xff]
    %v7947 = vld [vmem:[%s15 + $0x2a8] sm:$0xff]
    %v7948 = vld [vmem:[%s15 + $0x2b0] sm:$0xff]
    %v7949 = vld [vmem:[%s15 + $0x2b8] sm:$0xf]
    %v7950 = vld [vmem:[%s15 + $0x2bc] sm:$0xff]
    %v7951 = vld [vmem:[%s15 + $0x2c4] sm:$0xff]
    %v7952 = vld [vmem:[%s15 + $0x2cc] sm:$0xff]
    %v7953 = vld [vmem:[%s15 + $0x2d4] sm:$0xf]
    %v7954 = vld [vmem:[%s15 + $0x2d8] sm:$0xff]
    %v7955 = vld [vmem:[%s15 + $0x2e0] sm:$0xff]
    %v7956 = vld [vmem:[%s15 + $0x2e8] sm:$0xff]
    %v7957 = vld [vmem:[%s15 + $0x2f0] sm:$0xf]
    %v7958 = vld [vmem:[%s15 + $0x2f4] sm:$0xff]
    %v7959 = vld [vmem:[%s15 + $0x2fc] sm:$0xff]
    %v7960 = vld [vmem:[%s15 + $0x304] sm:$0xff]
    %v7961 = vld [vmem:[%s15 + $0x30c] sm:$0xf]
    %v7962 = vld [vmem:[%s15 + $0x310] sm:$0xff]
    %v7963 = vld [vmem:[%s15 + $0x318] sm:$0xff]
    %v7964 = vld [vmem:[%s15 + $0x320] sm:$0xff]
    %v7965 = vld [vmem:[%s15 + $0x328] sm:$0xf]
    %v7966 = vld [vmem:[%s15 + $0x32c] sm:$0xff]
    %v7967 = vld [vmem:[%s15 + $0x334] sm:$0xff]
    %v7968 = vld [vmem:[%s15 + $0x33c] sm:$0xff]
    %v7969 = vld [vmem:[%s15 + $0x344] sm:$0xf]
    %v7970 = vld [vmem:[%s15 + $0x348] sm:$0xff]
    %v7971 = vld [vmem:[%s15 + $0x350] sm:$0xff]
    %v7972 = vld [vmem:[%s15 + $0x358] sm:$0xff]
    %v7973 = vld [vmem:[%s15 + $0x360] sm:$0xf]
    %v7974 = vld [vmem:[%s15 + $0x364] sm:$0xff]
    %v7975 = vld [vmem:[%s15 + $0x36c] sm:$0xff]
    %v7976 = vld [vmem:[%s15 + $0x374] sm:$0xff]
    %v7977 = vld [vmem:[%s15 + $0x37c] sm:$0xf]
    %v7978 = vld [vmem:[%s15 + $0x380] sm:$0xff]
    %v7979 = vld [vmem:[%s15 + $0x388] sm:$0xff]
    %v7980 = vld [vmem:[%s15 + $0x390] sm:$0xff]
    %v7981 = vld [vmem:[%s15 + $0x398] sm:$0xf]
    %v7982 = vld [vmem:[%s15 + $0x39c] sm:$0xff]
    %v7983 = vld [vmem:[%s15 + $0x3a4] sm:$0xff]
    %v7984 = vld [vmem:[%s15 + $0x3ac] sm:$0xff]
    %v7985 = vld [vmem:[%s15 + $0x3b4] sm:$0xf]
    %v7986 = vld [vmem:[%s15 + $0x3b8] sm:$0xff]
    %v7987 = vld [vmem:[%s15 + $0x3c0] sm:$0xff]
    %v7988 = vld [vmem:[%s15 + $0x3c8] sm:$0xff]
    %v7989 = vld [vmem:[%s15 + $0x3d0] sm:$0xf]
    %v7990 = vld [vmem:[%s15 + $0x3d4] sm:$0xff]
    %v7991 = vld [vmem:[%s15 + $0x3dc] sm:$0xff]
    %v7992 = vld [vmem:[%s15 + $0x3e4] sm:$0xff]
    %v7993 = vld [vmem:[%s15 + $0x3ec] sm:$0xf]
    %v7994 = vld [vmem:[%s15 + $0x3f0] sm:$0xff]
    %v7995 = vld [vmem:[%s15 + $0x3f8] sm:$0xff]
    %v7996 = vld [vmem:[%s15 + $0x400] sm:$0xff]
    %v7997 = vld [vmem:[%s15 + $0x408] sm:$0xf]
    %v7998 = vld [vmem:[%s15 + $0x40c] sm:$0xff]
    %v7999 = vld [vmem:[%s15 + $0x414] sm:$0xff]
    %v8000 = vld [vmem:[%s15 + $0x41c] sm:$0xff]
    %v8001 = vld [vmem:[%s15 + $0x424] sm:$0xf]
    %v8002 = vld [vmem:[%s15 + $0x428] sm:$0xff]
    %v8003 = vld [vmem:[%s15 + $0x430] sm:$0xff]
    %v8004 = vld [vmem:[%s15 + $0x438] sm:$0xff]
    %v8005 = vld [vmem:[%s15 + $0x440] sm:$0xf]
    %v8006 = vld [vmem:[%s15 + $0x444] sm:$0xff]
    %v8007 = vld [vmem:[%s15 + $0x44c] sm:$0xff]
    %v8008 = vld [vmem:[%s15 + $0x454] sm:$0xff]
    %v8009 = vld [vmem:[%s15 + $0x45c] sm:$0xf]
    %v8010 = vld [vmem:[%s15 + $0x460] sm:$0xff]
    %v8011 = vld [vmem:[%s15 + $0x468] sm:$0xff]
    %v8012 = vld [vmem:[%s15 + $0x470] sm:$0xff]
    %v8013 = vld [vmem:[%s15 + $0x478] sm:$0xf]
    %v8014 = vld [vmem:[%s15 + $0x47c] sm:$0xff]
    %v8015 = vld [vmem:[%s15 + $0x484] sm:$0xff]
    %v8016 = vld [vmem:[%s15 + $0x48c] sm:$0xff]
    %v8017 = vld [vmem:[%s15 + $0x494] sm:$0xf]
    %v8018 = vld [vmem:[%s15 + $0x498] sm:$0xff]
    %v8019 = vld [vmem:[%s15 + $0x4a0] sm:$0xff]
    %v8020 = vld [vmem:[%s15 + $0x4a8] sm:$0xff]
    %v8021 = vld [vmem:[%s15 + $0x4b0] sm:$0xf]
    %v8022 = vld [vmem:[%s15 + $0x4b4] sm:$0xff]
    %v8023 = vld [vmem:[%s15 + $0x4bc] sm:$0xff]
    %v8024 = vld [vmem:[%s15 + $0x4c4] sm:$0xff]
    %v8025 = vld [vmem:[%s15 + $0x4cc] sm:$0xf]
    %v8026 = vld [vmem:[%s15 + $0x4d0] sm:$0xff]
    %v8027 = vld [vmem:[%s15 + $0x4d8] sm:$0xff]
    %v8028 = vld [vmem:[%s15 + $0x4e0] sm:$0xff]
    %v8029 = vld [vmem:[%s15 + $0x4e8] sm:$0xf]
    %v8030 = vld [vmem:[%s15 + $0x4ec] sm:$0xff]
    %v8031 = vld [vmem:[%s15 + $0x4f4] sm:$0xff]
    %v8032 = vld [vmem:[%s15 + $0x4fc] sm:$0xff]
    %v8033 = vld [vmem:[%s15 + $0x504] sm:$0xf]
    %v8034 = vld [vmem:[%s15 + $0x508] sm:$0xff]
    %v8035 = vld [vmem:[%s15 + $0x510] sm:$0xff]
    %v8036 = vld [vmem:[%s15 + $0x518] sm:$0xff]
    %v8037 = vld [vmem:[%s15 + $0x520] sm:$0xf]
    %v8038 = vld [vmem:[%s15 + $0x524] sm:$0xff]
    %v8039 = vld [vmem:[%s15 + $0x52c] sm:$0xff]
    %v8040 = vld [vmem:[%s15 + $0x534] sm:$0xff]
    %v8041 = vld [vmem:[%s15 + $0x53c] sm:$0xf]
    %v8042 = vld [vmem:[%s15 + $0x540] sm:$0xff]
    %v8043 = vld [vmem:[%s15 + $0x548] sm:$0xff]
    %v8044 = vld [vmem:[%s15 + $0x550] sm:$0xff]
    %v8045 = vld [vmem:[%s15 + $0x558] sm:$0xf]
    %v8046 = vld [vmem:[%s15 + $0x55c] sm:$0xff]
    %v8047 = vld [vmem:[%s15 + $0x564] sm:$0xff]
    %v8048 = vld [vmem:[%s15 + $0x56c] sm:$0xff]
    %v8049 = vld [vmem:[%s15 + $0x574] sm:$0xf]
    %v8050 = vld [vmem:[%s15 + $0x578] sm:$0xff]
    %v8051 = vld [vmem:[%s15 + $0x580] sm:$0xff]
    %v8052 = vld [vmem:[%s15 + $0x588] sm:$0xff]
    %v8053 = vld [vmem:[%s15 + $0x590] sm:$0xf]
    %v8054 = vld [vmem:[%s15 + $0x594] sm:$0xff]
    %v8055 = vld [vmem:[%s15 + $0x59c] sm:$0xff]
    %v8056 = vld [vmem:[%s15 + $0x5a4] sm:$0xff]
    %v8057 = vld [vmem:[%s15 + $0x5ac] sm:$0xf]
    %v8058 = vld [vmem:[%s15 + $0x5b0] sm:$0xff]
    %v8059 = vld [vmem:[%s15 + $0x5b8] sm:$0xff]
    %v8060 = vld [vmem:[%s15 + $0x5c0] sm:$0xff]
    %v8061 = vld [vmem:[%s15 + $0x5c8] sm:$0xf]
    %v8062 = vld [vmem:[%s15 + $0x5cc] sm:$0xff]
    %v8063 = vld [vmem:[%s15 + $0x5d4] sm:$0xff]
    %v8064 = vld [vmem:[%s15 + $0x5dc] sm:$0xff]
    %v8065 = vld [vmem:[%s15 + $0x5e4] sm:$0xf]
    %v8066 = vld [vmem:[%s15 + $0x5e8] sm:$0xff]
    %v8067 = vld [vmem:[%s15 + $0x5f0] sm:$0xff]
    %v8068 = vld [vmem:[%s15 + $0x5f8] sm:$0xff]
    %v8069 = vld [vmem:[%s15 + $0x600] sm:$0xf]
    %v8070 = vld [vmem:[%s15 + $0x604] sm:$0xff]
    %v8071 = vld [vmem:[%s15 + $0x60c] sm:$0xff]
    %v8072 = vld [vmem:[%s15 + $0x614] sm:$0xff]
    %v8073 = vld [vmem:[%s15 + $0x61c] sm:$0xf]
    %v8074 = vld [vmem:[%s15 + $0x620] sm:$0xff]
    %v8075 = vld [vmem:[%s15 + $0x628] sm:$0xff]
    %v8076 = vld [vmem:[%s15 + $0x630] sm:$0xff]
    %v8077 = vld [vmem:[%s15 + $0x638] sm:$0xf]
    %v8078 = vld [vmem:[%s15 + $0x63c] sm:$0xff]
    %v8079 = vld [vmem:[%s15 + $0x644] sm:$0xff]
    %v8080 = vld [vmem:[%s15 + $0x64c] sm:$0xff]
    %v8081 = vld [vmem:[%s15 + $0x654] sm:$0xf]
    %v8082 = vld [vmem:[%s15 + $0x658] sm:$0xff]
    %v8083 = vld [vmem:[%s15 + $0x660] sm:$0xff]
    %v8084 = vld [vmem:[%s15 + $0x668] sm:$0xff]
    %v8085 = vld [vmem:[%s15 + $0x670] sm:$0xf]
    %v8086 = vld [vmem:[%s15 + $0x674] sm:$0xff]
    %v8087 = vld [vmem:[%s15 + $0x67c] sm:$0xff]
    %v8088 = vld [vmem:[%s15 + $0x684] sm:$0xff]
    %v8089 = vld [vmem:[%s15 + $0x68c] sm:$0xf]
    %v8090 = vld [vmem:[%s15 + $0x690] sm:$0xff]
    %v8091 = vld [vmem:[%s15 + $0x698] sm:$0xff]
    %v8092 = vld [vmem:[%s15 + $0x6a0] sm:$0xff]
    %v8093 = vld [vmem:[%s15 + $0x6a8] sm:$0xf]
    %v8094 = vld [vmem:[%s15 + $0x6ac] sm:$0xff]
    %v8095 = vld [vmem:[%s15 + $0x6b4] sm:$0xff]
    %v8096 = vld [vmem:[%s15 + $0x6bc] sm:$0xff]
    %v8097 = vld [vmem:[%s15 + $0x6c4] sm:$0xf]
    %v8098 = vld [vmem:[%s15 + $0x6c8] sm:$0xff]
    %v8099 = vld [vmem:[%s15 + $0x6d0] sm:$0xff]
    %v8100 = vld [vmem:[%s15 + $0x6d8] sm:$0xff]
    %v8101 = vld [vmem:[%s15 + $0x6e0] sm:$0xf]
    %v8102 = vld [vmem:[%s15 + $0x6e4] sm:$0xff]
    %v8103 = vld [vmem:[%s15 + $0x6ec] sm:$0xff]
    %v8104 = vld [vmem:[%s15 + $0x6f4] sm:$0xff]
    %v8105 = vld [vmem:[%s15 + $0x6fc] sm:$0xf]
    %v8106 = vld [vmem:[%s15 + $0x700] sm:$0xff]
    %v8107 = vld [vmem:[%s15 + $0x708] sm:$0xff]
    %v8108 = vld [vmem:[%s15 + $0x710] sm:$0xff]
    %v8109 = vld [vmem:[%s15 + $0x718] sm:$0xf]
    %v8110 = vld [vmem:[%s15 + $0x71c] sm:$0xff]
    %v8111 = vld [vmem:[%s15 + $0x724] sm:$0xff]
    %v8112 = vld [vmem:[%s15 + $0x72c] sm:$0xff]
    %v8113 = vld [vmem:[%s15 + $0x734] sm:$0xf]
    %v8114 = vld [vmem:[%s15 + $0x738] sm:$0xff]
    %v8115 = vld [vmem:[%s15 + $0x740] sm:$0xff]
    %v8116 = vld [vmem:[%s15 + $0x748] sm:$0xff]
    %v8117 = vld [vmem:[%s15 + $0x750] sm:$0xf]
    %v8118 = vld [vmem:[%s15 + $0x754] sm:$0xff]
    %v8119 = vld [vmem:[%s15 + $0x75c] sm:$0xff]
    %v8120 = vld [vmem:[%s15 + $0x764] sm:$0xff]
    %v8121 = vld [vmem:[%s15 + $0x76c] sm:$0xf]
    %v8122 = vld [vmem:[%s15 + $0x770] sm:$0xff]
    %v8123 = vld [vmem:[%s15 + $0x778] sm:$0xff]
    %v8124 = vld [vmem:[%s15 + $0x780] sm:$0xff]
    %v8125 = vld [vmem:[%s15 + $0x788] sm:$0xf]
    %v8126 = vld [vmem:[%s15 + $0x78c] sm:$0xff]
    %v8127 = vld [vmem:[%s15 + $0x794] sm:$0xff]
    %v8128 = vld [vmem:[%s15 + $0x79c] sm:$0xff]
    %v8129 = vld [vmem:[%s15 + $0x7a4] sm:$0xf]
    %v8130 = vld [vmem:[%s15 + $0x7a8] sm:$0xff]
    %v8131 = vld [vmem:[%s15 + $0x7b0] sm:$0xff]
    %v8132 = vld [vmem:[%s15 + $0x7b8] sm:$0xff]
    %v8133 = vld [vmem:[%s15 + $0x7c0] sm:$0xf]
    %v8134 = vld [vmem:[%s15 + $0x7c4] sm:$0xff]
    %v8135 = vld [vmem:[%s15 + $0x7cc] sm:$0xff]
    %v8136 = vld [vmem:[%s15 + $0x7d4] sm:$0xff]
    %v8137 = vld [vmem:[%s15 + $0x7dc] sm:$0xf]
    %v8138 = vld [vmem:[%s15 + $0x7e0] sm:$0xff]
    %v8139 = vld [vmem:[%s15 + $0x7e8] sm:$0xff]
    %v8140 = vld [vmem:[%s15 + $0x7f0] sm:$0xff]
    %v8141 = vld [vmem:[%s15 + $0x7f8] sm:$0xf]
    %v8142 = vld [vmem:[%s15 + $0x7fc] sm:$0xff]
    %v8143 = vld [vmem:[%s15 + $0x804] sm:$0xff]
    %v8144 = vld [vmem:[%s15 + $0x80c] sm:$0xff]
    %v8145 = vld [vmem:[%s15 + $0x814] sm:$0xf]
    %v8146 = vld [vmem:[%s15 + $0x818] sm:$0xff]
    %v8147 = vld [vmem:[%s15 + $0x820] sm:$0xff]
    %v8148 = vld [vmem:[%s15 + $0x828] sm:$0xff]
    %v8149 = vld [vmem:[%s15 + $0x830] sm:$0xf]
    %v8150 = vld [vmem:[%s15 + $0x834] sm:$0xff]
    %v8151 = vld [vmem:[%s15 + $0x83c] sm:$0xff]
    %v8152 = vld [vmem:[%s15 + $0x844] sm:$0xff]
    %v8153 = vld [vmem:[%s15 + $0x84c] sm:$0xf]
    %v8154 = vld [vmem:[%s15 + $0x850] sm:$0xff]
    %v8155 = vld [vmem:[%s15 + $0x858] sm:$0xff]
    %v8156 = vld [vmem:[%s15 + $0x860] sm:$0xff]
    %v8157 = vld [vmem:[%s15 + $0x868] sm:$0xf]
    %v8158 = vld [vmem:[%s15 + $0x86c] sm:$0xff]
    %v8159 = vld [vmem:[%s15 + $0x874] sm:$0xff]
    %v8160 = vld [vmem:[%s15 + $0x87c] sm:$0xff]
    %v8161 = vld [vmem:[%s15 + $0x884] sm:$0xf]
    %v8162 = vld [vmem:[%s15 + $0x888] sm:$0xff]
    %v8163 = vld [vmem:[%s15 + $0x890] sm:$0xff]
    %v8164 = vld [vmem:[%s15 + $0x898] sm:$0xff]
    %v8165 = vld [vmem:[%s15 + $0x8a0] sm:$0xf]
    %v8166 = vld [vmem:[%s15 + $0x8a4] sm:$0xff]
    %v8167 = vld [vmem:[%s15 + $0x8ac] sm:$0xff]
    %v8168 = vld [vmem:[%s15 + $0x8b4] sm:$0xff]
    %v8169 = vld [vmem:[%s15 + $0x8bc] sm:$0xf]
    %v8170 = vld [vmem:[%s15 + $0x8c0] sm:$0xff]
    %v8171 = vld [vmem:[%s15 + $0x8c8] sm:$0xff]
    %v8172 = vld [vmem:[%s15 + $0x8d0] sm:$0xff]
    %v8173 = vld [vmem:[%s15 + $0x8d8] sm:$0xf]
    %v8174 = vld [vmem:[%s15 + $0x8dc] sm:$0xff]
    %v8175 = vld [vmem:[%s15 + $0x8e4] sm:$0xff]
    %v8176 = vld [vmem:[%s15 + $0x8ec] sm:$0xff]
    %v8177 = vld [vmem:[%s15 + $0x8f4] sm:$0xf]
    %v8178 = vld [vmem:[%s15 + $0x8f8] sm:$0xff]
    %v8179 = vld [vmem:[%s15 + $0x900] sm:$0xff]
    %v8180 = vld [vmem:[%s15 + $0x908] sm:$0xff]
    %v8181 = vld [vmem:[%s15 + $0x910] sm:$0xf]
    %v8182 = vld [vmem:[%s15 + $0x914] sm:$0xff]
    %v8183 = vld [vmem:[%s15 + $0x91c] sm:$0xff]
    %v8184 = vld [vmem:[%s15 + $0x924] sm:$0xff]
    %v8185 = vld [vmem:[%s15 + $0x92c] sm:$0xf]
    %v8186 = vld [vmem:[%s15 + $0x930] sm:$0xff]
    %v8187 = vld [vmem:[%s15 + $0x938] sm:$0xff]
    %v8188 = vld [vmem:[%s15 + $0x940] sm:$0xff]
    %v8189 = vld [vmem:[%s15 + $0x948] sm:$0xf]
    %v8190 = vld [vmem:[%s15 + $0x94c] sm:$0xff]
    %v8191 = vld [vmem:[%s15 + $0x954] sm:$0xff]
    %v8192 = vld [vmem:[%s15 + $0x95c] sm:$0xff]
    %v8193 = vld [vmem:[%s15 + $0x964] sm:$0xf]
    %v8194 = vld [vmem:[%s15 + $0x968] sm:$0xff]
    %v8195 = vld [vmem:[%s15 + $0x970] sm:$0xff]
    %v8196 = vld [vmem:[%s15 + $0x978] sm:$0xff]
    %v8197 = vld [vmem:[%s15 + $0x980] sm:$0xf]
    %v8198 = vld [vmem:[%s15 + $0x984] sm:$0xff]
    %v8199 = vld [vmem:[%s15 + $0x98c] sm:$0xff]
    %v8200 = vld [vmem:[%s15 + $0x994] sm:$0xff]
    %v8201 = vld [vmem:[%s15 + $0x99c] sm:$0xf]
    %v8202 = vld [vmem:[%s15 + $0x9a0] sm:$0xff]
    %v8203 = vld [vmem:[%s15 + $0x9a8] sm:$0xff]
    %v8204 = vld [vmem:[%s15 + $0x9b0] sm:$0xff]
    %v8205 = vld [vmem:[%s15 + $0x9b8] sm:$0xf]
    %v8206 = vld [vmem:[%s15 + $0x9bc] sm:$0xff]
    %v8207 = vld [vmem:[%s15 + $0x9c4] sm:$0xff]
    %v8208 = vld [vmem:[%s15 + $0x9cc] sm:$0xff]
    %v8209 = vld [vmem:[%s15 + $0x9d4] sm:$0xf]
    %v8210 = vld [vmem:[%s15 + $0x9d8] sm:$0xff]
    %v8211 = vld [vmem:[%s15 + $0x9e0] sm:$0xff]
    %v8212 = vld [vmem:[%s15 + $0x9e8] sm:$0xff]
    %v8213 = vld [vmem:[%s15 + $0x9f0] sm:$0xf]
    %v8214 = vld [vmem:[%s15 + $0x9f4] sm:$0xff]
    %v8215 = vld [vmem:[%s15 + $0x9fc] sm:$0xff]
    %v8216 = vld [vmem:[%s15 + $0xa04] sm:$0xff]
    %v8217 = vld [vmem:[%s15 + $0xa0c] sm:$0xf]
    %v8218 = vld [vmem:[%s15 + $0xa10] sm:$0xff]
    %v8219 = vld [vmem:[%s15 + $0xa18] sm:$0xff]
    %v8220 = vld [vmem:[%s15 + $0xa20] sm:$0xff]
    %v8221 = vld [vmem:[%s15 + $0xa28] sm:$0xf]
    %v8222 = vld [vmem:[%s15 + $0xa2c] sm:$0xff]
    %v8223 = vld [vmem:[%s15 + $0xa34] sm:$0xff]
    %v8224 = vld [vmem:[%s15 + $0xa3c] sm:$0xff]
    %v8225 = vld [vmem:[%s15 + $0xa44] sm:$0xf]
    %v8226 = vld [vmem:[%s15 + $0xa48] sm:$0xff]
    %v8227 = vld [vmem:[%s15 + $0xa50] sm:$0xff]
    %v8228 = vld [vmem:[%s15 + $0xa58] sm:$0xff]
    %v8229 = vld [vmem:[%s15 + $0xa60] sm:$0xf]
    %v8230 = vld [vmem:[%s15 + $0xa64] sm:$0xff]
    %v8231 = vld [vmem:[%s15 + $0xa6c] sm:$0xff]
    %v8232 = vld [vmem:[%s15 + $0xa74] sm:$0xff]
    %v8233 = vld [vmem:[%s15 + $0xa7c] sm:$0xf]
    %v8234 = vld [vmem:[%s15 + $0xa80] sm:$0xff]
    %v8235 = vld [vmem:[%s15 + $0xa88] sm:$0xff]
    %v8236 = vld [vmem:[%s15 + $0xa90] sm:$0xff]
    %v8237 = vld [vmem:[%s15 + $0xa98] sm:$0xf]
    %v8238 = vld [vmem:[%s15 + $0xa9c] sm:$0xff]
    %v8239 = vld [vmem:[%s15 + $0xaa4] sm:$0xff]
    %v8240 = vld [vmem:[%s15 + $0xaac] sm:$0xff]
    %v8241 = vld [vmem:[%s15 + $0xab4] sm:$0xf]
    %v8242 = vld [vmem:[%s15 + $0xab8] sm:$0xff]
    %v8243 = vld [vmem:[%s15 + $0xac0] sm:$0xff]
    %v8244 = vld [vmem:[%s15 + $0xac8] sm:$0xff]
    %v8245 = vld [vmem:[%s15 + $0xad0] sm:$0xf]
    %v8246 = vld [vmem:[%s15 + $0xad4] sm:$0xff]
    %v8247 = vld [vmem:[%s15 + $0xadc] sm:$0xff]
    %v8248 = vld [vmem:[%s15 + $0xae4] sm:$0xff]
    %v8249 = vld [vmem:[%s15 + $0xaec] sm:$0xf]
    %v8250 = vld [vmem:[%s15 + $0xaf0] sm:$0xff]
    %v8251 = vld [vmem:[%s15 + $0xaf8] sm:$0xff]
    %v8252 = vld [vmem:[%s15 + $0xb00] sm:$0xff]
    %v8253 = vld [vmem:[%s15 + $0xb08] sm:$0xf]
    %v8254 = vld [vmem:[%s15 + $0xb0c] sm:$0xff]
    %v8255 = vld [vmem:[%s15 + $0xb14] sm:$0xff]
    %v8256 = vld [vmem:[%s15 + $0xb1c] sm:$0xff]
    %v8257 = vld [vmem:[%s15 + $0xb24] sm:$0xf]
    %v8258 = vld [vmem:[%s15 + $0xb28] sm:$0xff]
    %v8259 = vld [vmem:[%s15 + $0xb30] sm:$0xff]
    %v8260 = vld [vmem:[%s15 + $0xb38] sm:$0xff]
    %v8261 = vld [vmem:[%s15 + $0xb40] sm:$0xf]
    %v8262 = vld [vmem:[%s15 + $0xb44] sm:$0xff]
    %v8263 = vld [vmem:[%s15 + $0xb4c] sm:$0xff]
    %v8264 = vld [vmem:[%s15 + $0xb54] sm:$0xff]
    %v8265 = vld [vmem:[%s15 + $0xb5c] sm:$0xf]
    %v8266 = vld [vmem:[%s15 + $0xb60] sm:$0xff]
    %v8267 = vld [vmem:[%s15 + $0xb68] sm:$0xff]
    %v8268 = vld [vmem:[%s15 + $0xb70] sm:$0xff]
    %v8269 = vld [vmem:[%s15 + $0xb78] sm:$0xf]
    %v8270 = vld [vmem:[%s15 + $0xb7c] sm:$0xff]
    %v8271 = vld [vmem:[%s15 + $0xb84] sm:$0xff]
    %v8272 = vld [vmem:[%s15 + $0xb8c] sm:$0xff]
    %v8273 = vld [vmem:[%s15 + $0xb94] sm:$0xf]
    %v8274 = vld [vmem:[%s15 + $0xb98] sm:$0xff]
    %v8275 = vld [vmem:[%s15 + $0xba0] sm:$0xff]
    %v8276 = vld [vmem:[%s15 + $0xba8] sm:$0xff]
    %v8277 = vld [vmem:[%s15 + $0xbb0] sm:$0xf]
    %v8278 = vld [vmem:[%s15 + $0xbb4] sm:$0xff]
    %v8279 = vld [vmem:[%s15 + $0xbbc] sm:$0xff]
    %v8280 = vld [vmem:[%s15 + $0xbc4] sm:$0xff]
    %v8281 = vld [vmem:[%s15 + $0xbcc] sm:$0xf]
    %v8282 = vld [vmem:[#allocation2] sm:$0x1]
    %v8284 = vlaneseq
    %v8285 = vshrl.u32 %v8284, 7
    %v8286 = vsub.s32 0, %v8285
    %v8287 = vrot.slane %v8282, %v8286
    %8288 = vset.pattern.permute.xlu0 0
    %8289 = vperm.xlu0 %8288, %v8287
    %v8290 = vpop.permute.xlu0 %8289
    %v8724 = vunpack.c.l.b16 %v7850
    %v8725 = vunpack.c.h.b16 %v7850
    %v8726 = vunpack.c.l.b16 %v7851
    %v8727 = vunpack.c.h.b16 %v7851
    %v8728 = vunpack.c.l.b16 %v7852
    %v8729 = vunpack.c.h.b16 %v7852
    %v8730 = vunpack.c.l.b16 %v7853
    %v8731 = vunpack.c.l.b16 %v7854
    %v8732 = vunpack.c.h.b16 %v7854
    %v8733 = vunpack.c.l.b16 %v7855
    %v8734 = vunpack.c.h.b16 %v7855
    %v8735 = vunpack.c.l.b16 %v7856
    %v8736 = vunpack.c.h.b16 %v7856
    %v8737 = vunpack.c.l.b16 %v7857
    %v8738 = vunpack.c.l.b16 %v7858
    %v8739 = vunpack.c.h.b16 %v7858
    %v8740 = vunpack.c.l.b16 %v7859
    %v8741 = vunpack.c.h.b16 %v7859
    %v8742 = vunpack.c.l.b16 %v7860
    %v8743 = vunpack.c.h.b16 %v7860
    %v8744 = vunpack.c.l.b16 %v7861
    %v8745 = vunpack.c.l.b16 %v7862
    %v8746 = vunpack.c.h.b16 %v7862
    %v8747 = vunpack.c.l.b16 %v7863
    %v8748 = vunpack.c.h.b16 %v7863
    %v8749 = vunpack.c.l.b16 %v7864
    %v8750 = vunpack.c.h.b16 %v7864
    %v8751 = vunpack.c.l.b16 %v7865
    %v8752 = vunpack.c.l.b16 %v7866
    %v8753 = vunpack.c.h.b16 %v7866
    %v8754 = vunpack.c.l.b16 %v7867
    %v8755 = vunpack.c.h.b16 %v7867
    %v8756 = vunpack.c.l.b16 %v7868
    %v8757 = vunpack.c.h.b16 %v7868
    %v8758 = vunpack.c.l.b16 %v7869
    %v8759 = vunpack.c.l.b16 %v7870
    %v8760 = vunpack.c.h.b16 %v7870
    %v8761 = vunpack.c.l.b16 %v7871
    %v8762 = vunpack.c.h.b16 %v7871
    %v8763 = vunpack.c.l.b16 %v7872
    %v8764 = vunpack.c.h.b16 %v7872
    %v8765 = vunpack.c.l.b16 %v7873
    %v8766 = vunpack.c.l.b16 %v7874
    %v8767 = vunpack.c.h.b16 %v7874
    %v8768 = vunpack.c.l.b16 %v7875
    %v8769 = vunpack.c.h.b16 %v7875
    %v8770 = vunpack.c.l.b16 %v7876
    %v8771 = vunpack.c.h.b16 %v7876
    %v8772 = vunpack.c.l.b16 %v7877
    %v8773 = vunpack.c.l.b16 %v7878
    %v8774 = vunpack.c.h.b16 %v7878
    %v8775 = vunpack.c.l.b16 %v7879
    %v8776 = vunpack.c.h.b16 %v7879
    %v8777 = vunpack.c.l.b16 %v7880
    %v8778 = vunpack.c.h.b16 %v7880
    %v8779 = vunpack.c.l.b16 %v7881
    %v8780 = vunpack.c.l.b16 %v7882
    %v8781 = vunpack.c.h.b16 %v7882
    %v8782 = vunpack.c.l.b16 %v7883
    %v8783 = vunpack.c.h.b16 %v7883
    %v8784 = vunpack.c.l.b16 %v7884
    %v8785 = vunpack.c.h.b16 %v7884
    %v8786 = vunpack.c.l.b16 %v7885
    %v8787 = vunpack.c.l.b16 %v7886
    %v8788 = vunpack.c.h.b16 %v7886
    %v8789 = vunpack.c.l.b16 %v7887
    %v8790 = vunpack.c.h.b16 %v7887
    %v8791 = vunpack.c.l.b16 %v7888
    %v8792 = vunpack.c.h.b16 %v7888
    %v8793 = vunpack.c.l.b16 %v7889
    %v8794 = vunpack.c.l.b16 %v7890
    %v8795 = vunpack.c.h.b16 %v7890
    %v8796 = vunpack.c.l.b16 %v7891
    %v8797 = vunpack.c.h.b16 %v7891
    %v8798 = vunpack.c.l.b16 %v7892
    %v8799 = vunpack.c.h.b16 %v7892
    %v8800 = vunpack.c.l.b16 %v7893
    %v8801 = vunpack.c.l.b16 %v7894
    %v8802 = vunpack.c.h.b16 %v7894
    %v8803 = vunpack.c.l.b16 %v7895
    %v8804 = vunpack.c.h.b16 %v7895
    %v8805 = vunpack.c.l.b16 %v7896
    %v8806 = vunpack.c.h.b16 %v7896
    %v8807 = vunpack.c.l.b16 %v7897
    %v8808 = vunpack.c.l.b16 %v7898
    %v8809 = vunpack.c.h.b16 %v7898
    %v8810 = vunpack.c.l.b16 %v7899
    %v8811 = vunpack.c.h.b16 %v7899
    %v8812 = vunpack.c.l.b16 %v7900
    %v8813 = vunpack.c.h.b16 %v7900
    %v8814 = vunpack.c.l.b16 %v7901
    %v8815 = vunpack.c.l.b16 %v7902
    %v8816 = vunpack.c.h.b16 %v7902
    %v8817 = vunpack.c.l.b16 %v7903
    %v8818 = vunpack.c.h.b16 %v7903
    %v8819 = vunpack.c.l.b16 %v7904
    %v8820 = vunpack.c.h.b16 %v7904
    %v8821 = vunpack.c.l.b16 %v7905
    %v8822 = vunpack.c.l.b16 %v7906
    %v8823 = vunpack.c.h.b16 %v7906
    %v8824 = vunpack.c.l.b16 %v7907
    %v8825 = vunpack.c.h.b16 %v7907
    %v8826 = vunpack.c.l.b16 %v7908
    %v8827 = vunpack.c.h.b16 %v7908
    %v8828 = vunpack.c.l.b16 %v7909
    %v8829 = vunpack.c.l.b16 %v7910
    %v8830 = vunpack.c.h.b16 %v7910
    %v8831 = vunpack.c.l.b16 %v7911
    %v8832 = vunpack.c.h.b16 %v7911
    %v8833 = vunpack.c.l.b16 %v7912
    %v8834 = vunpack.c.h.b16 %v7912
    %v8835 = vunpack.c.l.b16 %v7913
    %v8836 = vunpack.c.l.b16 %v7914
    %v8837 = vunpack.c.h.b16 %v7914
    %v8838 = vunpack.c.l.b16 %v7915
    %v8839 = vunpack.c.h.b16 %v7915
    %v8840 = vunpack.c.l.b16 %v7916
    %v8841 = vunpack.c.h.b16 %v7916
    %v8842 = vunpack.c.l.b16 %v7917
    %v8843 = vunpack.c.l.b16 %v7918
    %v8844 = vunpack.c.h.b16 %v7918
    %v8845 = vunpack.c.l.b16 %v7919
    %v8846 = vunpack.c.h.b16 %v7919
    %v8847 = vunpack.c.l.b16 %v7920
    %v8848 = vunpack.c.h.b16 %v7920
    %v8849 = vunpack.c.l.b16 %v7921
    %v8850 = vunpack.c.l.b16 %v7922
    %v8851 = vunpack.c.h.b16 %v7922
    %v8852 = vunpack.c.l.b16 %v7923
    %v8853 = vunpack.c.h.b16 %v7923
    %v8854 = vunpack.c.l.b16 %v7924
    %v8855 = vunpack.c.h.b16 %v7924
    %v8856 = vunpack.c.l.b16 %v7925
    %v8857 = vunpack.c.l.b16 %v7926
    %v8858 = vunpack.c.h.b16 %v7926
    %v8859 = vunpack.c.l.b16 %v7927
    %v8860 = vunpack.c.h.b16 %v7927
    %v8861 = vunpack.c.l.b16 %v7928
    %v8862 = vunpack.c.h.b16 %v7928
    %v8863 = vunpack.c.l.b16 %v7929
    %v8864 = vunpack.c.l.b16 %v7930
    %v8865 = vunpack.c.h.b16 %v7930
    %v8866 = vunpack.c.l.b16 %v7931
    %v8867 = vunpack.c.h.b16 %v7931
    %v8868 = vunpack.c.l.b16 %v7932
    %v8869 = vunpack.c.h.b16 %v7932
    %v8870 = vunpack.c.l.b16 %v7933
    %v8871 = vunpack.c.l.b16 %v7934
    %v8872 = vunpack.c.h.b16 %v7934
    %v8873 = vunpack.c.l.b16 %v7935
    %v8874 = vunpack.c.h.b16 %v7935
    %v8875 = vunpack.c.l.b16 %v7936
    %v8876 = vunpack.c.h.b16 %v7936
    %v8877 = vunpack.c.l.b16 %v7937
    %v8878 = vunpack.c.l.b16 %v7938
    %v8879 = vunpack.c.h.b16 %v7938
    %v8880 = vunpack.c.l.b16 %v7939
    %v8881 = vunpack.c.h.b16 %v7939
    %v8882 = vunpack.c.l.b16 %v7940
    %v8883 = vunpack.c.h.b16 %v7940
    %v8884 = vunpack.c.l.b16 %v7941
    %v8885 = vunpack.c.l.b16 %v7942
    %v8886 = vunpack.c.h.b16 %v7942
    %v8887 = vunpack.c.l.b16 %v7943
    %v8888 = vunpack.c.h.b16 %v7943
    %v8889 = vunpack.c.l.b16 %v7944
    %v8890 = vunpack.c.h.b16 %v7944
    %v8891 = vunpack.c.l.b16 %v7945
    %v8892 = vunpack.c.l.b16 %v7946
    %v8893 = vunpack.c.h.b16 %v7946
    %v8894 = vunpack.c.l.b16 %v7947
    %v8895 = vunpack.c.h.b16 %v7947
    %v8896 = vunpack.c.l.b16 %v7948
    %v8897 = vunpack.c.h.b16 %v7948
    %v8898 = vunpack.c.l.b16 %v7949
    %v8899 = vunpack.c.l.b16 %v7950
    %v8900 = vunpack.c.h.b16 %v7950
    %v8901 = vunpack.c.l.b16 %v7951
    %v8902 = vunpack.c.h.b16 %v7951
    %v8903 = vunpack.c.l.b16 %v7952
    %v8904 = vunpack.c.h.b16 %v7952
    %v8905 = vunpack.c.l.b16 %v7953
    %v8906 = vunpack.c.l.b16 %v7954
    %v8907 = vunpack.c.h.b16 %v7954
    %v8908 = vunpack.c.l.b16 %v7955
    %v8909 = vunpack.c.h.b16 %v7955
    %v8910 = vunpack.c.l.b16 %v7956
    %v8911 = vunpack.c.h.b16 %v7956
    %v8912 = vunpack.c.l.b16 %v7957
    %v8913 = vunpack.c.l.b16 %v7958
    %v8914 = vunpack.c.h.b16 %v7958
    %v8915 = vunpack.c.l.b16 %v7959
    %v8916 = vunpack.c.h.b16 %v7959
    %v8917 = vunpack.c.l.b16 %v7960
    %v8918 = vunpack.c.h.b16 %v7960
    %v8919 = vunpack.c.l.b16 %v7961
    %v8920 = vunpack.c.l.b16 %v7962
    %v8921 = vunpack.c.h.b16 %v7962
    %v8922 = vunpack.c.l.b16 %v7963
    %v8923 = vunpack.c.h.b16 %v7963
    %v8924 = vunpack.c.l.b16 %v7964
    %v8925 = vunpack.c.h.b16 %v7964
    %v8926 = vunpack.c.l.b16 %v7965
    %v8927 = vunpack.c.l.b16 %v7966
    %v8928 = vunpack.c.h.b16 %v7966
    %v8929 = vunpack.c.l.b16 %v7967
    %v8930 = vunpack.c.h.b16 %v7967
    %v8931 = vunpack.c.l.b16 %v7968
    %v8932 = vunpack.c.h.b16 %v7968
    %v8933 = vunpack.c.l.b16 %v7969
    %v8934 = vunpack.c.l.b16 %v7970
    %v8935 = vunpack.c.h.b16 %v7970
    %v8936 = vunpack.c.l.b16 %v7971
    %v8937 = vunpack.c.h.b16 %v7971
    %v8938 = vunpack.c.l.b16 %v7972
    %v8939 = vunpack.c.h.b16 %v7972
    %v8940 = vunpack.c.l.b16 %v7973
    %v8941 = vunpack.c.l.b16 %v7974
    %v8942 = vunpack.c.h.b16 %v7974
    %v8943 = vunpack.c.l.b16 %v7975
    %v8944 = vunpack.c.h.b16 %v7975
    %v8945 = vunpack.c.l.b16 %v7976
    %v8946 = vunpack.c.h.b16 %v7976
    %v8947 = vunpack.c.l.b16 %v7977
    %v8948 = vunpack.c.l.b16 %v7978
    %v8949 = vunpack.c.h.b16 %v7978
    %v8950 = vunpack.c.l.b16 %v7979
    %v8951 = vunpack.c.h.b16 %v7979
    %v8952 = vunpack.c.l.b16 %v7980
    %v8953 = vunpack.c.h.b16 %v7980
    %v8954 = vunpack.c.l.b16 %v7981
    %v8955 = vunpack.c.l.b16 %v7982
    %v8956 = vunpack.c.h.b16 %v7982
    %v8957 = vunpack.c.l.b16 %v7983
    %v8958 = vunpack.c.h.b16 %v7983
    %v8959 = vunpack.c.l.b16 %v7984
    %v8960 = vunpack.c.h.b16 %v7984
    %v8961 = vunpack.c.l.b16 %v7985
    %v8962 = vunpack.c.l.b16 %v7986
    %v8963 = vunpack.c.h.b16 %v7986
    %v8964 = vunpack.c.l.b16 %v7987
    %v8965 = vunpack.c.h.b16 %v7987
    %v8966 = vunpack.c.l.b16 %v7988
    %v8967 = vunpack.c.h.b16 %v7988
    %v8968 = vunpack.c.l.b16 %v7989
    %v8969 = vunpack.c.l.b16 %v7990
    %v8970 = vunpack.c.h.b16 %v7990
    %v8971 = vunpack.c.l.b16 %v7991
    %v8972 = vunpack.c.h.b16 %v7991
    %v8973 = vunpack.c.l.b16 %v7992
    %v8974 = vunpack.c.h.b16 %v7992
    %v8975 = vunpack.c.l.b16 %v7993
    %v8976 = vunpack.c.l.b16 %v7994
    %v8977 = vunpack.c.h.b16 %v7994
    %v8978 = vunpack.c.l.b16 %v7995
    %v8979 = vunpack.c.h.b16 %v7995
    %v8980 = vunpack.c.l.b16 %v7996
    %v8981 = vunpack.c.h.b16 %v7996
    %v8982 = vunpack.c.l.b16 %v7997
    %v8983 = vunpack.c.l.b16 %v7998
    %v8984 = vunpack.c.h.b16 %v7998
    %v8985 = vunpack.c.l.b16 %v7999
    %v8986 = vunpack.c.h.b16 %v7999
    %v8987 = vunpack.c.l.b16 %v8000
    %v8988 = vunpack.c.h.b16 %v8000
    %v8989 = vunpack.c.l.b16 %v8001
    %v8990 = vunpack.c.l.b16 %v8002
    %v8991 = vunpack.c.h.b16 %v8002
    %v8992 = vunpack.c.l.b16 %v8003
    %v8993 = vunpack.c.h.b16 %v8003
    %v8994 = vunpack.c.l.b16 %v8004
    %v8995 = vunpack.c.h.b16 %v8004
    %v8996 = vunpack.c.l.b16 %v8005
    %v8997 = vunpack.c.l.b16 %v8006
    %v8998 = vunpack.c.h.b16 %v8006
    %v8999 = vunpack.c.l.b16 %v8007
    %v9000 = vunpack.c.h.b16 %v8007
    %v9001 = vunpack.c.l.b16 %v8008
    %v9002 = vunpack.c.h.b16 %v8008
    %v9003 = vunpack.c.l.b16 %v8009
    %v9004 = vunpack.c.l.b16 %v8010
    %v9005 = vunpack.c.h.b16 %v8010
    %v9006 = vunpack.c.l.b16 %v8011
    %v9007 = vunpack.c.h.b16 %v8011
    %v9008 = vunpack.c.l.b16 %v8012
    %v9009 = vunpack.c.h.b16 %v8012
    %v9010 = vunpack.c.l.b16 %v8013
    %v9011 = vunpack.c.l.b16 %v8014
    %v9012 = vunpack.c.h.b16 %v8014
    %v9013 = vunpack.c.l.b16 %v8015
    %v9014 = vunpack.c.h.b16 %v8015
    %v9015 = vunpack.c.l.b16 %v8016
    %v9016 = vunpack.c.h.b16 %v8016
    %v9017 = vunpack.c.l.b16 %v8017
    %v9018 = vunpack.c.l.b16 %v8018
    %v9019 = vunpack.c.h.b16 %v8018
    %v9020 = vunpack.c.l.b16 %v8019
    %v9021 = vunpack.c.h.b16 %v8019
    %v9022 = vunpack.c.l.b16 %v8020
    %v9023 = vunpack.c.h.b16 %v8020
    %v9024 = vunpack.c.l.b16 %v8021
    %v9025 = vunpack.c.l.b16 %v8022
    %v9026 = vunpack.c.h.b16 %v8022
    %v9027 = vunpack.c.l.b16 %v8023
    %v9028 = vunpack.c.h.b16 %v8023
    %v9029 = vunpack.c.l.b16 %v8024
    %v9030 = vunpack.c.h.b16 %v8024
    %v9031 = vunpack.c.l.b16 %v8025
    %v9032 = vunpack.c.l.b16 %v8026
    %v9033 = vunpack.c.h.b16 %v8026
    %v9034 = vunpack.c.l.b16 %v8027
    %v9035 = vunpack.c.h.b16 %v8027
    %v9036 = vunpack.c.l.b16 %v8028
    %v9037 = vunpack.c.h.b16 %v8028
    %v9038 = vunpack.c.l.b16 %v8029
    %v9039 = vunpack.c.l.b16 %v8030
    %v9040 = vunpack.c.h.b16 %v8030
    %v9041 = vunpack.c.l.b16 %v8031
    %v9042 = vunpack.c.h.b16 %v8031
    %v9043 = vunpack.c.l.b16 %v8032
    %v9044 = vunpack.c.h.b16 %v8032
    %v9045 = vunpack.c.l.b16 %v8033
    %v9046 = vunpack.c.l.b16 %v8034
    %v9047 = vunpack.c.h.b16 %v8034
    %v9048 = vunpack.c.l.b16 %v8035
    %v9049 = vunpack.c.h.b16 %v8035
    %v9050 = vunpack.c.l.b16 %v8036
    %v9051 = vunpack.c.h.b16 %v8036
    %v9052 = vunpack.c.l.b16 %v8037
    %v9053 = vunpack.c.l.b16 %v8038
    %v9054 = vunpack.c.h.b16 %v8038
    %v9055 = vunpack.c.l.b16 %v8039
    %v9056 = vunpack.c.h.b16 %v8039
    %v9057 = vunpack.c.l.b16 %v8040
    %v9058 = vunpack.c.h.b16 %v8040
    %v9059 = vunpack.c.l.b16 %v8041
    %v9060 = vunpack.c.l.b16 %v8042
    %v9061 = vunpack.c.h.b16 %v8042
    %v9062 = vunpack.c.l.b16 %v8043
    %v9063 = vunpack.c.h.b16 %v8043
    %v9064 = vunpack.c.l.b16 %v8044
    %v9065 = vunpack.c.h.b16 %v8044
    %v9066 = vunpack.c.l.b16 %v8045
    %v9067 = vunpack.c.l.b16 %v8046
    %v9068 = vunpack.c.h.b16 %v8046
    %v9069 = vunpack.c.l.b16 %v8047
    %v9070 = vunpack.c.h.b16 %v8047
    %v9071 = vunpack.c.l.b16 %v8048
    %v9072 = vunpack.c.h.b16 %v8048
    %v9073 = vunpack.c.l.b16 %v8049
    %v9074 = vunpack.c.l.b16 %v8050
    %v9075 = vunpack.c.h.b16 %v8050
    %v9076 = vunpack.c.l.b16 %v8051
    %v9077 = vunpack.c.h.b16 %v8051
    %v9078 = vunpack.c.l.b16 %v8052
    %v9079 = vunpack.c.h.b16 %v8052
    %v9080 = vunpack.c.l.b16 %v8053
    %v9081 = vunpack.c.l.b16 %v8054
    %v9082 = vunpack.c.h.b16 %v8054
    %v9083 = vunpack.c.l.b16 %v8055
    %v9084 = vunpack.c.h.b16 %v8055
    %v9085 = vunpack.c.l.b16 %v8056
    %v9086 = vunpack.c.h.b16 %v8056
    %v9087 = vunpack.c.l.b16 %v8057
    %v9088 = vunpack.c.l.b16 %v8058
    %v9089 = vunpack.c.h.b16 %v8058
    %v9090 = vunpack.c.l.b16 %v8059
    %v9091 = vunpack.c.h.b16 %v8059
    %v9092 = vunpack.c.l.b16 %v8060
    %v9093 = vunpack.c.h.b16 %v8060
    %v9094 = vunpack.c.l.b16 %v8061
    %v9095 = vunpack.c.l.b16 %v8062
    %v9096 = vunpack.c.h.b16 %v8062
    %v9097 = vunpack.c.l.b16 %v8063
    %v9098 = vunpack.c.h.b16 %v8063
    %v9099 = vunpack.c.l.b16 %v8064
    %v9100 = vunpack.c.h.b16 %v8064
    %v9101 = vunpack.c.l.b16 %v8065
    %v9102 = vunpack.c.l.b16 %v8066
    %v9103 = vunpack.c.h.b16 %v8066
    %v9104 = vunpack.c.l.b16 %v8067
    %v9105 = vunpack.c.h.b16 %v8067
    %v9106 = vunpack.c.l.b16 %v8068
    %v9107 = vunpack.c.h.b16 %v8068
    %v9108 = vunpack.c.l.b16 %v8069
    %v9109 = vunpack.c.l.b16 %v8070
    %v9110 = vunpack.c.h.b16 %v8070
    %v9111 = vunpack.c.l.b16 %v8071
    %v9112 = vunpack.c.h.b16 %v8071
    %v9113 = vunpack.c.l.b16 %v8072
    %v9114 = vunpack.c.h.b16 %v8072
    %v9115 = vunpack.c.l.b16 %v8073
    %v9116 = vunpack.c.l.b16 %v8074
    %v9117 = vunpack.c.h.b16 %v8074
    %v9118 = vunpack.c.l.b16 %v8075
    %v9119 = vunpack.c.h.b16 %v8075
    %v9120 = vunpack.c.l.b16 %v8076
    %v9121 = vunpack.c.h.b16 %v8076
    %v9122 = vunpack.c.l.b16 %v8077
    %v9123 = vunpack.c.l.b16 %v8078
    %v9124 = vunpack.c.h.b16 %v8078
    %v9125 = vunpack.c.l.b16 %v8079
    %v9126 = vunpack.c.h.b16 %v8079
    %v9127 = vunpack.c.l.b16 %v8080
    %v9128 = vunpack.c.h.b16 %v8080
    %v9129 = vunpack.c.l.b16 %v8081
    %v9130 = vunpack.c.l.b16 %v8082
    %v9131 = vunpack.c.h.b16 %v8082
    %v9132 = vunpack.c.l.b16 %v8083
    %v9133 = vunpack.c.h.b16 %v8083
    %v9134 = vunpack.c.l.b16 %v8084
    %v9135 = vunpack.c.h.b16 %v8084
    %v9136 = vunpack.c.l.b16 %v8085
    %v9137 = vunpack.c.l.b16 %v8086
    %v9138 = vunpack.c.h.b16 %v8086
    %v9139 = vunpack.c.l.b16 %v8087
    %v9140 = vunpack.c.h.b16 %v8087
    %v9141 = vunpack.c.l.b16 %v8088
    %v9142 = vunpack.c.h.b16 %v8088
    %v9143 = vunpack.c.l.b16 %v8089
    %v9144 = vunpack.c.l.b16 %v8090
    %v9145 = vunpack.c.h.b16 %v8090
    %v9146 = vunpack.c.l.b16 %v8091
    %v9147 = vunpack.c.h.b16 %v8091
    %v9148 = vunpack.c.l.b16 %v8092
    %v9149 = vunpack.c.h.b16 %v8092
    %v9150 = vunpack.c.l.b16 %v8093
    %v9151 = vunpack.c.l.b16 %v8094
    %v9152 = vunpack.c.h.b16 %v8094
    %v9153 = vunpack.c.l.b16 %v8095
    %v9154 = vunpack.c.h.b16 %v8095
    %v9155 = vunpack.c.l.b16 %v8096
    %v9156 = vunpack.c.h.b16 %v8096
    %v9157 = vunpack.c.l.b16 %v8097
    %v9158 = vunpack.c.l.b16 %v8098
    %v9159 = vunpack.c.h.b16 %v8098
    %v9160 = vunpack.c.l.b16 %v8099
    %v9161 = vunpack.c.h.b16 %v8099
    %v9162 = vunpack.c.l.b16 %v8100
    %v9163 = vunpack.c.h.b16 %v8100
    %v9164 = vunpack.c.l.b16 %v8101
    %v9165 = vunpack.c.l.b16 %v8102
    %v9166 = vunpack.c.h.b16 %v8102
    %v9167 = vunpack.c.l.b16 %v8103
    %v9168 = vunpack.c.h.b16 %v8103
    %v9169 = vunpack.c.l.b16 %v8104
    %v9170 = vunpack.c.h.b16 %v8104
    %v9171 = vunpack.c.l.b16 %v8105
    %v9172 = vunpack.c.l.b16 %v8106
    %v9173 = vunpack.c.h.b16 %v8106
    %v9174 = vunpack.c.l.b16 %v8107
    %v9175 = vunpack.c.h.b16 %v8107
    %v9176 = vunpack.c.l.b16 %v8108
    %v9177 = vunpack.c.h.b16 %v8108
    %v9178 = vunpack.c.l.b16 %v8109
    %v9179 = vunpack.c.l.b16 %v8110
    %v9180 = vunpack.c.h.b16 %v8110
    %v9181 = vunpack.c.l.b16 %v8111
    %v9182 = vunpack.c.h.b16 %v8111
    %v9183 = vunpack.c.l.b16 %v8112
    %v9184 = vunpack.c.h.b16 %v8112
    %v9185 = vunpack.c.l.b16 %v8113
    %v9186 = vunpack.c.l.b16 %v8114
    %v9187 = vunpack.c.h.b16 %v8114
    %v9188 = vunpack.c.l.b16 %v8115
    %v9189 = vunpack.c.h.b16 %v8115
    %v9190 = vunpack.c.l.b16 %v8116
    %v9191 = vunpack.c.h.b16 %v8116
    %v9192 = vunpack.c.l.b16 %v8117
    %v9193 = vunpack.c.l.b16 %v8118
    %v9194 = vunpack.c.h.b16 %v8118
    %v9195 = vunpack.c.l.b16 %v8119
    %v9196 = vunpack.c.h.b16 %v8119
    %v9197 = vunpack.c.l.b16 %v8120
    %v9198 = vunpack.c.h.b16 %v8120
    %v9199 = vunpack.c.l.b16 %v8121
    %v9200 = vunpack.c.l.b16 %v8122
    %v9201 = vunpack.c.h.b16 %v8122
    %v9202 = vunpack.c.l.b16 %v8123
    %v9203 = vunpack.c.h.b16 %v8123
    %v9204 = vunpack.c.l.b16 %v8124
    %v9205 = vunpack.c.h.b16 %v8124
    %v9206 = vunpack.c.l.b16 %v8125
    %v9207 = vunpack.c.l.b16 %v8126
    %v9208 = vunpack.c.h.b16 %v8126
    %v9209 = vunpack.c.l.b16 %v8127
    %v9210 = vunpack.c.h.b16 %v8127
    %v9211 = vunpack.c.l.b16 %v8128
    %v9212 = vunpack.c.h.b16 %v8128
    %v9213 = vunpack.c.l.b16 %v8129
    %v9214 = vunpack.c.l.b16 %v8130
    %v9215 = vunpack.c.h.b16 %v8130
    %v9216 = vunpack.c.l.b16 %v8131
    %v9217 = vunpack.c.h.b16 %v8131
    %v9218 = vunpack.c.l.b16 %v8132
    %v9219 = vunpack.c.h.b16 %v8132
    %v9220 = vunpack.c.l.b16 %v8133
    %v9221 = vunpack.c.l.b16 %v8134
    %v9222 = vunpack.c.h.b16 %v8134
    %v9223 = vunpack.c.l.b16 %v8135
    %v9224 = vunpack.c.h.b16 %v8135
    %v9225 = vunpack.c.l.b16 %v8136
    %v9226 = vunpack.c.h.b16 %v8136
    %v9227 = vunpack.c.l.b16 %v8137
    %v9228 = vunpack.c.l.b16 %v8138
    %v9229 = vunpack.c.h.b16 %v8138
    %v9230 = vunpack.c.l.b16 %v8139
    %v9231 = vunpack.c.h.b16 %v8139
    %v9232 = vunpack.c.l.b16 %v8140
    %v9233 = vunpack.c.h.b16 %v8140
    %v9234 = vunpack.c.l.b16 %v8141
    %v9235 = vunpack.c.l.b16 %v8142
    %v9236 = vunpack.c.h.b16 %v8142
    %v9237 = vunpack.c.l.b16 %v8143
    %v9238 = vunpack.c.h.b16 %v8143
    %v9239 = vunpack.c.l.b16 %v8144
    %v9240 = vunpack.c.h.b16 %v8144
    %v9241 = vunpack.c.l.b16 %v8145
    %v9242 = vunpack.c.l.b16 %v8146
    %v9243 = vunpack.c.h.b16 %v8146
    %v9244 = vunpack.c.l.b16 %v8147
    %v9245 = vunpack.c.h.b16 %v8147
    %v9246 = vunpack.c.l.b16 %v8148
    %v9247 = vunpack.c.h.b16 %v8148
    %v9248 = vunpack.c.l.b16 %v8149
    %v9249 = vunpack.c.l.b16 %v8150
    %v9250 = vunpack.c.h.b16 %v8150
    %v9251 = vunpack.c.l.b16 %v8151
    %v9252 = vunpack.c.h.b16 %v8151
    %v9253 = vunpack.c.l.b16 %v8152
    %v9254 = vunpack.c.h.b16 %v8152
    %v9255 = vunpack.c.l.b16 %v8153
    %v9256 = vunpack.c.l.b16 %v8154
    %v9257 = vunpack.c.h.b16 %v8154
    %v9258 = vunpack.c.l.b16 %v8155
    %v9259 = vunpack.c.h.b16 %v8155
    %v9260 = vunpack.c.l.b16 %v8156
    %v9261 = vunpack.c.h.b16 %v8156
    %v9262 = vunpack.c.l.b16 %v8157
    %v9263 = vunpack.c.l.b16 %v8158
    %v9264 = vunpack.c.h.b16 %v8158
    %v9265 = vunpack.c.l.b16 %v8159
    %v9266 = vunpack.c.h.b16 %v8159
    %v9267 = vunpack.c.l.b16 %v8160
    %v9268 = vunpack.c.h.b16 %v8160
    %v9269 = vunpack.c.l.b16 %v8161
    %v9270 = vunpack.c.l.b16 %v8162
    %v9271 = vunpack.c.h.b16 %v8162
    %v9272 = vunpack.c.l.b16 %v8163
    %v9273 = vunpack.c.h.b16 %v8163
    %v9274 = vunpack.c.l.b16 %v8164
    %v9275 = vunpack.c.h.b16 %v8164
    %v9276 = vunpack.c.l.b16 %v8165
    %v9277 = vunpack.c.l.b16 %v8166
    %v9278 = vunpack.c.h.b16 %v8166
    %v9279 = vunpack.c.l.b16 %v8167
    %v9280 = vunpack.c.h.b16 %v8167
    %v9281 = vunpack.c.l.b16 %v8168
    %v9282 = vunpack.c.h.b16 %v8168
    %v9283 = vunpack.c.l.b16 %v8169
    %v9284 = vunpack.c.l.b16 %v8170
    %v9285 = vunpack.c.h.b16 %v8170
    %v9286 = vunpack.c.l.b16 %v8171
    %v9287 = vunpack.c.h.b16 %v8171
    %v9288 = vunpack.c.l.b16 %v8172
    %v9289 = vunpack.c.h.b16 %v8172
    %v9290 = vunpack.c.l.b16 %v8173
    %v9291 = vunpack.c.l.b16 %v8174
    %v9292 = vunpack.c.h.b16 %v8174
    %v9293 = vunpack.c.l.b16 %v8175
    %v9294 = vunpack.c.h.b16 %v8175
    %v9295 = vunpack.c.l.b16 %v8176
    %v9296 = vunpack.c.h.b16 %v8176
    %v9297 = vunpack.c.l.b16 %v8177
    %v9298 = vunpack.c.l.b16 %v8178
    %v9299 = vunpack.c.h.b16 %v8178
    %v9300 = vunpack.c.l.b16 %v8179
    %v9301 = vunpack.c.h.b16 %v8179
    %v9302 = vunpack.c.l.b16 %v8180
    %v9303 = vunpack.c.h.b16 %v8180
    %v9304 = vunpack.c.l.b16 %v8181
    %v9305 = vunpack.c.l.b16 %v8182
    %v9306 = vunpack.c.h.b16 %v8182
    %v9307 = vunpack.c.l.b16 %v8183
    %v9308 = vunpack.c.h.b16 %v8183
    %v9309 = vunpack.c.l.b16 %v8184
    %v9310 = vunpack.c.h.b16 %v8184
    %v9311 = vunpack.c.l.b16 %v8185
    %v9312 = vunpack.c.l.b16 %v8186
    %v9313 = vunpack.c.h.b16 %v8186
    %v9314 = vunpack.c.l.b16 %v8187
    %v9315 = vunpack.c.h.b16 %v8187
    %v9316 = vunpack.c.l.b16 %v8188
    %v9317 = vunpack.c.h.b16 %v8188
    %v9318 = vunpack.c.l.b16 %v8189
    %v9319 = vunpack.c.l.b16 %v8190
    %v9320 = vunpack.c.h.b16 %v8190
    %v9321 = vunpack.c.l.b16 %v8191
    %v9322 = vunpack.c.h.b16 %v8191
    %v9323 = vunpack.c.l.b16 %v8192
    %v9324 = vunpack.c.h.b16 %v8192
    %v9325 = vunpack.c.l.b16 %v8193
    %v9326 = vunpack.c.l.b16 %v8194
    %v9327 = vunpack.c.h.b16 %v8194
    %v9328 = vunpack.c.l.b16 %v8195
    %v9329 = vunpack.c.h.b16 %v8195
    %v9330 = vunpack.c.l.b16 %v8196
    %v9331 = vunpack.c.h.b16 %v8196
    %v9332 = vunpack.c.l.b16 %v8197
    %v9333 = vunpack.c.l.b16 %v8198
    %v9334 = vunpack.c.h.b16 %v8198
    %v9335 = vunpack.c.l.b16 %v8199
    %v9336 = vunpack.c.h.b16 %v8199
    %v9337 = vunpack.c.l.b16 %v8200
    %v9338 = vunpack.c.h.b16 %v8200
    %v9339 = vunpack.c.l.b16 %v8201
    %v9340 = vunpack.c.l.b16 %v8202
    %v9341 = vunpack.c.h.b16 %v8202
    %v9342 = vunpack.c.l.b16 %v8203
    %v9343 = vunpack.c.h.b16 %v8203
    %v9344 = vunpack.c.l.b16 %v8204
    %v9345 = vunpack.c.h.b16 %v8204
    %v9346 = vunpack.c.l.b16 %v8205
    %v9347 = vunpack.c.l.b16 %v8206
    %v9348 = vunpack.c.h.b16 %v8206
    %v9349 = vunpack.c.l.b16 %v8207
    %v9350 = vunpack.c.h.b16 %v8207
    %v9351 = vunpack.c.l.b16 %v8208
    %v9352 = vunpack.c.h.b16 %v8208
    %v9353 = vunpack.c.l.b16 %v8209
    %v9354 = vunpack.c.l.b16 %v8210
    %v9355 = vunpack.c.h.b16 %v8210
    %v9356 = vunpack.c.l.b16 %v8211
    %v9357 = vunpack.c.h.b16 %v8211
    %v9358 = vunpack.c.l.b16 %v8212
    %v9359 = vunpack.c.h.b16 %v8212
    %v9360 = vunpack.c.l.b16 %v8213
    %v9361 = vunpack.c.l.b16 %v8214
    %v9362 = vunpack.c.h.b16 %v8214
    %v9363 = vunpack.c.l.b16 %v8215
    %v9364 = vunpack.c.h.b16 %v8215
    %v9365 = vunpack.c.l.b16 %v8216
    %v9366 = vunpack.c.h.b16 %v8216
    %v9367 = vunpack.c.l.b16 %v8217
    %v9368 = vunpack.c.l.b16 %v8218
    %v9369 = vunpack.c.h.b16 %v8218
    %v9370 = vunpack.c.l.b16 %v8219
    %v9371 = vunpack.c.h.b16 %v8219
    %v9372 = vunpack.c.l.b16 %v8220
    %v9373 = vunpack.c.h.b16 %v8220
    %v9374 = vunpack.c.l.b16 %v8221
    %v9375 = vunpack.c.l.b16 %v8222
    %v9376 = vunpack.c.h.b16 %v8222
    %v9377 = vunpack.c.l.b16 %v8223
    %v9378 = vunpack.c.h.b16 %v8223
    %v9379 = vunpack.c.l.b16 %v8224
    %v9380 = vunpack.c.h.b16 %v8224
    %v9381 = vunpack.c.l.b16 %v8225
    %v9382 = vunpack.c.l.b16 %v8226
    %v9383 = vunpack.c.h.b16 %v8226
    %v9384 = vunpack.c.l.b16 %v8227
    %v9385 = vunpack.c.h.b16 %v8227
    %v9386 = vunpack.c.l.b16 %v8228
    %v9387 = vunpack.c.h.b16 %v8228
    %v9388 = vunpack.c.l.b16 %v8229
    %v9389 = vunpack.c.l.b16 %v8230
    %v9390 = vunpack.c.h.b16 %v8230
    %v9391 = vunpack.c.l.b16 %v8231
    %v9392 = vunpack.c.h.b16 %v8231
    %v9393 = vunpack.c.l.b16 %v8232
    %v9394 = vunpack.c.h.b16 %v8232
    %v9395 = vunpack.c.l.b16 %v8233
    %v9396 = vunpack.c.l.b16 %v8234
    %v9397 = vunpack.c.h.b16 %v8234
    %v9398 = vunpack.c.l.b16 %v8235
    %v9399 = vunpack.c.h.b16 %v8235
    %v9400 = vunpack.c.l.b16 %v8236
    %v9401 = vunpack.c.h.b16 %v8236
    %v9402 = vunpack.c.l.b16 %v8237
    %v9403 = vunpack.c.l.b16 %v8238
    %v9404 = vunpack.c.h.b16 %v8238
    %v9405 = vunpack.c.l.b16 %v8239
    %v9406 = vunpack.c.h.b16 %v8239
    %v9407 = vunpack.c.l.b16 %v8240
    %v9408 = vunpack.c.h.b16 %v8240
    %v9409 = vunpack.c.l.b16 %v8241
    %v9410 = vunpack.c.l.b16 %v8242
    %v9411 = vunpack.c.h.b16 %v8242
    %v9412 = vunpack.c.l.b16 %v8243
    %v9413 = vunpack.c.h.b16 %v8243
    %v9414 = vunpack.c.l.b16 %v8244
    %v9415 = vunpack.c.h.b16 %v8244
    %v9416 = vunpack.c.l.b16 %v8245
    %v9417 = vunpack.c.l.b16 %v8246
    %v9418 = vunpack.c.h.b16 %v8246
    %v9419 = vunpack.c.l.b16 %v8247
    %v9420 = vunpack.c.h.b16 %v8247
    %v9421 = vunpack.c.l.b16 %v8248
    %v9422 = vunpack.c.h.b16 %v8248
    %v9423 = vunpack.c.l.b16 %v8249
    %v9424 = vunpack.c.l.b16 %v8250
    %v9425 = vunpack.c.h.b16 %v8250
    %v9426 = vunpack.c.l.b16 %v8251
    %v9427 = vunpack.c.h.b16 %v8251
    %v9428 = vunpack.c.l.b16 %v8252
    %v9429 = vunpack.c.h.b16 %v8252
    %v9430 = vunpack.c.l.b16 %v8253
    %v9431 = vunpack.c.l.b16 %v8254
    %v9432 = vunpack.c.h.b16 %v8254
    %v9433 = vunpack.c.l.b16 %v8255
    %v9434 = vunpack.c.h.b16 %v8255
    %v9435 = vunpack.c.l.b16 %v8256
    %v9436 = vunpack.c.h.b16 %v8256
    %v9437 = vunpack.c.l.b16 %v8257
    %v9438 = vunpack.c.l.b16 %v8258
    %v9439 = vunpack.c.h.b16 %v8258
    %v9440 = vunpack.c.l.b16 %v8259
    %v9441 = vunpack.c.h.b16 %v8259
    %v9442 = vunpack.c.l.b16 %v8260
    %v9443 = vunpack.c.h.b16 %v8260
    %v9444 = vunpack.c.l.b16 %v8261
    %v9445 = vunpack.c.l.b16 %v8262
    %v9446 = vunpack.c.h.b16 %v8262
    %v9447 = vunpack.c.l.b16 %v8263
    %v9448 = vunpack.c.h.b16 %v8263
    %v9449 = vunpack.c.l.b16 %v8264
    %v9450 = vunpack.c.h.b16 %v8264
    %v9451 = vunpack.c.l.b16 %v8265
    %v9452 = vunpack.c.l.b16 %v8266
    %v9453 = vunpack.c.h.b16 %v8266
    %v9454 = vunpack.c.l.b16 %v8267
    %v9455 = vunpack.c.h.b16 %v8267
    %v9456 = vunpack.c.l.b16 %v8268
    %v9457 = vunpack.c.h.b16 %v8268
    %v9458 = vunpack.c.l.b16 %v8269
    %v9459 = vunpack.c.l.b16 %v8270
    %v9460 = vunpack.c.h.b16 %v8270
    %v9461 = vunpack.c.l.b16 %v8271
    %v9462 = vunpack.c.h.b16 %v8271
    %v9463 = vunpack.c.l.b16 %v8272
    %v9464 = vunpack.c.h.b16 %v8272
    %v9465 = vunpack.c.l.b16 %v8273
    %v9466 = vunpack.c.l.b16 %v8274
    %v9467 = vunpack.c.h.b16 %v8274
    %v9468 = vunpack.c.l.b16 %v8275
    %v9469 = vunpack.c.h.b16 %v8275
    %v9470 = vunpack.c.l.b16 %v8276
    %v9471 = vunpack.c.h.b16 %v8276
    %v9472 = vunpack.c.l.b16 %v8277
    %v9473 = vunpack.c.l.b16 %v8278
    %v9474 = vunpack.c.h.b16 %v8278
    %v9475 = vunpack.c.l.b16 %v8279
    %v9476 = vunpack.c.h.b16 %v8279
    %v9477 = vunpack.c.l.b16 %v8280
    %v9478 = vunpack.c.h.b16 %v8280
    %v9479 = vunpack.c.l.b16 %v8281
    %v9480 = vpack.c.b16 %v8731, %v8724
    %v9481 = vpack.c.b16 %v8732, %v8725
    %v9482 = vpack.c.b16 %v8733, %v8726
    %v9483 = vpack.c.b16 %v8734, %v8727
    %v9484 = vpack.c.b16 %v8735, %v8728
    %v9485 = vpack.c.b16 %v8736, %v8729
    %v9486 = vpack.c.b16 %v8737, %v8730
    %v9487 = vpack.c.b16 %v8745, %v8738
    %v9488 = vpack.c.b16 %v8746, %v8739
    %v9489 = vpack.c.b16 %v8747, %v8740
    %v9490 = vpack.c.b16 %v8748, %v8741
    %v9491 = vpack.c.b16 %v8749, %v8742
    %v9492 = vpack.c.b16 %v8750, %v8743
    %v9493 = vpack.c.b16 %v8751, %v8744
    %v9494 = vpack.c.b16 %v8759, %v8752
    %v9495 = vpack.c.b16 %v8760, %v8753
    %v9496 = vpack.c.b16 %v8761, %v8754
    %v9497 = vpack.c.b16 %v8762, %v8755
    %v9498 = vpack.c.b16 %v8763, %v8756
    %v9499 = vpack.c.b16 %v8764, %v8757
    %v9500 = vpack.c.b16 %v8765, %v8758
    %v9501 = vpack.c.b16 %v8773, %v8766
    %v9502 = vpack.c.b16 %v8774, %v8767
    %v9503 = vpack.c.b16 %v8775, %v8768
    %v9504 = vpack.c.b16 %v8776, %v8769
    %v9505 = vpack.c.b16 %v8777, %v8770
    %v9506 = vpack.c.b16 %v8778, %v8771
    %v9507 = vpack.c.b16 %v8779, %v8772
    %v9508 = vpack.c.b16 %v8787, %v8780
    %v9509 = vpack.c.b16 %v8788, %v8781
    %v9510 = vpack.c.b16 %v8789, %v8782
    %v9511 = vpack.c.b16 %v8790, %v8783
    %v9512 = vpack.c.b16 %v8791, %v8784
    %v9513 = vpack.c.b16 %v8792, %v8785
    %v9514 = vpack.c.b16 %v8793, %v8786
    %v9515 = vpack.c.b16 %v8801, %v8794
    %v9516 = vpack.c.b16 %v8802, %v8795
    %v9517 = vpack.c.b16 %v8803, %v8796
    %v9518 = vpack.c.b16 %v8804, %v8797
    %v9519 = vpack.c.b16 %v8805, %v8798
    %v9520 = vpack.c.b16 %v8806, %v8799
    %v9521 = vpack.c.b16 %v8807, %v8800
    %v9522 = vpack.c.b16 %v8815, %v8808
    %v9523 = vpack.c.b16 %v8816, %v8809
    %v9524 = vpack.c.b16 %v8817, %v8810
    %v9525 = vpack.c.b16 %v8818, %v8811
    %v9526 = vpack.c.b16 %v8819, %v8812
    %v9527 = vpack.c.b16 %v8820, %v8813
    %v9528 = vpack.c.b16 %v8821, %v8814
    %v9529 = vpack.c.b16 %v8829, %v8822
    %v9530 = vpack.c.b16 %v8830, %v8823
    %v9531 = vpack.c.b16 %v8831, %v8824
    %v9532 = vpack.c.b16 %v8832, %v8825
    %v9533 = vpack.c.b16 %v8833, %v8826
    %v9534 = vpack.c.b16 %v8834, %v8827
    %v9535 = vpack.c.b16 %v8835, %v8828
    %v9536 = vpack.c.b16 %v8843, %v8836
    %v9537 = vpack.c.b16 %v8844, %v8837
    %v9538 = vpack.c.b16 %v8845, %v8838
    %v9539 = vpack.c.b16 %v8846, %v8839
    %v9540 = vpack.c.b16 %v8847, %v8840
    %v9541 = vpack.c.b16 %v8848, %v8841
    %v9542 = vpack.c.b16 %v8849, %v8842
    %v9543 = vpack.c.b16 %v8857, %v8850
    %v9544 = vpack.c.b16 %v8858, %v8851
    %v9545 = vpack.c.b16 %v8859, %v8852
    %v9546 = vpack.c.b16 %v8860, %v8853
    %v9547 = vpack.c.b16 %v8861, %v8854
    %v9548 = vpack.c.b16 %v8862, %v8855
    %v9549 = vpack.c.b16 %v8863, %v8856
    %v9550 = vpack.c.b16 %v8871, %v8864
    %v9551 = vpack.c.b16 %v8872, %v8865
    %v9552 = vpack.c.b16 %v8873, %v8866
    %v9553 = vpack.c.b16 %v8874, %v8867
    %v9554 = vpack.c.b16 %v8875, %v8868
    %v9555 = vpack.c.b16 %v8876, %v8869
    %v9556 = vpack.c.b16 %v8877, %v8870
    %v9557 = vpack.c.b16 %v8885, %v8878
    %v9558 = vpack.c.b16 %v8886, %v8879
    %v9559 = vpack.c.b16 %v8887, %v8880
    %v9560 = vpack.c.b16 %v8888, %v8881
    %v9561 = vpack.c.b16 %v8889, %v8882
    %v9562 = vpack.c.b16 %v8890, %v8883
    %v9563 = vpack.c.b16 %v8891, %v8884
    %v9564 = vpack.c.b16 %v8899, %v8892
    %v9565 = vpack.c.b16 %v8900, %v8893
    %v9566 = vpack.c.b16 %v8901, %v8894
    %v9567 = vpack.c.b16 %v8902, %v8895
    %v9568 = vpack.c.b16 %v8903, %v8896
    %v9569 = vpack.c.b16 %v8904, %v8897
    %v9570 = vpack.c.b16 %v8905, %v8898
    %v9571 = vpack.c.b16 %v8913, %v8906
    %v9572 = vpack.c.b16 %v8914, %v8907
    %v9573 = vpack.c.b16 %v8915, %v8908
    %v9574 = vpack.c.b16 %v8916, %v8909
    %v9575 = vpack.c.b16 %v8917, %v8910
    %v9576 = vpack.c.b16 %v8918, %v8911
    %v9577 = vpack.c.b16 %v8919, %v8912
    %v9578 = vpack.c.b16 %v8927, %v8920
    %v9579 = vpack.c.b16 %v8928, %v8921
    %v9580 = vpack.c.b16 %v8929, %v8922
    %v9581 = vpack.c.b16 %v8930, %v8923
    %v9582 = vpack.c.b16 %v8931, %v8924
    %v9583 = vpack.c.b16 %v8932, %v8925
    %v9584 = vpack.c.b16 %v8933, %v8926
    %v9585 = vpack.c.b16 %v8941, %v8934
    %v9586 = vpack.c.b16 %v8942, %v8935
    %v9587 = vpack.c.b16 %v8943, %v8936
    %v9588 = vpack.c.b16 %v8944, %v8937
    %v9589 = vpack.c.b16 %v8945, %v8938
    %v9590 = vpack.c.b16 %v8946, %v8939
    %v9591 = vpack.c.b16 %v8947, %v8940
    %v9592 = vpack.c.b16 %v8955, %v8948
    %v9593 = vpack.c.b16 %v8956, %v8949
    %v9594 = vpack.c.b16 %v8957, %v8950
    %v9595 = vpack.c.b16 %v8958, %v8951
    %v9596 = vpack.c.b16 %v8959, %v8952
    %v9597 = vpack.c.b16 %v8960, %v8953
    %v9598 = vpack.c.b16 %v8961, %v8954
    %v9599 = vpack.c.b16 %v8969, %v8962
    %v9600 = vpack.c.b16 %v8970, %v8963
    %v9601 = vpack.c.b16 %v8971, %v8964
    %v9602 = vpack.c.b16 %v8972, %v8965
    %v9603 = vpack.c.b16 %v8973, %v8966
    %v9604 = vpack.c.b16 %v8974, %v8967
    %v9605 = vpack.c.b16 %v8975, %v8968
    %v9606 = vpack.c.b16 %v8983, %v8976
    %v9607 = vpack.c.b16 %v8984, %v8977
    %v9608 = vpack.c.b16 %v8985, %v8978
    %v9609 = vpack.c.b16 %v8986, %v8979
    %v9610 = vpack.c.b16 %v8987, %v8980
    %v9611 = vpack.c.b16 %v8988, %v8981
    %v9612 = vpack.c.b16 %v8989, %v8982
    %v9613 = vpack.c.b16 %v8997, %v8990
    %v9614 = vpack.c.b16 %v8998, %v8991
    %v9615 = vpack.c.b16 %v8999, %v8992
    %v9616 = vpack.c.b16 %v9000, %v8993
    %v9617 = vpack.c.b16 %v9001, %v8994
    %v9618 = vpack.c.b16 %v9002, %v8995
    %v9619 = vpack.c.b16 %v9003, %v8996
    %v9620 = vpack.c.b16 %v9011, %v9004
    %v9621 = vpack.c.b16 %v9012, %v9005
    %v9622 = vpack.c.b16 %v9013, %v9006
    %v9623 = vpack.c.b16 %v9014, %v9007
    %v9624 = vpack.c.b16 %v9015, %v9008
    %v9625 = vpack.c.b16 %v9016, %v9009
    %v9626 = vpack.c.b16 %v9017, %v9010
    %v9627 = vpack.c.b16 %v9025, %v9018
    %v9628 = vpack.c.b16 %v9026, %v9019
    %v9629 = vpack.c.b16 %v9027, %v9020
    %v9630 = vpack.c.b16 %v9028, %v9021
    %v9631 = vpack.c.b16 %v9029, %v9022
    %v9632 = vpack.c.b16 %v9030, %v9023
    %v9633 = vpack.c.b16 %v9031, %v9024
    %v9634 = vpack.c.b16 %v9039, %v9032
    %v9635 = vpack.c.b16 %v9040, %v9033
    %v9636 = vpack.c.b16 %v9041, %v9034
    %v9637 = vpack.c.b16 %v9042, %v9035
    %v9638 = vpack.c.b16 %v9043, %v9036
    %v9639 = vpack.c.b16 %v9044, %v9037
    %v9640 = vpack.c.b16 %v9045, %v9038
    %v9641 = vpack.c.b16 %v9053, %v9046
    %v9642 = vpack.c.b16 %v9054, %v9047
    %v9643 = vpack.c.b16 %v9055, %v9048
    %v9644 = vpack.c.b16 %v9056, %v9049
    %v9645 = vpack.c.b16 %v9057, %v9050
    %v9646 = vpack.c.b16 %v9058, %v9051
    %v9647 = vpack.c.b16 %v9059, %v9052
    %v9648 = vpack.c.b16 %v9067, %v9060
    %v9649 = vpack.c.b16 %v9068, %v9061
    %v9650 = vpack.c.b16 %v9069, %v9062
    %v9651 = vpack.c.b16 %v9070, %v9063
    %v9652 = vpack.c.b16 %v9071, %v9064
    %v9653 = vpack.c.b16 %v9072, %v9065
    %v9654 = vpack.c.b16 %v9073, %v9066
    %v9655 = vpack.c.b16 %v9081, %v9074
    %v9656 = vpack.c.b16 %v9082, %v9075
    %v9657 = vpack.c.b16 %v9083, %v9076
    %v9658 = vpack.c.b16 %v9084, %v9077
    %v9659 = vpack.c.b16 %v9085, %v9078
    %v9660 = vpack.c.b16 %v9086, %v9079
    %v9661 = vpack.c.b16 %v9087, %v9080
    %v9662 = vpack.c.b16 %v9095, %v9088
    %v9663 = vpack.c.b16 %v9096, %v9089
    %v9664 = vpack.c.b16 %v9097, %v9090
    %v9665 = vpack.c.b16 %v9098, %v9091
    %v9666 = vpack.c.b16 %v9099, %v9092
    %v9667 = vpack.c.b16 %v9100, %v9093
    %v9668 = vpack.c.b16 %v9101, %v9094
    %v9669 = vpack.c.b16 %v9109, %v9102
    %v9670 = vpack.c.b16 %v9110, %v9103
    %v9671 = vpack.c.b16 %v9111, %v9104
    %v9672 = vpack.c.b16 %v9112, %v9105
    %v9673 = vpack.c.b16 %v9113, %v9106
    %v9674 = vpack.c.b16 %v9114, %v9107
    %v9675 = vpack.c.b16 %v9115, %v9108
    %v9676 = vpack.c.b16 %v9123, %v9116
    %v9677 = vpack.c.b16 %v9124, %v9117
    %v9678 = vpack.c.b16 %v9125, %v9118
    %v9679 = vpack.c.b16 %v9126, %v9119
    %v9680 = vpack.c.b16 %v9127, %v9120
    %v9681 = vpack.c.b16 %v9128, %v9121
    %v9682 = vpack.c.b16 %v9129, %v9122
    %v9683 = vpack.c.b16 %v9137, %v9130
    %v9684 = vpack.c.b16 %v9138, %v9131
    %v9685 = vpack.c.b16 %v9139, %v9132
    %v9686 = vpack.c.b16 %v9140, %v9133
    %v9687 = vpack.c.b16 %v9141, %v9134
    %v9688 = vpack.c.b16 %v9142, %v9135
    %v9689 = vpack.c.b16 %v9143, %v9136
    %v9690 = vpack.c.b16 %v9151, %v9144
    %v9691 = vpack.c.b16 %v9152, %v9145
    %v9692 = vpack.c.b16 %v9153, %v9146
    %v9693 = vpack.c.b16 %v9154, %v9147
    %v9694 = vpack.c.b16 %v9155, %v9148
    %v9695 = vpack.c.b16 %v9156, %v9149
    %v9696 = vpack.c.b16 %v9157, %v9150
    %v9697 = vpack.c.b16 %v9165, %v9158
    %v9698 = vpack.c.b16 %v9166, %v9159
    %v9699 = vpack.c.b16 %v9167, %v9160
    %v9700 = vpack.c.b16 %v9168, %v9161
    %v9701 = vpack.c.b16 %v9169, %v9162
    %v9702 = vpack.c.b16 %v9170, %v9163
    %v9703 = vpack.c.b16 %v9171, %v9164
    %v9704 = vpack.c.b16 %v9179, %v9172
    %v9705 = vpack.c.b16 %v9180, %v9173
    %v9706 = vpack.c.b16 %v9181, %v9174
    %v9707 = vpack.c.b16 %v9182, %v9175
    %v9708 = vpack.c.b16 %v9183, %v9176
    %v9709 = vpack.c.b16 %v9184, %v9177
    %v9710 = vpack.c.b16 %v9185, %v9178
    %v9711 = vpack.c.b16 %v9193, %v9186
    %v9712 = vpack.c.b16 %v9194, %v9187
    %v9713 = vpack.c.b16 %v9195, %v9188
    %v9714 = vpack.c.b16 %v9196, %v9189
    %v9715 = vpack.c.b16 %v9197, %v9190
    %v9716 = vpack.c.b16 %v9198, %v9191
    %v9717 = vpack.c.b16 %v9199, %v9192
    %v9718 = vpack.c.b16 %v9207, %v9200
    %v9719 = vpack.c.b16 %v9208, %v9201
    %v9720 = vpack.c.b16 %v9209, %v9202
    %v9721 = vpack.c.b16 %v9210, %v9203
    %v9722 = vpack.c.b16 %v9211, %v9204
    %v9723 = vpack.c.b16 %v9212, %v9205
    %v9724 = vpack.c.b16 %v9213, %v9206
    %v9725 = vpack.c.b16 %v9221, %v9214
    %v9726 = vpack.c.b16 %v9222, %v9215
    %v9727 = vpack.c.b16 %v9223, %v9216
    %v9728 = vpack.c.b16 %v9224, %v9217
    %v9729 = vpack.c.b16 %v9225, %v9218
    %v9730 = vpack.c.b16 %v9226, %v9219
    %v9731 = vpack.c.b16 %v9227, %v9220
    %v9732 = vpack.c.b16 %v9235, %v9228
    %v9733 = vpack.c.b16 %v9236, %v9229
    %v9734 = vpack.c.b16 %v9237, %v9230
    %v9735 = vpack.c.b16 %v9238, %v9231
    %v9736 = vpack.c.b16 %v9239, %v9232
    %v9737 = vpack.c.b16 %v9240, %v9233
    %v9738 = vpack.c.b16 %v9241, %v9234
    %v9739 = vpack.c.b16 %v9249, %v9242
    %v9740 = vpack.c.b16 %v9250, %v9243
    %v9741 = vpack.c.b16 %v9251, %v9244
    %v9742 = vpack.c.b16 %v9252, %v9245
    %v9743 = vpack.c.b16 %v9253, %v9246
    %v9744 = vpack.c.b16 %v9254, %v9247
    %v9745 = vpack.c.b16 %v9255, %v9248
    %v9746 = vpack.c.b16 %v9263, %v9256
    %v9747 = vpack.c.b16 %v9264, %v9257
    %v9748 = vpack.c.b16 %v9265, %v9258
    %v9749 = vpack.c.b16 %v9266, %v9259
    %v9750 = vpack.c.b16 %v9267, %v9260
    %v9751 = vpack.c.b16 %v9268, %v9261
    %v9752 = vpack.c.b16 %v9269, %v9262
    %v9753 = vpack.c.b16 %v9277, %v9270
    %v9754 = vpack.c.b16 %v9278, %v9271
    %v9755 = vpack.c.b16 %v9279, %v9272
    %v9756 = vpack.c.b16 %v9280, %v9273
    %v9757 = vpack.c.b16 %v9281, %v9274
    %v9758 = vpack.c.b16 %v9282, %v9275
    %v9759 = vpack.c.b16 %v9283, %v9276
    %v9760 = vpack.c.b16 %v9291, %v9284
    %v9761 = vpack.c.b16 %v9292, %v9285
    %v9762 = vpack.c.b16 %v9293, %v9286
    %v9763 = vpack.c.b16 %v9294, %v9287
    %v9764 = vpack.c.b16 %v9295, %v9288
    %v9765 = vpack.c.b16 %v9296, %v9289
    %v9766 = vpack.c.b16 %v9297, %v9290
    %v9767 = vpack.c.b16 %v9305, %v9298
    %v9768 = vpack.c.b16 %v9306, %v9299
    %v9769 = vpack.c.b16 %v9307, %v9300
    %v9770 = vpack.c.b16 %v9308, %v9301
    %v9771 = vpack.c.b16 %v9309, %v9302
    %v9772 = vpack.c.b16 %v9310, %v9303
    %v9773 = vpack.c.b16 %v9311, %v9304
    %v9774 = vpack.c.b16 %v9319, %v9312
    %v9775 = vpack.c.b16 %v9320, %v9313
    %v9776 = vpack.c.b16 %v9321, %v9314
    %v9777 = vpack.c.b16 %v9322, %v9315
    %v9778 = vpack.c.b16 %v9323, %v9316
    %v9779 = vpack.c.b16 %v9324, %v9317
    %v9780 = vpack.c.b16 %v9325, %v9318
    %v9781 = vpack.c.b16 %v9333, %v9326
    %v9782 = vpack.c.b16 %v9334, %v9327
    %v9783 = vpack.c.b16 %v9335, %v9328
    %v9784 = vpack.c.b16 %v9336, %v9329
    %v9785 = vpack.c.b16 %v9337, %v9330
    %v9786 = vpack.c.b16 %v9338, %v9331
    %v9787 = vpack.c.b16 %v9339, %v9332
    %v9788 = vpack.c.b16 %v9347, %v9340
    %v9789 = vpack.c.b16 %v9348, %v9341
    %v9790 = vpack.c.b16 %v9349, %v9342
    %v9791 = vpack.c.b16 %v9350, %v9343
    %v9792 = vpack.c.b16 %v9351, %v9344
    %v9793 = vpack.c.b16 %v9352, %v9345
    %v9794 = vpack.c.b16 %v9353, %v9346
    %v9795 = vpack.c.b16 %v9361, %v9354
    %v9796 = vpack.c.b16 %v9362, %v9355
    %v9797 = vpack.c.b16 %v9363, %v9356
    %v9798 = vpack.c.b16 %v9364, %v9357
    %v9799 = vpack.c.b16 %v9365, %v9358
    %v9800 = vpack.c.b16 %v9366, %v9359
    %v9801 = vpack.c.b16 %v9367, %v9360
    %v9802 = vpack.c.b16 %v9375, %v9368
    %v9803 = vpack.c.b16 %v9376, %v9369
    %v9804 = vpack.c.b16 %v9377, %v9370
    %v9805 = vpack.c.b16 %v9378, %v9371
    %v9806 = vpack.c.b16 %v9379, %v9372
    %v9807 = vpack.c.b16 %v9380, %v9373
    %v9808 = vpack.c.b16 %v9381, %v9374
    %v9809 = vpack.c.b16 %v9389, %v9382
    %v9810 = vpack.c.b16 %v9390, %v9383
    %v9811 = vpack.c.b16 %v9391, %v9384
    %v9812 = vpack.c.b16 %v9392, %v9385
    %v9813 = vpack.c.b16 %v9393, %v9386
    %v9814 = vpack.c.b16 %v9394, %v9387
    %v9815 = vpack.c.b16 %v9395, %v9388
    %v9816 = vpack.c.b16 %v9403, %v9396
    %v9817 = vpack.c.b16 %v9404, %v9397
    %v9818 = vpack.c.b16 %v9405, %v9398
    %v9819 = vpack.c.b16 %v9406, %v9399
    %v9820 = vpack.c.b16 %v9407, %v9400
    %v9821 = vpack.c.b16 %v9408, %v9401
    %v9822 = vpack.c.b16 %v9409, %v9402
    %v9823 = vpack.c.b16 %v9417, %v9410
    %v9824 = vpack.c.b16 %v9418, %v9411
    %v9825 = vpack.c.b16 %v9419, %v9412
    %v9826 = vpack.c.b16 %v9420, %v9413
    %v9827 = vpack.c.b16 %v9421, %v9414
    %v9828 = vpack.c.b16 %v9422, %v9415
    %v9829 = vpack.c.b16 %v9423, %v9416
    %v9830 = vpack.c.b16 %v9431, %v9424
    %v9831 = vpack.c.b16 %v9432, %v9425
    %v9832 = vpack.c.b16 %v9433, %v9426
    %v9833 = vpack.c.b16 %v9434, %v9427
    %v9834 = vpack.c.b16 %v9435, %v9428
    %v9835 = vpack.c.b16 %v9436, %v9429
    %v9836 = vpack.c.b16 %v9437, %v9430
    %v9837 = vpack.c.b16 %v9445, %v9438
    %v9838 = vpack.c.b16 %v9446, %v9439
    %v9839 = vpack.c.b16 %v9447, %v9440
    %v9840 = vpack.c.b16 %v9448, %v9441
    %v9841 = vpack.c.b16 %v9449, %v9442
    %v9842 = vpack.c.b16 %v9450, %v9443
    %v9843 = vpack.c.b16 %v9451, %v9444
    %v9844 = vpack.c.b16 %v9459, %v9452
    %v9845 = vpack.c.b16 %v9460, %v9453
    %v9846 = vpack.c.b16 %v9461, %v9454
    %v9847 = vpack.c.b16 %v9462, %v9455
    %v9848 = vpack.c.b16 %v9463, %v9456
    %v9849 = vpack.c.b16 %v9464, %v9457
    %v9850 = vpack.c.b16 %v9465, %v9458
    %v9851 = vpack.c.b16 %v9473, %v9466
    %v9852 = vpack.c.b16 %v9474, %v9467
    %v9853 = vpack.c.b16 %v9475, %v9468
    %v9854 = vpack.c.b16 %v9476, %v9469
    %v9855 = vpack.c.b16 %v9477, %v9470
    %v9856 = vpack.c.b16 %v9478, %v9471
    %v9857 = vpack.c.b16 %v9479, %v9472
    %v10237 = vsel %vm3202, %v7849, 0
    %10239 = vmatprep.subr.bf16.mxu0 %v9530
    %10240 = vmatpush1.bf16.msra.mxu0 %v9529
    %10241 = vmatprep.subr.bf16.mxu0 %v9523
    %10242 = vmatpush1.bf16.msra.mxu0 %v9522
    %10243 = vmatprep.subr.bf16.mxu0 %v9516
    %10244 = vmatpush1.bf16.msra.mxu0 %v9515
    %10245 = vmatprep.subr.bf16.mxu0 %v9509
    %10246 = vmatpush1.bf16.msra.mxu0 %v9508
    %10247 = vmatprep.subr.bf16.mxu0 %v9502
    %10248 = vmatpush1.bf16.msra.mxu0 %v9501
    %10249 = vmatprep.subr.bf16.mxu0 %v9495
    %10250 = vmatpush1.bf16.msra.mxu0 %v9494
    %10251 = vmatprep.subr.bf16.mxu0 %v9488
    %10252 = vmatpush1.bf16.msra.mxu0 %v9487
    %10253 = vmatprep.subr.bf16.mxu0 %v9481
    %10254 = vmatpush1.bf16.msra.mxu0 %v9480
    %10255 = vmatprep.subr.bf16.mxu0 %v9586
    %10256 = vmatpush2.bf16.msra.mxu0 %v9585
    %10257 = vmatprep.subr.bf16.mxu0 %v9579
    %10258 = vmatpush2.bf16.msra.mxu0 %v9578
    %10259 = vmatprep.subr.bf16.mxu0 %v9572
    %10260 = vmatpush2.bf16.msra.mxu0 %v9571
    %10261 = vmatprep.subr.bf16.mxu0 %v9565
    %10262 = vmatpush2.bf16.msra.mxu0 %v9564
    %10263 = vmatprep.subr.bf16.mxu0 %v9558
    %10264 = vmatpush2.bf16.msra.mxu0 %v9557
    %10265 = vmatprep.subr.bf16.mxu0 %v9551
    %10266 = vmatpush2.bf16.msra.mxu0 %v9550
    %10267 = vmatprep.subr.bf16.mxu0 %v9544
    %10268 = vmatpush2.bf16.msra.mxu0 %v9543
    %10269 = vmatprep.subr.bf16.mxu0 %v9537
    %10270 = vmatpush2.bf16.msra.mxu0 %v9536
    %10271 = vmatprep.mubr.bf16.mxu0 %v7844
    %10272 = vmatmul.mubr.bf16.gmra.mxu0 %v7843
    %v10273 = vpop.f32.mrf.mxu0
    %v10274 = vadd.f32 %v8290, %v10273
    %v10275 = vpop.f32.mrf.mxu0
    %v10276 = vadd.f32 %v8290, %v10275
    %v10277 = vpop.f32.mrf.mxu0
    %v10278 = vpop.f32.mrf.mxu0
    %10279 = vdwg.mxu0
    %10280 = vmatprep.subr.bf16.mxu0 %v9642
    %10281 = vmatpush1.bf16.msra.mxu0 %v9641
    %10282 = vmatprep.subr.bf16.mxu0 %v9635
    %10283 = vmatpush1.bf16.msra.mxu0 %v9634
    %10284 = vmatprep.subr.bf16.mxu0 %v9628
    %10285 = vmatpush1.bf16.msra.mxu0 %v9627
    %10286 = vmatprep.subr.bf16.mxu0 %v9621
    %10287 = vmatpush1.bf16.msra.mxu0 %v9620
    %10288 = vmatprep.subr.bf16.mxu0 %v9614
    %10289 = vmatpush1.bf16.msra.mxu0 %v9613
    %10290 = vmatprep.subr.bf16.mxu0 %v9607
    %10291 = vmatpush1.bf16.msra.mxu0 %v9606
    %10292 = vmatprep.subr.bf16.mxu0 %v9600
    %10293 = vmatpush1.bf16.msra.mxu0 %v9599
    %10294 = vmatprep.subr.bf16.mxu0 %v9593
    %10295 = vmatpush1.bf16.msra.mxu0 %v9592
    %10296 = vmatprep.subr.bf16.mxu0 %v9698
    %10297 = vmatpush2.bf16.msra.mxu0 %v9697
    %10298 = vmatprep.subr.bf16.mxu0 %v9691
    %10299 = vmatpush2.bf16.msra.mxu0 %v9690
    %10300 = vmatprep.subr.bf16.mxu0 %v9684
    %10301 = vmatpush2.bf16.msra.mxu0 %v9683
    %10302 = vmatprep.subr.bf16.mxu0 %v9677
    %10303 = vmatpush2.bf16.msra.mxu0 %v9676
    %10304 = vmatprep.subr.bf16.mxu0 %v9670
    %10305 = vmatpush2.bf16.msra.mxu0 %v9669
    %10306 = vmatprep.subr.bf16.mxu0 %v9663
    %10307 = vmatpush2.bf16.msra.mxu0 %v9662
    %10308 = vmatprep.subr.bf16.mxu0 %v9656
    %10309 = vmatpush2.bf16.msra.mxu0 %v9655
    %10310 = vmatprep.subr.bf16.mxu0 %v9649
    %10311 = vmatpush2.bf16.msra.mxu0 %v9648
    %10312 = vmatprep.mubr.bf16.mxu0 %v7846
    %10313 = vmatmul.mubr.bf16.gmra.mxu0 %v7845
    %v10314 = vpop.f32.mrf.mxu0
    %v10315 = vadd.f32 %v10274, %v10314
    %v10316 = vpop.f32.mrf.mxu0
    %v10317 = vadd.f32 %v10276, %v10316
    %v10318 = vpop.f32.mrf.mxu0
    %v10319 = vpop.f32.mrf.mxu0
    %10320 = vdwg.mxu0
    %10321 = vmatprep.subr.bf16.mxu0 %v9754
    %10322 = vmatpush1.bf16.msra.mxu0 %v9753
    %10323 = vmatprep.subr.bf16.mxu0 %v9747
    %10324 = vmatpush1.bf16.msra.mxu0 %v9746
    %10325 = vmatprep.subr.bf16.mxu0 %v9740
    %10326 = vmatpush1.bf16.msra.mxu0 %v9739
    %10327 = vmatprep.subr.bf16.mxu0 %v9733
    %10328 = vmatpush1.bf16.msra.mxu0 %v9732
    %10329 = vmatprep.subr.bf16.mxu0 %v9726
    %10330 = vmatpush1.bf16.msra.mxu0 %v9725
    %10331 = vmatprep.subr.bf16.mxu0 %v9719
    %10332 = vmatpush1.bf16.msra.mxu0 %v9718
    %10333 = vmatprep.subr.bf16.mxu0 %v9712
    %10334 = vmatpush1.bf16.msra.mxu0 %v9711
    %10335 = vmatprep.subr.bf16.mxu0 %v9705
    %10336 = vmatpush1.bf16.msra.mxu0 %v9704
    %10337 = vmatprep.subr.bf16.mxu0 %v9810
    %10338 = vmatpush2.bf16.msra.mxu0 %v9809
    %10339 = vmatprep.subr.bf16.mxu0 %v9803
    %10340 = vmatpush2.bf16.msra.mxu0 %v9802
    %10341 = vmatprep.subr.bf16.mxu0 %v9796
    %10342 = vmatpush2.bf16.msra.mxu0 %v9795
    %10343 = vmatprep.subr.bf16.mxu0 %v9789
    %10344 = vmatpush2.bf16.msra.mxu0 %v9788
    %10345 = vmatprep.subr.bf16.mxu0 %v9782
    %10346 = vmatpush2.bf16.msra.mxu0 %v9781
    %10347 = vmatprep.subr.bf16.mxu0 %v9775
    %10348 = vmatpush2.bf16.msra.mxu0 %v9774
    %10349 = vmatprep.subr.bf16.mxu0 %v9768
    %10350 = vmatpush2.bf16.msra.mxu0 %v9767
    %10351 = vmatprep.subr.bf16.mxu0 %v9761
    %10352 = vmatpush2.bf16.msra.mxu0 %v9760
    %10353 = vmatprep.mubr.bf16.mxu0 %v7848
    %10354 = vmatmul.mubr.bf16.gmra.mxu0 %v7847
    %v10355 = vpop.f32.mrf.mxu0
    %v10356 = vadd.f32 %v10315, %v10355
    %v10357 = vpop.f32.mrf.mxu0
    %v10358 = vadd.f32 %v10317, %v10357
    %v10359 = vpop.f32.mrf.mxu0
    %v10360 = vpop.f32.mrf.mxu0
    %10361 = vdwg.mxu0
    %10362 = vmatprep.subr.bf16.mxu0 0
    %10363 = vmatpush1.bf16.msra.mxu0 0
    %10364 = vmatprep.subr.bf16.mxu0 0
    %10365 = vmatpush1.bf16.msra.mxu0 0
    %10366 = vmatprep.subr.bf16.mxu0 %v9852
    %10367 = vmatpush1.bf16.msra.mxu0 %v9851
    %10368 = vmatprep.subr.bf16.mxu0 %v9845
    %10369 = vmatpush1.bf16.msra.mxu0 %v9844
    %10370 = vmatprep.subr.bf16.mxu0 %v9838
    %10371 = vmatpush1.bf16.msra.mxu0 %v9837
    %10372 = vmatprep.subr.bf16.mxu0 %v9831
    %10373 = vmatpush1.bf16.msra.mxu0 %v9830
    %10374 = vmatprep.subr.bf16.mxu0 %v9824
    %10375 = vmatpush1.bf16.msra.mxu0 %v9823
    %10376 = vmatprep.subr.bf16.mxu0 %v9817
    %10377 = vmatpush1.bf16.msra.mxu0 %v9816
    %10378 = vmatprep.subr.bf16.mxu0 0
    %10379 = vmatpush2.bf16.msra.mxu0 0
    %10380 = vmatprep.subr.bf16.mxu0 0
    %10381 = vmatpush2.bf16.msra.mxu0 0
    %10382 = vmatprep.subr.bf16.mxu0 0
    %10383 = vmatpush2.bf16.msra.mxu0 0
    %10384 = vmatprep.subr.bf16.mxu0 0
    %10385 = vmatpush2.bf16.msra.mxu0 0
    %10386 = vmatprep.subr.bf16.mxu0 0
    %10387 = vmatpush2.bf16.msra.mxu0 0
    %10388 = vmatprep.subr.bf16.mxu0 0
    %10389 = vmatpush2.bf16.msra.mxu0 0
    %10390 = vmatprep.subr.bf16.mxu0 0
    %10391 = vmatpush2.bf16.msra.mxu0 0
    %10392 = vmatprep.subr.bf16.mxu0 0
    %10393 = vmatpush2.bf16.msra.mxu0 0
    %10394 = vmatprep.mubr.bf16.mxu0 0
    %10395 = vmatmul.mubr.bf16.gmra.mxu0 %v10237
    %v10396 = vpop.f32.mrf.mxu0
    %v10397 = vadd.f32 %v10356, %v10396
    %v10398 = vpop.f32.mrf.mxu0
    %v10399 = vadd.f32 %v10358, %v10398
    %v10400 = vpop.f32.mrf.mxu0
    %v10401 = vpop.f32.mrf.mxu0
    %10402 = vdwg.mxu0
    %10403 = vmatprep.subr.bf16.mxu0 %v9532
    %10404 = vmatpush1.bf16.msra.mxu0 %v9531
    %10405 = vmatprep.subr.bf16.mxu0 %v9525
    %10406 = vmatpush1.bf16.msra.mxu0 %v9524
    %10407 = vmatprep.subr.bf16.mxu0 %v9518
    %10408 = vmatpush1.bf16.msra.mxu0 %v9517
    %10409 = vmatprep.subr.bf16.mxu0 %v9511
    %10410 = vmatpush1.bf16.msra.mxu0 %v9510
    %10411 = vmatprep.subr.bf16.mxu0 %v9504
    %10412 = vmatpush1.bf16.msra.mxu0 %v9503
    %10413 = vmatprep.subr.bf16.mxu0 %v9497
    %10414 = vmatpush1.bf16.msra.mxu0 %v9496
    %10415 = vmatprep.subr.bf16.mxu0 %v9490
    %10416 = vmatpush1.bf16.msra.mxu0 %v9489
    %10417 = vmatprep.subr.bf16.mxu0 %v9483
    %10418 = vmatpush1.bf16.msra.mxu0 %v9482
    %10419 = vmatprep.subr.bf16.mxu0 %v9588
    %10420 = vmatpush2.bf16.msra.mxu0 %v9587
    %10421 = vmatprep.subr.bf16.mxu0 %v9581
    %10422 = vmatpush2.bf16.msra.mxu0 %v9580
    %10423 = vmatprep.subr.bf16.mxu0 %v9574
    %10424 = vmatpush2.bf16.msra.mxu0 %v9573
    %10425 = vmatprep.subr.bf16.mxu0 %v9567
    %10426 = vmatpush2.bf16.msra.mxu0 %v9566
    %10427 = vmatprep.subr.bf16.mxu0 %v9560
    %10428 = vmatpush2.bf16.msra.mxu0 %v9559
    %10429 = vmatprep.subr.bf16.mxu0 %v9553
    %10430 = vmatpush2.bf16.msra.mxu0 %v9552
    %10431 = vmatprep.subr.bf16.mxu0 %v9546
    %10432 = vmatpush2.bf16.msra.mxu0 %v9545
    %10433 = vmatprep.subr.bf16.mxu0 %v9539
    %10434 = vmatpush2.bf16.msra.mxu0 %v9538
    %10435 = vmatprep.mubr.bf16.mxu0 %v7844
    %10436 = vmatmul.mubr.bf16.gmra.mxu0 %v7843
    %v10437 = vpop.f32.mrf.mxu0
    %v10438 = vadd.f32 %v8290, %v10437
    %v10439 = vpop.f32.mrf.mxu0
    %v10440 = vadd.f32 %v8290, %v10439
    %v10441 = vpop.f32.mrf.mxu0
    %v10442 = vpop.f32.mrf.mxu0
    %10443 = vdwg.mxu0
    %10444 = vmatprep.subr.bf16.mxu0 %v9644
    %10445 = vmatpush1.bf16.msra.mxu0 %v9643
    %10446 = vmatprep.subr.bf16.mxu0 %v9637
    %10447 = vmatpush1.bf16.msra.mxu0 %v9636
    %10448 = vmatprep.subr.bf16.mxu0 %v9630
    %10449 = vmatpush1.bf16.msra.mxu0 %v9629
    %10450 = vmatprep.subr.bf16.mxu0 %v9623
    %10451 = vmatpush1.bf16.msra.mxu0 %v9622
    %10452 = vmatprep.subr.bf16.mxu0 %v9616
    %10453 = vmatpush1.bf16.msra.mxu0 %v9615
    %10454 = vmatprep.subr.bf16.mxu0 %v9609
    %10455 = vmatpush1.bf16.msra.mxu0 %v9608
    %10456 = vmatprep.subr.bf16.mxu0 %v9602
    %10457 = vmatpush1.bf16.msra.mxu0 %v9601
    %10458 = vmatprep.subr.bf16.mxu0 %v9595
    %10459 = vmatpush1.bf16.msra.mxu0 %v9594
    %10460 = vmatprep.subr.bf16.mxu0 %v9700
    %10461 = vmatpush2.bf16.msra.mxu0 %v9699
    %10462 = vmatprep.subr.bf16.mxu0 %v9693
    %10463 = vmatpush2.bf16.msra.mxu0 %v9692
    %10464 = vmatprep.subr.bf16.mxu0 %v9686
    %10465 = vmatpush2.bf16.msra.mxu0 %v9685
    %10466 = vmatprep.subr.bf16.mxu0 %v9679
    %10467 = vmatpush2.bf16.msra.mxu0 %v9678
    %10468 = vmatprep.subr.bf16.mxu0 %v9672
    %10469 = vmatpush2.bf16.msra.mxu0 %v9671
    %10470 = vmatprep.subr.bf16.mxu0 %v9665
    %10471 = vmatpush2.bf16.msra.mxu0 %v9664
    %10472 = vmatprep.subr.bf16.mxu0 %v9658
    %10473 = vmatpush2.bf16.msra.mxu0 %v9657
    %10474 = vmatprep.subr.bf16.mxu0 %v9651
    %10475 = vmatpush2.bf16.msra.mxu0 %v9650
    %10476 = vmatprep.mubr.bf16.mxu0 %v7846
    %10477 = vmatmul.mubr.bf16.gmra.mxu0 %v7845
    %v10478 = vpop.f32.mrf.mxu0
    %v10479 = vadd.f32 %v10438, %v10478
    %v10480 = vpop.f32.mrf.mxu0
    %v10481 = vadd.f32 %v10440, %v10480
    %v10482 = vpop.f32.mrf.mxu0
    %v10483 = vpop.f32.mrf.mxu0
    %10484 = vdwg.mxu0
    %10485 = vmatprep.subr.bf16.mxu0 %v9756
    %10486 = vmatpush1.bf16.msra.mxu0 %v9755
    %10487 = vmatprep.subr.bf16.mxu0 %v9749
    %10488 = vmatpush1.bf16.msra.mxu0 %v9748
    %10489 = vmatprep.subr.bf16.mxu0 %v9742
    %10490 = vmatpush1.bf16.msra.mxu0 %v9741
    %10491 = vmatprep.subr.bf16.mxu0 %v9735
    %10492 = vmatpush1.bf16.msra.mxu0 %v9734
    %10493 = vmatprep.subr.bf16.mxu0 %v9728
    %10494 = vmatpush1.bf16.msra.mxu0 %v9727
    %10495 = vmatprep.subr.bf16.mxu0 %v9721
    %10496 = vmatpush1.bf16.msra.mxu0 %v9720
    %10497 = vmatprep.subr.bf16.mxu0 %v9714
    %10498 = vmatpush1.bf16.msra.mxu0 %v9713
    %10499 = vmatprep.subr.bf16.mxu0 %v9707
    %10500 = vmatpush1.bf16.msra.mxu0 %v9706
    %10501 = vmatprep.subr.bf16.mxu0 %v9812
    %10502 = vmatpush2.bf16.msra.mxu0 %v9811
    %10503 = vmatprep.subr.bf16.mxu0 %v9805
    %10504 = vmatpush2.bf16.msra.mxu0 %v9804
    %10505 = vmatprep.subr.bf16.mxu0 %v9798
    %10506 = vmatpush2.bf16.msra.mxu0 %v9797
    %10507 = vmatprep.subr.bf16.mxu0 %v9791
    %10508 = vmatpush2.bf16.msra.mxu0 %v9790
    %10509 = vmatprep.subr.bf16.mxu0 %v9784
    %10510 = vmatpush2.bf16.msra.mxu0 %v9783
    %10511 = vmatprep.subr.bf16.mxu0 %v9777
    %10512 = vmatpush2.bf16.msra.mxu0 %v9776
    %10513 = vmatprep.subr.bf16.mxu0 %v9770
    %10514 = vmatpush2.bf16.msra.mxu0 %v9769
    %10515 = vmatprep.subr.bf16.mxu0 %v9763
    %10516 = vmatpush2.bf16.msra.mxu0 %v9762
    %10517 = vmatprep.mubr.bf16.mxu0 %v7848
    %10518 = vmatmul.mubr.bf16.gmra.mxu0 %v7847
    %v10519 = vpop.f32.mrf.mxu0
    %v10520 = vadd.f32 %v10479, %v10519
    %v10521 = vpop.f32.mrf.mxu0
    %v10522 = vadd.f32 %v10481, %v10521
    %v10523 = vpop.f32.mrf.mxu0
    %v10524 = vpop.f32.mrf.mxu0
    %10525 = vdwg.mxu0
    %10526 = vmatprep.subr.bf16.mxu0 0
    %10527 = vmatpush1.bf16.msra.mxu0 0
    %10528 = vmatprep.subr.bf16.mxu0 0
    %10529 = vmatpush1.bf16.msra.mxu0 0
    %10530 = vmatprep.subr.bf16.mxu0 %v9854
    %10531 = vmatpush1.bf16.msra.mxu0 %v9853
    %10532 = vmatprep.subr.bf16.mxu0 %v9847
    %10533 = vmatpush1.bf16.msra.mxu0 %v9846
    %10534 = vmatprep.subr.bf16.mxu0 %v9840
    %10535 = vmatpush1.bf16.msra.mxu0 %v9839
    %10536 = vmatprep.subr.bf16.mxu0 %v9833
    %10537 = vmatpush1.bf16.msra.mxu0 %v9832
    %10538 = vmatprep.subr.bf16.mxu0 %v9826
    %10539 = vmatpush1.bf16.msra.mxu0 %v9825
    %10540 = vmatprep.subr.bf16.mxu0 %v9819
    %10541 = vmatpush1.bf16.msra.mxu0 %v9818
    %10542 = vmatprep.subr.bf16.mxu0 0
    %10543 = vmatpush2.bf16.msra.mxu0 0
    %10544 = vmatprep.subr.bf16.mxu0 0
    %10545 = vmatpush2.bf16.msra.mxu0 0
    %10546 = vmatprep.subr.bf16.mxu0 0
    %10547 = vmatpush2.bf16.msra.mxu0 0
    %10548 = vmatprep.subr.bf16.mxu0 0
    %10549 = vmatpush2.bf16.msra.mxu0 0
    %10550 = vmatprep.subr.bf16.mxu0 0
    %10551 = vmatpush2.bf16.msra.mxu0 0
    %10552 = vmatprep.subr.bf16.mxu0 0
    %10553 = vmatpush2.bf16.msra.mxu0 0
    %10554 = vmatprep.subr.bf16.mxu0 0
    %10555 = vmatpush2.bf16.msra.mxu0 0
    %10556 = vmatprep.subr.bf16.mxu0 0
    %10557 = vmatpush2.bf16.msra.mxu0 0
    %10558 = vmatprep.mubr.bf16.mxu0 0
    %10559 = vmatmul.mubr.bf16.gmra.mxu0 %v10237
    %v10560 = vpop.f32.mrf.mxu0
    %v10561 = vadd.f32 %v10520, %v10560
    %v10562 = vpop.f32.mrf.mxu0
    %v10563 = vadd.f32 %v10522, %v10562
    %v10564 = vpop.f32.mrf.mxu0
    %v10565 = vpop.f32.mrf.mxu0
    %10566 = vdwg.mxu0
    %10567 = vmatprep.subr.bf16.mxu0 %v9534
    %10568 = vmatpush1.bf16.msra.mxu0 %v9533
    %10569 = vmatprep.subr.bf16.mxu0 %v9527
    %10570 = vmatpush1.bf16.msra.mxu0 %v9526
    %10571 = vmatprep.subr.bf16.mxu0 %v9520
    %10572 = vmatpush1.bf16.msra.mxu0 %v9519
    %10573 = vmatprep.subr.bf16.mxu0 %v9513
    %10574 = vmatpush1.bf16.msra.mxu0 %v9512
    %10575 = vmatprep.subr.bf16.mxu0 %v9506
    %10576 = vmatpush1.bf16.msra.mxu0 %v9505
    %10577 = vmatprep.subr.bf16.mxu0 %v9499
    %10578 = vmatpush1.bf16.msra.mxu0 %v9498
    %10579 = vmatprep.subr.bf16.mxu0 %v9492
    %10580 = vmatpush1.bf16.msra.mxu0 %v9491
    %10581 = vmatprep.subr.bf16.mxu0 %v9485
    %10582 = vmatpush1.bf16.msra.mxu0 %v9484
    %10583 = vmatprep.subr.bf16.mxu0 %v9590
    %10584 = vmatpush2.bf16.msra.mxu0 %v9589
    %10585 = vmatprep.subr.bf16.mxu0 %v9583
    %10586 = vmatpush2.bf16.msra.mxu0 %v9582
    %10587 = vmatprep.subr.bf16.mxu0 %v9576
    %10588 = vmatpush2.bf16.msra.mxu0 %v9575
    %10589 = vmatprep.subr.bf16.mxu0 %v9569
    %10590 = vmatpush2.bf16.msra.mxu0 %v9568
    %10591 = vmatprep.subr.bf16.mxu0 %v9562
    %10592 = vmatpush2.bf16.msra.mxu0 %v9561
    %10593 = vmatprep.subr.bf16.mxu0 %v9555
    %10594 = vmatpush2.bf16.msra.mxu0 %v9554
    %10595 = vmatprep.subr.bf16.mxu0 %v9548
    %10596 = vmatpush2.bf16.msra.mxu0 %v9547
    %10597 = vmatprep.subr.bf16.mxu0 %v9541
    %10598 = vmatpush2.bf16.msra.mxu0 %v9540
    %10599 = vmatprep.mubr.bf16.mxu0 %v7844
    %10600 = vmatmul.mubr.bf16.gmra.mxu0 %v7843
    %v10601 = vpop.f32.mrf.mxu0
    %v10602 = vadd.f32 %v8290, %v10601
    %v10603 = vpop.f32.mrf.mxu0
    %v10604 = vadd.f32 %v8290, %v10603
    %v10605 = vpop.f32.mrf.mxu0
    %v10606 = vpop.f32.mrf.mxu0
    %10607 = vdwg.mxu0
    %10608 = vmatprep.subr.bf16.mxu0 %v9646
    %10609 = vmatpush1.bf16.msra.mxu0 %v9645
    %10610 = vmatprep.subr.bf16.mxu0 %v9639
    %10611 = vmatpush1.bf16.msra.mxu0 %v9638
    %10612 = vmatprep.subr.bf16.mxu0 %v9632
    %10613 = vmatpush1.bf16.msra.mxu0 %v9631
    %10614 = vmatprep.subr.bf16.mxu0 %v9625
    %10615 = vmatpush1.bf16.msra.mxu0 %v9624
    %10616 = vmatprep.subr.bf16.mxu0 %v9618
    %10617 = vmatpush1.bf16.msra.mxu0 %v9617
    %10618 = vmatprep.subr.bf16.mxu0 %v9611
    %10619 = vmatpush1.bf16.msra.mxu0 %v9610
    %10620 = vmatprep.subr.bf16.mxu0 %v9604
    %10621 = vmatpush1.bf16.msra.mxu0 %v9603
    %10622 = vmatprep.subr.bf16.mxu0 %v9597
    %10623 = vmatpush1.bf16.msra.mxu0 %v9596
    %10624 = vmatprep.subr.bf16.mxu0 %v9702
    %10625 = vmatpush2.bf16.msra.mxu0 %v9701
    %10626 = vmatprep.subr.bf16.mxu0 %v9695
    %10627 = vmatpush2.bf16.msra.mxu0 %v9694
    %10628 = vmatprep.subr.bf16.mxu0 %v9688
    %10629 = vmatpush2.bf16.msra.mxu0 %v9687
    %10630 = vmatprep.subr.bf16.mxu0 %v9681
    %10631 = vmatpush2.bf16.msra.mxu0 %v9680
    %10632 = vmatprep.subr.bf16.mxu0 %v9674
    %10633 = vmatpush2.bf16.msra.mxu0 %v9673
    %10634 = vmatprep.subr.bf16.mxu0 %v9667
    %10635 = vmatpush2.bf16.msra.mxu0 %v9666
    %10636 = vmatprep.subr.bf16.mxu0 %v9660
    %10637 = vmatpush2.bf16.msra.mxu0 %v9659
    %10638 = vmatprep.subr.bf16.mxu0 %v9653
    %10639 = vmatpush2.bf16.msra.mxu0 %v9652
    %10640 = vmatprep.mubr.bf16.mxu0 %v7846
    %10641 = vmatmul.mubr.bf16.gmra.mxu0 %v7845
    %v10642 = vpop.f32.mrf.mxu0
    %v10643 = vadd.f32 %v10602, %v10642
    %v10644 = vpop.f32.mrf.mxu0
    %v10645 = vadd.f32 %v10604, %v10644
    %v10646 = vpop.f32.mrf.mxu0
    %v10647 = vpop.f32.mrf.mxu0
    %10648 = vdwg.mxu0
    %10649 = vmatprep.subr.bf16.mxu0 %v9758
    %10650 = vmatpush1.bf16.msra.mxu0 %v9757
    %10651 = vmatprep.subr.bf16.mxu0 %v9751
    %10652 = vmatpush1.bf16.msra.mxu0 %v9750
    %10653 = vmatprep.subr.bf16.mxu0 %v9744
    %10654 = vmatpush1.bf16.msra.mxu0 %v9743
    %10655 = vmatprep.subr.bf16.mxu0 %v9737
    %10656 = vmatpush1.bf16.msra.mxu0 %v9736
    %10657 = vmatprep.subr.bf16.mxu0 %v9730
    %10658 = vmatpush1.bf16.msra.mxu0 %v9729
    %10659 = vmatprep.subr.bf16.mxu0 %v9723
    %10660 = vmatpush1.bf16.msra.mxu0 %v9722
    %10661 = vmatprep.subr.bf16.mxu0 %v9716
    %10662 = vmatpush1.bf16.msra.mxu0 %v9715
    %10663 = vmatprep.subr.bf16.mxu0 %v9709
    %10664 = vmatpush1.bf16.msra.mxu0 %v9708
    %10665 = vmatprep.subr.bf16.mxu0 %v9814
    %10666 = vmatpush2.bf16.msra.mxu0 %v9813
    %10667 = vmatprep.subr.bf16.mxu0 %v9807
    %10668 = vmatpush2.bf16.msra.mxu0 %v9806
    %10669 = vmatprep.subr.bf16.mxu0 %v9800
    %10670 = vmatpush2.bf16.msra.mxu0 %v9799
    %10671 = vmatprep.subr.bf16.mxu0 %v9793
    %10672 = vmatpush2.bf16.msra.mxu0 %v9792
    %10673 = vmatprep.subr.bf16.mxu0 %v9786
    %10674 = vmatpush2.bf16.msra.mxu0 %v9785
    %10675 = vmatprep.subr.bf16.mxu0 %v9779
    %10676 = vmatpush2.bf16.msra.mxu0 %v9778
    %10677 = vmatprep.subr.bf16.mxu0 %v9772
    %10678 = vmatpush2.bf16.msra.mxu0 %v9771
    %10679 = vmatprep.subr.bf16.mxu0 %v9765
    %10680 = vmatpush2.bf16.msra.mxu0 %v9764
    %10681 = vmatprep.mubr.bf16.mxu0 %v7848
    %10682 = vmatmul.mubr.bf16.gmra.mxu0 %v7847
    %v10683 = vpop.f32.mrf.mxu0
    %v10684 = vadd.f32 %v10643, %v10683
    %v10685 = vpop.f32.mrf.mxu0
    %v10686 = vadd.f32 %v10645, %v10685
    %v10687 = vpop.f32.mrf.mxu0
    %v10688 = vpop.f32.mrf.mxu0
    %10689 = vdwg.mxu0
    %10690 = vmatprep.subr.bf16.mxu0 0
    %10691 = vmatpush1.bf16.msra.mxu0 0
    %10692 = vmatprep.subr.bf16.mxu0 0
    %10693 = vmatpush1.bf16.msra.mxu0 0
    %10694 = vmatprep.subr.bf16.mxu0 %v9856
    %10695 = vmatpush1.bf16.msra.mxu0 %v9855
    %10696 = vmatprep.subr.bf16.mxu0 %v9849
    %10697 = vmatpush1.bf16.msra.mxu0 %v9848
    %10698 = vmatprep.subr.bf16.mxu0 %v9842
    %10699 = vmatpush1.bf16.msra.mxu0 %v9841
    %10700 = vmatprep.subr.bf16.mxu0 %v9835
    %10701 = vmatpush1.bf16.msra.mxu0 %v9834
    %10702 = vmatprep.subr.bf16.mxu0 %v9828
    %10703 = vmatpush1.bf16.msra.mxu0 %v9827
    %10704 = vmatprep.subr.bf16.mxu0 %v9821
    %10705 = vmatpush1.bf16.msra.mxu0 %v9820
    %10706 = vmatprep.subr.bf16.mxu0 0
    %10707 = vmatpush2.bf16.msra.mxu0 0
    %10708 = vmatprep.subr.bf16.mxu0 0
    %10709 = vmatpush2.bf16.msra.mxu0 0
    %10710 = vmatprep.subr.bf16.mxu0 0
    %10711 = vmatpush2.bf16.msra.mxu0 0
    %10712 = vmatprep.subr.bf16.mxu0 0
    %10713 = vmatpush2.bf16.msra.mxu0 0
    %10714 = vmatprep.subr.bf16.mxu0 0
    %10715 = vmatpush2.bf16.msra.mxu0 0
    %10716 = vmatprep.subr.bf16.mxu0 0
    %10717 = vmatpush2.bf16.msra.mxu0 0
    %10718 = vmatprep.subr.bf16.mxu0 0
    %10719 = vmatpush2.bf16.msra.mxu0 0
    %10720 = vmatprep.subr.bf16.mxu0 0
    %10721 = vmatpush2.bf16.msra.mxu0 0
    %10722 = vmatprep.mubr.bf16.mxu0 0
    %10723 = vmatmul.mubr.bf16.gmra.mxu0 %v10237
    %v10724 = vpop.f32.mrf.mxu0
    %v10725 = vadd.f32 %v10684, %v10724
    %v10726 = vpop.f32.mrf.mxu0
    %v10727 = vadd.f32 %v10686, %v10726
    %v10728 = vpop.f32.mrf.mxu0
    %v10729 = vpop.f32.mrf.mxu0
    %10730 = vdwg.mxu0
    %10731 = vmatprep.subr.bf16.mxu0 0
    %10732 = vmatpush1.bf16.msra.mxu0 %v9535
    %10733 = vmatprep.subr.bf16.mxu0 0
    %10734 = vmatpush1.bf16.msra.mxu0 %v9528
    %10735 = vmatprep.subr.bf16.mxu0 0
    %10736 = vmatpush1.bf16.msra.mxu0 %v9521
    %10737 = vmatprep.subr.bf16.mxu0 0
    %10738 = vmatpush1.bf16.msra.mxu0 %v9514
    %10739 = vmatprep.subr.bf16.mxu0 0
    %10740 = vmatpush1.bf16.msra.mxu0 %v9507
    %10741 = vmatprep.subr.bf16.mxu0 0
    %10742 = vmatpush1.bf16.msra.mxu0 %v9500
    %10743 = vmatprep.subr.bf16.mxu0 0
    %10744 = vmatpush1.bf16.msra.mxu0 %v9493
    %10745 = vmatprep.subr.bf16.mxu0 0
    %10746 = vmatpush1.bf16.msra.mxu0 %v9486
    %10747 = vmatprep.subr.bf16.mxu0 0
    %10748 = vmatpush2.bf16.msra.mxu0 %v9591
    %10749 = vmatprep.subr.bf16.mxu0 0
    %10750 = vmatpush2.bf16.msra.mxu0 %v9584
    %10751 = vmatprep.subr.bf16.mxu0 0
    %10752 = vmatpush2.bf16.msra.mxu0 %v9577
    %10753 = vmatprep.subr.bf16.mxu0 0
    %10754 = vmatpush2.bf16.msra.mxu0 %v9570
    %10755 = vmatprep.subr.bf16.mxu0 0
    %10756 = vmatpush2.bf16.msra.mxu0 %v9563
    %10757 = vmatprep.subr.bf16.mxu0 0
    %10758 = vmatpush2.bf16.msra.mxu0 %v9556
    %10759 = vmatprep.subr.bf16.mxu0 0
    %10760 = vmatpush2.bf16.msra.mxu0 %v9549
    %10761 = vmatprep.subr.bf16.mxu0 0
    %10762 = vmatpush2.bf16.msra.mxu0 %v9542
    %10763 = vmatprep.mubr.bf16.mxu0 %v7844
    %10764 = vmatmul.mubr.bf16.gmra.mxu0 %v7843
    %v10765 = vpop.f32.mrf.mxu0
    %v10766 = vadd.f32 %v8290, %v10765
    %v10767 = vpop.f32.mrf.mxu0
    %v10768 = vpop.f32.mrf.mxu0
    %v10769 = vpop.f32.mrf.mxu0
    %10770 = vdwg.mxu0
    %10771 = vmatprep.subr.bf16.mxu0 0
    %10772 = vmatpush1.bf16.msra.mxu0 %v9647
    %10773 = vmatprep.subr.bf16.mxu0 0
    %10774 = vmatpush1.bf16.msra.mxu0 %v9640
    %10775 = vmatprep.subr.bf16.mxu0 0
    %10776 = vmatpush1.bf16.msra.mxu0 %v9633
    %10777 = vmatprep.subr.bf16.mxu0 0
    %10778 = vmatpush1.bf16.msra.mxu0 %v9626
    %10779 = vmatprep.subr.bf16.mxu0 0
    %10780 = vmatpush1.bf16.msra.mxu0 %v9619
    %10781 = vmatprep.subr.bf16.mxu0 0
    %10782 = vmatpush1.bf16.msra.mxu0 %v9612
    %10783 = vmatprep.subr.bf16.mxu0 0
    %10784 = vmatpush1.bf16.msra.mxu0 %v9605
    %10785 = vmatprep.subr.bf16.mxu0 0
    %10786 = vmatpush1.bf16.msra.mxu0 %v9598
    %10787 = vmatprep.subr.bf16.mxu0 0
    %10788 = vmatpush2.bf16.msra.mxu0 %v9703
    %10789 = vmatprep.subr.bf16.mxu0 0
    %10790 = vmatpush2.bf16.msra.mxu0 %v9696
    %10791 = vmatprep.subr.bf16.mxu0 0
    %10792 = vmatpush2.bf16.msra.mxu0 %v9689
    %10793 = vmatprep.subr.bf16.mxu0 0
    %10794 = vmatpush2.bf16.msra.mxu0 %v9682
    %10795 = vmatprep.subr.bf16.mxu0 0
    %10796 = vmatpush2.bf16.msra.mxu0 %v9675
    %10797 = vmatprep.subr.bf16.mxu0 0
    %10798 = vmatpush2.bf16.msra.mxu0 %v9668
    %10799 = vmatprep.subr.bf16.mxu0 0
    %10800 = vmatpush2.bf16.msra.mxu0 %v9661
    %10801 = vmatprep.subr.bf16.mxu0 0
    %10802 = vmatpush2.bf16.msra.mxu0 %v9654
    %10803 = vmatprep.mubr.bf16.mxu0 %v7846
    %10804 = vmatmul.mubr.bf16.gmra.mxu0 %v7845
    %v10805 = vpop.f32.mrf.mxu0
    %v10806 = vadd.f32 %v10766, %v10805
    %v10807 = vpop.f32.mrf.mxu0
    %v10808 = vpop.f32.mrf.mxu0
    %v10809 = vpop.f32.mrf.mxu0
    %10810 = vdwg.mxu0
    %10811 = vmatprep.subr.bf16.mxu0 0
    %10812 = vmatpush1.bf16.msra.mxu0 %v9759
    %10813 = vmatprep.subr.bf16.mxu0 0
    %10814 = vmatpush1.bf16.msra.mxu0 %v9752
    %10815 = vmatprep.subr.bf16.mxu0 0
    %10816 = vmatpush1.bf16.msra.mxu0 %v9745
    %10817 = vmatprep.subr.bf16.mxu0 0
    %10818 = vmatpush1.bf16.msra.mxu0 %v9738
    %10819 = vmatprep.subr.bf16.mxu0 0
    %10820 = vmatpush1.bf16.msra.mxu0 %v9731
    %10821 = vmatprep.subr.bf16.mxu0 0
    %10822 = vmatpush1.bf16.msra.mxu0 %v9724
    %10823 = vmatprep.subr.bf16.mxu0 0
    %10824 = vmatpush1.bf16.msra.mxu0 %v9717
    %10825 = vmatprep.subr.bf16.mxu0 0
    %10826 = vmatpush1.bf16.msra.mxu0 %v9710
    %10827 = vmatprep.subr.bf16.mxu0 0
    %10828 = vmatpush2.bf16.msra.mxu0 %v9815
    %10829 = vmatprep.subr.bf16.mxu0 0
    %10830 = vmatpush2.bf16.msra.mxu0 %v9808
    %10831 = vmatprep.subr.bf16.mxu0 0
    %10832 = vmatpush2.bf16.msra.mxu0 %v9801
    %10833 = vmatprep.subr.bf16.mxu0 0
    %10834 = vmatpush2.bf16.msra.mxu0 %v9794
    %10835 = vmatprep.subr.bf16.mxu0 0
    %10836 = vmatpush2.bf16.msra.mxu0 %v9787
    %10837 = vmatprep.subr.bf16.mxu0 0
    %10838 = vmatpush2.bf16.msra.mxu0 %v9780
    %10839 = vmatprep.subr.bf16.mxu0 0
    %10840 = vmatpush2.bf16.msra.mxu0 %v9773
    %10841 = vmatprep.subr.bf16.mxu0 0
    %10842 = vmatpush2.bf16.msra.mxu0 %v9766
    %10843 = vmatprep.mubr.bf16.mxu0 %v7848
    %10844 = vmatmul.mubr.bf16.gmra.mxu0 %v7847
    %v10845 = vpop.f32.mrf.mxu0
    %v10846 = vadd.f32 %v10806, %v10845
    %v10847 = vpop.f32.mrf.mxu0
    %v10848 = vpop.f32.mrf.mxu0
    %v10849 = vpop.f32.mrf.mxu0
    %10850 = vdwg.mxu0
    %10851 = vmatprep.subr.bf16.mxu0 0
    %10852 = vmatpush1.bf16.msra.mxu0 0
    %10853 = vmatprep.subr.bf16.mxu0 0
    %10854 = vmatpush1.bf16.msra.mxu0 0
    %10855 = vmatprep.subr.bf16.mxu0 0
    %10856 = vmatpush1.bf16.msra.mxu0 %v9857
    %10857 = vmatprep.subr.bf16.mxu0 0
    %10858 = vmatpush1.bf16.msra.mxu0 %v9850
    %10859 = vmatprep.subr.bf16.mxu0 0
    %10860 = vmatpush1.bf16.msra.mxu0 %v9843
    %10861 = vmatprep.subr.bf16.mxu0 0
    %10862 = vmatpush1.bf16.msra.mxu0 %v9836
    %10863 = vmatprep.subr.bf16.mxu0 0
    %10864 = vmatpush1.bf16.msra.mxu0 %v9829
    %10865 = vmatprep.subr.bf16.mxu0 0
    %10866 = vmatpush1.bf16.msra.mxu0 %v9822
    %10867 = vmatprep.subr.bf16.mxu0 0
    %10868 = vmatpush2.bf16.msra.mxu0 0
    %10869 = vmatprep.subr.bf16.mxu0 0
    %10870 = vmatpush2.bf16.msra.mxu0 0
    %10871 = vmatprep.subr.bf16.mxu0 0
    %10872 = vmatpush2.bf16.msra.mxu0 0
    %10873 = vmatprep.subr.bf16.mxu0 0
    %10874 = vmatpush2.bf16.msra.mxu0 0
    %10875 = vmatprep.subr.bf16.mxu0 0
    %10876 = vmatpush2.bf16.msra.mxu0 0
    %10877 = vmatprep.subr.bf16.mxu0 0
    %10878 = vmatpush2.bf16.msra.mxu0 0
    %10879 = vmatprep.subr.bf16.mxu0 0
    %10880 = vmatpush2.bf16.msra.mxu0 0
    %10881 = vmatprep.subr.bf16.mxu0 0
    %10882 = vmatpush2.bf16.msra.mxu0 0
    %10883 = vmatprep.mubr.bf16.mxu0 0
    %10884 = vmatmul.mubr.bf16.gmra.mxu0 %v10237
    %v10885 = vpop.f32.mrf.mxu0
    %v10886 = vadd.f32 %v10846, %v10885
    %v10887 = vpop.f32.mrf.mxu0
    %v10888 = vpop.f32.mrf.mxu0
    %v10889 = vpop.f32.mrf.mxu0
    %10890 = vdwg.mxu0
    %v10891 = vmul.f32 %v10397, 0.5
    %v10892 = vmul.f32 %v10399, 0.5
    %v10893 = vmul.f32 %v10561, 0.5
    %v10894 = vmul.f32 %v10563, 0.5
    %v10895 = vmul.f32 %v10725, 0.5
    %v10896 = vmul.f32 %v10727, 0.5
    %v10897 = vmul.f32 %v10886, 0.5
    %v10898 = vtanh.pop %v10891
    %v10899 = vtanh.pop %v10892
    %v10900 = vtanh.pop %v10893
    %v10901 = vtanh.pop %v10894
    %v10902 = vtanh.pop %v10895
    %v10903 = vtanh.pop %v10896
    %v10904 = vtanh.pop %v10897
    %v10905 = vadd.f32 %v10898, 1.0
    %v10906 = vadd.f32 %v10899, 1.0
    %v10907 = vadd.f32 %v10900, 1.0
    %v10908 = vadd.f32 %v10901, 1.0
    %v10909 = vadd.f32 %v10902, 1.0
    %v10910 = vadd.f32 %v10903, 1.0
    %v10911 = vadd.f32 %v10904, 1.0
    %v10912 = vmul.f32 %v10905, 0.5
    %v10913 = vmul.f32 %v10906, 0.5
    %v10914 = vmul.f32 %v10907, 0.5
    %v10915 = vmul.f32 %v10908, 0.5
    %v10916 = vmul.f32 %v10909, 0.5
    %v10917 = vmul.f32 %v10910, 0.5
    %v10918 = vmul.f32 %v10911, 0.5
    %v10926 = vcombine.low %v10912, %v10913
    %v10927 = vcombine.low %v10914, %v10915
    %v10929 = vunpack.c.l.s4 1983009808
    %v10930 = vunpack.c.0.s8 %v10929
    %v10931 = vlaneseq
    %v10932 = vshrl.u32 %v10931, 7
    %v10933 = vsub.s32 %v10930, %v10932
    %v10934 = vrot.slane %v10926, %v10933
    %v10936 = vunpack.c.l.s4 1983009808
    %v10937 = vunpack.c.0.s8 %v10936
    %v10938 = vlaneseq
    %v10939 = vshrl.u32 %v10938, 7
    %v10940 = vsub.s32 %v10937, %v10939
    %v10941 = vrot.slane %v10927, %v10940
    %v10942 = vcombine.low %v10934, %v10941
    %v10943 = vcombine.low %v10916, %v10917
    %v10945 = vunpack.c.l.s4 1983009808
    %v10946 = vunpack.c.0.s8 %v10945
    %v10947 = vlaneseq
    %v10948 = vshrl.u32 %v10947, 7
    %v10949 = vsub.s32 %v10946, %v10948
    %v10950 = vrot.slane %v10943, %v10949
    %v10952 = vunpack.c.l.s4 1983009808
    %v10953 = vunpack.c.0.s8 %v10952
    %v10954 = vlaneseq
    %v10955 = vshrl.u32 %v10954, 7
    %v10956 = vsub.s32 %v10953, %v10955
    %v10957 = vrot.slane %v10918, %v10956
    %v10958 = vcombine.low %v10950, %v10957
    %10961 = vst [vmem:[%s21] sm:$0xff] %v10942
    %vm10962 = vcmask 1043458
    %vm10963 = vmor %vm10962, %vm2979
    %vm10964 = vcmask 128004
    %vm10965 = vmor %vm10964, %vm10963
    %10966 = vst.msk [vmem:[%s21 + $0x8] sm:$0x3f] %vm10965, %v10958
    // Predicated region
    $region86: #{autoencoder_forward.1} parent=1 // pred_check
      _
    $region87: #{autoencoder_forward.1} parent=1 // pred_check_branch
      %10968 = sbr.rel (0) target = $region89
    $region88: #{autoencoder_forward.1} parent=1 // pred_region
      _
    $region89: #{autoencoder_forward.1} parent=1 // pred_fallthru
      _
    // Predicated region
    $region90: #{autoencoder_forward.1} parent=1 // pred_check
      _
    $region91: #{autoencoder_forward.1} parent=1 // pred_check_branch
      %10970 = sbr.rel (0) target = $region93
    $region92: #{autoencoder_forward.1} parent=1 // pred_region
      %s10972 = ssub.s32 32, 32
      %10973 = vsyncadd [#allocation4], %s10972
      %s10975 = sshll.u32 [#allocation3], 4
      %s10976 = int_to_ptr.vmem [resolvable:$true] %s10975
      %10978 = dma.vmem_to_hbm [thread:$0]  %s10976, 32, %s22, [#allocation4]
    $region93: #{autoencoder_forward.1} parent=1 // pred_fallthru
      _
    // Predicated region
    $region94: #{autoencoder_forward.1} parent=1 // pred_check
      _
    $region95: #{autoencoder_forward.1} parent=1 // pred_check_branch
      %10980 = sbr.rel (0) target = $region97
    $region96: #{autoencoder_forward.1} parent=1 // pred_region
      _
    $region97: #{autoencoder_forward.1} parent=1 // pred_fallthru
      _
    // Predicated region
    $region98: #{autoencoder_forward.1} parent=1 // pred_check
      _
    $region99: #{autoencoder_forward.1} parent=1 // pred_check_branch
      %10982 = sbr.rel (0) target = $region101
    $region100: #{autoencoder_forward.1} parent=1 // pred_region
      _
    $region101: #{autoencoder_forward.1} parent=1 // pred_fallthru
      _
    // Predicated region
    $region102: #{autoencoder_forward.1} parent=1 // pred_check
      _
    $region103: #{autoencoder_forward.1} parent=1 // pred_check_branch
      %10984 = sbr.rel (0) target = $region105
    $region104: #{autoencoder_forward.1} parent=1 // pred_region
      %10985 = dma.done [#allocation4], 32
    $region105: #{autoencoder_forward.1} parent=1 // pred_fallthru
      _
    // Predicated region
    $region106: #{autoencoder_forward.1} parent=1 // pred_check
      _
    $region107: #{autoencoder_forward.1} parent=1 // pred_check_branch
      %10987 = sbr.rel (0) target = $region109
    $region108: #{autoencoder_forward.1} parent=1 // pred_region
      _
    $region109: #{autoencoder_forward.1} parent=1 // pred_fallthru
      _
    %10988 = vsyncpa [#allocation4], 1

</llo_original>
